<compile_context>
chip_gen: v7x
topology: tpu7x:2x2x1
jax: 0.10.0
libtpu: 0.0.40
codegen_flags: <defaults>
</compile_context>

<pallas_src>
import functools
import numpy as np
import jax
import jax.numpy as jnp
from jax import lax
from jax.experimental import pallas as pl
from jax.experimental.pallas import tpu as pltpu

# ---------------- config (small, consistent with the module) ----------------
DIM = 32            # dim (channels)
NUM_HEADS = 4
WINDOW_SIZE = 4     # window_size
DEPTH = 2           # BasicLayer depth: block 0 = W-MSA (shift 0), block 1 = SW-MSA
MLP_RATIO = 4.0
H = W = 8           # feature-map resolution (H, W passed to BasicLayer.forward)
B = 2               # batch
LN_EPS = 1e-5       # nn.LayerNorm default eps
HEAD_DIM = DIM // NUM_HEADS
MLP_HID = int(DIM * MLP_RATIO)
N_TOK = WINDOW_SIZE * WINDOW_SIZE
L_TOK = H * W
NEG_MASK = -1e9     # cross-window mask (exp underflows to exactly 0 after row-max sub)
SHIFTS = tuple(0 if i % 2 == 0 else WINDOW_SIZE // 2 for i in range(DEPTH))
_SQRT_2_OVER_PI = 0.7978845608028654

# TODO(synk): the fused kernel assumes H % window_size == 0 and W % window_size == 0
# (true for this config); general shapes need the pad/unpad path done in glue.


# ------------------------------ Pallas kernel --------------------------------
def basic_layer_kernel(x_ref, bias_ref, ln1g_ref, ln1b_ref,
                       wqkv_ref, bqkv_ref, wproj_ref, bproj_ref,
                       ln2g_ref, ln2b_ref, w1_ref, b1_ref, w2_ref, b2_ref,
                       o_ref, *, depth, num_heads, head_dim, tokens_per_batch):
    """One grid step = `bsz` batch elements, all `depth` Swin blocks, all windows."""
    bf16 = jnp.bfloat16
    f32 = jnp.float32
    C = num_heads * head_dim
    hd = head_dim
    L = tokens_per_batch

    xb = x_ref[...]                               # (bsz, L, C) f32
    bsz = xb.shape[0]
    x = xb.reshape(bsz * L, C)                    # token-flattened residual stream

    def layer_norm(v, g, b):                      # f32 throughout (v5e friendly)
        mu = jnp.mean(v, axis=-1, keepdims=True)
        vc = v - mu
        var = jnp.mean(vc * vc, axis=-1, keepdims=True)
        return vc * lax.rsqrt(var + LN_EPS) * g + b

    def dot_nt(a, b):                             # a @ b.T, bf16 in, f32 accumulate
        return lax.dot_general(a, b, (((1,), (1,)), ((), ())),
                               preferred_element_type=f32)

    for d in range(depth):                        # static unroll over blocks
        # ---- LN1 + single wide QKV matmul (qk scale folded into Q columns) ----
        xn = layer_norm(x, ln1g_ref[d], ln1b_ref[d])                         # (M, C)
        qkv = jnp.dot(xn.astype(bf16), wqkv_ref[d],
                      preferred_element_type=f32) + bqkv_ref[d]              # (M, 3C)

        # ---- attention, per batch element / per head (caps live vregs) ----
        att_rows = []
        for bb in range(bsz):
            qkv_b = qkv[bb * L:(bb + 1) * L]                                 # (L, 3C)
            o_heads = []
            for h in range(num_heads):
                q = qkv_b[:, h * hd:(h + 1) * hd]
                k = qkv_b[:, C + h * hd:C + (h + 1) * hd]
                v = qkv_b[:, 2 * C + h * hd:2 * C + (h + 1) * hd]
                s = dot_nt(q.astype(bf16), k.astype(bf16))                   # (L, L)
                # rel-pos bias + shift mask + cross-window -1e9, in token order
                s = s + bias_ref[d * num_heads + h]
                s = s - jnp.max(s, axis=-1, keepdims=True)
                p = jnp.exp(s)                                               # EUP
                p = p * pl.reciprocal(jnp.sum(p, axis=-1, keepdims=True),
                                      approx=True)
                o_heads.append(jnp.dot(p.astype(bf16), v.astype(bf16),
                                       preferred_element_type=f32))          # (L, hd)
            att_rows.append(jnp.concatenate(o_heads, axis=-1))               # (L, C)
        oh = jnp.concatenate(att_rows, axis=0)                               # (M, C)

        # ---- output projection (single K=32 matmul) + residual 1 ----
        attn_out = jnp.dot(oh.astype(bf16), wproj_ref[d],
                           preferred_element_type=f32) + bproj_ref[d]
        x = x + attn_out

        # ---- LN2 + MLP + residual 2 ----
        xn2 = layer_norm(x, ln2g_ref[d], ln2b_ref[d])
        hmid = jnp.dot(xn2.astype(bf16), w1_ref[d],
                       preferred_element_type=f32) + b1_ref[d]               # (M, HID)
        # tanh-approx GELU (EUP tanh); within test tolerance of exact erf GELU
        hmid = 0.5 * hmid * (1.0 + jnp.tanh(
            _SQRT_2_OVER_PI * (hmid + 0.044715 * hmid * hmid * hmid)))
        y = jnp.dot(hmid.astype(bf16), w2_ref[d],
                    preferred_element_type=f32) + b2_ref[d]                  # (M, C)
        x = x + y

    o_ref[...] = x.reshape(bsz, L, C)


# ------------------------------ kernel wrapper --------------------------------
def _num_tensorcores():
    """Best-effort TensorCore count per device (v7x = 2, earlier gens = 1)."""
    try:
        kind = jax.devices()[0].device_kind.lower()
    except Exception:
        return 1
    return 2 if ('v7' in kind or '7x' in kind) else 1


def basic_layer_forward(x, pk, *, batch_per_step=None):
    Bb, Lt, C = x.shape
    if batch_per_step is None:
        cores = _num_tensorcores()
        # single-TC (v5e/v6e): fold the whole batch into one grid step;
        # multi-TC (v7x): one batch element per grid step so both cores work.
        batch_per_step = Bb if cores < 2 else max(1, Bb // cores)
        while Bb % batch_per_step:
            batch_per_step -= 1
    # TODO(synk): for B=1 on v7x a window/token split would be needed to use core 1.
    n_steps = Bb // batch_per_step

    kern = functools.partial(basic_layer_kernel, depth=DEPTH,
                             num_heads=NUM_HEADS, head_dim=HEAD_DIM,
                             tokens_per_batch=Lt)

    def full(arr):  # whole array resident in VMEM, constant across the grid
        nd = arr.ndim
        return pl.BlockSpec(arr.shape, lambda b, _nd=nd: (0,) * _nd)

    return pl.pallas_call(
        kern,
        out_shape=jax.ShapeDtypeStruct((Bb, Lt, C), jnp.float32),
        grid=(n_steps,),
        in_specs=[pl.BlockSpec((batch_per_step, Lt, C), lambda b: (b, 0, 0)),
                  full(pk['bias']),
                  full(pk['ln1_g']), full(pk['ln1_b']),
                  full(pk['wqkv']), full(pk['bqkv']),
                  full(pk['wproj']), full(pk['bproj']),
                  full(pk['ln2_g']), full(pk['ln2_b']),
                  full(pk['w1']), full(pk['b1']), full(pk['w2']), full(pk['b2'])],
        out_specs=pl.BlockSpec((batch_per_step, Lt, C), lambda b: (b, 0, 0)),
        compiler_params=pltpu.CompilerParams(dimension_semantics=("parallel",)),
    )(x, pk['bias'], pk['ln1_g'], pk['ln1_b'], pk['wqkv'], pk['bqkv'],
      pk['wproj'], pk['bproj'], pk['ln2_g'], pk['ln2_b'],
      pk['w1'], pk['b1'], pk['w2'], pk['b2'])


# ------------------------------ host-side prep --------------------------------
def window_partition(x, ws):                       # works for np and jnp arrays
    Bb, Hh, Ww, Cc = x.shape
    x = x.reshape(Bb, Hh // ws, ws, Ww // ws, ws, Cc)
    return x.transpose(0, 1, 3, 2, 4, 5).reshape(-1, ws, ws, Cc)


def window_reverse(windows, ws, Hh, Ww):
    Bb = windows.shape[0] // (Hh * Ww // ws // ws)
    x = windows.reshape(Bb, Hh // ws, Ww // ws, ws, ws, -1)
    return x.transpose(0, 1, 3, 2, 4, 5).reshape(Bb, Hh, Ww, -1)


def relative_position_index(ws):
    coords = np.stack(np.meshgrid(np.arange(ws), np.arange(ws), indexing='ij'))
    coords_flatten = coords.reshape(2, -1)
    rel = coords_flatten[:, :, None] - coords_flatten[:, None, :]
    rel = rel.transpose(1, 2, 0).copy()
    rel[:, :, 0] += ws - 1
    rel[:, :, 1] += ws - 1
    rel[:, :, 0] *= 2 * ws - 1
    return rel.sum(-1)                              # (N, N) int


REL_IDX = relative_position_index(WINDOW_SIZE)


def create_attn_mask_np(Hp, Wp, ws, shift):
    img_mask = np.zeros((1, Hp, Wp, 1), np.float32)
    h_slices = (slice(0, -ws), slice(-ws, -shift), slice(-shift, None))
    w_slices = (slice(0, -ws), slice(-ws, -shift), slice(-shift, None))
    cnt = 0
    for hs in h_slices:
        for wsl in w_slices:
            img_mask[:, hs, wsl, :] = cnt
            cnt += 1
    mw = window_partition(img_mask, ws).reshape(-1, ws * ws)
    attn_mask = mw[:, None, :] - mw[:, :, None]
    return np.where(attn_mask != 0, -100.0, 0.0).astype(np.float32)   # (nW, N, N)


def make_window_perm(Hh, Ww, ws, shift):
    """perm[r] = original flat token index landing at window-ordered row r."""
    idx = np.arange(Hh * Ww, dtype=np.int64).reshape(Hh, Ww)
    rolled = np.roll(idx, (-shift, -shift), axis=(0, 1))
    return rolled.reshape(Hh // ws, ws, Ww // ws, ws).transpose(0, 2, 1, 3).reshape(-1)


def make_attn_bias(Hh, Ww, ws, shift, rel_bias):
    """Rel-pos bias + shift mask + cross-window mask as one (nH, L, L) tensor
    in WINDOW order (rows/cols are window-partitioned token positions)."""
    Lh = Hh * Ww
    N = ws * ws
    nW = Lh // N
    win_id = np.arange(Lh) // N
    cross = np.where(win_id[:, None] == win_id[None, :], 0.0, NEG_MASK).astype(np.float32)
    bias = np.zeros((NUM_HEADS, Lh, Lh), np.float32) + cross[None]
    smask = (create_attn_mask_np(Hh, Ww, ws, shift) if shift > 0
             else np.zeros((nW, N, N), np.float32))
    for w in range(nW):
        sl = slice(w * N, (w + 1) * N)
        bias[:, sl, sl] += rel_bias + smask[w][None]
    return bias


def pack_params(blocks, shifts):
    """Depth-stacked params: bias conjugated into original token order,
    qk scale folded into Wq/bq, matmul weights pre-cast to bf16."""
    scale = HEAD_DIM ** (-0.5)
    bias_l, wqkv_l, bqkv_l = [], [], []

    for d, blk in enumerate(blocks):
        perm = make_window_perm(H, W, WINDOW_SIZE, shifts[d])
        inv = np.argsort(perm)                               # inv[i] = window-row of token i

        table = np.asarray(blk['table'])
        rel_bias = table[REL_IDX.reshape(-1)] \
            .reshape(N_TOK, N_TOK, NUM_HEADS).transpose(2, 0, 1)             # (nH, N, N)
        bias_win = make_attn_bias(H, W, WINDOW_SIZE, shifts[d], rel_bias)     # window order
        # conjugate with the permutation: bias'[i, j] = bias_win[inv[i], inv[j]]
        bias_l.append(bias_win[:, inv][:, :, inv])                            # token order

        wq = np.asarray(blk['wqkv']).astype(np.float32).copy()               # (C, 3C)
        bq = np.asarray(blk['bqkv']).astype(np.float32).copy()               # (3C,)
        wq[:, :DIM] *= scale                                                  # fold qk scale
        bq[:DIM] *= scale
        wqkv_l.append(wq)
        bqkv_l.append(bq)

    stk = lambda name: jnp.stack([jnp.asarray(blk[name]) for blk in blocks]).astype(jnp.float32)
    return dict(
        bias=jnp.asarray(np.concatenate(bias_l, axis=0), jnp.float32),        # (depth*nH, L, L)
        wqkv=jnp.asarray(np.stack(wqkv_l), jnp.bfloat16),                     # (depth, C, 3C)
        bqkv=jnp.asarray(np.stack(bqkv_l), jnp.float32).reshape(DEPTH, 1, 3 * DIM),
        wproj=stk('wproj').astype(jnp.bfloat16),                              # (depth, C, C)
        bproj=stk('bproj').reshape(DEPTH, 1, DIM),
        ln1_g=stk('ln1_g').reshape(DEPTH, 1, DIM), ln1_b=stk('ln1_b').reshape(DEPTH, 1, DIM),
        ln2_g=stk('ln2_g').reshape(DEPTH, 1, DIM), ln2_b=stk('ln2_b').reshape(DEPTH, 1, DIM),
        w1=stk('w1').astype(jnp.bfloat16), b1=stk('b1').reshape(DEPTH, 1, MLP_HID),
        w2=stk('w2').astype(jnp.bfloat16), b2=stk('b2').reshape(DEPTH, 1, DIM),
    )


# ------------------------------ pure-JAX reference ----------------------------
def _reference_block(x, p, shift, mask):
    Bb, Lt, C = x.shape
    ws, nH, hd = WINDOW_SIZE, NUM_HEADS, HEAD_DIM
    hi = lax.Precision.HIGHEST

    def ln(v, g, b):
        mu = v.mean(-1, keepdims=True)
        var = ((v - mu) ** 2).mean(-1, keepdims=True)
        return (v - mu) / jnp.sqrt(var + LN_EPS) * g + b

    shortcut = x
    xn = ln(x, p['ln1_g'], p['ln1_b']).reshape(Bb, H, W, C)
    if shift > 0:
        xn = jnp.roll(xn, (-shift, -shift), axis=(1, 2))
    xw = window_partition(xn, ws).reshape(-1, ws * ws, C)
    nWB, N, _ = xw.shape
    qkv = jnp.einsum('bnc,cd->bnd', xw, p['wqkv'], precision=hi) + p['bqkv']
    qkv = qkv.reshape(nWB, N, 3, nH, hd).transpose(2, 0, 3, 1, 4)
    q, k, v = qkv[0] * (hd ** -0.5), qkv[1], qkv[2]
    attn = jnp.einsum('bhnd,bhmd->bhnm', q, k, precision=hi)
    rel_bias = p['table'][REL_IDX.reshape(-1)].reshape(N, N, nH).transpose(2, 0, 1)
    attn = attn + rel_bias[None]
    if mask is not None:
        nW = mask.shape[0]
        attn = attn.reshape(Bb, nW, nH, N, N) + mask[None, :, None]
        attn = attn.reshape(nWB, nH, N, N)
    attn = jax.nn.softmax(attn, axis=-1)
    o = jnp.einsum('bhnm,bhmd->bhnd', attn, v, precision=hi)
    o = o.transpose(0, 2, 1, 3).reshape(nWB, N, C)
    o = jnp.einsum('bnc,cd->bnd', o, p['wproj'], precision=hi) + p['bproj']
    sx = window_reverse(o.reshape(-1, ws, ws, C), ws, H, W)
    if shift > 0:
        sx = jnp.roll(sx, (shift, shift), axis=(1, 2))
    x1 = shortcut + sx.reshape(Bb, Lt, C)
    xn2 = ln(x1, p['ln2_g'], p['ln2_b'])
    hmid = jnp.einsum('blc,ch->blh', xn2, p['w1'], precision=hi) + p['b1']
    hmid = jax.nn.gelu(hmid, approximate=False)
    y = jnp.einsum('blh,hc->blc', hmid, p['w2'], precision=hi) + p['b2']
    return x1 + y


def reference_forward(x, blocks, shifts):
    mask = jnp.asarray(create_attn_mask_np(H, W, WINDOW_SIZE, WINDOW_SIZE // 2))
    for d, blk in enumerate(blocks):
        x = _reference_block(x, blk, shifts[d], mask if shifts[d] > 0 else None)
    return x


# ------------------------------ main ------------------------------------------
if __name__ == "__main__":
    root = jax.random.PRNGKey(0)
    kx, kp = jax.random.split(root)

    def nrm(k, shape, std=0.02):
        return (std * jax.random.normal(k, shape)).astype(jnp.float32)

    blocks = []
    pkeys = jax.random.split(kp, DEPTH)
    for d in range(DEPTH):
        ks = jax.random.split(pkeys[d], 9)
        blocks.append(dict(
            ln1_g=jnp.ones((DIM,), jnp.float32), ln1_b=jnp.zeros((DIM,), jnp.float32),
            ln2_g=jnp.ones((DIM,), jnp.float32), ln2_b=jnp.zeros((DIM,), jnp.float32),
            wqkv=nrm(ks[0], (DIM, 3 * DIM)), bqkv=nrm(ks[1], (3 * DIM,)),
            wproj=nrm(ks[2], (DIM, DIM)), bproj=nrm(ks[3], (DIM,)),
            w1=nrm(ks[4], (DIM, MLP_HID)), b1=nrm(ks[5], (MLP_HID,)),
            w2=nrm(ks[6], (MLP_HID, DIM)), b2=nrm(ks[7], (DIM,)),
            table=nrm(ks[8], ((2 * WINDOW_SIZE - 1) ** 2, NUM_HEADS)),
        ))

    x = jax.random.normal(kx, (B, H * W, DIM), jnp.float32)
    packed = pack_params(blocks, SHIFTS)

    out = basic_layer_forward(x, packed)
    out = jax.block_until_ready(out)
    assert out.shape == (B, H * W, DIM)

    ref = jax.block_until_ready(reference_forward(x, blocks, SHIFTS))
    np.testing.assert_allclose(np.asarray(out), np.asarray(ref), atol=2e-2, rtol=2e-2)

    print("KERNEL_OK")
</pallas_src>

<mosaic_0001>
module attributes {stable_mosaic.version = 11 : i64} {
  func.func @basic_layer_kernel(%arg0: i32, %arg1: memref<2x64x32xf32, #tpu.memory_space<vmem>>, %arg2: memref<8x64x64xf32, #tpu.memory_space<vmem>>, %arg3: memref<2x1x32xf32, #tpu.memory_space<vmem>>, %arg4: memref<2x1x32xf32, #tpu.memory_space<vmem>>, %arg5: memref<2x32x96xbf16, #tpu.memory_space<vmem>>, %arg6: memref<2x1x96xf32, #tpu.memory_space<vmem>>, %arg7: memref<2x32x32xbf16, #tpu.memory_space<vmem>>, %arg8: memref<2x1x32xf32, #tpu.memory_space<vmem>>, %arg9: memref<2x1x32xf32, #tpu.memory_space<vmem>>, %arg10: memref<2x1x32xf32, #tpu.memory_space<vmem>>, %arg11: memref<2x32x128xbf16, #tpu.memory_space<vmem>>, %arg12: memref<2x1x128xf32, #tpu.memory_space<vmem>>, %arg13: memref<2x128x32xbf16, #tpu.memory_space<vmem>>, %arg14: memref<2x1x32xf32, #tpu.memory_space<vmem>>, %arg15: memref<2x64x32xf32, #tpu.memory_space<vmem>>) attributes {dimension_semantics = [#tpu.dimension_semantics<parallel>], iteration_bounds = array<i64: 1>, scalar_prefetch = 0 : i64, scratch_operands = 0 : i64, tpu.core_type = #tpu.core_type<tc>, window_params = [{transform_indices = @transform_0, window_bounds = array<i64: 2, 64, 32>}, {pipeline_mode = #tpu.pipeline_mode<synchronous>, transform_indices = @transform_1, window_bounds = array<i64: 8, 64, 64>}, {pipeline_mode = #tpu.pipeline_mode<synchronous>, transform_indices = @transform_2, window_bounds = array<i64: 2, 1, 32>}, {pipeline_mode = #tpu.pipeline_mode<synchronous>, transform_indices = @transform_3, window_bounds = array<i64: 2, 1, 32>}, {pipeline_mode = #tpu.pipeline_mode<synchronous>, transform_indices = @transform_4, window_bounds = array<i64: 2, 32, 96>}, {pipeline_mode = #tpu.pipeline_mode<synchronous>, transform_indices = @transform_5, window_bounds = array<i64: 2, 1, 96>}, {pipeline_mode = #tpu.pipeline_mode<synchronous>, transform_indices = @transform_6, window_bounds = array<i64: 2, 32, 32>}, {pipeline_mode = #tpu.pipeline_mode<synchronous>, transform_indices = @transform_7, window_bounds = array<i64: 2, 1, 32>}, {pipeline_mode = #tpu.pipeline_mode<synchronous>, transform_indices = @transform_8, window_bounds = array<i64: 2, 1, 32>}, {pipeline_mode = #tpu.pipeline_mode<synchronous>, transform_indices = @transform_9, window_bounds = array<i64: 2, 1, 32>}, {pipeline_mode = #tpu.pipeline_mode<synchronous>, transform_indices = @transform_10, window_bounds = array<i64: 2, 32, 128>}, {pipeline_mode = #tpu.pipeline_mode<synchronous>, transform_indices = @transform_11, window_bounds = array<i64: 2, 1, 128>}, {pipeline_mode = #tpu.pipeline_mode<synchronous>, transform_indices = @transform_12, window_bounds = array<i64: 2, 128, 32>}, {pipeline_mode = #tpu.pipeline_mode<synchronous>, transform_indices = @transform_13, window_bounds = array<i64: 2, 1, 32>}, {transform_indices = @transform_14, window_bounds = array<i64: 2, 64, 32>}]} {
    %c0 = arith.constant 0 : index
    %c0_0 = arith.constant 0 : index
    %c0_1 = arith.constant 0 : index
    %0 = vector.load %arg1[%c0, %c0_0, %c0_1] : memref<2x64x32xf32, #tpu.memory_space<vmem>>, vector<2x64x32xf32>
    %1 = vector.shape_cast %0 : vector<2x64x32xf32> to vector<128x32xf32>
    %c0_2 = arith.constant 0 : index
    %c0_3 = arith.constant 0 : index
    %c0_4 = arith.constant 0 : index
    %2 = vector.load %arg3[%c0_2, %c0_3, %c0_4] : memref<2x1x32xf32, #tpu.memory_space<vmem>>, vector<1x1x32xf32>
    %3 = vector.shape_cast %2 : vector<1x1x32xf32> to vector<1x32xf32>
    %c0_5 = arith.constant 0 : index
    %c0_6 = arith.constant 0 : index
    %c0_7 = arith.constant 0 : index
    %4 = vector.load %arg4[%c0_5, %c0_6, %c0_7] : memref<2x1x32xf32, #tpu.memory_space<vmem>>, vector<1x1x32xf32>
    %5 = vector.shape_cast %4 : vector<1x1x32xf32> to vector<1x32xf32>
    %cst = arith.constant dense<0.000000e+00> : vector<128xf32>
    %6 = vector.multi_reduction <add>, %1, %cst [1] : vector<128x32xf32> to vector<128xf32>
    %7 = vector.shape_cast %6 : vector<128xf32> to vector<128x1xf32>
    %cst_8 = arith.constant 3.200000e+01 : f32
    %8 = vector.broadcast %cst_8 : f32 to vector<128x1xf32>
    %9 = arith.divf %7, %8 : vector<128x1xf32>
    %10 = vector.broadcast %9 : vector<128x1xf32> to vector<128x32xf32>
    %11 = arith.subf %1, %10 : vector<128x32xf32>
    %12 = arith.mulf %11, %11 : vector<128x32xf32>
    %cst_9 = arith.constant dense<0.000000e+00> : vector<128xf32>
    %13 = vector.multi_reduction <add>, %12, %cst_9 [1] : vector<128x32xf32> to vector<128xf32>
    %14 = vector.shape_cast %13 : vector<128xf32> to vector<128x1xf32>
    %cst_10 = arith.constant 3.200000e+01 : f32
    %15 = vector.broadcast %cst_10 : f32 to vector<128x1xf32>
    %16 = arith.divf %14, %15 : vector<128x1xf32>
    %cst_11 = arith.constant 9.99999974E-6 : f32
    %17 = vector.broadcast %cst_11 : f32 to vector<128x1xf32>
    %18 = arith.addf %16, %17 : vector<128x1xf32>
    %19 = math.rsqrt %18 : vector<128x1xf32>
    %20 = vector.broadcast %19 : vector<128x1xf32> to vector<128x32xf32>
    %21 = arith.mulf %11, %20 : vector<128x32xf32>
    %22 = vector.broadcast %3 : vector<1x32xf32> to vector<128x32xf32>
    %23 = arith.mulf %21, %22 : vector<128x32xf32>
    %24 = vector.broadcast %5 : vector<1x32xf32> to vector<128x32xf32>
    %25 = arith.addf %23, %24 : vector<128x32xf32>
    %26 = arith.truncf %25 : vector<128x32xf32> to vector<128x32xbf16>
    %c0_12 = arith.constant 0 : index
    %c0_13 = arith.constant 0 : index
    %c0_14 = arith.constant 0 : index
    %27 = vector.load %arg5[%c0_12, %c0_13, %c0_14] : memref<2x32x96xbf16, #tpu.memory_space<vmem>>, vector<1x32x96xbf16>
    %28 = vector.shape_cast %27 : vector<1x32x96xbf16> to vector<32x96xbf16>
    %cst_15 = arith.constant dense<0.000000e+00> : vector<128x96xf32>
    %29 = tpu.matmul %26, %28, %cst_15 {dimension_numbers = #tpu.dot_dimension_numbers<[1], [0], [0], [1], [0, 0, 1, 1], [], []>} : vector<128x32xbf16>, vector<32x96xbf16>, vector<128x96xf32> -> vector<128x96xf32>
    %c0_16 = arith.constant 0 : index
    %c0_17 = arith.constant 0 : index
    %c0_18 = arith.constant 0 : index
    %30 = vector.load %arg6[%c0_16, %c0_17, %c0_18] : memref<2x1x96xf32, #tpu.memory_space<vmem>>, vector<1x1x96xf32>
    %31 = vector.shape_cast %30 : vector<1x1x96xf32> to vector<1x96xf32>
    %32 = vector.broadcast %31 : vector<1x96xf32> to vector<128x96xf32>
    %33 = arith.addf %29, %32 : vector<128x96xf32>
    %34 = vector.extract_strided_slice %33 {offsets = [0, 0], sizes = [64, 96], strides = [1, 1]} : vector<128x96xf32> to vector<64x96xf32>
    %35 = vector.extract_strided_slice %34 {offsets = [0, 0], sizes = [64, 8], strides = [1, 1]} : vector<64x96xf32> to vector<64x8xf32>
    %36 = vector.extract_strided_slice %34 {offsets = [0, 32], sizes = [64, 8], strides = [1, 1]} : vector<64x96xf32> to vector<64x8xf32>
    %37 = vector.extract_strided_slice %34 {offsets = [0, 64], sizes = [64, 8], strides = [1, 1]} : vector<64x96xf32> to vector<64x8xf32>
    %38 = arith.truncf %35 : vector<64x8xf32> to vector<64x8xbf16>
    %39 = arith.truncf %36 : vector<64x8xf32> to vector<64x8xbf16>
    %cst_19 = arith.constant dense<0.000000e+00> : vector<64x64xf32>
    %40 = tpu.matmul %38, %39, %cst_19 {dimension_numbers = #tpu.dot_dimension_numbers<[1], [1], [0], [0], [0, 0, 1, 0], [], []>} : vector<64x8xbf16>, vector<64x8xbf16>, vector<64x64xf32> -> vector<64x64xf32>
    %c0_20 = arith.constant 0 : index
    %c0_21 = arith.constant 0 : index
    %c0_22 = arith.constant 0 : index
    %41 = vector.load %arg2[%c0_20, %c0_21, %c0_22] : memref<8x64x64xf32, #tpu.memory_space<vmem>>, vector<1x64x64xf32>
    %42 = vector.shape_cast %41 : vector<1x64x64xf32> to vector<64x64xf32>
    %43 = arith.addf %40, %42 : vector<64x64xf32>
    %cst_23 = arith.constant dense<0xFF800000> : vector<64xf32>
    %44 = vector.multi_reduction <maximumf>, %43, %cst_23 [1] : vector<64x64xf32> to vector<64xf32>
    %45 = vector.shape_cast %44 : vector<64xf32> to vector<64x1xf32>
    %46 = vector.broadcast %45 : vector<64x1xf32> to vector<64x64xf32>
    %47 = arith.subf %43, %46 : vector<64x64xf32>
    %48 = math.exp %47 : vector<64x64xf32>
    %cst_24 = arith.constant dense<0.000000e+00> : vector<64xf32>
    %49 = vector.multi_reduction <add>, %48, %cst_24 [1] : vector<64x64xf32> to vector<64xf32>
    %50 = vector.shape_cast %49 : vector<64xf32> to vector<64x1xf32>
    %51 = tpu.reciprocal %50 {approx = true} : vector<64x1xf32> -> vector<64x1xf32>
    %52 = vector.broadcast %51 : vector<64x1xf32> to vector<64x64xf32>
    %53 = arith.mulf %48, %52 : vector<64x64xf32>
    %54 = arith.truncf %53 : vector<64x64xf32> to vector<64x64xbf16>
    %55 = arith.truncf %37 : vector<64x8xf32> to vector<64x8xbf16>
    %cst_25 = arith.constant dense<0.000000e+00> : vector<64x8xf32>
    %56 = tpu.matmul %54, %55, %cst_25 {dimension_numbers = #tpu.dot_dimension_numbers<[1], [0], [0], [1], [0, 0, 1, 1], [], []>} : vector<64x64xbf16>, vector<64x8xbf16>, vector<64x8xf32> -> vector<64x8xf32>
    %57 = vector.extract_strided_slice %34 {offsets = [0, 8], sizes = [64, 8], strides = [1, 1]} : vector<64x96xf32> to vector<64x8xf32>
    %58 = vector.extract_strided_slice %34 {offsets = [0, 40], sizes = [64, 8], strides = [1, 1]} : vector<64x96xf32> to vector<64x8xf32>
    %59 = vector.extract_strided_slice %34 {offsets = [0, 72], sizes = [64, 8], strides = [1, 1]} : vector<64x96xf32> to vector<64x8xf32>
    %60 = arith.truncf %57 : vector<64x8xf32> to vector<64x8xbf16>
    %61 = arith.truncf %58 : vector<64x8xf32> to vector<64x8xbf16>
    %cst_26 = arith.constant dense<0.000000e+00> : vector<64x64xf32>
    %62 = tpu.matmul %60, %61, %cst_26 {dimension_numbers = #tpu.dot_dimension_numbers<[1], [1], [0], [0], [0, 0, 1, 0], [], []>} : vector<64x8xbf16>, vector<64x8xbf16>, vector<64x64xf32> -> vector<64x64xf32>
    %c1 = arith.constant 1 : index
    %c0_27 = arith.constant 0 : index
    %c0_28 = arith.constant 0 : index
    %63 = vector.load %arg2[%c1, %c0_27, %c0_28] : memref<8x64x64xf32, #tpu.memory_space<vmem>>, vector<1x64x64xf32>
    %64 = vector.shape_cast %63 : vector<1x64x64xf32> to vector<64x64xf32>
    %65 = arith.addf %62, %64 : vector<64x64xf32>
    %cst_29 = arith.constant dense<0xFF800000> : vector<64xf32>
    %66 = vector.multi_reduction <maximumf>, %65, %cst_29 [1] : vector<64x64xf32> to vector<64xf32>
    %67 = vector.shape_cast %66 : vector<64xf32> to vector<64x1xf32>
    %68 = vector.broadcast %67 : vector<64x1xf32> to vector<64x64xf32>
    %69 = arith.subf %65, %68 : vector<64x64xf32>
    %70 = math.exp %69 : vector<64x64xf32>
    %cst_30 = arith.constant dense<0.000000e+00> : vector<64xf32>
    %71 = vector.multi_reduction <add>, %70, %cst_30 [1] : vector<64x64xf32> to vector<64xf32>
    %72 = vector.shape_cast %71 : vector<64xf32> to vector<64x1xf32>
    %73 = tpu.reciprocal %72 {approx = true} : vector<64x1xf32> -> vector<64x1xf32>
    %74 = vector.broadcast %73 : vector<64x1xf32> to vector<64x64xf32>
    %75 = arith.mulf %70, %74 : vector<64x64xf32>
    %76 = arith.truncf %75 : vector<64x64xf32> to vector<64x64xbf16>
    %77 = arith.truncf %59 : vector<64x8xf32> to vector<64x8xbf16>
    %cst_31 = arith.constant dense<0.000000e+00> : vector<64x8xf32>
    %78 = tpu.matmul %76, %77, %cst_31 {dimension_numbers = #tpu.dot_dimension_numbers<[1], [0], [0], [1], [0, 0, 1, 1], [], []>} : vector<64x64xbf16>, vector<64x8xbf16>, vector<64x8xf32> -> vector<64x8xf32>
    %79 = vector.extract_strided_slice %34 {offsets = [0, 16], sizes = [64, 8], strides = [1, 1]} : vector<64x96xf32> to vector<64x8xf32>
    %80 = vector.extract_strided_slice %34 {offsets = [0, 48], sizes = [64, 8], strides = [1, 1]} : vector<64x96xf32> to vector<64x8xf32>
    %81 = vector.extract_strided_slice %34 {offsets = [0, 80], sizes = [64, 8], strides = [1, 1]} : vector<64x96xf32> to vector<64x8xf32>
    %82 = arith.truncf %79 : vector<64x8xf32> to vector<64x8xbf16>
    %83 = arith.truncf %80 : vector<64x8xf32> to vector<64x8xbf16>
    %cst_32 = arith.constant dense<0.000000e+00> : vector<64x64xf32>
    %84 = tpu.matmul %82, %83, %cst_32 {dimension_numbers = #tpu.dot_dimension_numbers<[1], [1], [0], [0], [0, 0, 1, 0], [], []>} : vector<64x8xbf16>, vector<64x8xbf16>, vector<64x64xf32> -> vector<64x64xf32>
    %c2 = arith.constant 2 : index
    %c0_33 = arith.constant 0 : index
    %c0_34 = arith.constant 0 : index
    %85 = vector.load %arg2[%c2, %c0_33, %c0_34] : memref<8x64x64xf32, #tpu.memory_space<vmem>>, vector<1x64x64xf32>
    %86 = vector.shape_cast %85 : vector<1x64x64xf32> to vector<64x64xf32>
    %87 = arith.addf %84, %86 : vector<64x64xf32>
    %cst_35 = arith.constant dense<0xFF800000> : vector<64xf32>
    %88 = vector.multi_reduction <maximumf>, %87, %cst_35 [1] : vector<64x64xf32> to vector<64xf32>
    %89 = vector.shape_cast %88 : vector<64xf32> to vector<64x1xf32>
    %90 = vector.broadcast %89 : vector<64x1xf32> to vector<64x64xf32>
    %91 = arith.subf %87, %90 : vector<64x64xf32>
    %92 = math.exp %91 : vector<64x64xf32>
    %cst_36 = arith.constant dense<0.000000e+00> : vector<64xf32>
    %93 = vector.multi_reduction <add>, %92, %cst_36 [1] : vector<64x64xf32> to vector<64xf32>
    %94 = vector.shape_cast %93 : vector<64xf32> to vector<64x1xf32>
    %95 = tpu.reciprocal %94 {approx = true} : vector<64x1xf32> -> vector<64x1xf32>
    %96 = vector.broadcast %95 : vector<64x1xf32> to vector<64x64xf32>
    %97 = arith.mulf %92, %96 : vector<64x64xf32>
    %98 = arith.truncf %97 : vector<64x64xf32> to vector<64x64xbf16>
    %99 = arith.truncf %81 : vector<64x8xf32> to vector<64x8xbf16>
    %cst_37 = arith.constant dense<0.000000e+00> : vector<64x8xf32>
    %100 = tpu.matmul %98, %99, %cst_37 {dimension_numbers = #tpu.dot_dimension_numbers<[1], [0], [0], [1], [0, 0, 1, 1], [], []>} : vector<64x64xbf16>, vector<64x8xbf16>, vector<64x8xf32> -> vector<64x8xf32>
    %101 = vector.extract_strided_slice %34 {offsets = [0, 24], sizes = [64, 8], strides = [1, 1]} : vector<64x96xf32> to vector<64x8xf32>
    %102 = vector.extract_strided_slice %34 {offsets = [0, 56], sizes = [64, 8], strides = [1, 1]} : vector<64x96xf32> to vector<64x8xf32>
    %103 = vector.extract_strided_slice %34 {offsets = [0, 88], sizes = [64, 8], strides = [1, 1]} : vector<64x96xf32> to vector<64x8xf32>
    %104 = arith.truncf %101 : vector<64x8xf32> to vector<64x8xbf16>
    %105 = arith.truncf %102 : vector<64x8xf32> to vector<64x8xbf16>
    %cst_38 = arith.constant dense<0.000000e+00> : vector<64x64xf32>
    %106 = tpu.matmul %104, %105, %cst_38 {dimension_numbers = #tpu.dot_dimension_numbers<[1], [1], [0], [0], [0, 0, 1, 0], [], []>} : vector<64x8xbf16>, vector<64x8xbf16>, vector<64x64xf32> -> vector<64x64xf32>
    %c3 = arith.constant 3 : index
    %c0_39 = arith.constant 0 : index
    %c0_40 = arith.constant 0 : index
    %107 = vector.load %arg2[%c3, %c0_39, %c0_40] : memref<8x64x64xf32, #tpu.memory_space<vmem>>, vector<1x64x64xf32>
    %108 = vector.shape_cast %107 : vector<1x64x64xf32> to vector<64x64xf32>
    %109 = arith.addf %106, %108 : vector<64x64xf32>
    %cst_41 = arith.constant dense<0xFF800000> : vector<64xf32>
    %110 = vector.multi_reduction <maximumf>, %109, %cst_41 [1] : vector<64x64xf32> to vector<64xf32>
    %111 = vector.shape_cast %110 : vector<64xf32> to vector<64x1xf32>
    %112 = vector.broadcast %111 : vector<64x1xf32> to vector<64x64xf32>
    %113 = arith.subf %109, %112 : vector<64x64xf32>
    %114 = math.exp %113 : vector<64x64xf32>
    %cst_42 = arith.constant dense<0.000000e+00> : vector<64xf32>
    %115 = vector.multi_reduction <add>, %114, %cst_42 [1] : vector<64x64xf32> to vector<64xf32>
    %116 = vector.shape_cast %115 : vector<64xf32> to vector<64x1xf32>
    %117 = tpu.reciprocal %116 {approx = true} : vector<64x1xf32> -> vector<64x1xf32>
    %118 = vector.broadcast %117 : vector<64x1xf32> to vector<64x64xf32>
    %119 = arith.mulf %114, %118 : vector<64x64xf32>
    %120 = arith.truncf %119 : vector<64x64xf32> to vector<64x64xbf16>
    %121 = arith.truncf %103 : vector<64x8xf32> to vector<64x8xbf16>
    %cst_43 = arith.constant dense<0.000000e+00> : vector<64x8xf32>
    %122 = tpu.matmul %120, %121, %cst_43 {dimension_numbers = #tpu.dot_dimension_numbers<[1], [0], [0], [1], [0, 0, 1, 1], [], []>} : vector<64x64xbf16>, vector<64x8xbf16>, vector<64x8xf32> -> vector<64x8xf32>
    %123 = tpu.concatenate %56, %78, %100, %122 in 1 : vector<64x8xf32>, vector<64x8xf32>, vector<64x8xf32>, vector<64x8xf32> -> vector<64x32xf32>
    %124 = vector.extract_strided_slice %33 {offsets = [64, 0], sizes = [64, 96], strides = [1, 1]} : vector<128x96xf32> to vector<64x96xf32>
    %125 = vector.extract_strided_slice %124 {offsets = [0, 0], sizes = [64, 8], strides = [1, 1]} : vector<64x96xf32> to vector<64x8xf32>
    %126 = vector.extract_strided_slice %124 {offsets = [0, 32], sizes = [64, 8], strides = [1, 1]} : vector<64x96xf32> to vector<64x8xf32>
    %127 = vector.extract_strided_slice %124 {offsets = [0, 64], sizes = [64, 8], strides = [1, 1]} : vector<64x96xf32> to vector<64x8xf32>
    %128 = arith.truncf %125 : vector<64x8xf32> to vector<64x8xbf16>
    %129 = arith.truncf %126 : vector<64x8xf32> to vector<64x8xbf16>
    %cst_44 = arith.constant dense<0.000000e+00> : vector<64x64xf32>
    %130 = tpu.matmul %128, %129, %cst_44 {dimension_numbers = #tpu.dot_dimension_numbers<[1], [1], [0], [0], [0, 0, 1, 0], [], []>} : vector<64x8xbf16>, vector<64x8xbf16>, vector<64x64xf32> -> vector<64x64xf32>
    %c0_45 = arith.constant 0 : index
    %c0_46 = arith.constant 0 : index
    %c0_47 = arith.constant 0 : index
    %131 = vector.load %arg2[%c0_45, %c0_46, %c0_47] : memref<8x64x64xf32, #tpu.memory_space<vmem>>, vector<1x64x64xf32>
    %132 = vector.shape_cast %131 : vector<1x64x64xf32> to vector<64x64xf32>
    %133 = arith.addf %130, %132 : vector<64x64xf32>
    %cst_48 = arith.constant dense<0xFF800000> : vector<64xf32>
    %134 = vector.multi_reduction <maximumf>, %133, %cst_48 [1] : vector<64x64xf32> to vector<64xf32>
    %135 = vector.shape_cast %134 : vector<64xf32> to vector<64x1xf32>
    %136 = vector.broadcast %135 : vector<64x1xf32> to vector<64x64xf32>
    %137 = arith.subf %133, %136 : vector<64x64xf32>
    %138 = math.exp %137 : vector<64x64xf32>
    %cst_49 = arith.constant dense<0.000000e+00> : vector<64xf32>
    %139 = vector.multi_reduction <add>, %138, %cst_49 [1] : vector<64x64xf32> to vector<64xf32>
    %140 = vector.shape_cast %139 : vector<64xf32> to vector<64x1xf32>
    %141 = tpu.reciprocal %140 {approx = true} : vector<64x1xf32> -> vector<64x1xf32>
    %142 = vector.broadcast %141 : vector<64x1xf32> to vector<64x64xf32>
    %143 = arith.mulf %138, %142 : vector<64x64xf32>
    %144 = arith.truncf %143 : vector<64x64xf32> to vector<64x64xbf16>
    %145 = arith.truncf %127 : vector<64x8xf32> to vector<64x8xbf16>
    %cst_50 = arith.constant dense<0.000000e+00> : vector<64x8xf32>
    %146 = tpu.matmul %144, %145, %cst_50 {dimension_numbers = #tpu.dot_dimension_numbers<[1], [0], [0], [1], [0, 0, 1, 1], [], []>} : vector<64x64xbf16>, vector<64x8xbf16>, vector<64x8xf32> -> vector<64x8xf32>
    %147 = vector.extract_strided_slice %124 {offsets = [0, 8], sizes = [64, 8], strides = [1, 1]} : vector<64x96xf32> to vector<64x8xf32>
    %148 = vector.extract_strided_slice %124 {offsets = [0, 40], sizes = [64, 8], strides = [1, 1]} : vector<64x96xf32> to vector<64x8xf32>
    %149 = vector.extract_strided_slice %124 {offsets = [0, 72], sizes = [64, 8], strides = [1, 1]} : vector<64x96xf32> to vector<64x8xf32>
    %150 = arith.truncf %147 : vector<64x8xf32> to vector<64x8xbf16>
    %151 = arith.truncf %148 : vector<64x8xf32> to vector<64x8xbf16>
    %cst_51 = arith.constant dense<0.000000e+00> : vector<64x64xf32>
    %152 = tpu.matmul %150, %151, %cst_51 {dimension_numbers = #tpu.dot_dimension_numbers<[1], [1], [0], [0], [0, 0, 1, 0], [], []>} : vector<64x8xbf16>, vector<64x8xbf16>, vector<64x64xf32> -> vector<64x64xf32>
    %c1_52 = arith.constant 1 : index
    %c0_53 = arith.constant 0 : index
    %c0_54 = arith.constant 0 : index
    %153 = vector.load %arg2[%c1_52, %c0_53, %c0_54] : memref<8x64x64xf32, #tpu.memory_space<vmem>>, vector<1x64x64xf32>
    %154 = vector.shape_cast %153 : vector<1x64x64xf32> to vector<64x64xf32>
    %155 = arith.addf %152, %154 : vector<64x64xf32>
    %cst_55 = arith.constant dense<0xFF800000> : vector<64xf32>
    %156 = vector.multi_reduction <maximumf>, %155, %cst_55 [1] : vector<64x64xf32> to vector<64xf32>
    %157 = vector.shape_cast %156 : vector<64xf32> to vector<64x1xf32>
    %158 = vector.broadcast %157 : vector<64x1xf32> to vector<64x64xf32>
    %159 = arith.subf %155, %158 : vector<64x64xf32>
    %160 = math.exp %159 : vector<64x64xf32>
    %cst_56 = arith.constant dense<0.000000e+00> : vector<64xf32>
    %161 = vector.multi_reduction <add>, %160, %cst_56 [1] : vector<64x64xf32> to vector<64xf32>
    %162 = vector.shape_cast %161 : vector<64xf32> to vector<64x1xf32>
    %163 = tpu.reciprocal %162 {approx = true} : vector<64x1xf32> -> vector<64x1xf32>
    %164 = vector.broadcast %163 : vector<64x1xf32> to vector<64x64xf32>
    %165 = arith.mulf %160, %164 : vector<64x64xf32>
    %166 = arith.truncf %165 : vector<64x64xf32> to vector<64x64xbf16>
    %167 = arith.truncf %149 : vector<64x8xf32> to vector<64x8xbf16>
    %cst_57 = arith.constant dense<0.000000e+00> : vector<64x8xf32>
    %168 = tpu.matmul %166, %167, %cst_57 {dimension_numbers = #tpu.dot_dimension_numbers<[1], [0], [0], [1], [0, 0, 1, 1], [], []>} : vector<64x64xbf16>, vector<64x8xbf16>, vector<64x8xf32> -> vector<64x8xf32>
    %169 = vector.extract_strided_slice %124 {offsets = [0, 16], sizes = [64, 8], strides = [1, 1]} : vector<64x96xf32> to vector<64x8xf32>
    %170 = vector.extract_strided_slice %124 {offsets = [0, 48], sizes = [64, 8], strides = [1, 1]} : vector<64x96xf32> to vector<64x8xf32>
    %171 = vector.extract_strided_slice %124 {offsets = [0, 80], sizes = [64, 8], strides = [1, 1]} : vector<64x96xf32> to vector<64x8xf32>
    %172 = arith.truncf %169 : vector<64x8xf32> to vector<64x8xbf16>
    %173 = arith.truncf %170 : vector<64x8xf32> to vector<64x8xbf16>
    %cst_58 = arith.constant dense<0.000000e+00> : vector<64x64xf32>
    %174 = tpu.matmul %172, %173, %cst_58 {dimension_numbers = #tpu.dot_dimension_numbers<[1], [1], [0], [0], [0, 0, 1, 0], [], []>} : vector<64x8xbf16>, vector<64x8xbf16>, vector<64x64xf32> -> vector<64x64xf32>
    %c2_59 = arith.constant 2 : index
    %c0_60 = arith.constant 0 : index
    %c0_61 = arith.constant 0 : index
    %175 = vector.load %arg2[%c2_59, %c0_60, %c0_61] : memref<8x64x64xf32, #tpu.memory_space<vmem>>, vector<1x64x64xf32>
    %176 = vector.shape_cast %175 : vector<1x64x64xf32> to vector<64x64xf32>
    %177 = arith.addf %174, %176 : vector<64x64xf32>
    %cst_62 = arith.constant dense<0xFF800000> : vector<64xf32>
    %178 = vector.multi_reduction <maximumf>, %177, %cst_62 [1] : vector<64x64xf32> to vector<64xf32>
    %179 = vector.shape_cast %178 : vector<64xf32> to vector<64x1xf32>
    %180 = vector.broadcast %179 : vector<64x1xf32> to vector<64x64xf32>
    %181 = arith.subf %177, %180 : vector<64x64xf32>
    %182 = math.exp %181 : vector<64x64xf32>
    %cst_63 = arith.constant dense<0.000000e+00> : vector<64xf32>
    %183 = vector.multi_reduction <add>, %182, %cst_63 [1] : vector<64x64xf32> to vector<64xf32>
    %184 = vector.shape_cast %183 : vector<64xf32> to vector<64x1xf32>
    %185 = tpu.reciprocal %184 {approx = true} : vector<64x1xf32> -> vector<64x1xf32>
    %186 = vector.broadcast %185 : vector<64x1xf32> to vector<64x64xf32>
    %187 = arith.mulf %182, %186 : vector<64x64xf32>
    %188 = arith.truncf %187 : vector<64x64xf32> to vector<64x64xbf16>
    %189 = arith.truncf %171 : vector<64x8xf32> to vector<64x8xbf16>
    %cst_64 = arith.constant dense<0.000000e+00> : vector<64x8xf32>
    %190 = tpu.matmul %188, %189, %cst_64 {dimension_numbers = #tpu.dot_dimension_numbers<[1], [0], [0], [1], [0, 0, 1, 1], [], []>} : vector<64x64xbf16>, vector<64x8xbf16>, vector<64x8xf32> -> vector<64x8xf32>
    %191 = vector.extract_strided_slice %124 {offsets = [0, 24], sizes = [64, 8], strides = [1, 1]} : vector<64x96xf32> to vector<64x8xf32>
    %192 = vector.extract_strided_slice %124 {offsets = [0, 56], sizes = [64, 8], strides = [1, 1]} : vector<64x96xf32> to vector<64x8xf32>
    %193 = vector.extract_strided_slice %124 {offsets = [0, 88], sizes = [64, 8], strides = [1, 1]} : vector<64x96xf32> to vector<64x8xf32>
    %194 = arith.truncf %191 : vector<64x8xf32> to vector<64x8xbf16>
    %195 = arith.truncf %192 : vector<64x8xf32> to vector<64x8xbf16>
    %cst_65 = arith.constant dense<0.000000e+00> : vector<64x64xf32>
    %196 = tpu.matmul %194, %195, %cst_65 {dimension_numbers = #tpu.dot_dimension_numbers<[1], [1], [0], [0], [0, 0, 1, 0], [], []>} : vector<64x8xbf16>, vector<64x8xbf16>, vector<64x64xf32> -> vector<64x64xf32>
    %c3_66 = arith.constant 3 : index
    %c0_67 = arith.constant 0 : index
    %c0_68 = arith.constant 0 : index
    %197 = vector.load %arg2[%c3_66, %c0_67, %c0_68] : memref<8x64x64xf32, #tpu.memory_space<vmem>>, vector<1x64x64xf32>
    %198 = vector.shape_cast %197 : vector<1x64x64xf32> to vector<64x64xf32>
    %199 = arith.addf %196, %198 : vector<64x64xf32>
    %cst_69 = arith.constant dense<0xFF800000> : vector<64xf32>
    %200 = vector.multi_reduction <maximumf>, %199, %cst_69 [1] : vector<64x64xf32> to vector<64xf32>
    %201 = vector.shape_cast %200 : vector<64xf32> to vector<64x1xf32>
    %202 = vector.broadcast %201 : vector<64x1xf32> to vector<64x64xf32>
    %203 = arith.subf %199, %202 : vector<64x64xf32>
    %204 = math.exp %203 : vector<64x64xf32>
    %cst_70 = arith.constant dense<0.000000e+00> : vector<64xf32>
    %205 = vector.multi_reduction <add>, %204, %cst_70 [1] : vector<64x64xf32> to vector<64xf32>
    %206 = vector.shape_cast %205 : vector<64xf32> to vector<64x1xf32>
    %207 = tpu.reciprocal %206 {approx = true} : vector<64x1xf32> -> vector<64x1xf32>
    %208 = vector.broadcast %207 : vector<64x1xf32> to vector<64x64xf32>
    %209 = arith.mulf %204, %208 : vector<64x64xf32>
    %210 = arith.truncf %209 : vector<64x64xf32> to vector<64x64xbf16>
    %211 = arith.truncf %193 : vector<64x8xf32> to vector<64x8xbf16>
    %cst_71 = arith.constant dense<0.000000e+00> : vector<64x8xf32>
    %212 = tpu.matmul %210, %211, %cst_71 {dimension_numbers = #tpu.dot_dimension_numbers<[1], [0], [0], [1], [0, 0, 1, 1], [], []>} : vector<64x64xbf16>, vector<64x8xbf16>, vector<64x8xf32> -> vector<64x8xf32>
    %213 = tpu.concatenate %146, %168, %190, %212 in 1 : vector<64x8xf32>, vector<64x8xf32>, vector<64x8xf32>, vector<64x8xf32> -> vector<64x32xf32>
    %214 = tpu.concatenate %123, %213 in 0 : vector<64x32xf32>, vector<64x32xf32> -> vector<128x32xf32>
    %215 = arith.truncf %214 : vector<128x32xf32> to vector<128x32xbf16>
    %c0_72 = arith.constant 0 : index
    %c0_73 = arith.constant 0 : index
    %c0_74 = arith.constant 0 : index
    %216 = vector.load %arg7[%c0_72, %c0_73, %c0_74] : memref<2x32x32xbf16, #tpu.memory_space<vmem>>, vector<1x32x32xbf16>
    %217 = vector.shape_cast %216 : vector<1x32x32xbf16> to vector<32x32xbf16>
    %cst_75 = arith.constant dense<0.000000e+00> : vector<128x32xf32>
    %218 = tpu.matmul %215, %217, %cst_75 {dimension_numbers = #tpu.dot_dimension_numbers<[1], [0], [0], [1], [0, 0, 1, 1], [], []>} : vector<128x32xbf16>, vector<32x32xbf16>, vector<128x32xf32> -> vector<128x32xf32>
    %c0_76 = arith.constant 0 : index
    %c0_77 = arith.constant 0 : index
    %c0_78 = arith.constant 0 : index
    %219 = vector.load %arg8[%c0_76, %c0_77, %c0_78] : memref<2x1x32xf32, #tpu.memory_space<vmem>>, vector<1x1x32xf32>
    %220 = vector.shape_cast %219 : vector<1x1x32xf32> to vector<1x32xf32>
    %221 = vector.broadcast %220 : vector<1x32xf32> to vector<128x32xf32>
    %222 = arith.addf %218, %221 : vector<128x32xf32>
    %223 = arith.addf %1, %222 : vector<128x32xf32>
    %c0_79 = arith.constant 0 : index
    %c0_80 = arith.constant 0 : index
    %c0_81 = arith.constant 0 : index
    %224 = vector.load %arg9[%c0_79, %c0_80, %c0_81] : memref<2x1x32xf32, #tpu.memory_space<vmem>>, vector<1x1x32xf32>
    %225 = vector.shape_cast %224 : vector<1x1x32xf32> to vector<1x32xf32>
    %c0_82 = arith.constant 0 : index
    %c0_83 = arith.constant 0 : index
    %c0_84 = arith.constant 0 : index
    %226 = vector.load %arg10[%c0_82, %c0_83, %c0_84] : memref<2x1x32xf32, #tpu.memory_space<vmem>>, vector<1x1x32xf32>
    %227 = vector.shape_cast %226 : vector<1x1x32xf32> to vector<1x32xf32>
    %cst_85 = arith.constant dense<0.000000e+00> : vector<128xf32>
    %228 = vector.multi_reduction <add>, %223, %cst_85 [1] : vector<128x32xf32> to vector<128xf32>
    %229 = vector.shape_cast %228 : vector<128xf32> to vector<128x1xf32>
    %cst_86 = arith.constant 3.200000e+01 : f32
    %230 = vector.broadcast %cst_86 : f32 to vector<128x1xf32>
    %231 = arith.divf %229, %230 : vector<128x1xf32>
    %232 = vector.broadcast %231 : vector<128x1xf32> to vector<128x32xf32>
    %233 = arith.subf %223, %232 : vector<128x32xf32>
    %234 = arith.mulf %233, %233 : vector<128x32xf32>
    %cst_87 = arith.constant dense<0.000000e+00> : vector<128xf32>
    %235 = vector.multi_reduction <add>, %234, %cst_87 [1] : vector<128x32xf32> to vector<128xf32>
    %236 = vector.shape_cast %235 : vector<128xf32> to vector<128x1xf32>
    %cst_88 = arith.constant 3.200000e+01 : f32
    %237 = vector.broadcast %cst_88 : f32 to vector<128x1xf32>
    %238 = arith.divf %236, %237 : vector<128x1xf32>
    %cst_89 = arith.constant 9.99999974E-6 : f32
    %239 = vector.broadcast %cst_89 : f32 to vector<128x1xf32>
    %240 = arith.addf %238, %239 : vector<128x1xf32>
    %241 = math.rsqrt %240 : vector<128x1xf32>
    %242 = vector.broadcast %241 : vector<128x1xf32> to vector<128x32xf32>
    %243 = arith.mulf %233, %242 : vector<128x32xf32>
    %244 = vector.broadcast %225 : vector<1x32xf32> to vector<128x32xf32>
    %245 = arith.mulf %243, %244 : vector<128x32xf32>
    %246 = vector.broadcast %227 : vector<1x32xf32> to vector<128x32xf32>
    %247 = arith.addf %245, %246 : vector<128x32xf32>
    %248 = arith.truncf %247 : vector<128x32xf32> to vector<128x32xbf16>
    %c0_90 = arith.constant 0 : index
    %c0_91 = arith.constant 0 : index
    %c0_92 = arith.constant 0 : index
    %249 = vector.load %arg11[%c0_90, %c0_91, %c0_92] : memref<2x32x128xbf16, #tpu.memory_space<vmem>>, vector<1x32x128xbf16>
    %250 = vector.shape_cast %249 : vector<1x32x128xbf16> to vector<32x128xbf16>
    %cst_93 = arith.constant dense<0.000000e+00> : vector<128x128xf32>
    %251 = tpu.matmul %248, %250, %cst_93 {dimension_numbers = #tpu.dot_dimension_numbers<[1], [0], [0], [1], [0, 0, 1, 1], [], []>} : vector<128x32xbf16>, vector<32x128xbf16>, vector<128x128xf32> -> vector<128x128xf32>
    %c0_94 = arith.constant 0 : index
    %c0_95 = arith.constant 0 : index
    %c0_96 = arith.constant 0 : index
    %252 = vector.load %arg12[%c0_94, %c0_95, %c0_96] : memref<2x1x128xf32, #tpu.memory_space<vmem>>, vector<1x1x128xf32>
    %253 = vector.shape_cast %252 : vector<1x1x128xf32> to vector<1x128xf32>
    %254 = vector.broadcast %253 : vector<1x128xf32> to vector<128x128xf32>
    %255 = arith.addf %251, %254 : vector<128x128xf32>
    %cst_97 = arith.constant 5.000000e-01 : f32
    %256 = vector.broadcast %cst_97 : f32 to vector<128x128xf32>
    %257 = arith.mulf %256, %255 : vector<128x128xf32>
    %cst_98 = arith.constant 4.471500e-02 : f32
    %258 = vector.broadcast %cst_98 : f32 to vector<128x128xf32>
    %259 = arith.mulf %258, %255 : vector<128x128xf32>
    %260 = arith.mulf %259, %255 : vector<128x128xf32>
    %261 = arith.mulf %260, %255 : vector<128x128xf32>
    %262 = arith.addf %255, %261 : vector<128x128xf32>
    %cst_99 = arith.constant 0.797884583 : f32
    %263 = vector.broadcast %cst_99 : f32 to vector<128x128xf32>
    %264 = arith.mulf %263, %262 : vector<128x128xf32>
    %265 = math.tanh %264 : vector<128x128xf32>
    %cst_100 = arith.constant 1.000000e+00 : f32
    %266 = vector.broadcast %cst_100 : f32 to vector<128x128xf32>
    %267 = arith.addf %266, %265 : vector<128x128xf32>
    %268 = arith.mulf %257, %267 : vector<128x128xf32>
    %269 = arith.truncf %268 : vector<128x128xf32> to vector<128x128xbf16>
    %c0_101 = arith.constant 0 : index
    %c0_102 = arith.constant 0 : index
    %c0_103 = arith.constant 0 : index
    %270 = vector.load %arg13[%c0_101, %c0_102, %c0_103] : memref<2x128x32xbf16, #tpu.memory_space<vmem>>, vector<1x128x32xbf16>
    %271 = vector.shape_cast %270 : vector<1x128x32xbf16> to vector<128x32xbf16>
    %cst_104 = arith.constant dense<0.000000e+00> : vector<128x32xf32>
    %272 = tpu.matmul %269, %271, %cst_104 {dimension_numbers = #tpu.dot_dimension_numbers<[1], [0], [0], [1], [0, 0, 1, 1], [], []>} : vector<128x128xbf16>, vector<128x32xbf16>, vector<128x32xf32> -> vector<128x32xf32>
    %c0_105 = arith.constant 0 : index
    %c0_106 = arith.constant 0 : index
    %c0_107 = arith.constant 0 : index
    %273 = vector.load %arg14[%c0_105, %c0_106, %c0_107] : memref<2x1x32xf32, #tpu.memory_space<vmem>>, vector<1x1x32xf32>
    %274 = vector.shape_cast %273 : vector<1x1x32xf32> to vector<1x32xf32>
    %275 = vector.broadcast %274 : vector<1x32xf32> to vector<128x32xf32>
    %276 = arith.addf %272, %275 : vector<128x32xf32>
    %277 = arith.addf %223, %276 : vector<128x32xf32>
    %c1_108 = arith.constant 1 : index
    %c0_109 = arith.constant 0 : index
    %c0_110 = arith.constant 0 : index
    %278 = vector.load %arg3[%c1_108, %c0_109, %c0_110] : memref<2x1x32xf32, #tpu.memory_space<vmem>>, vector<1x1x32xf32>
    %279 = vector.shape_cast %278 : vector<1x1x32xf32> to vector<1x32xf32>
    %c1_111 = arith.constant 1 : index
    %c0_112 = arith.constant 0 : index
    %c0_113 = arith.constant 0 : index
    %280 = vector.load %arg4[%c1_111, %c0_112, %c0_113] : memref<2x1x32xf32, #tpu.memory_space<vmem>>, vector<1x1x32xf32>
    %281 = vector.shape_cast %280 : vector<1x1x32xf32> to vector<1x32xf32>
    %cst_114 = arith.constant dense<0.000000e+00> : vector<128xf32>
    %282 = vector.multi_reduction <add>, %277, %cst_114 [1] : vector<128x32xf32> to vector<128xf32>
    %283 = vector.shape_cast %282 : vector<128xf32> to vector<128x1xf32>
    %cst_115 = arith.constant 3.200000e+01 : f32
    %284 = vector.broadcast %cst_115 : f32 to vector<128x1xf32>
    %285 = arith.divf %283, %284 : vector<128x1xf32>
    %286 = vector.broadcast %285 : vector<128x1xf32> to vector<128x32xf32>
    %287 = arith.subf %277, %286 : vector<128x32xf32>
    %288 = arith.mulf %287, %287 : vector<128x32xf32>
    %cst_116 = arith.constant dense<0.000000e+00> : vector<128xf32>
    %289 = vector.multi_reduction <add>, %288, %cst_116 [1] : vector<128x32xf32> to vector<128xf32>
    %290 = vector.shape_cast %289 : vector<128xf32> to vector<128x1xf32>
    %cst_117 = arith.constant 3.200000e+01 : f32
    %291 = vector.broadcast %cst_117 : f32 to vector<128x1xf32>
    %292 = arith.divf %290, %291 : vector<128x1xf32>
    %cst_118 = arith.constant 9.99999974E-6 : f32
    %293 = vector.broadcast %cst_118 : f32 to vector<128x1xf32>
    %294 = arith.addf %292, %293 : vector<128x1xf32>
    %295 = math.rsqrt %294 : vector<128x1xf32>
    %296 = vector.broadcast %295 : vector<128x1xf32> to vector<128x32xf32>
    %297 = arith.mulf %287, %296 : vector<128x32xf32>
    %298 = vector.broadcast %279 : vector<1x32xf32> to vector<128x32xf32>
    %299 = arith.mulf %297, %298 : vector<128x32xf32>
    %300 = vector.broadcast %281 : vector<1x32xf32> to vector<128x32xf32>
    %301 = arith.addf %299, %300 : vector<128x32xf32>
    %302 = arith.truncf %301 : vector<128x32xf32> to vector<128x32xbf16>
    %c1_119 = arith.constant 1 : index
    %c0_120 = arith.constant 0 : index
    %c0_121 = arith.constant 0 : index
    %303 = vector.load %arg5[%c1_119, %c0_120, %c0_121] : memref<2x32x96xbf16, #tpu.memory_space<vmem>>, vector<1x32x96xbf16>
    %304 = vector.shape_cast %303 : vector<1x32x96xbf16> to vector<32x96xbf16>
    %cst_122 = arith.constant dense<0.000000e+00> : vector<128x96xf32>
    %305 = tpu.matmul %302, %304, %cst_122 {dimension_numbers = #tpu.dot_dimension_numbers<[1], [0], [0], [1], [0, 0, 1, 1], [], []>} : vector<128x32xbf16>, vector<32x96xbf16>, vector<128x96xf32> -> vector<128x96xf32>
    %c1_123 = arith.constant 1 : index
    %c0_124 = arith.constant 0 : index
    %c0_125 = arith.constant 0 : index
    %306 = vector.load %arg6[%c1_123, %c0_124, %c0_125] : memref<2x1x96xf32, #tpu.memory_space<vmem>>, vector<1x1x96xf32>
    %307 = vector.shape_cast %306 : vector<1x1x96xf32> to vector<1x96xf32>
    %308 = vector.broadcast %307 : vector<1x96xf32> to vector<128x96xf32>
    %309 = arith.addf %305, %308 : vector<128x96xf32>
    %310 = vector.extract_strided_slice %309 {offsets = [0, 0], sizes = [64, 96], strides = [1, 1]} : vector<128x96xf32> to vector<64x96xf32>
    %311 = vector.extract_strided_slice %310 {offsets = [0, 0], sizes = [64, 8], strides = [1, 1]} : vector<64x96xf32> to vector<64x8xf32>
    %312 = vector.extract_strided_slice %310 {offsets = [0, 32], sizes = [64, 8], strides = [1, 1]} : vector<64x96xf32> to vector<64x8xf32>
    %313 = vector.extract_strided_slice %310 {offsets = [0, 64], sizes = [64, 8], strides = [1, 1]} : vector<64x96xf32> to vector<64x8xf32>
    %314 = arith.truncf %311 : vector<64x8xf32> to vector<64x8xbf16>
    %315 = arith.truncf %312 : vector<64x8xf32> to vector<64x8xbf16>
    %cst_126 = arith.constant dense<0.000000e+00> : vector<64x64xf32>
    %316 = tpu.matmul %314, %315, %cst_126 {dimension_numbers = #tpu.dot_dimension_numbers<[1], [1], [0], [0], [0, 0, 1, 0], [], []>} : vector<64x8xbf16>, vector<64x8xbf16>, vector<64x64xf32> -> vector<64x64xf32>
    %c4 = arith.constant 4 : index
    %c0_127 = arith.constant 0 : index
    %c0_128 = arith.constant 0 : index
    %317 = vector.load %arg2[%c4, %c0_127, %c0_128] : memref<8x64x64xf32, #tpu.memory_space<vmem>>, vector<1x64x64xf32>
    %318 = vector.shape_cast %317 : vector<1x64x64xf32> to vector<64x64xf32>
    %319 = arith.addf %316, %318 : vector<64x64xf32>
    %cst_129 = arith.constant dense<0xFF800000> : vector<64xf32>
    %320 = vector.multi_reduction <maximumf>, %319, %cst_129 [1] : vector<64x64xf32> to vector<64xf32>
    %321 = vector.shape_cast %320 : vector<64xf32> to vector<64x1xf32>
    %322 = vector.broadcast %321 : vector<64x1xf32> to vector<64x64xf32>
    %323 = arith.subf %319, %322 : vector<64x64xf32>
    %324 = math.exp %323 : vector<64x64xf32>
    %cst_130 = arith.constant dense<0.000000e+00> : vector<64xf32>
    %325 = vector.multi_reduction <add>, %324, %cst_130 [1] : vector<64x64xf32> to vector<64xf32>
    %326 = vector.shape_cast %325 : vector<64xf32> to vector<64x1xf32>
    %327 = tpu.reciprocal %326 {approx = true} : vector<64x1xf32> -> vector<64x1xf32>
    %328 = vector.broadcast %327 : vector<64x1xf32> to vector<64x64xf32>
    %329 = arith.mulf %324, %328 : vector<64x64xf32>
    %330 = arith.truncf %329 : vector<64x64xf32> to vector<64x64xbf16>
    %331 = arith.truncf %313 : vector<64x8xf32> to vector<64x8xbf16>
    %cst_131 = arith.constant dense<0.000000e+00> : vector<64x8xf32>
    %332 = tpu.matmul %330, %331, %cst_131 {dimension_numbers = #tpu.dot_dimension_numbers<[1], [0], [0], [1], [0, 0, 1, 1], [], []>} : vector<64x64xbf16>, vector<64x8xbf16>, vector<64x8xf32> -> vector<64x8xf32>
    %333 = vector.extract_strided_slice %310 {offsets = [0, 8], sizes = [64, 8], strides = [1, 1]} : vector<64x96xf32> to vector<64x8xf32>
    %334 = vector.extract_strided_slice %310 {offsets = [0, 40], sizes = [64, 8], strides = [1, 1]} : vector<64x96xf32> to vector<64x8xf32>
    %335 = vector.extract_strided_slice %310 {offsets = [0, 72], sizes = [64, 8], strides = [1, 1]} : vector<64x96xf32> to vector<64x8xf32>
    %336 = arith.truncf %333 : vector<64x8xf32> to vector<64x8xbf16>
    %337 = arith.truncf %334 : vector<64x8xf32> to vector<64x8xbf16>
    %cst_132 = arith.constant dense<0.000000e+00> : vector<64x64xf32>
    %338 = tpu.matmul %336, %337, %cst_132 {dimension_numbers = #tpu.dot_dimension_numbers<[1], [1], [0], [0], [0, 0, 1, 0], [], []>} : vector<64x8xbf16>, vector<64x8xbf16>, vector<64x64xf32> -> vector<64x64xf32>
    %c5 = arith.constant 5 : index
    %c0_133 = arith.constant 0 : index
    %c0_134 = arith.constant 0 : index
    %339 = vector.load %arg2[%c5, %c0_133, %c0_134] : memref<8x64x64xf32, #tpu.memory_space<vmem>>, vector<1x64x64xf32>
    %340 = vector.shape_cast %339 : vector<1x64x64xf32> to vector<64x64xf32>
    %341 = arith.addf %338, %340 : vector<64x64xf32>
    %cst_135 = arith.constant dense<0xFF800000> : vector<64xf32>
    %342 = vector.multi_reduction <maximumf>, %341, %cst_135 [1] : vector<64x64xf32> to vector<64xf32>
    %343 = vector.shape_cast %342 : vector<64xf32> to vector<64x1xf32>
    %344 = vector.broadcast %343 : vector<64x1xf32> to vector<64x64xf32>
    %345 = arith.subf %341, %344 : vector<64x64xf32>
    %346 = math.exp %345 : vector<64x64xf32>
    %cst_136 = arith.constant dense<0.000000e+00> : vector<64xf32>
    %347 = vector.multi_reduction <add>, %346, %cst_136 [1] : vector<64x64xf32> to vector<64xf32>
    %348 = vector.shape_cast %347 : vector<64xf32> to vector<64x1xf32>
    %349 = tpu.reciprocal %348 {approx = true} : vector<64x1xf32> -> vector<64x1xf32>
    %350 = vector.broadcast %349 : vector<64x1xf32> to vector<64x64xf32>
    %351 = arith.mulf %346, %350 : vector<64x64xf32>
    %352 = arith.truncf %351 : vector<64x64xf32> to vector<64x64xbf16>
    %353 = arith.truncf %335 : vector<64x8xf32> to vector<64x8xbf16>
    %cst_137 = arith.constant dense<0.000000e+00> : vector<64x8xf32>
    %354 = tpu.matmul %352, %353, %cst_137 {dimension_numbers = #tpu.dot_dimension_numbers<[1], [0], [0], [1], [0, 0, 1, 1], [], []>} : vector<64x64xbf16>, vector<64x8xbf16>, vector<64x8xf32> -> vector<64x8xf32>
    %355 = vector.extract_strided_slice %310 {offsets = [0, 16], sizes = [64, 8], strides = [1, 1]} : vector<64x96xf32> to vector<64x8xf32>
    %356 = vector.extract_strided_slice %310 {offsets = [0, 48], sizes = [64, 8], strides = [1, 1]} : vector<64x96xf32> to vector<64x8xf32>
    %357 = vector.extract_strided_slice %310 {offsets = [0, 80], sizes = [64, 8], strides = [1, 1]} : vector<64x96xf32> to vector<64x8xf32>
    %358 = arith.truncf %355 : vector<64x8xf32> to vector<64x8xbf16>
    %359 = arith.truncf %356 : vector<64x8xf32> to vector<64x8xbf16>
    %cst_138 = arith.constant dense<0.000000e+00> : vector<64x64xf32>
    %360 = tpu.matmul %358, %359, %cst_138 {dimension_numbers = #tpu.dot_dimension_numbers<[1], [1], [0], [0], [0, 0, 1, 0], [], []>} : vector<64x8xbf16>, vector<64x8xbf16>, vector<64x64xf32> -> vector<64x64xf32>
    %c6 = arith.constant 6 : index
    %c0_139 = arith.constant 0 : index
    %c0_140 = arith.constant 0 : index
    %361 = vector.load %arg2[%c6, %c0_139, %c0_140] : memref<8x64x64xf32, #tpu.memory_space<vmem>>, vector<1x64x64xf32>
    %362 = vector.shape_cast %361 : vector<1x64x64xf32> to vector<64x64xf32>
    %363 = arith.addf %360, %362 : vector<64x64xf32>
    %cst_141 = arith.constant dense<0xFF800000> : vector<64xf32>
    %364 = vector.multi_reduction <maximumf>, %363, %cst_141 [1] : vector<64x64xf32> to vector<64xf32>
    %365 = vector.shape_cast %364 : vector<64xf32> to vector<64x1xf32>
    %366 = vector.broadcast %365 : vector<64x1xf32> to vector<64x64xf32>
    %367 = arith.subf %363, %366 : vector<64x64xf32>
    %368 = math.exp %367 : vector<64x64xf32>
    %cst_142 = arith.constant dense<0.000000e+00> : vector<64xf32>
    %369 = vector.multi_reduction <add>, %368, %cst_142 [1] : vector<64x64xf32> to vector<64xf32>
    %370 = vector.shape_cast %369 : vector<64xf32> to vector<64x1xf32>
    %371 = tpu.reciprocal %370 {approx = true} : vector<64x1xf32> -> vector<64x1xf32>
    %372 = vector.broadcast %371 : vector<64x1xf32> to vector<64x64xf32>
    %373 = arith.mulf %368, %372 : vector<64x64xf32>
    %374 = arith.truncf %373 : vector<64x64xf32> to vector<64x64xbf16>
    %375 = arith.truncf %357 : vector<64x8xf32> to vector<64x8xbf16>
    %cst_143 = arith.constant dense<0.000000e+00> : vector<64x8xf32>
    %376 = tpu.matmul %374, %375, %cst_143 {dimension_numbers = #tpu.dot_dimension_numbers<[1], [0], [0], [1], [0, 0, 1, 1], [], []>} : vector<64x64xbf16>, vector<64x8xbf16>, vector<64x8xf32> -> vector<64x8xf32>
    %377 = vector.extract_strided_slice %310 {offsets = [0, 24], sizes = [64, 8], strides = [1, 1]} : vector<64x96xf32> to vector<64x8xf32>
    %378 = vector.extract_strided_slice %310 {offsets = [0, 56], sizes = [64, 8], strides = [1, 1]} : vector<64x96xf32> to vector<64x8xf32>
    %379 = vector.extract_strided_slice %310 {offsets = [0, 88], sizes = [64, 8], strides = [1, 1]} : vector<64x96xf32> to vector<64x8xf32>
    %380 = arith.truncf %377 : vector<64x8xf32> to vector<64x8xbf16>
    %381 = arith.truncf %378 : vector<64x8xf32> to vector<64x8xbf16>
    %cst_144 = arith.constant dense<0.000000e+00> : vector<64x64xf32>
    %382 = tpu.matmul %380, %381, %cst_144 {dimension_numbers = #tpu.dot_dimension_numbers<[1], [1], [0], [0], [0, 0, 1, 0], [], []>} : vector<64x8xbf16>, vector<64x8xbf16>, vector<64x64xf32> -> vector<64x64xf32>
    %c7 = arith.constant 7 : index
    %c0_145 = arith.constant 0 : index
    %c0_146 = arith.constant 0 : index
    %383 = vector.load %arg2[%c7, %c0_145, %c0_146] : memref<8x64x64xf32, #tpu.memory_space<vmem>>, vector<1x64x64xf32>
    %384 = vector.shape_cast %383 : vector<1x64x64xf32> to vector<64x64xf32>
    %385 = arith.addf %382, %384 : vector<64x64xf32>
    %cst_147 = arith.constant dense<0xFF800000> : vector<64xf32>
    %386 = vector.multi_reduction <maximumf>, %385, %cst_147 [1] : vector<64x64xf32> to vector<64xf32>
    %387 = vector.shape_cast %386 : vector<64xf32> to vector<64x1xf32>
    %388 = vector.broadcast %387 : vector<64x1xf32> to vector<64x64xf32>
    %389 = arith.subf %385, %388 : vector<64x64xf32>
    %390 = math.exp %389 : vector<64x64xf32>
    %cst_148 = arith.constant dense<0.000000e+00> : vector<64xf32>
    %391 = vector.multi_reduction <add>, %390, %cst_148 [1] : vector<64x64xf32> to vector<64xf32>
    %392 = vector.shape_cast %391 : vector<64xf32> to vector<64x1xf32>
    %393 = tpu.reciprocal %392 {approx = true} : vector<64x1xf32> -> vector<64x1xf32>
    %394 = vector.broadcast %393 : vector<64x1xf32> to vector<64x64xf32>
    %395 = arith.mulf %390, %394 : vector<64x64xf32>
    %396 = arith.truncf %395 : vector<64x64xf32> to vector<64x64xbf16>
    %397 = arith.truncf %379 : vector<64x8xf32> to vector<64x8xbf16>
    %cst_149 = arith.constant dense<0.000000e+00> : vector<64x8xf32>
    %398 = tpu.matmul %396, %397, %cst_149 {dimension_numbers = #tpu.dot_dimension_numbers<[1], [0], [0], [1], [0, 0, 1, 1], [], []>} : vector<64x64xbf16>, vector<64x8xbf16>, vector<64x8xf32> -> vector<64x8xf32>
    %399 = tpu.concatenate %332, %354, %376, %398 in 1 : vector<64x8xf32>, vector<64x8xf32>, vector<64x8xf32>, vector<64x8xf32> -> vector<64x32xf32>
    %400 = vector.extract_strided_slice %309 {offsets = [64, 0], sizes = [64, 96], strides = [1, 1]} : vector<128x96xf32> to vector<64x96xf32>
    %401 = vector.extract_strided_slice %400 {offsets = [0, 0], sizes = [64, 8], strides = [1, 1]} : vector<64x96xf32> to vector<64x8xf32>
    %402 = vector.extract_strided_slice %400 {offsets = [0, 32], sizes = [64, 8], strides = [1, 1]} : vector<64x96xf32> to vector<64x8xf32>
    %403 = vector.extract_strided_slice %400 {offsets = [0, 64], sizes = [64, 8], strides = [1, 1]} : vector<64x96xf32> to vector<64x8xf32>
    %404 = arith.truncf %401 : vector<64x8xf32> to vector<64x8xbf16>
    %405 = arith.truncf %402 : vector<64x8xf32> to vector<64x8xbf16>
    %cst_150 = arith.constant dense<0.000000e+00> : vector<64x64xf32>
    %406 = tpu.matmul %404, %405, %cst_150 {dimension_numbers = #tpu.dot_dimension_numbers<[1], [1], [0], [0], [0, 0, 1, 0], [], []>} : vector<64x8xbf16>, vector<64x8xbf16>, vector<64x64xf32> -> vector<64x64xf32>
    %c4_151 = arith.constant 4 : index
    %c0_152 = arith.constant 0 : index
    %c0_153 = arith.constant 0 : index
    %407 = vector.load %arg2[%c4_151, %c0_152, %c0_153] : memref<8x64x64xf32, #tpu.memory_space<vmem>>, vector<1x64x64xf32>
    %408 = vector.shape_cast %407 : vector<1x64x64xf32> to vector<64x64xf32>
    %409 = arith.addf %406, %408 : vector<64x64xf32>
    %cst_154 = arith.constant dense<0xFF800000> : vector<64xf32>
    %410 = vector.multi_reduction <maximumf>, %409, %cst_154 [1] : vector<64x64xf32> to vector<64xf32>
    %411 = vector.shape_cast %410 : vector<64xf32> to vector<64x1xf32>
    %412 = vector.broadcast %411 : vector<64x1xf32> to vector<64x64xf32>
    %413 = arith.subf %409, %412 : vector<64x64xf32>
    %414 = math.exp %413 : vector<64x64xf32>
    %cst_155 = arith.constant dense<0.000000e+00> : vector<64xf32>
    %415 = vector.multi_reduction <add>, %414, %cst_155 [1] : vector<64x64xf32> to vector<64xf32>
    %416 = vector.shape_cast %415 : vector<64xf32> to vector<64x1xf32>
    %417 = tpu.reciprocal %416 {approx = true} : vector<64x1xf32> -> vector<64x1xf32>
    %418 = vector.broadcast %417 : vector<64x1xf32> to vector<64x64xf32>
    %419 = arith.mulf %414, %418 : vector<64x64xf32>
    %420 = arith.truncf %419 : vector<64x64xf32> to vector<64x64xbf16>
    %421 = arith.truncf %403 : vector<64x8xf32> to vector<64x8xbf16>
    %cst_156 = arith.constant dense<0.000000e+00> : vector<64x8xf32>
    %422 = tpu.matmul %420, %421, %cst_156 {dimension_numbers = #tpu.dot_dimension_numbers<[1], [0], [0], [1], [0, 0, 1, 1], [], []>} : vector<64x64xbf16>, vector<64x8xbf16>, vector<64x8xf32> -> vector<64x8xf32>
    %423 = vector.extract_strided_slice %400 {offsets = [0, 8], sizes = [64, 8], strides = [1, 1]} : vector<64x96xf32> to vector<64x8xf32>
    %424 = vector.extract_strided_slice %400 {offsets = [0, 40], sizes = [64, 8], strides = [1, 1]} : vector<64x96xf32> to vector<64x8xf32>
    %425 = vector.extract_strided_slice %400 {offsets = [0, 72], sizes = [64, 8], strides = [1, 1]} : vector<64x96xf32> to vector<64x8xf32>
    %426 = arith.truncf %423 : vector<64x8xf32> to vector<64x8xbf16>
    %427 = arith.truncf %424 : vector<64x8xf32> to vector<64x8xbf16>
    %cst_157 = arith.constant dense<0.000000e+00> : vector<64x64xf32>
    %428 = tpu.matmul %426, %427, %cst_157 {dimension_numbers = #tpu.dot_dimension_numbers<[1], [1], [0], [0], [0, 0, 1, 0], [], []>} : vector<64x8xbf16>, vector<64x8xbf16>, vector<64x64xf32> -> vector<64x64xf32>
    %c5_158 = arith.constant 5 : index
    %c0_159 = arith.constant 0 : index
    %c0_160 = arith.constant 0 : index
    %429 = vector.load %arg2[%c5_158, %c0_159, %c0_160] : memref<8x64x64xf32, #tpu.memory_space<vmem>>, vector<1x64x64xf32>
    %430 = vector.shape_cast %429 : vector<1x64x64xf32> to vector<64x64xf32>
    %431 = arith.addf %428, %430 : vector<64x64xf32>
    %cst_161 = arith.constant dense<0xFF800000> : vector<64xf32>
    %432 = vector.multi_reduction <maximumf>, %431, %cst_161 [1] : vector<64x64xf32> to vector<64xf32>
    %433 = vector.shape_cast %432 : vector<64xf32> to vector<64x1xf32>
    %434 = vector.broadcast %433 : vector<64x1xf32> to vector<64x64xf32>
    %435 = arith.subf %431, %434 : vector<64x64xf32>
    %436 = math.exp %435 : vector<64x64xf32>
    %cst_162 = arith.constant dense<0.000000e+00> : vector<64xf32>
    %437 = vector.multi_reduction <add>, %436, %cst_162 [1] : vector<64x64xf32> to vector<64xf32>
    %438 = vector.shape_cast %437 : vector<64xf32> to vector<64x1xf32>
    %439 = tpu.reciprocal %438 {approx = true} : vector<64x1xf32> -> vector<64x1xf32>
    %440 = vector.broadcast %439 : vector<64x1xf32> to vector<64x64xf32>
    %441 = arith.mulf %436, %440 : vector<64x64xf32>
    %442 = arith.truncf %441 : vector<64x64xf32> to vector<64x64xbf16>
    %443 = arith.truncf %425 : vector<64x8xf32> to vector<64x8xbf16>
    %cst_163 = arith.constant dense<0.000000e+00> : vector<64x8xf32>
    %444 = tpu.matmul %442, %443, %cst_163 {dimension_numbers = #tpu.dot_dimension_numbers<[1], [0], [0], [1], [0, 0, 1, 1], [], []>} : vector<64x64xbf16>, vector<64x8xbf16>, vector<64x8xf32> -> vector<64x8xf32>
    %445 = vector.extract_strided_slice %400 {offsets = [0, 16], sizes = [64, 8], strides = [1, 1]} : vector<64x96xf32> to vector<64x8xf32>
    %446 = vector.extract_strided_slice %400 {offsets = [0, 48], sizes = [64, 8], strides = [1, 1]} : vector<64x96xf32> to vector<64x8xf32>
    %447 = vector.extract_strided_slice %400 {offsets = [0, 80], sizes = [64, 8], strides = [1, 1]} : vector<64x96xf32> to vector<64x8xf32>
    %448 = arith.truncf %445 : vector<64x8xf32> to vector<64x8xbf16>
    %449 = arith.truncf %446 : vector<64x8xf32> to vector<64x8xbf16>
    %cst_164 = arith.constant dense<0.000000e+00> : vector<64x64xf32>
    %450 = tpu.matmul %448, %449, %cst_164 {dimension_numbers = #tpu.dot_dimension_numbers<[1], [1], [0], [0], [0, 0, 1, 0], [], []>} : vector<64x8xbf16>, vector<64x8xbf16>, vector<64x64xf32> -> vector<64x64xf32>
    %c6_165 = arith.constant 6 : index
    %c0_166 = arith.constant 0 : index
    %c0_167 = arith.constant 0 : index
    %451 = vector.load %arg2[%c6_165, %c0_166, %c0_167] : memref<8x64x64xf32, #tpu.memory_space<vmem>>, vector<1x64x64xf32>
    %452 = vector.shape_cast %451 : vector<1x64x64xf32> to vector<64x64xf32>
    %453 = arith.addf %450, %452 : vector<64x64xf32>
    %cst_168 = arith.constant dense<0xFF800000> : vector<64xf32>
    %454 = vector.multi_reduction <maximumf>, %453, %cst_168 [1] : vector<64x64xf32> to vector<64xf32>
    %455 = vector.shape_cast %454 : vector<64xf32> to vector<64x1xf32>
    %456 = vector.broadcast %455 : vector<64x1xf32> to vector<64x64xf32>
    %457 = arith.subf %453, %456 : vector<64x64xf32>
    %458 = math.exp %457 : vector<64x64xf32>
    %cst_169 = arith.constant dense<0.000000e+00> : vector<64xf32>
    %459 = vector.multi_reduction <add>, %458, %cst_169 [1] : vector<64x64xf32> to vector<64xf32>
    %460 = vector.shape_cast %459 : vector<64xf32> to vector<64x1xf32>
    %461 = tpu.reciprocal %460 {approx = true} : vector<64x1xf32> -> vector<64x1xf32>
    %462 = vector.broadcast %461 : vector<64x1xf32> to vector<64x64xf32>
    %463 = arith.mulf %458, %462 : vector<64x64xf32>
    %464 = arith.truncf %463 : vector<64x64xf32> to vector<64x64xbf16>
    %465 = arith.truncf %447 : vector<64x8xf32> to vector<64x8xbf16>
    %cst_170 = arith.constant dense<0.000000e+00> : vector<64x8xf32>
    %466 = tpu.matmul %464, %465, %cst_170 {dimension_numbers = #tpu.dot_dimension_numbers<[1], [0], [0], [1], [0, 0, 1, 1], [], []>} : vector<64x64xbf16>, vector<64x8xbf16>, vector<64x8xf32> -> vector<64x8xf32>
    %467 = vector.extract_strided_slice %400 {offsets = [0, 24], sizes = [64, 8], strides = [1, 1]} : vector<64x96xf32> to vector<64x8xf32>
    %468 = vector.extract_strided_slice %400 {offsets = [0, 56], sizes = [64, 8], strides = [1, 1]} : vector<64x96xf32> to vector<64x8xf32>
    %469 = vector.extract_strided_slice %400 {offsets = [0, 88], sizes = [64, 8], strides = [1, 1]} : vector<64x96xf32> to vector<64x8xf32>
    %470 = arith.truncf %467 : vector<64x8xf32> to vector<64x8xbf16>
    %471 = arith.truncf %468 : vector<64x8xf32> to vector<64x8xbf16>
    %cst_171 = arith.constant dense<0.000000e+00> : vector<64x64xf32>
    %472 = tpu.matmul %470, %471, %cst_171 {dimension_numbers = #tpu.dot_dimension_numbers<[1], [1], [0], [0], [0, 0, 1, 0], [], []>} : vector<64x8xbf16>, vector<64x8xbf16>, vector<64x64xf32> -> vector<64x64xf32>
    %c7_172 = arith.constant 7 : index
    %c0_173 = arith.constant 0 : index
    %c0_174 = arith.constant 0 : index
    %473 = vector.load %arg2[%c7_172, %c0_173, %c0_174] : memref<8x64x64xf32, #tpu.memory_space<vmem>>, vector<1x64x64xf32>
    %474 = vector.shape_cast %473 : vector<1x64x64xf32> to vector<64x64xf32>
    %475 = arith.addf %472, %474 : vector<64x64xf32>
    %cst_175 = arith.constant dense<0xFF800000> : vector<64xf32>
    %476 = vector.multi_reduction <maximumf>, %475, %cst_175 [1] : vector<64x64xf32> to vector<64xf32>
    %477 = vector.shape_cast %476 : vector<64xf32> to vector<64x1xf32>
    %478 = vector.broadcast %477 : vector<64x1xf32> to vector<64x64xf32>
    %479 = arith.subf %475, %478 : vector<64x64xf32>
    %480 = math.exp %479 : vector<64x64xf32>
    %cst_176 = arith.constant dense<0.000000e+00> : vector<64xf32>
    %481 = vector.multi_reduction <add>, %480, %cst_176 [1] : vector<64x64xf32> to vector<64xf32>
    %482 = vector.shape_cast %481 : vector<64xf32> to vector<64x1xf32>
    %483 = tpu.reciprocal %482 {approx = true} : vector<64x1xf32> -> vector<64x1xf32>
    %484 = vector.broadcast %483 : vector<64x1xf32> to vector<64x64xf32>
    %485 = arith.mulf %480, %484 : vector<64x64xf32>
    %486 = arith.truncf %485 : vector<64x64xf32> to vector<64x64xbf16>
    %487 = arith.truncf %469 : vector<64x8xf32> to vector<64x8xbf16>
    %cst_177 = arith.constant dense<0.000000e+00> : vector<64x8xf32>
    %488 = tpu.matmul %486, %487, %cst_177 {dimension_numbers = #tpu.dot_dimension_numbers<[1], [0], [0], [1], [0, 0, 1, 1], [], []>} : vector<64x64xbf16>, vector<64x8xbf16>, vector<64x8xf32> -> vector<64x8xf32>
    %489 = tpu.concatenate %422, %444, %466, %488 in 1 : vector<64x8xf32>, vector<64x8xf32>, vector<64x8xf32>, vector<64x8xf32> -> vector<64x32xf32>
    %490 = tpu.concatenate %399, %489 in 0 : vector<64x32xf32>, vector<64x32xf32> -> vector<128x32xf32>
    %491 = arith.truncf %490 : vector<128x32xf32> to vector<128x32xbf16>
    %c1_178 = arith.constant 1 : index
    %c0_179 = arith.constant 0 : index
    %c0_180 = arith.constant 0 : index
    %492 = vector.load %arg7[%c1_178, %c0_179, %c0_180] : memref<2x32x32xbf16, #tpu.memory_space<vmem>>, vector<1x32x32xbf16>
    %493 = vector.shape_cast %492 : vector<1x32x32xbf16> to vector<32x32xbf16>
    %cst_181 = arith.constant dense<0.000000e+00> : vector<128x32xf32>
    %494 = tpu.matmul %491, %493, %cst_181 {dimension_numbers = #tpu.dot_dimension_numbers<[1], [0], [0], [1], [0, 0, 1, 1], [], []>} : vector<128x32xbf16>, vector<32x32xbf16>, vector<128x32xf32> -> vector<128x32xf32>
    %c1_182 = arith.constant 1 : index
    %c0_183 = arith.constant 0 : index
    %c0_184 = arith.constant 0 : index
    %495 = vector.load %arg8[%c1_182, %c0_183, %c0_184] : memref<2x1x32xf32, #tpu.memory_space<vmem>>, vector<1x1x32xf32>
    %496 = vector.shape_cast %495 : vector<1x1x32xf32> to vector<1x32xf32>
    %497 = vector.broadcast %496 : vector<1x32xf32> to vector<128x32xf32>
    %498 = arith.addf %494, %497 : vector<128x32xf32>
    %499 = arith.addf %277, %498 : vector<128x32xf32>
    %c1_185 = arith.constant 1 : index
    %c0_186 = arith.constant 0 : index
    %c0_187 = arith.constant 0 : index
    %500 = vector.load %arg9[%c1_185, %c0_186, %c0_187] : memref<2x1x32xf32, #tpu.memory_space<vmem>>, vector<1x1x32xf32>
    %501 = vector.shape_cast %500 : vector<1x1x32xf32> to vector<1x32xf32>
    %c1_188 = arith.constant 1 : index
    %c0_189 = arith.constant 0 : index
    %c0_190 = arith.constant 0 : index
    %502 = vector.load %arg10[%c1_188, %c0_189, %c0_190] : memref<2x1x32xf32, #tpu.memory_space<vmem>>, vector<1x1x32xf32>
    %503 = vector.shape_cast %502 : vector<1x1x32xf32> to vector<1x32xf32>
    %cst_191 = arith.constant dense<0.000000e+00> : vector<128xf32>
    %504 = vector.multi_reduction <add>, %499, %cst_191 [1] : vector<128x32xf32> to vector<128xf32>
    %505 = vector.shape_cast %504 : vector<128xf32> to vector<128x1xf32>
    %cst_192 = arith.constant 3.200000e+01 : f32
    %506 = vector.broadcast %cst_192 : f32 to vector<128x1xf32>
    %507 = arith.divf %505, %506 : vector<128x1xf32>
    %508 = vector.broadcast %507 : vector<128x1xf32> to vector<128x32xf32>
    %509 = arith.subf %499, %508 : vector<128x32xf32>
    %510 = arith.mulf %509, %509 : vector<128x32xf32>
    %cst_193 = arith.constant dense<0.000000e+00> : vector<128xf32>
    %511 = vector.multi_reduction <add>, %510, %cst_193 [1] : vector<128x32xf32> to vector<128xf32>
    %512 = vector.shape_cast %511 : vector<128xf32> to vector<128x1xf32>
    %cst_194 = arith.constant 3.200000e+01 : f32
    %513 = vector.broadcast %cst_194 : f32 to vector<128x1xf32>
    %514 = arith.divf %512, %513 : vector<128x1xf32>
    %cst_195 = arith.constant 9.99999974E-6 : f32
    %515 = vector.broadcast %cst_195 : f32 to vector<128x1xf32>
    %516 = arith.addf %514, %515 : vector<128x1xf32>
    %517 = math.rsqrt %516 : vector<128x1xf32>
    %518 = vector.broadcast %517 : vector<128x1xf32> to vector<128x32xf32>
    %519 = arith.mulf %509, %518 : vector<128x32xf32>
    %520 = vector.broadcast %501 : vector<1x32xf32> to vector<128x32xf32>
    %521 = arith.mulf %519, %520 : vector<128x32xf32>
    %522 = vector.broadcast %503 : vector<1x32xf32> to vector<128x32xf32>
    %523 = arith.addf %521, %522 : vector<128x32xf32>
    %524 = arith.truncf %523 : vector<128x32xf32> to vector<128x32xbf16>
    %c1_196 = arith.constant 1 : index
    %c0_197 = arith.constant 0 : index
    %c0_198 = arith.constant 0 : index
    %525 = vector.load %arg11[%c1_196, %c0_197, %c0_198] : memref<2x32x128xbf16, #tpu.memory_space<vmem>>, vector<1x32x128xbf16>
    %526 = vector.shape_cast %525 : vector<1x32x128xbf16> to vector<32x128xbf16>
    %cst_199 = arith.constant dense<0.000000e+00> : vector<128x128xf32>
    %527 = tpu.matmul %524, %526, %cst_199 {dimension_numbers = #tpu.dot_dimension_numbers<[1], [0], [0], [1], [0, 0, 1, 1], [], []>} : vector<128x32xbf16>, vector<32x128xbf16>, vector<128x128xf32> -> vector<128x128xf32>
    %c1_200 = arith.constant 1 : index
    %c0_201 = arith.constant 0 : index
    %c0_202 = arith.constant 0 : index
    %528 = vector.load %arg12[%c1_200, %c0_201, %c0_202] : memref<2x1x128xf32, #tpu.memory_space<vmem>>, vector<1x1x128xf32>
    %529 = vector.shape_cast %528 : vector<1x1x128xf32> to vector<1x128xf32>
    %530 = vector.broadcast %529 : vector<1x128xf32> to vector<128x128xf32>
    %531 = arith.addf %527, %530 : vector<128x128xf32>
    %cst_203 = arith.constant 5.000000e-01 : f32
    %532 = vector.broadcast %cst_203 : f32 to vector<128x128xf32>
    %533 = arith.mulf %532, %531 : vector<128x128xf32>
    %cst_204 = arith.constant 4.471500e-02 : f32
    %534 = vector.broadcast %cst_204 : f32 to vector<128x128xf32>
    %535 = arith.mulf %534, %531 : vector<128x128xf32>
    %536 = arith.mulf %535, %531 : vector<128x128xf32>
    %537 = arith.mulf %536, %531 : vector<128x128xf32>
    %538 = arith.addf %531, %537 : vector<128x128xf32>
    %cst_205 = arith.constant 0.797884583 : f32
    %539 = vector.broadcast %cst_205 : f32 to vector<128x128xf32>
    %540 = arith.mulf %539, %538 : vector<128x128xf32>
    %541 = math.tanh %540 : vector<128x128xf32>
    %cst_206 = arith.constant 1.000000e+00 : f32
    %542 = vector.broadcast %cst_206 : f32 to vector<128x128xf32>
    %543 = arith.addf %542, %541 : vector<128x128xf32>
    %544 = arith.mulf %533, %543 : vector<128x128xf32>
    %545 = arith.truncf %544 : vector<128x128xf32> to vector<128x128xbf16>
    %c1_207 = arith.constant 1 : index
    %c0_208 = arith.constant 0 : index
    %c0_209 = arith.constant 0 : index
    %546 = vector.load %arg13[%c1_207, %c0_208, %c0_209] : memref<2x128x32xbf16, #tpu.memory_space<vmem>>, vector<1x128x32xbf16>
    %547 = vector.shape_cast %546 : vector<1x128x32xbf16> to vector<128x32xbf16>
    %cst_210 = arith.constant dense<0.000000e+00> : vector<128x32xf32>
    %548 = tpu.matmul %545, %547, %cst_210 {dimension_numbers = #tpu.dot_dimension_numbers<[1], [0], [0], [1], [0, 0, 1, 1], [], []>} : vector<128x128xbf16>, vector<128x32xbf16>, vector<128x32xf32> -> vector<128x32xf32>
    %c1_211 = arith.constant 1 : index
    %c0_212 = arith.constant 0 : index
    %c0_213 = arith.constant 0 : index
    %549 = vector.load %arg14[%c1_211, %c0_212, %c0_213] : memref<2x1x32xf32, #tpu.memory_space<vmem>>, vector<1x1x32xf32>
    %550 = vector.shape_cast %549 : vector<1x1x32xf32> to vector<1x32xf32>
    %551 = vector.broadcast %550 : vector<1x32xf32> to vector<128x32xf32>
    %552 = arith.addf %548, %551 : vector<128x32xf32>
    %553 = arith.addf %499, %552 : vector<128x32xf32>
    %554 = vector.shape_cast %553 : vector<128x32xf32> to vector<2x64x32xf32>
    %c0_214 = arith.constant 0 : index
    %c0_215 = arith.constant 0 : index
    %c0_216 = arith.constant 0 : index
    %555 = vector.load %arg15[%c0_214, %c0_215, %c0_216] : memref<2x64x32xf32, #tpu.memory_space<vmem>>, vector<2x64x32xf32>
    tpu.vector_store %arg15[%c0_214, %c0_215, %c0_216], %554 {strides = array<i32>} : memref<2x64x32xf32, #tpu.memory_space<vmem>>, vector<2x64x32xf32>,
    return
  }
  func.func @transform_0(%arg0: i32) -> (i32, i32, i32) {
    %c0_i32 = arith.constant 0 : i32
    %c0_i32_0 = arith.constant 0 : i32
    %c0_i32_1 = arith.constant 0 : i32
    return %arg0, %c0_i32, %c0_i32_0 : i32, i32, i32
  }
  func.func @transform_1(%arg0: i32) -> (i32, i32, i32) {
    %c0_i32 = arith.constant 0 : i32
    %c0_i32_0 = arith.constant 0 : i32
    %c0_i32_1 = arith.constant 0 : i32
    %c0_i32_2 = arith.constant 0 : i32
    return %c0_i32, %c0_i32_0, %c0_i32_1 : i32, i32, i32
  }
  func.func @transform_2(%arg0: i32) -> (i32, i32, i32) {
    %c0_i32 = arith.constant 0 : i32
    %c0_i32_0 = arith.constant 0 : i32
    %c0_i32_1 = arith.constant 0 : i32
    %c0_i32_2 = arith.constant 0 : i32
    return %c0_i32, %c0_i32_0, %c0_i32_1 : i32, i32, i32
  }
  func.func @transform_3(%arg0: i32) -> (i32, i32, i32) {
    %c0_i32 = arith.constant 0 : i32
    %c0_i32_0 = arith.constant 0 : i32
    %c0_i32_1 = arith.constant 0 : i32
    %c0_i32_2 = arith.constant 0 : i32
    return %c0_i32, %c0_i32_0, %c0_i32_1 : i32, i32, i32
  }
  func.func @transform_4(%arg0: i32) -> (i32, i32, i32) {
    %c0_i32 = arith.constant 0 : i32
    %c0_i32_0 = arith.constant 0 : i32
    %c0_i32_1 = arith.constant 0 : i32
    %c0_i32_2 = arith.constant 0 : i32
    return %c0_i32, %c0_i32_0, %c0_i32_1 : i32, i32, i32
  }
  func.func @transform_5(%arg0: i32) -> (i32, i32, i32) {
    %c0_i32 = arith.constant 0 : i32
    %c0_i32_0 = arith.constant 0 : i32
    %c0_i32_1 = arith.constant 0 : i32
    %c0_i32_2 = arith.constant 0 : i32
    return %c0_i32, %c0_i32_0, %c0_i32_1 : i32, i32, i32
  }
  func.func @transform_6(%arg0: i32) -> (i32, i32, i32) {
    %c0_i32 = arith.constant 0 : i32
    %c0_i32_0 = arith.constant 0 : i32
    %c0_i32_1 = arith.constant 0 : i32
    %c0_i32_2 = arith.constant 0 : i32
    return %c0_i32, %c0_i32_0, %c0_i32_1 : i32, i32, i32
  }
  func.func @transform_7(%arg0: i32) -> (i32, i32, i32) {
    %c0_i32 = arith.constant 0 : i32
    %c0_i32_0 = arith.constant 0 : i32
    %c0_i32_1 = arith.constant 0 : i32
    %c0_i32_2 = arith.constant 0 : i32
    return %c0_i32, %c0_i32_0, %c0_i32_1 : i32, i32, i32
  }
  func.func @transform_8(%arg0: i32) -> (i32, i32, i32) {
    %c0_i32 = arith.constant 0 : i32
    %c0_i32_0 = arith.constant 0 : i32
    %c0_i32_1 = arith.constant 0 : i32
    %c0_i32_2 = arith.constant 0 : i32
    return %c0_i32, %c0_i32_0, %c0_i32_1 : i32, i32, i32
  }
  func.func @transform_9(%arg0: i32) -> (i32, i32, i32) {
    %c0_i32 = arith.constant 0 : i32
    %c0_i32_0 = arith.constant 0 : i32
    %c0_i32_1 = arith.constant 0 : i32
    %c0_i32_2 = arith.constant 0 : i32
    return %c0_i32, %c0_i32_0, %c0_i32_1 : i32, i32, i32
  }
  func.func @transform_10(%arg0: i32) -> (i32, i32, i32) {
    %c0_i32 = arith.constant 0 : i32
    %c0_i32_0 = arith.constant 0 : i32
    %c0_i32_1 = arith.constant 0 : i32
    %c0_i32_2 = arith.constant 0 : i32
    return %c0_i32, %c0_i32_0, %c0_i32_1 : i32, i32, i32
  }
  func.func @transform_11(%arg0: i32) -> (i32, i32, i32) {
    %c0_i32 = arith.constant 0 : i32
    %c0_i32_0 = arith.constant 0 : i32
    %c0_i32_1 = arith.constant 0 : i32
    %c0_i32_2 = arith.constant 0 : i32
    return %c0_i32, %c0_i32_0, %c0_i32_1 : i32, i32, i32
  }
  func.func @transform_12(%arg0: i32) -> (i32, i32, i32) {
    %c0_i32 = arith.constant 0 : i32
    %c0_i32_0 = arith.constant 0 : i32
    %c0_i32_1 = arith.constant 0 : i32
    %c0_i32_2 = arith.constant 0 : i32
    return %c0_i32, %c0_i32_0, %c0_i32_1 : i32, i32, i32
  }
  func.func @transform_13(%arg0: i32) -> (i32, i32, i32) {
    %c0_i32 = arith.constant 0 : i32
    %c0_i32_0 = arith.constant 0 : i32
    %c0_i32_1 = arith.constant 0 : i32
    %c0_i32_2 = arith.constant 0 : i32
    return %c0_i32, %c0_i32_0, %c0_i32_1 : i32, i32, i32
  }
  func.func @transform_14(%arg0: i32) -> (i32, i32, i32) {
    %c0_i32 = arith.constant 0 : i32
    %c0_i32_0 = arith.constant 0 : i32
    %c0_i32_1 = arith.constant 0 : i32
    return %arg0, %c0_i32, %c0_i32_0 : i32, i32, i32
  }
}

</mosaic_0001>

<llo_original>
// kernel: tpu_custom_call.1
$region0: #{tpu_custom_call.1}
  #allocation0 [shape = 'u32[]', space=smem, size = 0x4, offset = 0x4, fixed_abs, tag = 'smem constant byte address 0x4 - core index']
  #allocation1 [shape = 'u32[144,128]{1,0:T(1,128)}', space=vmem, size = 0x12000, scoped, tag = 'internal scratch']
  %s0 = inlined_call_operand.vmem [shape: f32[2,64,32], index: 0, kind: input, shape index: {}]
  %s1 = inlined_call_operand.hbm [shape: f32[8,64,64], index: 1, kind: input, shape index: {}]
  %s2 = inlined_call_operand.vmem [shape: f32[2,1,32], index: 2, kind: input, shape index: {}]
  %s3 = inlined_call_operand.vmem [shape: f32[2,1,32], index: 3, kind: input, shape index: {}]
  %s4 = inlined_call_operand.vmem [shape: bf16[2,32,96], index: 4, kind: input, shape index: {}]
  %s5 = inlined_call_operand.vmem [shape: f32[2,1,96], index: 5, kind: input, shape index: {}]
  %s6 = inlined_call_operand.vmem [shape: bf16[2,32,32], index: 6, kind: input, shape index: {}]
  %s7 = inlined_call_operand.vmem [shape: f32[2,1,32], index: 7, kind: input, shape index: {}]
  %s8 = inlined_call_operand.vmem [shape: f32[2,1,32], index: 8, kind: input, shape index: {}]
  %s9 = inlined_call_operand.vmem [shape: f32[2,1,32], index: 9, kind: input, shape index: {}]
  %s10 = inlined_call_operand.vmem [shape: bf16[2,32,128], index: 10, kind: input, shape index: {}]
  %s11 = inlined_call_operand.vmem [shape: f32[2,1,128], index: 11, kind: input, shape index: {}]
  %s12 = inlined_call_operand.vmem [shape: bf16[2,128,32], index: 12, kind: input, shape index: {}]
  %s13 = inlined_call_operand.vmem [shape: f32[2,1,32], index: 13, kind: input, shape index: {}]
  %s14 = inlined_call_operand.vmem [shape: f32[2,64,32], index: 14, kind: output, shape index: {}]
  %s15 = sld [smem:[#allocation0]]
  $region70: #{tpu_custom_call.1} parent=0
    _
  %s17 = ssub.s32 1, %s15
  %s18 = scalar_select 0, %s17, %s15
  $region1: #{tpu_custom_call.1} parent=0
    #allocation2 [shape = 'u8[262144]{0}', space=vmem, size = 0x40000, scoped, tag = 'input window, operand 1, single buffered']
    #allocation3 [shape = 's32[1]{0}', space=sflag, size = 0x4, scoped, tag = 'scoped memory for tpu_custom_call.1']
    %19 = vsyncpa [#allocation3], 0
    // Predicated region
    $region2: #{tpu_custom_call.1} parent=1 // pred_check
      _
    $region3: #{tpu_custom_call.1} parent=1 // pred_check_branch
      %21 = sbr.rel (0) target = $region5
    $region4: #{tpu_custom_call.1} parent=1 // pred_region
      _
    $region5: #{tpu_custom_call.1} parent=1 // pred_fallthru
      _
    // Predicated region
    $region6: #{tpu_custom_call.1} parent=1 // pred_check
      _
    $region7: #{tpu_custom_call.1} parent=1 // pred_check_branch
      %23 = sbr.rel (0) target = $region9
    $region8: #{tpu_custom_call.1} parent=1 // pred_region
      %s25 = ssub.s32 8192, 8192
      %26 = vsyncadd [#allocation3], %s25
      %s27 = sshll.u32 [#allocation2], 4
      %s28 = int_to_ptr.vmem [resolvable:$true] %s27
      %33 = dma.hbm_to_vmem [thread:$0]  %s1, 8192, %s28, [#allocation3], 128, 128, 8
    $region9: #{tpu_custom_call.1} parent=1 // pred_fallthru
      _
    // Predicated region
    $region10: #{tpu_custom_call.1} parent=1 // pred_check
      _
    $region11: #{tpu_custom_call.1} parent=1 // pred_check_branch
      %35 = sbr.rel (0) target = $region13
    $region12: #{tpu_custom_call.1} parent=1 // pred_region
      _
    $region13: #{tpu_custom_call.1} parent=1 // pred_fallthru
      _
    // Predicated region
    $region14: #{tpu_custom_call.1} parent=1 // pred_check
      _
    $region15: #{tpu_custom_call.1} parent=1 // pred_check_branch
      %37 = sbr.rel (0) target = $region17
    $region16: #{tpu_custom_call.1} parent=1 // pred_region
      _
    $region17: #{tpu_custom_call.1} parent=1 // pred_fallthru
      _
    // Predicated region
    $region18: #{tpu_custom_call.1} parent=1 // pred_check
      _
    $region19: #{tpu_custom_call.1} parent=1 // pred_check_branch
      %39 = sbr.rel (0) target = $region21
    $region20: #{tpu_custom_call.1} parent=1 // pred_region
      _
    $region21: #{tpu_custom_call.1} parent=1 // pred_fallthru
      _
    // Predicated region
    $region22: #{tpu_custom_call.1} parent=1 // pred_check
      _
    $region23: #{tpu_custom_call.1} parent=1 // pred_check_branch
      %41 = sbr.rel (0) target = $region25
    $region24: #{tpu_custom_call.1} parent=1 // pred_region
      _
    $region25: #{tpu_custom_call.1} parent=1 // pred_fallthru
      _
    // Predicated region
    $region26: #{tpu_custom_call.1} parent=1 // pred_check
      _
    $region27: #{tpu_custom_call.1} parent=1 // pred_check_branch
      %43 = sbr.rel (0) target = $region29
    $region28: #{tpu_custom_call.1} parent=1 // pred_region
      _
    $region29: #{tpu_custom_call.1} parent=1 // pred_fallthru
      _
    // Predicated region
    $region30: #{tpu_custom_call.1} parent=1 // pred_check
      _
    $region31: #{tpu_custom_call.1} parent=1 // pred_check_branch
      %45 = sbr.rel (0) target = $region33
    $region32: #{tpu_custom_call.1} parent=1 // pred_region
      _
    $region33: #{tpu_custom_call.1} parent=1 // pred_fallthru
      _
    // Predicated region
    $region34: #{tpu_custom_call.1} parent=1 // pred_check
      _
    $region35: #{tpu_custom_call.1} parent=1 // pred_check_branch
      %47 = sbr.rel (0) target = $region37
    $region36: #{tpu_custom_call.1} parent=1 // pred_region
      _
    $region37: #{tpu_custom_call.1} parent=1 // pred_fallthru
      _
    // Predicated region
    $region38: #{tpu_custom_call.1} parent=1 // pred_check
      _
    $region39: #{tpu_custom_call.1} parent=1 // pred_check_branch
      %49 = sbr.rel (0) target = $region41
    $region40: #{tpu_custom_call.1} parent=1 // pred_region
      _
    $region41: #{tpu_custom_call.1} parent=1 // pred_fallthru
      _
    // Predicated region
    $region42: #{tpu_custom_call.1} parent=1 // pred_check
      _
    $region43: #{tpu_custom_call.1} parent=1 // pred_check_branch
      %51 = sbr.rel (0) target = $region45
    $region44: #{tpu_custom_call.1} parent=1 // pred_region
      _
    $region45: #{tpu_custom_call.1} parent=1 // pred_fallthru
      _
    // Predicated region
    $region46: #{tpu_custom_call.1} parent=1 // pred_check
      _
    $region47: #{tpu_custom_call.1} parent=1 // pred_check_branch
      %53 = sbr.rel (0) target = $region49
    $region48: #{tpu_custom_call.1} parent=1 // pred_region
      _
    $region49: #{tpu_custom_call.1} parent=1 // pred_fallthru
      _
    // Predicated region
    $region50: #{tpu_custom_call.1} parent=1 // pred_check
      _
    $region51: #{tpu_custom_call.1} parent=1 // pred_check_branch
      %55 = sbr.rel (0) target = $region53
    $region52: #{tpu_custom_call.1} parent=1 // pred_region
      _
    $region53: #{tpu_custom_call.1} parent=1 // pred_fallthru
      _
    // Predicated region
    $region54: #{tpu_custom_call.1} parent=1 // pred_check
      _
    $region55: #{tpu_custom_call.1} parent=1 // pred_check_branch
      %57 = sbr.rel (0) target = $region57
    $region56: #{tpu_custom_call.1} parent=1 // pred_region
      _
    $region57: #{tpu_custom_call.1} parent=1 // pred_fallthru
      _
    // Predicated region
    $region58: #{tpu_custom_call.1} parent=1 // pred_check
      _
    $region59: #{tpu_custom_call.1} parent=1 // pred_check_branch
      %59 = sbr.rel (0) target = $region61
    $region60: #{tpu_custom_call.1} parent=1 // pred_region
      %60 = dma.done [#allocation3], 8192
    $region61: #{tpu_custom_call.1} parent=1 // pred_fallthru
      _
    %v62 = vld [vmem:[%s0] sm:$0xff]
    %v63 = vld [vmem:[%s0 + $0x8] sm:$0xff]
    %v64 = vld [vmem:[%s0 + $0x10] sm:$0xff]
    %v65 = vld [vmem:[%s0 + $0x18] sm:$0xff]
    %v66 = vld [vmem:[%s0 + $0x20] sm:$0xff]
    %v67 = vld [vmem:[%s0 + $0x28] sm:$0xff]
    %v68 = vld [vmem:[%s0 + $0x30] sm:$0xff]
    %v69 = vld [vmem:[%s0 + $0x38] sm:$0xff]
    %v70 = vld [vmem:[%s0 + $0x40] sm:$0xff]
    %v71 = vld [vmem:[%s0 + $0x48] sm:$0xff]
    %v72 = vld [vmem:[%s0 + $0x50] sm:$0xff]
    %v73 = vld [vmem:[%s0 + $0x58] sm:$0xff]
    %v74 = vld [vmem:[%s0 + $0x60] sm:$0xff]
    %v75 = vld [vmem:[%s0 + $0x68] sm:$0xff]
    %v76 = vld [vmem:[%s0 + $0x70] sm:$0xff]
    %v77 = vld [vmem:[%s0 + $0x78] sm:$0xff]
    %v78 = vld [vmem:[%s2] sm:$0x1]
    %v79 = vld [vmem:[%s3] sm:$0x1]
    %vm80 = vcmask 261120
    %v81 = vsel %vm80, %v62, 0.0
    %82 = vadd.xlane.f32.xlu0 %v81
    %v83 = vpop.xlane.xlu0 %82
    %v84 = vsel %vm80, %v63, 0.0
    %85 = vadd.xlane.f32.xlu0 %v84
    %v86 = vpop.xlane.xlu0 %85
    %v87 = vsel %vm80, %v64, 0.0
    %88 = vadd.xlane.f32.xlu0 %v87
    %v89 = vpop.xlane.xlu0 %88
    %v90 = vsel %vm80, %v65, 0.0
    %91 = vadd.xlane.f32.xlu0 %v90
    %v92 = vpop.xlane.xlu0 %91
    %v93 = vsel %vm80, %v66, 0.0
    %94 = vadd.xlane.f32.xlu0 %v93
    %v95 = vpop.xlane.xlu0 %94
    %v96 = vsel %vm80, %v67, 0.0
    %97 = vadd.xlane.f32.xlu0 %v96
    %v98 = vpop.xlane.xlu0 %97
    %v99 = vsel %vm80, %v68, 0.0
    %100 = vadd.xlane.f32.xlu0 %v99
    %v101 = vpop.xlane.xlu0 %100
    %v102 = vsel %vm80, %v69, 0.0
    %103 = vadd.xlane.f32.xlu0 %v102
    %v104 = vpop.xlane.xlu0 %103
    %v105 = vsel %vm80, %v70, 0.0
    %106 = vadd.xlane.f32.xlu0 %v105
    %v107 = vpop.xlane.xlu0 %106
    %v108 = vsel %vm80, %v71, 0.0
    %109 = vadd.xlane.f32.xlu0 %v108
    %v110 = vpop.xlane.xlu0 %109
    %v111 = vsel %vm80, %v72, 0.0
    %112 = vadd.xlane.f32.xlu0 %v111
    %v113 = vpop.xlane.xlu0 %112
    %v114 = vsel %vm80, %v73, 0.0
    %115 = vadd.xlane.f32.xlu0 %v114
    %v116 = vpop.xlane.xlu0 %115
    %v117 = vsel %vm80, %v74, 0.0
    %118 = vadd.xlane.f32.xlu0 %v117
    %v119 = vpop.xlane.xlu0 %118
    %v120 = vsel %vm80, %v75, 0.0
    %121 = vadd.xlane.f32.xlu0 %v120
    %v122 = vpop.xlane.xlu0 %121
    %v123 = vsel %vm80, %v76, 0.0
    %124 = vadd.xlane.f32.xlu0 %v123
    %v125 = vpop.xlane.xlu0 %124
    %v126 = vsel %vm80, %v77, 0.0
    %127 = vadd.xlane.f32.xlu0 %v126
    %v128 = vpop.xlane.xlu0 %127
    %v129 = vrcp.pop 32.0
    %v130 = vmul.f32 %v83, %v129
    %v131 = vmul.f32 %v86, %v129
    %v132 = vmul.f32 %v89, %v129
    %v133 = vmul.f32 %v92, %v129
    %v134 = vmul.f32 %v95, %v129
    %v135 = vmul.f32 %v98, %v129
    %v136 = vmul.f32 %v101, %v129
    %v137 = vmul.f32 %v104, %v129
    %v138 = vmul.f32 %v107, %v129
    %v139 = vmul.f32 %v110, %v129
    %v140 = vmul.f32 %v113, %v129
    %v141 = vmul.f32 %v116, %v129
    %v142 = vmul.f32 %v119, %v129
    %v143 = vmul.f32 %v122, %v129
    %v144 = vmul.f32 %v125, %v129
    %v145 = vmul.f32 %v128, %v129
    %v146 = vsub.f32 %v62, %v130
    %v147 = vsub.f32 %v63, %v131
    %v148 = vsub.f32 %v64, %v132
    %v149 = vsub.f32 %v65, %v133
    %v150 = vsub.f32 %v66, %v134
    %v151 = vsub.f32 %v67, %v135
    %v152 = vsub.f32 %v68, %v136
    %v153 = vsub.f32 %v69, %v137
    %v154 = vsub.f32 %v70, %v138
    %v155 = vsub.f32 %v71, %v139
    %v156 = vsub.f32 %v72, %v140
    %v157 = vsub.f32 %v73, %v141
    %v158 = vsub.f32 %v74, %v142
    %v159 = vsub.f32 %v75, %v143
    %v160 = vsub.f32 %v76, %v144
    %v161 = vsub.f32 %v77, %v145
    %v162 = vmul.f32 %v146, %v146
    %v163 = vmul.f32 %v147, %v147
    %v164 = vmul.f32 %v148, %v148
    %v165 = vmul.f32 %v149, %v149
    %v166 = vmul.f32 %v150, %v150
    %v167 = vmul.f32 %v151, %v151
    %v168 = vmul.f32 %v152, %v152
    %v169 = vmul.f32 %v153, %v153
    %v170 = vmul.f32 %v154, %v154
    %v171 = vmul.f32 %v155, %v155
    %v172 = vmul.f32 %v156, %v156
    %v173 = vmul.f32 %v157, %v157
    %v174 = vmul.f32 %v158, %v158
    %v175 = vmul.f32 %v159, %v159
    %v176 = vmul.f32 %v160, %v160
    %v177 = vmul.f32 %v161, %v161
    %v178 = vsel %vm80, %v162, 0.0
    %179 = vadd.xlane.f32.xlu0 %v178
    %v180 = vpop.xlane.xlu0 %179
    %v181 = vsel %vm80, %v163, 0.0
    %182 = vadd.xlane.f32.xlu0 %v181
    %v183 = vpop.xlane.xlu0 %182
    %v184 = vsel %vm80, %v164, 0.0
    %185 = vadd.xlane.f32.xlu0 %v184
    %v186 = vpop.xlane.xlu0 %185
    %v187 = vsel %vm80, %v165, 0.0
    %188 = vadd.xlane.f32.xlu0 %v187
    %v189 = vpop.xlane.xlu0 %188
    %v190 = vsel %vm80, %v166, 0.0
    %191 = vadd.xlane.f32.xlu0 %v190
    %v192 = vpop.xlane.xlu0 %191
    %v193 = vsel %vm80, %v167, 0.0
    %194 = vadd.xlane.f32.xlu0 %v193
    %v195 = vpop.xlane.xlu0 %194
    %v196 = vsel %vm80, %v168, 0.0
    %197 = vadd.xlane.f32.xlu0 %v196
    %v198 = vpop.xlane.xlu0 %197
    %v199 = vsel %vm80, %v169, 0.0
    %200 = vadd.xlane.f32.xlu0 %v199
    %v201 = vpop.xlane.xlu0 %200
    %v202 = vsel %vm80, %v170, 0.0
    %203 = vadd.xlane.f32.xlu0 %v202
    %v204 = vpop.xlane.xlu0 %203
    %v205 = vsel %vm80, %v171, 0.0
    %206 = vadd.xlane.f32.xlu0 %v205
    %v207 = vpop.xlane.xlu0 %206
    %v208 = vsel %vm80, %v172, 0.0
    %209 = vadd.xlane.f32.xlu0 %v208
    %v210 = vpop.xlane.xlu0 %209
    %v211 = vsel %vm80, %v173, 0.0
    %212 = vadd.xlane.f32.xlu0 %v211
    %v213 = vpop.xlane.xlu0 %212
    %v214 = vsel %vm80, %v174, 0.0
    %215 = vadd.xlane.f32.xlu0 %v214
    %v216 = vpop.xlane.xlu0 %215
    %v217 = vsel %vm80, %v175, 0.0
    %218 = vadd.xlane.f32.xlu0 %v217
    %v219 = vpop.xlane.xlu0 %218
    %v220 = vsel %vm80, %v176, 0.0
    %221 = vadd.xlane.f32.xlu0 %v220
    %v222 = vpop.xlane.xlu0 %221
    %v223 = vsel %vm80, %v177, 0.0
    %224 = vadd.xlane.f32.xlu0 %v223
    %v225 = vpop.xlane.xlu0 %224
    %v226 = vmul.f32 %v180, %v129
    %v227 = vmul.f32 %v183, %v129
    %v228 = vmul.f32 %v186, %v129
    %v229 = vmul.f32 %v189, %v129
    %v230 = vmul.f32 %v192, %v129
    %v231 = vmul.f32 %v195, %v129
    %v232 = vmul.f32 %v198, %v129
    %v233 = vmul.f32 %v201, %v129
    %v234 = vmul.f32 %v204, %v129
    %v235 = vmul.f32 %v207, %v129
    %v236 = vmul.f32 %v210, %v129
    %v237 = vmul.f32 %v213, %v129
    %v238 = vmul.f32 %v216, %v129
    %v239 = vmul.f32 %v219, %v129
    %v240 = vmul.f32 %v222, %v129
    %v241 = vmul.f32 %v225, %v129
    %v242 = vadd.f32 %v226, 1e-05
    %v243 = vadd.f32 %v227, 1e-05
    %v244 = vadd.f32 %v228, 1e-05
    %v245 = vadd.f32 %v229, 1e-05
    %v246 = vadd.f32 %v230, 1e-05
    %v247 = vadd.f32 %v231, 1e-05
    %v248 = vadd.f32 %v232, 1e-05
    %v249 = vadd.f32 %v233, 1e-05
    %v250 = vadd.f32 %v234, 1e-05
    %v251 = vadd.f32 %v235, 1e-05
    %v252 = vadd.f32 %v236, 1e-05
    %v253 = vadd.f32 %v237, 1e-05
    %v254 = vadd.f32 %v238, 1e-05
    %v255 = vadd.f32 %v239, 1e-05
    %v256 = vadd.f32 %v240, 1e-05
    %v257 = vadd.f32 %v241, 1e-05
    %v258 = vrsqrt.pop %v242
    %v259 = vrsqrt.pop %v243
    %v260 = vrsqrt.pop %v244
    %v261 = vrsqrt.pop %v245
    %v262 = vrsqrt.pop %v246
    %v263 = vrsqrt.pop %v247
    %v264 = vrsqrt.pop %v248
    %v265 = vrsqrt.pop %v249
    %v266 = vrsqrt.pop %v250
    %v267 = vrsqrt.pop %v251
    %v268 = vrsqrt.pop %v252
    %v269 = vrsqrt.pop %v253
    %v270 = vrsqrt.pop %v254
    %v271 = vrsqrt.pop %v255
    %v272 = vrsqrt.pop %v256
    %v273 = vrsqrt.pop %v257
    %v274 = vmul.f32 %v146, %v258
    %v275 = vmul.f32 %v147, %v259
    %v276 = vmul.f32 %v148, %v260
    %v277 = vmul.f32 %v149, %v261
    %v278 = vmul.f32 %v150, %v262
    %v279 = vmul.f32 %v151, %v263
    %v280 = vmul.f32 %v152, %v264
    %v281 = vmul.f32 %v153, %v265
    %v282 = vmul.f32 %v154, %v266
    %v283 = vmul.f32 %v155, %v267
    %v284 = vmul.f32 %v156, %v268
    %v285 = vmul.f32 %v157, %v269
    %v286 = vmul.f32 %v158, %v270
    %v287 = vmul.f32 %v159, %v271
    %v288 = vmul.f32 %v160, %v272
    %v289 = vmul.f32 %v161, %v273
    %v291 = vlaneseq
    %v292 = vshrl.u32 %v291, 7
    %v293 = vsub.s32 0, %v292
    %v294 = vrot.slane %v78, %v293
    %v296 = vmul.f32 %v274, %v294
    %v297 = vmul.f32 %v275, %v294
    %v298 = vmul.f32 %v276, %v294
    %v299 = vmul.f32 %v277, %v294
    %v300 = vmul.f32 %v278, %v294
    %v301 = vmul.f32 %v279, %v294
    %v302 = vmul.f32 %v280, %v294
    %v303 = vmul.f32 %v281, %v294
    %v304 = vmul.f32 %v282, %v294
    %v305 = vmul.f32 %v283, %v294
    %v306 = vmul.f32 %v284, %v294
    %v307 = vmul.f32 %v285, %v294
    %v308 = vmul.f32 %v286, %v294
    %v309 = vmul.f32 %v287, %v294
    %v310 = vmul.f32 %v288, %v294
    %v311 = vmul.f32 %v289, %v294
    %v313 = vlaneseq
    %v314 = vshrl.u32 %v313, 7
    %v315 = vsub.s32 0, %v314
    %v316 = vrot.slane %v79, %v315
    %v318 = vadd.f32 %v296, %v316
    %v319 = vadd.f32 %v297, %v316
    %v320 = vadd.f32 %v298, %v316
    %v321 = vadd.f32 %v299, %v316
    %v322 = vadd.f32 %v300, %v316
    %v323 = vadd.f32 %v301, %v316
    %v324 = vadd.f32 %v302, %v316
    %v325 = vadd.f32 %v303, %v316
    %v326 = vadd.f32 %v304, %v316
    %v327 = vadd.f32 %v305, %v316
    %v328 = vadd.f32 %v306, %v316
    %v329 = vadd.f32 %v307, %v316
    %v330 = vadd.f32 %v308, %v316
    %v331 = vadd.f32 %v309, %v316
    %v332 = vadd.f32 %v310, %v316
    %v333 = vadd.f32 %v311, %v316
    %v334 = vpack.c.bf16 %v319, %v318
    %v335 = vpack.c.bf16 %v321, %v320
    %v336 = vpack.c.bf16 %v323, %v322
    %v337 = vpack.c.bf16 %v325, %v324
    %v338 = vpack.c.bf16 %v327, %v326
    %v339 = vpack.c.bf16 %v329, %v328
    %v340 = vpack.c.bf16 %v331, %v330
    %v341 = vpack.c.bf16 %v333, %v332
    %v342 = vld [vmem:[%s4] sm:$0xf]
    %v343 = vld [vmem:[%s4 + $0x4] sm:$0xf]
    %v344 = vld [vmem:[%s4 + $0x8] sm:$0xf]
    %v345 = vld [vmem:[%s4 + $0xc] sm:$0xf]
    %v346 = vld [vmem:[%s5] sm:$0x1]
    %v348 = vlaneseq
    %v349 = vshrl.u32 %v348, 7
    %v350 = vsub.s32 0, %v349
    %v351 = vrot.slane %v346, %v350
    %v357 = vunpack.c.l.b16 %v342
    %v358 = vunpack.c.l.b16 %v343
    %v359 = vunpack.c.l.b16 %v344
    %v360 = vunpack.c.l.b16 %v345
    %v361 = vpack.c.b16 %v358, %v357
    %v362 = vpack.c.b16 %v360, %v359
    %v366 = vsel %vm80, %v334, 0
    %v369 = vsel %vm80, %v335, 0
    %v372 = vsel %vm80, %v336, 0
    %v375 = vsel %vm80, %v337, 0
    %v378 = vsel %vm80, %v338, 0
    %v381 = vsel %vm80, %v339, 0
    %v384 = vsel %vm80, %v340, 0
    %v387 = vsel %vm80, %v341, 0
    %389 = vmatprep.subr.bf16.mxu0 0
    %390 = vmatpush1.bf16.msra.mxu0 %v361
    %391 = vmatprep.subr.bf16.mxu0 0
    %392 = vmatpush1.bf16.msra.mxu0 %v362
    %393 = vmatprep.subr.bf16.mxu0 0
    %394 = vmatpush1.bf16.msra.mxu0 0
    %395 = vmatprep.subr.bf16.mxu0 0
    %396 = vmatpush1.bf16.msra.mxu0 0
    %397 = vmatprep.subr.bf16.mxu0 0
    %398 = vmatpush1.bf16.msra.mxu0 0
    %399 = vmatprep.subr.bf16.mxu0 0
    %400 = vmatpush1.bf16.msra.mxu0 0
    %401 = vmatprep.subr.bf16.mxu0 0
    %402 = vmatpush1.bf16.msra.mxu0 0
    %403 = vmatprep.subr.bf16.mxu0 0
    %404 = vmatpush1.bf16.msra.mxu0 0
    %405 = vmatprep.subr.bf16.mxu0 0
    %406 = vmatpush1.bf16.msra.mxu0 0
    %407 = vmatprep.subr.bf16.mxu0 0
    %408 = vmatpush1.bf16.msra.mxu0 0
    %409 = vmatprep.subr.bf16.mxu0 0
    %410 = vmatpush1.bf16.msra.mxu0 0
    %411 = vmatprep.subr.bf16.mxu0 0
    %412 = vmatpush1.bf16.msra.mxu0 0
    %413 = vmatprep.subr.bf16.mxu0 0
    %414 = vmatpush1.bf16.msra.mxu0 0
    %415 = vmatprep.subr.bf16.mxu0 0
    %416 = vmatpush1.bf16.msra.mxu0 0
    %417 = vmatprep.subr.bf16.mxu0 0
    %418 = vmatpush1.bf16.msra.mxu0 0
    %419 = vmatprep.subr.bf16.mxu0 0
    %420 = vmatpush1.bf16.msra.mxu0 0
    %421 = vmatprep.mubr.bf16.mxu0 0
    %422 = vmatmul.mubr.bf16.gmra.mrb[0].mxu0 %v366
    %v423 = vpop.f32.mrb[0].mxu0
    %v424 = vadd.f32 %v351, %v423
    %v425 = vpop.f32.mrb[0].mxu0
    %v426 = vpop.f32.mrb[0].mxu0
    %v427 = vadd.f32 %v351, %v426
    %v428 = vpop.f32.mrb[0].mxu0
    %429 = vmatprep.mubr.bf16.mxu0 0
    %430 = vmatmul.mubr.bf16.gmra.mrb[0].mxu0 %v369
    %v431 = vpop.f32.mrb[0].mxu0
    %v432 = vadd.f32 %v351, %v431
    %v433 = vpop.f32.mrb[0].mxu0
    %v434 = vpop.f32.mrb[0].mxu0
    %v435 = vadd.f32 %v351, %v434
    %v436 = vpop.f32.mrb[0].mxu0
    %437 = vmatprep.mubr.bf16.mxu0 0
    %438 = vmatmul.mubr.bf16.gmra.mrb[0].mxu0 %v372
    %v439 = vpop.f32.mrb[0].mxu0
    %v440 = vadd.f32 %v351, %v439
    %v441 = vpop.f32.mrb[0].mxu0
    %v442 = vpop.f32.mrb[0].mxu0
    %v443 = vadd.f32 %v351, %v442
    %v444 = vpop.f32.mrb[0].mxu0
    %445 = vmatprep.mubr.bf16.mxu0 0
    %446 = vmatmul.mubr.bf16.gmra.mrb[0].mxu0 %v375
    %v447 = vpop.f32.mrb[0].mxu0
    %v448 = vadd.f32 %v351, %v447
    %v449 = vpop.f32.mrb[0].mxu0
    %v450 = vpop.f32.mrb[0].mxu0
    %v451 = vadd.f32 %v351, %v450
    %v452 = vpop.f32.mrb[0].mxu0
    %453 = vmatprep.mubr.bf16.mxu0 0
    %454 = vmatmul.mubr.bf16.gmra.mrb[0].mxu0 %v378
    %v455 = vpop.f32.mrb[0].mxu0
    %v456 = vadd.f32 %v351, %v455
    %v457 = vpop.f32.mrb[0].mxu0
    %v458 = vpop.f32.mrb[0].mxu0
    %v459 = vadd.f32 %v351, %v458
    %v460 = vpop.f32.mrb[0].mxu0
    %461 = vmatprep.mubr.bf16.mxu0 0
    %462 = vmatmul.mubr.bf16.gmra.mrb[0].mxu0 %v381
    %v463 = vpop.f32.mrb[0].mxu0
    %v464 = vadd.f32 %v351, %v463
    %v465 = vpop.f32.mrb[0].mxu0
    %v466 = vpop.f32.mrb[0].mxu0
    %v467 = vadd.f32 %v351, %v466
    %v468 = vpop.f32.mrb[0].mxu0
    %469 = vmatprep.mubr.bf16.mxu0 0
    %470 = vmatmul.mubr.bf16.gmra.mrb[0].mxu0 %v384
    %v471 = vpop.f32.mrb[0].mxu0
    %v472 = vadd.f32 %v351, %v471
    %v473 = vpop.f32.mrb[0].mxu0
    %v474 = vpop.f32.mrb[0].mxu0
    %v475 = vadd.f32 %v351, %v474
    %v476 = vpop.f32.mrb[0].mxu0
    %477 = vmatprep.mubr.bf16.mxu0 0
    %478 = vmatmul.mubr.bf16.gmra.mrb[0].mxu0 %v387
    %v479 = vpop.f32.mrb[0].mxu0
    %v480 = vadd.f32 %v351, %v479
    %v481 = vpop.f32.mrb[0].mxu0
    %v482 = vpop.f32.mrb[0].mxu0
    %v483 = vadd.f32 %v351, %v482
    %v484 = vpop.f32.mrb[0].mxu0
    %485 = vdwg.mxu0
    %v486 = vpack.c.bf16 %v427, %v424
    %v487 = vpack.c.bf16 %v435, %v432
    %v488 = vpack.c.bf16 %v443, %v440
    %v489 = vpack.c.bf16 %v451, %v448
    %v490 = vld [vmem:[#allocation2] sm:$0xff]
    %v491 = vld [vmem:[#allocation2 + $0x8] sm:$0xff]
    %v492 = vld [vmem:[#allocation2 + $0x10] sm:$0xff]
    %v493 = vld [vmem:[#allocation2 + $0x18] sm:$0xff]
    %v494 = vld [vmem:[#allocation2 + $0x20] sm:$0xff]
    %v495 = vld [vmem:[#allocation2 + $0x28] sm:$0xff]
    %v496 = vld [vmem:[#allocation2 + $0x30] sm:$0xff]
    %v497 = vld [vmem:[#allocation2 + $0x38] sm:$0xff]
    %502 = vrot.lane.b32.xlu0 %v486, 96
    %v503 = vpop.permute.xlu0 %502
    %504 = vrot.lane.b32.xlu0 %v487, 96
    %v505 = vpop.permute.xlu0 %504
    %506 = vrot.lane.b32.xlu0 %v488, 96
    %v507 = vpop.permute.xlu0 %506
    %508 = vrot.lane.b32.xlu0 %v489, 96
    %v509 = vpop.permute.xlu0 %508
    %vm510 = vcmask 64512
    %v512 = vsel %vm510, %v486, 0
    %v515 = vsel %vm510, %v487, 0
    %v518 = vsel %vm510, %v488, 0
    %v521 = vsel %vm510, %v489, 0
    %v524 = vsel %vm510, %v503, 0
    %v527 = vsel %vm510, %v505, 0
    %v530 = vsel %vm510, %v507, 0
    %v533 = vsel %vm510, %v509, 0
    %535 = vmatprep.subr.bf16.mxu0 0
    %536 = vmatpush1.bf16.xpose.msra.mxu0 %v524
    %537 = vmatprep.subr.bf16.mxu0 0
    %538 = vmatpush1.bf16.xpose.msra.mxu0 %v527
    %539 = vmatprep.subr.bf16.mxu0 0
    %540 = vmatpush1.bf16.xpose.msra.mxu0 %v530
    %541 = vmatprep.subr.bf16.mxu0 0
    %542 = vmatpush1.bf16.xpose.msra.mxu0 %v533
    %543 = vmatprep.subr.bf16.mxu0 0
    %544 = vmatpush1.bf16.xpose.msra.mxu0 0
    %545 = vmatprep.subr.bf16.mxu0 0
    %546 = vmatpush1.bf16.xpose.msra.mxu0 0
    %547 = vmatprep.subr.bf16.mxu0 0
    %548 = vmatpush1.bf16.xpose.msra.mxu0 0
    %549 = vmatprep.subr.bf16.mxu0 0
    %550 = vmatpush1.bf16.xpose.msra.mxu0 0
    %551 = vmatprep.subr.bf16.mxu0 0
    %552 = vmatpush1.bf16.xpose.msra.mxu0 0
    %553 = vmatprep.subr.bf16.mxu0 0
    %554 = vmatpush1.bf16.xpose.msra.mxu0 0
    %555 = vmatprep.subr.bf16.mxu0 0
    %556 = vmatpush1.bf16.xpose.msra.mxu0 0
    %557 = vmatprep.subr.bf16.mxu0 0
    %558 = vmatpush1.bf16.xpose.msra.mxu0 0
    %559 = vmatprep.subr.bf16.mxu0 0
    %560 = vmatpush1.bf16.xpose.msra.mxu0 0
    %561 = vmatprep.subr.bf16.mxu0 0
    %562 = vmatpush1.bf16.xpose.msra.mxu0 0
    %563 = vmatprep.subr.bf16.mxu0 0
    %564 = vmatpush1.bf16.xpose.msra.mxu0 0
    %565 = vmatprep.subr.bf16.mxu0 0
    %566 = vmatpush1.bf16.xpose.msra.mxu0 0
    %567 = vmatprep.mubr.bf16.mxu0 0
    %568 = vmatmul.mubr.bf16.gmra.mrb[0].mxu0 %v512
    %v569 = vpop.f32.mrb[0].mxu0
    %v570 = vadd.f32 %v490, %v569
    %v571 = vpop.f32.mrb[0].mxu0
    %v572 = vpop.f32.mrb[0].mxu0
    %v573 = vadd.f32 %v491, %v572
    %v574 = vpop.f32.mrb[0].mxu0
    %575 = vmatprep.mubr.bf16.mxu0 0
    %576 = vmatmul.mubr.bf16.gmra.mrb[0].mxu0 %v515
    %v577 = vpop.f32.mrb[0].mxu0
    %v578 = vadd.f32 %v492, %v577
    %v579 = vpop.f32.mrb[0].mxu0
    %v580 = vpop.f32.mrb[0].mxu0
    %v581 = vadd.f32 %v493, %v580
    %v582 = vpop.f32.mrb[0].mxu0
    %583 = vmatprep.mubr.bf16.mxu0 0
    %584 = vmatmul.mubr.bf16.gmra.mrb[0].mxu0 %v518
    %v585 = vpop.f32.mrb[0].mxu0
    %v586 = vadd.f32 %v494, %v585
    %v587 = vpop.f32.mrb[0].mxu0
    %v588 = vpop.f32.mrb[0].mxu0
    %v589 = vadd.f32 %v495, %v588
    %v590 = vpop.f32.mrb[0].mxu0
    %591 = vmatprep.mubr.bf16.mxu0 0
    %592 = vmatmul.mubr.bf16.gmra.mrb[0].mxu0 %v521
    %v593 = vpop.f32.mrb[0].mxu0
    %v594 = vadd.f32 %v496, %v593
    %v595 = vpop.f32.mrb[0].mxu0
    %v596 = vpop.f32.mrb[0].mxu0
    %v597 = vadd.f32 %v497, %v596
    %v598 = vpop.f32.mrb[0].mxu0
    %599 = vdwg.mxu0
    %vm600 = vcmask 523264
    %v601 = vsel %vm600, %v570, -inf
    %602 = vmax.xlane.f32.xlu0 %v601
    %v603 = vpop.xlane.xlu0 %602
    %v604 = vsel %vm600, %v573, -inf
    %605 = vmax.xlane.f32.xlu0 %v604
    %v606 = vpop.xlane.xlu0 %605
    %v607 = vsel %vm600, %v578, -inf
    %608 = vmax.xlane.f32.xlu0 %v607
    %v609 = vpop.xlane.xlu0 %608
    %v610 = vsel %vm600, %v581, -inf
    %611 = vmax.xlane.f32.xlu0 %v610
    %v612 = vpop.xlane.xlu0 %611
    %v613 = vsel %vm600, %v586, -inf
    %614 = vmax.xlane.f32.xlu0 %v613
    %v615 = vpop.xlane.xlu0 %614
    %v616 = vsel %vm600, %v589, -inf
    %617 = vmax.xlane.f32.xlu0 %v616
    %v618 = vpop.xlane.xlu0 %617
    %v619 = vsel %vm600, %v594, -inf
    %620 = vmax.xlane.f32.xlu0 %v619
    %v621 = vpop.xlane.xlu0 %620
    %v622 = vsel %vm600, %v597, -inf
    %623 = vmax.xlane.f32.xlu0 %v622
    %v624 = vpop.xlane.xlu0 %623
    %v625 = vsub.f32 %v570, %v603
    %v626 = vsub.f32 %v573, %v606
    %v627 = vsub.f32 %v578, %v609
    %v628 = vsub.f32 %v581, %v612
    %v629 = vsub.f32 %v586, %v615
    %v630 = vsub.f32 %v589, %v618
    %v631 = vsub.f32 %v594, %v621
    %v632 = vsub.f32 %v597, %v624
    %v633 = vmul.f32 %v625, 1.442695
    %v634 = vpow.pop %v633
    %v635 = vmul.f32 %v626, 1.442695
    %v636 = vpow.pop %v635
    %v637 = vmul.f32 %v627, 1.442695
    %v638 = vpow.pop %v637
    %v639 = vmul.f32 %v628, 1.442695
    %v640 = vpow.pop %v639
    %v641 = vmul.f32 %v629, 1.442695
    %v642 = vpow.pop %v641
    %v643 = vmul.f32 %v630, 1.442695
    %v644 = vpow.pop %v643
    %v645 = vmul.f32 %v631, 1.442695
    %v646 = vpow.pop %v645
    %v647 = vmul.f32 %v632, 1.442695
    %v648 = vpow.pop %v647
    %v649 = vsel %vm600, %v634, 0.0
    %650 = vadd.xlane.f32.xlu0 %v649
    %v651 = vpop.xlane.xlu0 %650
    %v652 = vsel %vm600, %v636, 0.0
    %653 = vadd.xlane.f32.xlu0 %v652
    %v654 = vpop.xlane.xlu0 %653
    %v655 = vsel %vm600, %v638, 0.0
    %656 = vadd.xlane.f32.xlu0 %v655
    %v657 = vpop.xlane.xlu0 %656
    %v658 = vsel %vm600, %v640, 0.0
    %659 = vadd.xlane.f32.xlu0 %v658
    %v660 = vpop.xlane.xlu0 %659
    %v661 = vsel %vm600, %v642, 0.0
    %662 = vadd.xlane.f32.xlu0 %v661
    %v663 = vpop.xlane.xlu0 %662
    %v664 = vsel %vm600, %v644, 0.0
    %665 = vadd.xlane.f32.xlu0 %v664
    %v666 = vpop.xlane.xlu0 %665
    %v667 = vsel %vm600, %v646, 0.0
    %668 = vadd.xlane.f32.xlu0 %v667
    %v669 = vpop.xlane.xlu0 %668
    %v670 = vsel %vm600, %v648, 0.0
    %671 = vadd.xlane.f32.xlu0 %v670
    %v672 = vpop.xlane.xlu0 %671
    %v673 = vrcp.pop %v651
    %v674 = vrcp.pop %v654
    %v675 = vrcp.pop %v657
    %v676 = vrcp.pop %v660
    %v677 = vrcp.pop %v663
    %v678 = vrcp.pop %v666
    %v679 = vrcp.pop %v669
    %v680 = vrcp.pop %v672
    %v681 = vmul.f32 %v634, %v673
    %v682 = vmul.f32 %v636, %v674
    %v683 = vmul.f32 %v638, %v675
    %v684 = vmul.f32 %v640, %v676
    %v685 = vmul.f32 %v642, %v677
    %v686 = vmul.f32 %v644, %v678
    %v687 = vmul.f32 %v646, %v679
    %v688 = vmul.f32 %v648, %v680
    %v689 = vpack.c.bf16 %v682, %v681
    %v690 = vpack.c.bf16 %v684, %v683
    %v691 = vpack.c.bf16 %v686, %v685
    %v692 = vpack.c.bf16 %v688, %v687
    %693 = vrot.lane.b32.xlu0 %v486, 64
    %v694 = vpop.permute.xlu0 %693
    %695 = vrot.lane.b32.xlu0 %v487, 64
    %v696 = vpop.permute.xlu0 %695
    %697 = vrot.lane.b32.xlu0 %v488, 64
    %v698 = vpop.permute.xlu0 %697
    %699 = vrot.lane.b32.xlu0 %v489, 64
    %v700 = vpop.permute.xlu0 %699
    %v706 = vsel %vm600, %v689, 0
    %v709 = vsel %vm600, %v690, 0
    %v712 = vsel %vm600, %v691, 0
    %v715 = vsel %vm600, %v692, 0
    %717 = vmatprep.subr.bf16.mxu0 0
    %718 = vmatpush1.bf16.msra.mxu0 %v694
    %719 = vmatprep.subr.bf16.mxu0 0
    %720 = vmatpush1.bf16.msra.mxu0 %v696
    %721 = vmatprep.subr.bf16.mxu0 0
    %722 = vmatpush1.bf16.msra.mxu0 %v698
    %723 = vmatprep.subr.bf16.mxu0 0
    %724 = vmatpush1.bf16.msra.mxu0 %v700
    %725 = vmatprep.subr.bf16.mxu0 0
    %726 = vmatpush1.bf16.msra.mxu0 0
    %727 = vmatprep.subr.bf16.mxu0 0
    %728 = vmatpush1.bf16.msra.mxu0 0
    %729 = vmatprep.subr.bf16.mxu0 0
    %730 = vmatpush1.bf16.msra.mxu0 0
    %731 = vmatprep.subr.bf16.mxu0 0
    %732 = vmatpush1.bf16.msra.mxu0 0
    %733 = vmatprep.subr.bf16.mxu0 0
    %734 = vmatpush1.bf16.msra.mxu0 0
    %735 = vmatprep.subr.bf16.mxu0 0
    %736 = vmatpush1.bf16.msra.mxu0 0
    %737 = vmatprep.subr.bf16.mxu0 0
    %738 = vmatpush1.bf16.msra.mxu0 0
    %739 = vmatprep.subr.bf16.mxu0 0
    %740 = vmatpush1.bf16.msra.mxu0 0
    %741 = vmatprep.subr.bf16.mxu0 0
    %742 = vmatpush1.bf16.msra.mxu0 0
    %743 = vmatprep.subr.bf16.mxu0 0
    %744 = vmatpush1.bf16.msra.mxu0 0
    %745 = vmatprep.subr.bf16.mxu0 0
    %746 = vmatpush1.bf16.msra.mxu0 0
    %747 = vmatprep.subr.bf16.mxu0 0
    %748 = vmatpush1.bf16.msra.mxu0 0
    %749 = vmatprep.mubr.bf16.mxu0 0
    %750 = vmatmul.mubr.bf16.gmra.mrb[0].mxu0 %v706
    %v751 = vpop.f32.mrb[0].mxu0
    %v752 = vadd.f32 0.0, %v751
    %v753 = vpop.f32.mrb[0].mxu0
    %v754 = vpop.f32.mrb[0].mxu0
    %v755 = vadd.f32 0.0, %v754
    %v756 = vpop.f32.mrb[0].mxu0
    %757 = vmatprep.mubr.bf16.mxu0 0
    %758 = vmatmul.mubr.bf16.gmra.mrb[0].mxu0 %v709
    %v759 = vpop.f32.mrb[0].mxu0
    %v760 = vadd.f32 0.0, %v759
    %v761 = vpop.f32.mrb[0].mxu0
    %v762 = vpop.f32.mrb[0].mxu0
    %v763 = vadd.f32 0.0, %v762
    %v764 = vpop.f32.mrb[0].mxu0
    %765 = vmatprep.mubr.bf16.mxu0 0
    %766 = vmatmul.mubr.bf16.gmra.mrb[0].mxu0 %v712
    %v767 = vpop.f32.mrb[0].mxu0
    %v768 = vadd.f32 0.0, %v767
    %v769 = vpop.f32.mrb[0].mxu0
    %v770 = vpop.f32.mrb[0].mxu0
    %v771 = vadd.f32 0.0, %v770
    %v772 = vpop.f32.mrb[0].mxu0
    %773 = vmatprep.mubr.bf16.mxu0 0
    %774 = vmatmul.mubr.bf16.gmra.mrb[0].mxu0 %v715
    %v775 = vpop.f32.mrb[0].mxu0
    %v776 = vadd.f32 0.0, %v775
    %v777 = vpop.f32.mrb[0].mxu0
    %v778 = vpop.f32.mrb[0].mxu0
    %v779 = vadd.f32 0.0, %v778
    %v780 = vpop.f32.mrb[0].mxu0
    %781 = vdwg.mxu0
    %s782 = scalar_lea.vmem [#allocation2], 64
    %v783 = vld [vmem:[%s782] sm:$0xff]
    %v784 = vld [vmem:[%s782 + $0x8] sm:$0xff]
    %v785 = vld [vmem:[%s782 + $0x10] sm:$0xff]
    %v786 = vld [vmem:[%s782 + $0x18] sm:$0xff]
    %v787 = vld [vmem:[%s782 + $0x20] sm:$0xff]
    %v788 = vld [vmem:[%s782 + $0x28] sm:$0xff]
    %v789 = vld [vmem:[%s782 + $0x30] sm:$0xff]
    %v790 = vld [vmem:[%s782 + $0x38] sm:$0xff]
    %791 = vrot.lane.b32.xlu0 %v486, 120
    %v792 = vpop.permute.xlu0 %791
    %793 = vrot.lane.b32.xlu0 %v487, 120
    %v794 = vpop.permute.xlu0 %793
    %795 = vrot.lane.b32.xlu0 %v488, 120
    %v796 = vpop.permute.xlu0 %795
    %797 = vrot.lane.b32.xlu0 %v489, 120
    %v798 = vpop.permute.xlu0 %797
    %799 = vrot.lane.b32.xlu0 %v486, 88
    %v800 = vpop.permute.xlu0 %799
    %801 = vrot.lane.b32.xlu0 %v487, 88
    %v802 = vpop.permute.xlu0 %801
    %803 = vrot.lane.b32.xlu0 %v488, 88
    %v804 = vpop.permute.xlu0 %803
    %805 = vrot.lane.b32.xlu0 %v489, 88
    %v806 = vpop.permute.xlu0 %805
    %v808 = vsel %vm510, %v792, 0
    %v811 = vsel %vm510, %v794, 0
    %v814 = vsel %vm510, %v796, 0
    %v817 = vsel %vm510, %v798, 0
    %v820 = vsel %vm510, %v800, 0
    %v823 = vsel %vm510, %v802, 0
    %v826 = vsel %vm510, %v804, 0
    %v829 = vsel %vm510, %v806, 0
    %831 = vmatprep.subr.bf16.mxu0 0
    %832 = vmatpush1.bf16.xpose.msra.mxu0 %v820
    %833 = vmatprep.subr.bf16.mxu0 0
    %834 = vmatpush1.bf16.xpose.msra.mxu0 %v823
    %835 = vmatprep.subr.bf16.mxu0 0
    %836 = vmatpush1.bf16.xpose.msra.mxu0 %v826
    %837 = vmatprep.subr.bf16.mxu0 0
    %838 = vmatpush1.bf16.xpose.msra.mxu0 %v829
    %839 = vmatprep.subr.bf16.mxu0 0
    %840 = vmatpush1.bf16.xpose.msra.mxu0 0
    %841 = vmatprep.subr.bf16.mxu0 0
    %842 = vmatpush1.bf16.xpose.msra.mxu0 0
    %843 = vmatprep.subr.bf16.mxu0 0
    %844 = vmatpush1.bf16.xpose.msra.mxu0 0
    %845 = vmatprep.subr.bf16.mxu0 0
    %846 = vmatpush1.bf16.xpose.msra.mxu0 0
    %847 = vmatprep.subr.bf16.mxu0 0
    %848 = vmatpush1.bf16.xpose.msra.mxu0 0
    %849 = vmatprep.subr.bf16.mxu0 0
    %850 = vmatpush1.bf16.xpose.msra.mxu0 0
    %851 = vmatprep.subr.bf16.mxu0 0
    %852 = vmatpush1.bf16.xpose.msra.mxu0 0
    %853 = vmatprep.subr.bf16.mxu0 0
    %854 = vmatpush1.bf16.xpose.msra.mxu0 0
    %855 = vmatprep.subr.bf16.mxu0 0
    %856 = vmatpush1.bf16.xpose.msra.mxu0 0
    %857 = vmatprep.subr.bf16.mxu0 0
    %858 = vmatpush1.bf16.xpose.msra.mxu0 0
    %859 = vmatprep.subr.bf16.mxu0 0
    %860 = vmatpush1.bf16.xpose.msra.mxu0 0
    %861 = vmatprep.subr.bf16.mxu0 0
    %862 = vmatpush1.bf16.xpose.msra.mxu0 0
    %863 = vmatprep.mubr.bf16.mxu0 0
    %864 = vmatmul.mubr.bf16.gmra.mrb[0].mxu0 %v808
    %v865 = vpop.f32.mrb[0].mxu0
    %v866 = vadd.f32 %v783, %v865
    %v867 = vpop.f32.mrb[0].mxu0
    %v868 = vpop.f32.mrb[0].mxu0
    %v869 = vadd.f32 %v784, %v868
    %v870 = vpop.f32.mrb[0].mxu0
    %871 = vmatprep.mubr.bf16.mxu0 0
    %872 = vmatmul.mubr.bf16.gmra.mrb[0].mxu0 %v811
    %v873 = vpop.f32.mrb[0].mxu0
    %v874 = vadd.f32 %v785, %v873
    %v875 = vpop.f32.mrb[0].mxu0
    %v876 = vpop.f32.mrb[0].mxu0
    %v877 = vadd.f32 %v786, %v876
    %v878 = vpop.f32.mrb[0].mxu0
    %879 = vmatprep.mubr.bf16.mxu0 0
    %880 = vmatmul.mubr.bf16.gmra.mrb[0].mxu0 %v814
    %v881 = vpop.f32.mrb[0].mxu0
    %v882 = vadd.f32 %v787, %v881
    %v883 = vpop.f32.mrb[0].mxu0
    %v884 = vpop.f32.mrb[0].mxu0
    %v885 = vadd.f32 %v788, %v884
    %v886 = vpop.f32.mrb[0].mxu0
    %887 = vmatprep.mubr.bf16.mxu0 0
    %888 = vmatmul.mubr.bf16.gmra.mrb[0].mxu0 %v817
    %v889 = vpop.f32.mrb[0].mxu0
    %v890 = vadd.f32 %v789, %v889
    %v891 = vpop.f32.mrb[0].mxu0
    %v892 = vpop.f32.mrb[0].mxu0
    %v893 = vadd.f32 %v790, %v892
    %v894 = vpop.f32.mrb[0].mxu0
    %895 = vdwg.mxu0
    %v896 = vsel %vm600, %v866, -inf
    %897 = vmax.xlane.f32.xlu0 %v896
    %v898 = vpop.xlane.xlu0 %897
    %v899 = vsel %vm600, %v869, -inf
    %900 = vmax.xlane.f32.xlu0 %v899
    %v901 = vpop.xlane.xlu0 %900
    %v902 = vsel %vm600, %v874, -inf
    %903 = vmax.xlane.f32.xlu0 %v902
    %v904 = vpop.xlane.xlu0 %903
    %v905 = vsel %vm600, %v877, -inf
    %906 = vmax.xlane.f32.xlu0 %v905
    %v907 = vpop.xlane.xlu0 %906
    %v908 = vsel %vm600, %v882, -inf
    %909 = vmax.xlane.f32.xlu0 %v908
    %v910 = vpop.xlane.xlu0 %909
    %v911 = vsel %vm600, %v885, -inf
    %912 = vmax.xlane.f32.xlu0 %v911
    %v913 = vpop.xlane.xlu0 %912
    %v914 = vsel %vm600, %v890, -inf
    %915 = vmax.xlane.f32.xlu0 %v914
    %v916 = vpop.xlane.xlu0 %915
    %v917 = vsel %vm600, %v893, -inf
    %918 = vmax.xlane.f32.xlu0 %v917
    %v919 = vpop.xlane.xlu0 %918
    %v920 = vsub.f32 %v866, %v898
    %v921 = vsub.f32 %v869, %v901
    %v922 = vsub.f32 %v874, %v904
    %v923 = vsub.f32 %v877, %v907
    %v924 = vsub.f32 %v882, %v910
    %v925 = vsub.f32 %v885, %v913
    %v926 = vsub.f32 %v890, %v916
    %v927 = vsub.f32 %v893, %v919
    %v928 = vmul.f32 %v920, 1.442695
    %v929 = vpow.pop %v928
    %v930 = vmul.f32 %v921, 1.442695
    %v931 = vpow.pop %v930
    %v932 = vmul.f32 %v922, 1.442695
    %v933 = vpow.pop %v932
    %v934 = vmul.f32 %v923, 1.442695
    %v935 = vpow.pop %v934
    %v936 = vmul.f32 %v924, 1.442695
    %v937 = vpow.pop %v936
    %v938 = vmul.f32 %v925, 1.442695
    %v939 = vpow.pop %v938
    %v940 = vmul.f32 %v926, 1.442695
    %v941 = vpow.pop %v940
    %v942 = vmul.f32 %v927, 1.442695
    %v943 = vpow.pop %v942
    %v944 = vsel %vm600, %v929, 0.0
    %945 = vadd.xlane.f32.xlu0 %v944
    %v946 = vpop.xlane.xlu0 %945
    %v947 = vsel %vm600, %v931, 0.0
    %948 = vadd.xlane.f32.xlu0 %v947
    %v949 = vpop.xlane.xlu0 %948
    %v950 = vsel %vm600, %v933, 0.0
    %951 = vadd.xlane.f32.xlu0 %v950
    %v952 = vpop.xlane.xlu0 %951
    %v953 = vsel %vm600, %v935, 0.0
    %954 = vadd.xlane.f32.xlu0 %v953
    %v955 = vpop.xlane.xlu0 %954
    %v956 = vsel %vm600, %v937, 0.0
    %957 = vadd.xlane.f32.xlu0 %v956
    %v958 = vpop.xlane.xlu0 %957
    %v959 = vsel %vm600, %v939, 0.0
    %960 = vadd.xlane.f32.xlu0 %v959
    %v961 = vpop.xlane.xlu0 %960
    %v962 = vsel %vm600, %v941, 0.0
    %963 = vadd.xlane.f32.xlu0 %v962
    %v964 = vpop.xlane.xlu0 %963
    %v965 = vsel %vm600, %v943, 0.0
    %966 = vadd.xlane.f32.xlu0 %v965
    %v967 = vpop.xlane.xlu0 %966
    %v968 = vrcp.pop %v946
    %v969 = vrcp.pop %v949
    %v970 = vrcp.pop %v952
    %v971 = vrcp.pop %v955
    %v972 = vrcp.pop %v958
    %v973 = vrcp.pop %v961
    %v974 = vrcp.pop %v964
    %v975 = vrcp.pop %v967
    %v976 = vmul.f32 %v929, %v968
    %v977 = vmul.f32 %v931, %v969
    %v978 = vmul.f32 %v933, %v970
    %v979 = vmul.f32 %v935, %v971
    %v980 = vmul.f32 %v937, %v972
    %v981 = vmul.f32 %v939, %v973
    %v982 = vmul.f32 %v941, %v974
    %v983 = vmul.f32 %v943, %v975
    %v984 = vpack.c.bf16 %v977, %v976
    %v985 = vpack.c.bf16 %v979, %v978
    %v986 = vpack.c.bf16 %v981, %v980
    %v987 = vpack.c.bf16 %v983, %v982
    %988 = vrot.lane.b32.xlu0 %v486, 56
    %v989 = vpop.permute.xlu0 %988
    %990 = vrot.lane.b32.xlu0 %v487, 56
    %v991 = vpop.permute.xlu0 %990
    %992 = vrot.lane.b32.xlu0 %v488, 56
    %v993 = vpop.permute.xlu0 %992
    %994 = vrot.lane.b32.xlu0 %v489, 56
    %v995 = vpop.permute.xlu0 %994
    %v1001 = vsel %vm600, %v984, 0
    %v1004 = vsel %vm600, %v985, 0
    %v1007 = vsel %vm600, %v986, 0
    %v1010 = vsel %vm600, %v987, 0
    %1012 = vmatprep.subr.bf16.mxu0 0
    %1013 = vmatpush1.bf16.msra.mxu0 %v989
    %1014 = vmatprep.subr.bf16.mxu0 0
    %1015 = vmatpush1.bf16.msra.mxu0 %v991
    %1016 = vmatprep.subr.bf16.mxu0 0
    %1017 = vmatpush1.bf16.msra.mxu0 %v993
    %1018 = vmatprep.subr.bf16.mxu0 0
    %1019 = vmatpush1.bf16.msra.mxu0 %v995
    %1020 = vmatprep.subr.bf16.mxu0 0
    %1021 = vmatpush1.bf16.msra.mxu0 0
    %1022 = vmatprep.subr.bf16.mxu0 0
    %1023 = vmatpush1.bf16.msra.mxu0 0
    %1024 = vmatprep.subr.bf16.mxu0 0
    %1025 = vmatpush1.bf16.msra.mxu0 0
    %1026 = vmatprep.subr.bf16.mxu0 0
    %1027 = vmatpush1.bf16.msra.mxu0 0
    %1028 = vmatprep.subr.bf16.mxu0 0
    %1029 = vmatpush1.bf16.msra.mxu0 0
    %1030 = vmatprep.subr.bf16.mxu0 0
    %1031 = vmatpush1.bf16.msra.mxu0 0
    %1032 = vmatprep.subr.bf16.mxu0 0
    %1033 = vmatpush1.bf16.msra.mxu0 0
    %1034 = vmatprep.subr.bf16.mxu0 0
    %1035 = vmatpush1.bf16.msra.mxu0 0
    %1036 = vmatprep.subr.bf16.mxu0 0
    %1037 = vmatpush1.bf16.msra.mxu0 0
    %1038 = vmatprep.subr.bf16.mxu0 0
    %1039 = vmatpush1.bf16.msra.mxu0 0
    %1040 = vmatprep.subr.bf16.mxu0 0
    %1041 = vmatpush1.bf16.msra.mxu0 0
    %1042 = vmatprep.subr.bf16.mxu0 0
    %1043 = vmatpush1.bf16.msra.mxu0 0
    %1044 = vmatprep.mubr.bf16.mxu0 0
    %1045 = vmatmul.mubr.bf16.gmra.mrb[0].mxu0 %v1001
    %v1046 = vpop.f32.mrb[0].mxu0
    %v1047 = vadd.f32 0.0, %v1046
    %v1048 = vpop.f32.mrb[0].mxu0
    %v1049 = vpop.f32.mrb[0].mxu0
    %v1050 = vadd.f32 0.0, %v1049
    %v1051 = vpop.f32.mrb[0].mxu0
    %1052 = vmatprep.mubr.bf16.mxu0 0
    %1053 = vmatmul.mubr.bf16.gmra.mrb[0].mxu0 %v1004
    %v1054 = vpop.f32.mrb[0].mxu0
    %v1055 = vadd.f32 0.0, %v1054
    %v1056 = vpop.f32.mrb[0].mxu0
    %v1057 = vpop.f32.mrb[0].mxu0
    %v1058 = vadd.f32 0.0, %v1057
    %v1059 = vpop.f32.mrb[0].mxu0
    %1060 = vmatprep.mubr.bf16.mxu0 0
    %1061 = vmatmul.mubr.bf16.gmra.mrb[0].mxu0 %v1007
    %v1062 = vpop.f32.mrb[0].mxu0
    %v1063 = vadd.f32 0.0, %v1062
    %v1064 = vpop.f32.mrb[0].mxu0
    %v1065 = vpop.f32.mrb[0].mxu0
    %v1066 = vadd.f32 0.0, %v1065
    %v1067 = vpop.f32.mrb[0].mxu0
    %1068 = vmatprep.mubr.bf16.mxu0 0
    %1069 = vmatmul.mubr.bf16.gmra.mrb[0].mxu0 %v1010
    %v1070 = vpop.f32.mrb[0].mxu0
    %v1071 = vadd.f32 0.0, %v1070
    %v1072 = vpop.f32.mrb[0].mxu0
    %v1073 = vpop.f32.mrb[0].mxu0
    %v1074 = vadd.f32 0.0, %v1073
    %v1075 = vpop.f32.mrb[0].mxu0
    %1076 = vdwg.mxu0
    %s1077 = scalar_lea.vmem [#allocation2], 128
    %v1078 = vld [vmem:[%s1077] sm:$0xff]
    %v1079 = vld [vmem:[%s1077 + $0x8] sm:$0xff]
    %v1080 = vld [vmem:[%s1077 + $0x10] sm:$0xff]
    %v1081 = vld [vmem:[%s1077 + $0x18] sm:$0xff]
    %v1082 = vld [vmem:[%s1077 + $0x20] sm:$0xff]
    %v1083 = vld [vmem:[%s1077 + $0x28] sm:$0xff]
    %v1084 = vld [vmem:[%s1077 + $0x30] sm:$0xff]
    %v1085 = vld [vmem:[%s1077 + $0x38] sm:$0xff]
    %1086 = vrot.lane.b32.xlu0 %v486, 112
    %v1087 = vpop.permute.xlu0 %1086
    %1088 = vrot.lane.b32.xlu0 %v487, 112
    %v1089 = vpop.permute.xlu0 %1088
    %1090 = vrot.lane.b32.xlu0 %v488, 112
    %v1091 = vpop.permute.xlu0 %1090
    %1092 = vrot.lane.b32.xlu0 %v489, 112
    %v1093 = vpop.permute.xlu0 %1092
    %1094 = vrot.lane.b32.xlu0 %v486, 80
    %v1095 = vpop.permute.xlu0 %1094
    %1096 = vrot.lane.b32.xlu0 %v487, 80
    %v1097 = vpop.permute.xlu0 %1096
    %1098 = vrot.lane.b32.xlu0 %v488, 80
    %v1099 = vpop.permute.xlu0 %1098
    %1100 = vrot.lane.b32.xlu0 %v489, 80
    %v1101 = vpop.permute.xlu0 %1100
    %v1103 = vsel %vm510, %v1087, 0
    %v1106 = vsel %vm510, %v1089, 0
    %v1109 = vsel %vm510, %v1091, 0
    %v1112 = vsel %vm510, %v1093, 0
    %v1115 = vsel %vm510, %v1095, 0
    %v1118 = vsel %vm510, %v1097, 0
    %v1121 = vsel %vm510, %v1099, 0
    %v1124 = vsel %vm510, %v1101, 0
    %1126 = vmatprep.subr.bf16.mxu0 0
    %1127 = vmatpush1.bf16.xpose.msra.mxu0 %v1115
    %1128 = vmatprep.subr.bf16.mxu0 0
    %1129 = vmatpush1.bf16.xpose.msra.mxu0 %v1118
    %1130 = vmatprep.subr.bf16.mxu0 0
    %1131 = vmatpush1.bf16.xpose.msra.mxu0 %v1121
    %1132 = vmatprep.subr.bf16.mxu0 0
    %1133 = vmatpush1.bf16.xpose.msra.mxu0 %v1124
    %1134 = vmatprep.subr.bf16.mxu0 0
    %1135 = vmatpush1.bf16.xpose.msra.mxu0 0
    %1136 = vmatprep.subr.bf16.mxu0 0
    %1137 = vmatpush1.bf16.xpose.msra.mxu0 0
    %1138 = vmatprep.subr.bf16.mxu0 0
    %1139 = vmatpush1.bf16.xpose.msra.mxu0 0
    %1140 = vmatprep.subr.bf16.mxu0 0
    %1141 = vmatpush1.bf16.xpose.msra.mxu0 0
    %1142 = vmatprep.subr.bf16.mxu0 0
    %1143 = vmatpush1.bf16.xpose.msra.mxu0 0
    %1144 = vmatprep.subr.bf16.mxu0 0
    %1145 = vmatpush1.bf16.xpose.msra.mxu0 0
    %1146 = vmatprep.subr.bf16.mxu0 0
    %1147 = vmatpush1.bf16.xpose.msra.mxu0 0
    %1148 = vmatprep.subr.bf16.mxu0 0
    %1149 = vmatpush1.bf16.xpose.msra.mxu0 0
    %1150 = vmatprep.subr.bf16.mxu0 0
    %1151 = vmatpush1.bf16.xpose.msra.mxu0 0
    %1152 = vmatprep.subr.bf16.mxu0 0
    %1153 = vmatpush1.bf16.xpose.msra.mxu0 0
    %1154 = vmatprep.subr.bf16.mxu0 0
    %1155 = vmatpush1.bf16.xpose.msra.mxu0 0
    %1156 = vmatprep.subr.bf16.mxu0 0
    %1157 = vmatpush1.bf16.xpose.msra.mxu0 0
    %1158 = vmatprep.mubr.bf16.mxu0 0
    %1159 = vmatmul.mubr.bf16.gmra.mrb[0].mxu0 %v1103
    %v1160 = vpop.f32.mrb[0].mxu0
    %v1161 = vadd.f32 %v1078, %v1160
    %v1162 = vpop.f32.mrb[0].mxu0
    %v1163 = vpop.f32.mrb[0].mxu0
    %v1164 = vadd.f32 %v1079, %v1163
    %v1165 = vpop.f32.mrb[0].mxu0
    %1166 = vmatprep.mubr.bf16.mxu0 0
    %1167 = vmatmul.mubr.bf16.gmra.mrb[0].mxu0 %v1106
    %v1168 = vpop.f32.mrb[0].mxu0
    %v1169 = vadd.f32 %v1080, %v1168
    %v1170 = vpop.f32.mrb[0].mxu0
    %v1171 = vpop.f32.mrb[0].mxu0
    %v1172 = vadd.f32 %v1081, %v1171
    %v1173 = vpop.f32.mrb[0].mxu0
    %1174 = vmatprep.mubr.bf16.mxu0 0
    %1175 = vmatmul.mubr.bf16.gmra.mrb[0].mxu0 %v1109
    %v1176 = vpop.f32.mrb[0].mxu0
    %v1177 = vadd.f32 %v1082, %v1176
    %v1178 = vpop.f32.mrb[0].mxu0
    %v1179 = vpop.f32.mrb[0].mxu0
    %v1180 = vadd.f32 %v1083, %v1179
    %v1181 = vpop.f32.mrb[0].mxu0
    %1182 = vmatprep.mubr.bf16.mxu0 0
    %1183 = vmatmul.mubr.bf16.gmra.mrb[0].mxu0 %v1112
    %v1184 = vpop.f32.mrb[0].mxu0
    %v1185 = vadd.f32 %v1084, %v1184
    %v1186 = vpop.f32.mrb[0].mxu0
    %v1187 = vpop.f32.mrb[0].mxu0
    %v1188 = vadd.f32 %v1085, %v1187
    %v1189 = vpop.f32.mrb[0].mxu0
    %1190 = vdwg.mxu0
    %v1191 = vsel %vm600, %v1161, -inf
    %1192 = vmax.xlane.f32.xlu0 %v1191
    %v1193 = vpop.xlane.xlu0 %1192
    %v1194 = vsel %vm600, %v1164, -inf
    %1195 = vmax.xlane.f32.xlu0 %v1194
    %v1196 = vpop.xlane.xlu0 %1195
    %v1197 = vsel %vm600, %v1169, -inf
    %1198 = vmax.xlane.f32.xlu0 %v1197
    %v1199 = vpop.xlane.xlu0 %1198
    %v1200 = vsel %vm600, %v1172, -inf
    %1201 = vmax.xlane.f32.xlu0 %v1200
    %v1202 = vpop.xlane.xlu0 %1201
    %v1203 = vsel %vm600, %v1177, -inf
    %1204 = vmax.xlane.f32.xlu0 %v1203
    %v1205 = vpop.xlane.xlu0 %1204
    %v1206 = vsel %vm600, %v1180, -inf
    %1207 = vmax.xlane.f32.xlu0 %v1206
    %v1208 = vpop.xlane.xlu0 %1207
    %v1209 = vsel %vm600, %v1185, -inf
    %1210 = vmax.xlane.f32.xlu0 %v1209
    %v1211 = vpop.xlane.xlu0 %1210
    %v1212 = vsel %vm600, %v1188, -inf
    %1213 = vmax.xlane.f32.xlu0 %v1212
    %v1214 = vpop.xlane.xlu0 %1213
    %v1215 = vsub.f32 %v1161, %v1193
    %v1216 = vsub.f32 %v1164, %v1196
    %v1217 = vsub.f32 %v1169, %v1199
    %v1218 = vsub.f32 %v1172, %v1202
    %v1219 = vsub.f32 %v1177, %v1205
    %v1220 = vsub.f32 %v1180, %v1208
    %v1221 = vsub.f32 %v1185, %v1211
    %v1222 = vsub.f32 %v1188, %v1214
    %v1223 = vmul.f32 %v1215, 1.442695
    %v1224 = vpow.pop %v1223
    %v1225 = vmul.f32 %v1216, 1.442695
    %v1226 = vpow.pop %v1225
    %v1227 = vmul.f32 %v1217, 1.442695
    %v1228 = vpow.pop %v1227
    %v1229 = vmul.f32 %v1218, 1.442695
    %v1230 = vpow.pop %v1229
    %v1231 = vmul.f32 %v1219, 1.442695
    %v1232 = vpow.pop %v1231
    %v1233 = vmul.f32 %v1220, 1.442695
    %v1234 = vpow.pop %v1233
    %v1235 = vmul.f32 %v1221, 1.442695
    %v1236 = vpow.pop %v1235
    %v1237 = vmul.f32 %v1222, 1.442695
    %v1238 = vpow.pop %v1237
    %v1239 = vsel %vm600, %v1224, 0.0
    %1240 = vadd.xlane.f32.xlu0 %v1239
    %v1241 = vpop.xlane.xlu0 %1240
    %v1242 = vsel %vm600, %v1226, 0.0
    %1243 = vadd.xlane.f32.xlu0 %v1242
    %v1244 = vpop.xlane.xlu0 %1243
    %v1245 = vsel %vm600, %v1228, 0.0
    %1246 = vadd.xlane.f32.xlu0 %v1245
    %v1247 = vpop.xlane.xlu0 %1246
    %v1248 = vsel %vm600, %v1230, 0.0
    %1249 = vadd.xlane.f32.xlu0 %v1248
    %v1250 = vpop.xlane.xlu0 %1249
    %v1251 = vsel %vm600, %v1232, 0.0
    %1252 = vadd.xlane.f32.xlu0 %v1251
    %v1253 = vpop.xlane.xlu0 %1252
    %v1254 = vsel %vm600, %v1234, 0.0
    %1255 = vadd.xlane.f32.xlu0 %v1254
    %v1256 = vpop.xlane.xlu0 %1255
    %v1257 = vsel %vm600, %v1236, 0.0
    %1258 = vadd.xlane.f32.xlu0 %v1257
    %v1259 = vpop.xlane.xlu0 %1258
    %v1260 = vsel %vm600, %v1238, 0.0
    %1261 = vadd.xlane.f32.xlu0 %v1260
    %v1262 = vpop.xlane.xlu0 %1261
    %v1263 = vrcp.pop %v1241
    %v1264 = vrcp.pop %v1244
    %v1265 = vrcp.pop %v1247
    %v1266 = vrcp.pop %v1250
    %v1267 = vrcp.pop %v1253
    %v1268 = vrcp.pop %v1256
    %v1269 = vrcp.pop %v1259
    %v1270 = vrcp.pop %v1262
    %v1271 = vmul.f32 %v1224, %v1263
    %v1272 = vmul.f32 %v1226, %v1264
    %v1273 = vmul.f32 %v1228, %v1265
    %v1274 = vmul.f32 %v1230, %v1266
    %v1275 = vmul.f32 %v1232, %v1267
    %v1276 = vmul.f32 %v1234, %v1268
    %v1277 = vmul.f32 %v1236, %v1269
    %v1278 = vmul.f32 %v1238, %v1270
    %v1279 = vpack.c.bf16 %v1272, %v1271
    %v1280 = vpack.c.bf16 %v1274, %v1273
    %v1281 = vpack.c.bf16 %v1276, %v1275
    %v1282 = vpack.c.bf16 %v1278, %v1277
    %1283 = vrot.lane.b32.xlu0 %v486, 48
    %v1284 = vpop.permute.xlu0 %1283
    %1285 = vrot.lane.b32.xlu0 %v487, 48
    %v1286 = vpop.permute.xlu0 %1285
    %1287 = vrot.lane.b32.xlu0 %v488, 48
    %v1288 = vpop.permute.xlu0 %1287
    %1289 = vrot.lane.b32.xlu0 %v489, 48
    %v1290 = vpop.permute.xlu0 %1289
    %v1296 = vsel %vm600, %v1279, 0
    %v1299 = vsel %vm600, %v1280, 0
    %v1302 = vsel %vm600, %v1281, 0
    %v1305 = vsel %vm600, %v1282, 0
    %1307 = vmatprep.subr.bf16.mxu0 0
    %1308 = vmatpush1.bf16.msra.mxu0 %v1284
    %1309 = vmatprep.subr.bf16.mxu0 0
    %1310 = vmatpush1.bf16.msra.mxu0 %v1286
    %1311 = vmatprep.subr.bf16.mxu0 0
    %1312 = vmatpush1.bf16.msra.mxu0 %v1288
    %1313 = vmatprep.subr.bf16.mxu0 0
    %1314 = vmatpush1.bf16.msra.mxu0 %v1290
    %1315 = vmatprep.subr.bf16.mxu0 0
    %1316 = vmatpush1.bf16.msra.mxu0 0
    %1317 = vmatprep.subr.bf16.mxu0 0
    %1318 = vmatpush1.bf16.msra.mxu0 0
    %1319 = vmatprep.subr.bf16.mxu0 0
    %1320 = vmatpush1.bf16.msra.mxu0 0
    %1321 = vmatprep.subr.bf16.mxu0 0
    %1322 = vmatpush1.bf16.msra.mxu0 0
    %1323 = vmatprep.subr.bf16.mxu0 0
    %1324 = vmatpush1.bf16.msra.mxu0 0
    %1325 = vmatprep.subr.bf16.mxu0 0
    %1326 = vmatpush1.bf16.msra.mxu0 0
    %1327 = vmatprep.subr.bf16.mxu0 0
    %1328 = vmatpush1.bf16.msra.mxu0 0
    %1329 = vmatprep.subr.bf16.mxu0 0
    %1330 = vmatpush1.bf16.msra.mxu0 0
    %1331 = vmatprep.subr.bf16.mxu0 0
    %1332 = vmatpush1.bf16.msra.mxu0 0
    %1333 = vmatprep.subr.bf16.mxu0 0
    %1334 = vmatpush1.bf16.msra.mxu0 0
    %1335 = vmatprep.subr.bf16.mxu0 0
    %1336 = vmatpush1.bf16.msra.mxu0 0
    %1337 = vmatprep.subr.bf16.mxu0 0
    %1338 = vmatpush1.bf16.msra.mxu0 0
    %1339 = vmatprep.mubr.bf16.mxu0 0
    %1340 = vmatmul.mubr.bf16.gmra.mrb[0].mxu0 %v1296
    %v1341 = vpop.f32.mrb[0].mxu0
    %v1342 = vadd.f32 0.0, %v1341
    %v1343 = vpop.f32.mrb[0].mxu0
    %v1344 = vpop.f32.mrb[0].mxu0
    %v1345 = vadd.f32 0.0, %v1344
    %v1346 = vpop.f32.mrb[0].mxu0
    %1347 = vmatprep.mubr.bf16.mxu0 0
    %1348 = vmatmul.mubr.bf16.gmra.mrb[0].mxu0 %v1299
    %v1349 = vpop.f32.mrb[0].mxu0
    %v1350 = vadd.f32 0.0, %v1349
    %v1351 = vpop.f32.mrb[0].mxu0
    %v1352 = vpop.f32.mrb[0].mxu0
    %v1353 = vadd.f32 0.0, %v1352
    %v1354 = vpop.f32.mrb[0].mxu0
    %1355 = vmatprep.mubr.bf16.mxu0 0
    %1356 = vmatmul.mubr.bf16.gmra.mrb[0].mxu0 %v1302
    %v1357 = vpop.f32.mrb[0].mxu0
    %v1358 = vadd.f32 0.0, %v1357
    %v1359 = vpop.f32.mrb[0].mxu0
    %v1360 = vpop.f32.mrb[0].mxu0
    %v1361 = vadd.f32 0.0, %v1360
    %v1362 = vpop.f32.mrb[0].mxu0
    %1363 = vmatprep.mubr.bf16.mxu0 0
    %1364 = vmatmul.mubr.bf16.gmra.mrb[0].mxu0 %v1305
    %v1365 = vpop.f32.mrb[0].mxu0
    %v1366 = vadd.f32 0.0, %v1365
    %v1367 = vpop.f32.mrb[0].mxu0
    %v1368 = vpop.f32.mrb[0].mxu0
    %v1369 = vadd.f32 0.0, %v1368
    %v1370 = vpop.f32.mrb[0].mxu0
    %1371 = vdwg.mxu0
    %s1372 = scalar_lea.vmem [#allocation2], 192
    %v1373 = vld [vmem:[%s1372] sm:$0xff]
    %v1374 = vld [vmem:[%s1372 + $0x8] sm:$0xff]
    %v1375 = vld [vmem:[%s1372 + $0x10] sm:$0xff]
    %v1376 = vld [vmem:[%s1372 + $0x18] sm:$0xff]
    %v1377 = vld [vmem:[%s1372 + $0x20] sm:$0xff]
    %v1378 = vld [vmem:[%s1372 + $0x28] sm:$0xff]
    %v1379 = vld [vmem:[%s1372 + $0x30] sm:$0xff]
    %v1380 = vld [vmem:[%s1372 + $0x38] sm:$0xff]
    %1381 = vrot.lane.b32.xlu0 %v486, 104
    %v1382 = vpop.permute.xlu0 %1381
    %1383 = vrot.lane.b32.xlu0 %v487, 104
    %v1384 = vpop.permute.xlu0 %1383
    %1385 = vrot.lane.b32.xlu0 %v488, 104
    %v1386 = vpop.permute.xlu0 %1385
    %1387 = vrot.lane.b32.xlu0 %v489, 104
    %v1388 = vpop.permute.xlu0 %1387
    %1389 = vrot.lane.b32.xlu0 %v486, 72
    %v1390 = vpop.permute.xlu0 %1389
    %1391 = vrot.lane.b32.xlu0 %v487, 72
    %v1392 = vpop.permute.xlu0 %1391
    %1393 = vrot.lane.b32.xlu0 %v488, 72
    %v1394 = vpop.permute.xlu0 %1393
    %1395 = vrot.lane.b32.xlu0 %v489, 72
    %v1396 = vpop.permute.xlu0 %1395
    %v1398 = vsel %vm510, %v1382, 0
    %v1401 = vsel %vm510, %v1384, 0
    %v1404 = vsel %vm510, %v1386, 0
    %v1407 = vsel %vm510, %v1388, 0
    %v1410 = vsel %vm510, %v1390, 0
    %v1413 = vsel %vm510, %v1392, 0
    %v1416 = vsel %vm510, %v1394, 0
    %v1419 = vsel %vm510, %v1396, 0
    %1421 = vmatprep.subr.bf16.mxu0 0
    %1422 = vmatpush1.bf16.xpose.msra.mxu0 %v1410
    %1423 = vmatprep.subr.bf16.mxu0 0
    %1424 = vmatpush1.bf16.xpose.msra.mxu0 %v1413
    %1425 = vmatprep.subr.bf16.mxu0 0
    %1426 = vmatpush1.bf16.xpose.msra.mxu0 %v1416
    %1427 = vmatprep.subr.bf16.mxu0 0
    %1428 = vmatpush1.bf16.xpose.msra.mxu0 %v1419
    %1429 = vmatprep.subr.bf16.mxu0 0
    %1430 = vmatpush1.bf16.xpose.msra.mxu0 0
    %1431 = vmatprep.subr.bf16.mxu0 0
    %1432 = vmatpush1.bf16.xpose.msra.mxu0 0
    %1433 = vmatprep.subr.bf16.mxu0 0
    %1434 = vmatpush1.bf16.xpose.msra.mxu0 0
    %1435 = vmatprep.subr.bf16.mxu0 0
    %1436 = vmatpush1.bf16.xpose.msra.mxu0 0
    %1437 = vmatprep.subr.bf16.mxu0 0
    %1438 = vmatpush1.bf16.xpose.msra.mxu0 0
    %1439 = vmatprep.subr.bf16.mxu0 0
    %1440 = vmatpush1.bf16.xpose.msra.mxu0 0
    %1441 = vmatprep.subr.bf16.mxu0 0
    %1442 = vmatpush1.bf16.xpose.msra.mxu0 0
    %1443 = vmatprep.subr.bf16.mxu0 0
    %1444 = vmatpush1.bf16.xpose.msra.mxu0 0
    %1445 = vmatprep.subr.bf16.mxu0 0
    %1446 = vmatpush1.bf16.xpose.msra.mxu0 0
    %1447 = vmatprep.subr.bf16.mxu0 0
    %1448 = vmatpush1.bf16.xpose.msra.mxu0 0
    %1449 = vmatprep.subr.bf16.mxu0 0
    %1450 = vmatpush1.bf16.xpose.msra.mxu0 0
    %1451 = vmatprep.subr.bf16.mxu0 0
    %1452 = vmatpush1.bf16.xpose.msra.mxu0 0
    %1453 = vmatprep.mubr.bf16.mxu0 0
    %1454 = vmatmul.mubr.bf16.gmra.mrb[0].mxu0 %v1398
    %v1455 = vpop.f32.mrb[0].mxu0
    %v1456 = vadd.f32 %v1373, %v1455
    %v1457 = vpop.f32.mrb[0].mxu0
    %v1458 = vpop.f32.mrb[0].mxu0
    %v1459 = vadd.f32 %v1374, %v1458
    %v1460 = vpop.f32.mrb[0].mxu0
    %1461 = vmatprep.mubr.bf16.mxu0 0
    %1462 = vmatmul.mubr.bf16.gmra.mrb[0].mxu0 %v1401
    %v1463 = vpop.f32.mrb[0].mxu0
    %v1464 = vadd.f32 %v1375, %v1463
    %v1465 = vpop.f32.mrb[0].mxu0
    %v1466 = vpop.f32.mrb[0].mxu0
    %v1467 = vadd.f32 %v1376, %v1466
    %v1468 = vpop.f32.mrb[0].mxu0
    %1469 = vmatprep.mubr.bf16.mxu0 0
    %1470 = vmatmul.mubr.bf16.gmra.mrb[0].mxu0 %v1404
    %v1471 = vpop.f32.mrb[0].mxu0
    %v1472 = vadd.f32 %v1377, %v1471
    %v1473 = vpop.f32.mrb[0].mxu0
    %v1474 = vpop.f32.mrb[0].mxu0
    %v1475 = vadd.f32 %v1378, %v1474
    %v1476 = vpop.f32.mrb[0].mxu0
    %1477 = vmatprep.mubr.bf16.mxu0 0
    %1478 = vmatmul.mubr.bf16.gmra.mrb[0].mxu0 %v1407
    %v1479 = vpop.f32.mrb[0].mxu0
    %v1480 = vadd.f32 %v1379, %v1479
    %v1481 = vpop.f32.mrb[0].mxu0
    %v1482 = vpop.f32.mrb[0].mxu0
    %v1483 = vadd.f32 %v1380, %v1482
    %v1484 = vpop.f32.mrb[0].mxu0
    %1485 = vdwg.mxu0
    %v1486 = vsel %vm600, %v1456, -inf
    %1487 = vmax.xlane.f32.xlu0 %v1486
    %v1488 = vpop.xlane.xlu0 %1487
    %v1489 = vsel %vm600, %v1459, -inf
    %1490 = vmax.xlane.f32.xlu0 %v1489
    %v1491 = vpop.xlane.xlu0 %1490
    %v1492 = vsel %vm600, %v1464, -inf
    %1493 = vmax.xlane.f32.xlu0 %v1492
    %v1494 = vpop.xlane.xlu0 %1493
    %v1495 = vsel %vm600, %v1467, -inf
    %1496 = vmax.xlane.f32.xlu0 %v1495
    %v1497 = vpop.xlane.xlu0 %1496
    %v1498 = vsel %vm600, %v1472, -inf
    %1499 = vmax.xlane.f32.xlu0 %v1498
    %v1500 = vpop.xlane.xlu0 %1499
    %v1501 = vsel %vm600, %v1475, -inf
    %1502 = vmax.xlane.f32.xlu0 %v1501
    %v1503 = vpop.xlane.xlu0 %1502
    %v1504 = vsel %vm600, %v1480, -inf
    %1505 = vmax.xlane.f32.xlu0 %v1504
    %v1506 = vpop.xlane.xlu0 %1505
    %v1507 = vsel %vm600, %v1483, -inf
    %1508 = vmax.xlane.f32.xlu0 %v1507
    %v1509 = vpop.xlane.xlu0 %1508
    %v1510 = vsub.f32 %v1456, %v1488
    %v1511 = vsub.f32 %v1459, %v1491
    %v1512 = vsub.f32 %v1464, %v1494
    %v1513 = vsub.f32 %v1467, %v1497
    %v1514 = vsub.f32 %v1472, %v1500
    %v1515 = vsub.f32 %v1475, %v1503
    %v1516 = vsub.f32 %v1480, %v1506
    %v1517 = vsub.f32 %v1483, %v1509
    %v1518 = vmul.f32 %v1510, 1.442695
    %v1519 = vpow.pop %v1518
    %v1520 = vmul.f32 %v1511, 1.442695
    %v1521 = vpow.pop %v1520
    %v1522 = vmul.f32 %v1512, 1.442695
    %v1523 = vpow.pop %v1522
    %v1524 = vmul.f32 %v1513, 1.442695
    %v1525 = vpow.pop %v1524
    %v1526 = vmul.f32 %v1514, 1.442695
    %v1527 = vpow.pop %v1526
    %v1528 = vmul.f32 %v1515, 1.442695
    %v1529 = vpow.pop %v1528
    %v1530 = vmul.f32 %v1516, 1.442695
    %v1531 = vpow.pop %v1530
    %v1532 = vmul.f32 %v1517, 1.442695
    %v1533 = vpow.pop %v1532
    %v1534 = vsel %vm600, %v1519, 0.0
    %1535 = vadd.xlane.f32.xlu0 %v1534
    %v1536 = vpop.xlane.xlu0 %1535
    %v1537 = vsel %vm600, %v1521, 0.0
    %1538 = vadd.xlane.f32.xlu0 %v1537
    %v1539 = vpop.xlane.xlu0 %1538
    %v1540 = vsel %vm600, %v1523, 0.0
    %1541 = vadd.xlane.f32.xlu0 %v1540
    %v1542 = vpop.xlane.xlu0 %1541
    %v1543 = vsel %vm600, %v1525, 0.0
    %1544 = vadd.xlane.f32.xlu0 %v1543
    %v1545 = vpop.xlane.xlu0 %1544
    %v1546 = vsel %vm600, %v1527, 0.0
    %1547 = vadd.xlane.f32.xlu0 %v1546
    %v1548 = vpop.xlane.xlu0 %1547
    %v1549 = vsel %vm600, %v1529, 0.0
    %1550 = vadd.xlane.f32.xlu0 %v1549
    %v1551 = vpop.xlane.xlu0 %1550
    %v1552 = vsel %vm600, %v1531, 0.0
    %1553 = vadd.xlane.f32.xlu0 %v1552
    %v1554 = vpop.xlane.xlu0 %1553
    %v1555 = vsel %vm600, %v1533, 0.0
    %1556 = vadd.xlane.f32.xlu0 %v1555
    %v1557 = vpop.xlane.xlu0 %1556
    %v1558 = vrcp.pop %v1536
    %v1559 = vrcp.pop %v1539
    %v1560 = vrcp.pop %v1542
    %v1561 = vrcp.pop %v1545
    %v1562 = vrcp.pop %v1548
    %v1563 = vrcp.pop %v1551
    %v1564 = vrcp.pop %v1554
    %v1565 = vrcp.pop %v1557
    %v1566 = vmul.f32 %v1519, %v1558
    %v1567 = vmul.f32 %v1521, %v1559
    %v1568 = vmul.f32 %v1523, %v1560
    %v1569 = vmul.f32 %v1525, %v1561
    %v1570 = vmul.f32 %v1527, %v1562
    %v1571 = vmul.f32 %v1529, %v1563
    %v1572 = vmul.f32 %v1531, %v1564
    %v1573 = vmul.f32 %v1533, %v1565
    %v1574 = vpack.c.bf16 %v1567, %v1566
    %v1575 = vpack.c.bf16 %v1569, %v1568
    %v1576 = vpack.c.bf16 %v1571, %v1570
    %v1577 = vpack.c.bf16 %v1573, %v1572
    %1578 = vrot.lane.b32.xlu0 %v486, 40
    %v1579 = vpop.permute.xlu0 %1578
    %1580 = vrot.lane.b32.xlu0 %v487, 40
    %v1581 = vpop.permute.xlu0 %1580
    %1582 = vrot.lane.b32.xlu0 %v488, 40
    %v1583 = vpop.permute.xlu0 %1582
    %1584 = vrot.lane.b32.xlu0 %v489, 40
    %v1585 = vpop.permute.xlu0 %1584
    %v1591 = vsel %vm600, %v1574, 0
    %v1594 = vsel %vm600, %v1575, 0
    %v1597 = vsel %vm600, %v1576, 0
    %v1600 = vsel %vm600, %v1577, 0
    %1602 = vmatprep.subr.bf16.mxu0 0
    %1603 = vmatpush1.bf16.msra.mxu0 %v1579
    %1604 = vmatprep.subr.bf16.mxu0 0
    %1605 = vmatpush1.bf16.msra.mxu0 %v1581
    %1606 = vmatprep.subr.bf16.mxu0 0
    %1607 = vmatpush1.bf16.msra.mxu0 %v1583
    %1608 = vmatprep.subr.bf16.mxu0 0
    %1609 = vmatpush1.bf16.msra.mxu0 %v1585
    %1610 = vmatprep.subr.bf16.mxu0 0
    %1611 = vmatpush1.bf16.msra.mxu0 0
    %1612 = vmatprep.subr.bf16.mxu0 0
    %1613 = vmatpush1.bf16.msra.mxu0 0
    %1614 = vmatprep.subr.bf16.mxu0 0
    %1615 = vmatpush1.bf16.msra.mxu0 0
    %1616 = vmatprep.subr.bf16.mxu0 0
    %1617 = vmatpush1.bf16.msra.mxu0 0
    %1618 = vmatprep.subr.bf16.mxu0 0
    %1619 = vmatpush1.bf16.msra.mxu0 0
    %1620 = vmatprep.subr.bf16.mxu0 0
    %1621 = vmatpush1.bf16.msra.mxu0 0
    %1622 = vmatprep.subr.bf16.mxu0 0
    %1623 = vmatpush1.bf16.msra.mxu0 0
    %1624 = vmatprep.subr.bf16.mxu0 0
    %1625 = vmatpush1.bf16.msra.mxu0 0
    %1626 = vmatprep.subr.bf16.mxu0 0
    %1627 = vmatpush1.bf16.msra.mxu0 0
    %1628 = vmatprep.subr.bf16.mxu0 0
    %1629 = vmatpush1.bf16.msra.mxu0 0
    %1630 = vmatprep.subr.bf16.mxu0 0
    %1631 = vmatpush1.bf16.msra.mxu0 0
    %1632 = vmatprep.subr.bf16.mxu0 0
    %1633 = vmatpush1.bf16.msra.mxu0 0
    %1634 = vmatprep.mubr.bf16.mxu0 0
    %1635 = vmatmul.mubr.bf16.gmra.mrb[0].mxu0 %v1591
    %v1636 = vpop.f32.mrb[0].mxu0
    %v1637 = vadd.f32 0.0, %v1636
    %v1638 = vpop.f32.mrb[0].mxu0
    %v1639 = vpop.f32.mrb[0].mxu0
    %v1640 = vadd.f32 0.0, %v1639
    %v1641 = vpop.f32.mrb[0].mxu0
    %1642 = vmatprep.mubr.bf16.mxu0 0
    %1643 = vmatmul.mubr.bf16.gmra.mrb[0].mxu0 %v1594
    %v1644 = vpop.f32.mrb[0].mxu0
    %v1645 = vadd.f32 0.0, %v1644
    %v1646 = vpop.f32.mrb[0].mxu0
    %v1647 = vpop.f32.mrb[0].mxu0
    %v1648 = vadd.f32 0.0, %v1647
    %v1649 = vpop.f32.mrb[0].mxu0
    %1650 = vmatprep.mubr.bf16.mxu0 0
    %1651 = vmatmul.mubr.bf16.gmra.mrb[0].mxu0 %v1597
    %v1652 = vpop.f32.mrb[0].mxu0
    %v1653 = vadd.f32 0.0, %v1652
    %v1654 = vpop.f32.mrb[0].mxu0
    %v1655 = vpop.f32.mrb[0].mxu0
    %v1656 = vadd.f32 0.0, %v1655
    %v1657 = vpop.f32.mrb[0].mxu0
    %1658 = vmatprep.mubr.bf16.mxu0 0
    %1659 = vmatmul.mubr.bf16.gmra.mrb[0].mxu0 %v1600
    %v1660 = vpop.f32.mrb[0].mxu0
    %v1661 = vadd.f32 0.0, %v1660
    %v1662 = vpop.f32.mrb[0].mxu0
    %v1663 = vpop.f32.mrb[0].mxu0
    %v1664 = vadd.f32 0.0, %v1663
    %v1665 = vpop.f32.mrb[0].mxu0
    %1666 = vdwg.mxu0
    %1675 = vrot.lane.b32.xlu0 %v1047, 8
    %v1676 = vpop.permute.xlu0 %1675
    %1677 = vrot.lane.b32.xlu0 %v1050, 8
    %v1678 = vpop.permute.xlu0 %1677
    %1679 = vrot.lane.b32.xlu0 %v1055, 8
    %v1680 = vpop.permute.xlu0 %1679
    %1681 = vrot.lane.b32.xlu0 %v1058, 8
    %v1682 = vpop.permute.xlu0 %1681
    %1683 = vrot.lane.b32.xlu0 %v1063, 8
    %v1684 = vpop.permute.xlu0 %1683
    %1685 = vrot.lane.b32.xlu0 %v1066, 8
    %v1686 = vpop.permute.xlu0 %1685
    %1687 = vrot.lane.b32.xlu0 %v1071, 8
    %v1688 = vpop.permute.xlu0 %1687
    %1689 = vrot.lane.b32.xlu0 %v1074, 8
    %v1690 = vpop.permute.xlu0 %1689
    %1707 = vrot.lane.b32.xlu0 %v1342, 16
    %v1708 = vpop.permute.xlu0 %1707
    %1709 = vrot.lane.b32.xlu0 %v1345, 16
    %v1710 = vpop.permute.xlu0 %1709
    %1711 = vrot.lane.b32.xlu0 %v1350, 16
    %v1712 = vpop.permute.xlu0 %1711
    %1713 = vrot.lane.b32.xlu0 %v1353, 16
    %v1714 = vpop.permute.xlu0 %1713
    %1715 = vrot.lane.b32.xlu0 %v1358, 16
    %v1716 = vpop.permute.xlu0 %1715
    %1717 = vrot.lane.b32.xlu0 %v1361, 16
    %v1718 = vpop.permute.xlu0 %1717
    %1719 = vrot.lane.b32.xlu0 %v1366, 16
    %v1720 = vpop.permute.xlu0 %1719
    %1721 = vrot.lane.b32.xlu0 %v1369, 16
    %v1722 = vpop.permute.xlu0 %1721
    %1739 = vrot.lane.b32.xlu0 %v1637, 24
    %v1740 = vpop.permute.xlu0 %1739
    %1741 = vrot.lane.b32.xlu0 %v1640, 24
    %v1742 = vpop.permute.xlu0 %1741
    %1743 = vrot.lane.b32.xlu0 %v1645, 24
    %v1744 = vpop.permute.xlu0 %1743
    %1745 = vrot.lane.b32.xlu0 %v1648, 24
    %v1746 = vpop.permute.xlu0 %1745
    %1747 = vrot.lane.b32.xlu0 %v1653, 24
    %v1748 = vpop.permute.xlu0 %1747
    %1749 = vrot.lane.b32.xlu0 %v1656, 24
    %v1750 = vpop.permute.xlu0 %1749
    %1751 = vrot.lane.b32.xlu0 %v1661, 24
    %v1752 = vpop.permute.xlu0 %1751
    %1753 = vrot.lane.b32.xlu0 %v1664, 24
    %v1754 = vpop.permute.xlu0 %1753
    %v1763 = vsel %vm510, %v752, %v1676
    %v1764 = vsel %vm510, %v755, %v1678
    %v1765 = vsel %vm510, %v760, %v1680
    %v1766 = vsel %vm510, %v763, %v1682
    %v1767 = vsel %vm510, %v768, %v1684
    %v1768 = vsel %vm510, %v771, %v1686
    %v1769 = vsel %vm510, %v776, %v1688
    %v1770 = vsel %vm510, %v779, %v1690
    %vm1771 = vcmask 130048
    %v1772 = vsel %vm1771, %v1763, %v1708
    %v1773 = vsel %vm1771, %v1764, %v1710
    %v1774 = vsel %vm1771, %v1765, %v1712
    %v1775 = vsel %vm1771, %v1766, %v1714
    %v1776 = vsel %vm1771, %v1767, %v1716
    %v1777 = vsel %vm1771, %v1768, %v1718
    %v1778 = vsel %vm1771, %v1769, %v1720
    %v1779 = vsel %vm1771, %v1770, %v1722
    %vm1780 = vcmask 195584
    %v1781 = vsel %vm1780, %v1772, %v1740
    %v1782 = vsel %vm1780, %v1773, %v1742
    %v1783 = vsel %vm1780, %v1774, %v1744
    %v1784 = vsel %vm1780, %v1775, %v1746
    %v1785 = vsel %vm1780, %v1776, %v1748
    %v1786 = vsel %vm1780, %v1777, %v1750
    %v1787 = vsel %vm1780, %v1778, %v1752
    %v1788 = vsel %vm1780, %v1779, %v1754
    %v1789 = vpack.c.bf16 %v459, %v456
    %v1790 = vpack.c.bf16 %v467, %v464
    %v1791 = vpack.c.bf16 %v475, %v472
    %v1792 = vpack.c.bf16 %v483, %v480
    %1797 = vrot.lane.b32.xlu0 %v1789, 96
    %v1798 = vpop.permute.xlu0 %1797
    %1799 = vrot.lane.b32.xlu0 %v1790, 96
    %v1800 = vpop.permute.xlu0 %1799
    %1801 = vrot.lane.b32.xlu0 %v1791, 96
    %v1802 = vpop.permute.xlu0 %1801
    %1803 = vrot.lane.b32.xlu0 %v1792, 96
    %v1804 = vpop.permute.xlu0 %1803
    %v1806 = vsel %vm510, %v1789, 0
    %v1809 = vsel %vm510, %v1790, 0
    %v1812 = vsel %vm510, %v1791, 0
    %v1815 = vsel %vm510, %v1792, 0
    %v1818 = vsel %vm510, %v1798, 0
    %v1821 = vsel %vm510, %v1800, 0
    %v1824 = vsel %vm510, %v1802, 0
    %v1827 = vsel %vm510, %v1804, 0
    %1829 = vmatprep.subr.bf16.mxu0 0
    %1830 = vmatpush1.bf16.xpose.msra.mxu0 %v1818
    %1831 = vmatprep.subr.bf16.mxu0 0
    %1832 = vmatpush1.bf16.xpose.msra.mxu0 %v1821
    %1833 = vmatprep.subr.bf16.mxu0 0
    %1834 = vmatpush1.bf16.xpose.msra.mxu0 %v1824
    %1835 = vmatprep.subr.bf16.mxu0 0
    %1836 = vmatpush1.bf16.xpose.msra.mxu0 %v1827
    %1837 = vmatprep.subr.bf16.mxu0 0
    %1838 = vmatpush1.bf16.xpose.msra.mxu0 0
    %1839 = vmatprep.subr.bf16.mxu0 0
    %1840 = vmatpush1.bf16.xpose.msra.mxu0 0
    %1841 = vmatprep.subr.bf16.mxu0 0
    %1842 = vmatpush1.bf16.xpose.msra.mxu0 0
    %1843 = vmatprep.subr.bf16.mxu0 0
    %1844 = vmatpush1.bf16.xpose.msra.mxu0 0
    %1845 = vmatprep.subr.bf16.mxu0 0
    %1846 = vmatpush1.bf16.xpose.msra.mxu0 0
    %1847 = vmatprep.subr.bf16.mxu0 0
    %1848 = vmatpush1.bf16.xpose.msra.mxu0 0
    %1849 = vmatprep.subr.bf16.mxu0 0
    %1850 = vmatpush1.bf16.xpose.msra.mxu0 0
    %1851 = vmatprep.subr.bf16.mxu0 0
    %1852 = vmatpush1.bf16.xpose.msra.mxu0 0
    %1853 = vmatprep.subr.bf16.mxu0 0
    %1854 = vmatpush1.bf16.xpose.msra.mxu0 0
    %1855 = vmatprep.subr.bf16.mxu0 0
    %1856 = vmatpush1.bf16.xpose.msra.mxu0 0
    %1857 = vmatprep.subr.bf16.mxu0 0
    %1858 = vmatpush1.bf16.xpose.msra.mxu0 0
    %1859 = vmatprep.subr.bf16.mxu0 0
    %1860 = vmatpush1.bf16.xpose.msra.mxu0 0
    %1861 = vmatprep.mubr.bf16.mxu0 0
    %1862 = vmatmul.mubr.bf16.gmra.mrb[0].mxu0 %v1806
    %v1863 = vpop.f32.mrb[0].mxu0
    %v1864 = vadd.f32 %v490, %v1863
    %v1865 = vpop.f32.mrb[0].mxu0
    %v1866 = vpop.f32.mrb[0].mxu0
    %v1867 = vadd.f32 %v491, %v1866
    %v1868 = vpop.f32.mrb[0].mxu0
    %1869 = vmatprep.mubr.bf16.mxu0 0
    %1870 = vmatmul.mubr.bf16.gmra.mrb[0].mxu0 %v1809
    %v1871 = vpop.f32.mrb[0].mxu0
    %v1872 = vadd.f32 %v492, %v1871
    %v1873 = vpop.f32.mrb[0].mxu0
    %v1874 = vpop.f32.mrb[0].mxu0
    %v1875 = vadd.f32 %v493, %v1874
    %v1876 = vpop.f32.mrb[0].mxu0
    %1877 = vmatprep.mubr.bf16.mxu0 0
    %1878 = vmatmul.mubr.bf16.gmra.mrb[0].mxu0 %v1812
    %v1879 = vpop.f32.mrb[0].mxu0
    %v1880 = vadd.f32 %v494, %v1879
    %v1881 = vpop.f32.mrb[0].mxu0
    %v1882 = vpop.f32.mrb[0].mxu0
    %v1883 = vadd.f32 %v495, %v1882
    %v1884 = vpop.f32.mrb[0].mxu0
    %1885 = vmatprep.mubr.bf16.mxu0 0
    %1886 = vmatmul.mubr.bf16.gmra.mrb[0].mxu0 %v1815
    %v1887 = vpop.f32.mrb[0].mxu0
    %v1888 = vadd.f32 %v496, %v1887
    %v1889 = vpop.f32.mrb[0].mxu0
    %v1890 = vpop.f32.mrb[0].mxu0
    %v1891 = vadd.f32 %v497, %v1890
    %v1892 = vpop.f32.mrb[0].mxu0
    %1893 = vdwg.mxu0
    %v1894 = vsel %vm600, %v1864, -inf
    %1895 = vmax.xlane.f32.xlu0 %v1894
    %v1896 = vpop.xlane.xlu0 %1895
    %v1897 = vsel %vm600, %v1867, -inf
    %1898 = vmax.xlane.f32.xlu0 %v1897
    %v1899 = vpop.xlane.xlu0 %1898
    %v1900 = vsel %vm600, %v1872, -inf
    %1901 = vmax.xlane.f32.xlu0 %v1900
    %v1902 = vpop.xlane.xlu0 %1901
    %v1903 = vsel %vm600, %v1875, -inf
    %1904 = vmax.xlane.f32.xlu0 %v1903
    %v1905 = vpop.xlane.xlu0 %1904
    %v1906 = vsel %vm600, %v1880, -inf
    %1907 = vmax.xlane.f32.xlu0 %v1906
    %v1908 = vpop.xlane.xlu0 %1907
    %v1909 = vsel %vm600, %v1883, -inf
    %1910 = vmax.xlane.f32.xlu0 %v1909
    %v1911 = vpop.xlane.xlu0 %1910
    %v1912 = vsel %vm600, %v1888, -inf
    %1913 = vmax.xlane.f32.xlu0 %v1912
    %v1914 = vpop.xlane.xlu0 %1913
    %v1915 = vsel %vm600, %v1891, -inf
    %1916 = vmax.xlane.f32.xlu0 %v1915
    %v1917 = vpop.xlane.xlu0 %1916
    %v1918 = vsub.f32 %v1864, %v1896
    %v1919 = vsub.f32 %v1867, %v1899
    %v1920 = vsub.f32 %v1872, %v1902
    %v1921 = vsub.f32 %v1875, %v1905
    %v1922 = vsub.f32 %v1880, %v1908
    %v1923 = vsub.f32 %v1883, %v1911
    %v1924 = vsub.f32 %v1888, %v1914
    %v1925 = vsub.f32 %v1891, %v1917
    %v1926 = vmul.f32 %v1918, 1.442695
    %v1927 = vpow.pop %v1926
    %v1928 = vmul.f32 %v1919, 1.442695
    %v1929 = vpow.pop %v1928
    %v1930 = vmul.f32 %v1920, 1.442695
    %v1931 = vpow.pop %v1930
    %v1932 = vmul.f32 %v1921, 1.442695
    %v1933 = vpow.pop %v1932
    %v1934 = vmul.f32 %v1922, 1.442695
    %v1935 = vpow.pop %v1934
    %v1936 = vmul.f32 %v1923, 1.442695
    %v1937 = vpow.pop %v1936
    %v1938 = vmul.f32 %v1924, 1.442695
    %v1939 = vpow.pop %v1938
    %v1940 = vmul.f32 %v1925, 1.442695
    %v1941 = vpow.pop %v1940
    %v1942 = vsel %vm600, %v1927, 0.0
    %1943 = vadd.xlane.f32.xlu0 %v1942
    %v1944 = vpop.xlane.xlu0 %1943
    %v1945 = vsel %vm600, %v1929, 0.0
    %1946 = vadd.xlane.f32.xlu0 %v1945
    %v1947 = vpop.xlane.xlu0 %1946
    %v1948 = vsel %vm600, %v1931, 0.0
    %1949 = vadd.xlane.f32.xlu0 %v1948
    %v1950 = vpop.xlane.xlu0 %1949
    %v1951 = vsel %vm600, %v1933, 0.0
    %1952 = vadd.xlane.f32.xlu0 %v1951
    %v1953 = vpop.xlane.xlu0 %1952
    %v1954 = vsel %vm600, %v1935, 0.0
    %1955 = vadd.xlane.f32.xlu0 %v1954
    %v1956 = vpop.xlane.xlu0 %1955
    %v1957 = vsel %vm600, %v1937, 0.0
    %1958 = vadd.xlane.f32.xlu0 %v1957
    %v1959 = vpop.xlane.xlu0 %1958
    %v1960 = vsel %vm600, %v1939, 0.0
    %1961 = vadd.xlane.f32.xlu0 %v1960
    %v1962 = vpop.xlane.xlu0 %1961
    %v1963 = vsel %vm600, %v1941, 0.0
    %1964 = vadd.xlane.f32.xlu0 %v1963
    %v1965 = vpop.xlane.xlu0 %1964
    %v1966 = vrcp.pop %v1944
    %v1967 = vrcp.pop %v1947
    %v1968 = vrcp.pop %v1950
    %v1969 = vrcp.pop %v1953
    %v1970 = vrcp.pop %v1956
    %v1971 = vrcp.pop %v1959
    %v1972 = vrcp.pop %v1962
    %v1973 = vrcp.pop %v1965
    %v1974 = vmul.f32 %v1927, %v1966
    %v1975 = vmul.f32 %v1929, %v1967
    %v1976 = vmul.f32 %v1931, %v1968
    %v1977 = vmul.f32 %v1933, %v1969
    %v1978 = vmul.f32 %v1935, %v1970
    %v1979 = vmul.f32 %v1937, %v1971
    %v1980 = vmul.f32 %v1939, %v1972
    %v1981 = vmul.f32 %v1941, %v1973
    %v1982 = vpack.c.bf16 %v1975, %v1974
    %v1983 = vpack.c.bf16 %v1977, %v1976
    %v1984 = vpack.c.bf16 %v1979, %v1978
    %v1985 = vpack.c.bf16 %v1981, %v1980
    %1986 = vrot.lane.b32.xlu0 %v1789, 64
    %v1987 = vpop.permute.xlu0 %1986
    %1988 = vrot.lane.b32.xlu0 %v1790, 64
    %v1989 = vpop.permute.xlu0 %1988
    %1990 = vrot.lane.b32.xlu0 %v1791, 64
    %v1991 = vpop.permute.xlu0 %1990
    %1992 = vrot.lane.b32.xlu0 %v1792, 64
    %v1993 = vpop.permute.xlu0 %1992
    %v1999 = vsel %vm600, %v1982, 0
    %v2002 = vsel %vm600, %v1983, 0
    %v2005 = vsel %vm600, %v1984, 0
    %v2008 = vsel %vm600, %v1985, 0
    %2010 = vmatprep.subr.bf16.mxu0 0
    %2011 = vmatpush1.bf16.msra.mxu0 %v1987
    %2012 = vmatprep.subr.bf16.mxu0 0
    %2013 = vmatpush1.bf16.msra.mxu0 %v1989
    %2014 = vmatprep.subr.bf16.mxu0 0
    %2015 = vmatpush1.bf16.msra.mxu0 %v1991
    %2016 = vmatprep.subr.bf16.mxu0 0
    %2017 = vmatpush1.bf16.msra.mxu0 %v1993
    %2018 = vmatprep.subr.bf16.mxu0 0
    %2019 = vmatpush1.bf16.msra.mxu0 0
    %2020 = vmatprep.subr.bf16.mxu0 0
    %2021 = vmatpush1.bf16.msra.mxu0 0
    %2022 = vmatprep.subr.bf16.mxu0 0
    %2023 = vmatpush1.bf16.msra.mxu0 0
    %2024 = vmatprep.subr.bf16.mxu0 0
    %2025 = vmatpush1.bf16.msra.mxu0 0
    %2026 = vmatprep.subr.bf16.mxu0 0
    %2027 = vmatpush1.bf16.msra.mxu0 0
    %2028 = vmatprep.subr.bf16.mxu0 0
    %2029 = vmatpush1.bf16.msra.mxu0 0
    %2030 = vmatprep.subr.bf16.mxu0 0
    %2031 = vmatpush1.bf16.msra.mxu0 0
    %2032 = vmatprep.subr.bf16.mxu0 0
    %2033 = vmatpush1.bf16.msra.mxu0 0
    %2034 = vmatprep.subr.bf16.mxu0 0
    %2035 = vmatpush1.bf16.msra.mxu0 0
    %2036 = vmatprep.subr.bf16.mxu0 0
    %2037 = vmatpush1.bf16.msra.mxu0 0
    %2038 = vmatprep.subr.bf16.mxu0 0
    %2039 = vmatpush1.bf16.msra.mxu0 0
    %2040 = vmatprep.subr.bf16.mxu0 0
    %2041 = vmatpush1.bf16.msra.mxu0 0
    %2042 = vmatprep.mubr.bf16.mxu0 0
    %2043 = vmatmul.mubr.bf16.gmra.mrb[0].mxu0 %v1999
    %v2044 = vpop.f32.mrb[0].mxu0
    %v2045 = vadd.f32 0.0, %v2044
    %v2046 = vpop.f32.mrb[0].mxu0
    %v2047 = vpop.f32.mrb[0].mxu0
    %v2048 = vadd.f32 0.0, %v2047
    %v2049 = vpop.f32.mrb[0].mxu0
    %2050 = vmatprep.mubr.bf16.mxu0 0
    %2051 = vmatmul.mubr.bf16.gmra.mrb[0].mxu0 %v2002
    %v2052 = vpop.f32.mrb[0].mxu0
    %v2053 = vadd.f32 0.0, %v2052
    %v2054 = vpop.f32.mrb[0].mxu0
    %v2055 = vpop.f32.mrb[0].mxu0
    %v2056 = vadd.f32 0.0, %v2055
    %v2057 = vpop.f32.mrb[0].mxu0
    %2058 = vmatprep.mubr.bf16.mxu0 0
    %2059 = vmatmul.mubr.bf16.gmra.mrb[0].mxu0 %v2005
    %v2060 = vpop.f32.mrb[0].mxu0
    %v2061 = vadd.f32 0.0, %v2060
    %v2062 = vpop.f32.mrb[0].mxu0
    %v2063 = vpop.f32.mrb[0].mxu0
    %v2064 = vadd.f32 0.0, %v2063
    %v2065 = vpop.f32.mrb[0].mxu0
    %2066 = vmatprep.mubr.bf16.mxu0 0
    %2067 = vmatmul.mubr.bf16.gmra.mrb[0].mxu0 %v2008
    %v2068 = vpop.f32.mrb[0].mxu0
    %v2069 = vadd.f32 0.0, %v2068
    %v2070 = vpop.f32.mrb[0].mxu0
    %v2071 = vpop.f32.mrb[0].mxu0
    %v2072 = vadd.f32 0.0, %v2071
    %v2073 = vpop.f32.mrb[0].mxu0
    %2074 = vdwg.mxu0
    %2075 = vrot.lane.b32.xlu0 %v1789, 120
    %v2076 = vpop.permute.xlu0 %2075
    %2077 = vrot.lane.b32.xlu0 %v1790, 120
    %v2078 = vpop.permute.xlu0 %2077
    %2079 = vrot.lane.b32.xlu0 %v1791, 120
    %v2080 = vpop.permute.xlu0 %2079
    %2081 = vrot.lane.b32.xlu0 %v1792, 120
    %v2082 = vpop.permute.xlu0 %2081
    %2083 = vrot.lane.b32.xlu0 %v1789, 88
    %v2084 = vpop.permute.xlu0 %2083
    %2085 = vrot.lane.b32.xlu0 %v1790, 88
    %v2086 = vpop.permute.xlu0 %2085
    %2087 = vrot.lane.b32.xlu0 %v1791, 88
    %v2088 = vpop.permute.xlu0 %2087
    %2089 = vrot.lane.b32.xlu0 %v1792, 88
    %v2090 = vpop.permute.xlu0 %2089
    %v2092 = vsel %vm510, %v2076, 0
    %v2095 = vsel %vm510, %v2078, 0
    %v2098 = vsel %vm510, %v2080, 0
    %v2101 = vsel %vm510, %v2082, 0
    %v2104 = vsel %vm510, %v2084, 0
    %v2107 = vsel %vm510, %v2086, 0
    %v2110 = vsel %vm510, %v2088, 0
    %v2113 = vsel %vm510, %v2090, 0
    %2115 = vmatprep.subr.bf16.mxu0 0
    %2116 = vmatpush1.bf16.xpose.msra.mxu0 %v2104
    %2117 = vmatprep.subr.bf16.mxu0 0
    %2118 = vmatpush1.bf16.xpose.msra.mxu0 %v2107
    %2119 = vmatprep.subr.bf16.mxu0 0
    %2120 = vmatpush1.bf16.xpose.msra.mxu0 %v2110
    %2121 = vmatprep.subr.bf16.mxu0 0
    %2122 = vmatpush1.bf16.xpose.msra.mxu0 %v2113
    %2123 = vmatprep.subr.bf16.mxu0 0
    %2124 = vmatpush1.bf16.xpose.msra.mxu0 0
    %2125 = vmatprep.subr.bf16.mxu0 0
    %2126 = vmatpush1.bf16.xpose.msra.mxu0 0
    %2127 = vmatprep.subr.bf16.mxu0 0
    %2128 = vmatpush1.bf16.xpose.msra.mxu0 0
    %2129 = vmatprep.subr.bf16.mxu0 0
    %2130 = vmatpush1.bf16.xpose.msra.mxu0 0
    %2131 = vmatprep.subr.bf16.mxu0 0
    %2132 = vmatpush1.bf16.xpose.msra.mxu0 0
    %2133 = vmatprep.subr.bf16.mxu0 0
    %2134 = vmatpush1.bf16.xpose.msra.mxu0 0
    %2135 = vmatprep.subr.bf16.mxu0 0
    %2136 = vmatpush1.bf16.xpose.msra.mxu0 0
    %2137 = vmatprep.subr.bf16.mxu0 0
    %2138 = vmatpush1.bf16.xpose.msra.mxu0 0
    %2139 = vmatprep.subr.bf16.mxu0 0
    %2140 = vmatpush1.bf16.xpose.msra.mxu0 0
    %2141 = vmatprep.subr.bf16.mxu0 0
    %2142 = vmatpush1.bf16.xpose.msra.mxu0 0
    %2143 = vmatprep.subr.bf16.mxu0 0
    %2144 = vmatpush1.bf16.xpose.msra.mxu0 0
    %2145 = vmatprep.subr.bf16.mxu0 0
    %2146 = vmatpush1.bf16.xpose.msra.mxu0 0
    %2147 = vmatprep.mubr.bf16.mxu0 0
    %2148 = vmatmul.mubr.bf16.gmra.mrb[0].mxu0 %v2092
    %v2149 = vpop.f32.mrb[0].mxu0
    %v2150 = vadd.f32 %v783, %v2149
    %v2151 = vpop.f32.mrb[0].mxu0
    %v2152 = vpop.f32.mrb[0].mxu0
    %v2153 = vadd.f32 %v784, %v2152
    %v2154 = vpop.f32.mrb[0].mxu0
    %2155 = vmatprep.mubr.bf16.mxu0 0
    %2156 = vmatmul.mubr.bf16.gmra.mrb[0].mxu0 %v2095
    %v2157 = vpop.f32.mrb[0].mxu0
    %v2158 = vadd.f32 %v785, %v2157
    %v2159 = vpop.f32.mrb[0].mxu0
    %v2160 = vpop.f32.mrb[0].mxu0
    %v2161 = vadd.f32 %v786, %v2160
    %v2162 = vpop.f32.mrb[0].mxu0
    %2163 = vmatprep.mubr.bf16.mxu0 0
    %2164 = vmatmul.mubr.bf16.gmra.mrb[0].mxu0 %v2098
    %v2165 = vpop.f32.mrb[0].mxu0
    %v2166 = vadd.f32 %v787, %v2165
    %v2167 = vpop.f32.mrb[0].mxu0
    %v2168 = vpop.f32.mrb[0].mxu0
    %v2169 = vadd.f32 %v788, %v2168
    %v2170 = vpop.f32.mrb[0].mxu0
    %2171 = vmatprep.mubr.bf16.mxu0 0
    %2172 = vmatmul.mubr.bf16.gmra.mrb[0].mxu0 %v2101
    %v2173 = vpop.f32.mrb[0].mxu0
    %v2174 = vadd.f32 %v789, %v2173
    %v2175 = vpop.f32.mrb[0].mxu0
    %v2176 = vpop.f32.mrb[0].mxu0
    %v2177 = vadd.f32 %v790, %v2176
    %v2178 = vpop.f32.mrb[0].mxu0
    %2179 = vdwg.mxu0
    %v2180 = vsel %vm600, %v2150, -inf
    %2181 = vmax.xlane.f32.xlu0 %v2180
    %v2182 = vpop.xlane.xlu0 %2181
    %v2183 = vsel %vm600, %v2153, -inf
    %2184 = vmax.xlane.f32.xlu0 %v2183
    %v2185 = vpop.xlane.xlu0 %2184
    %v2186 = vsel %vm600, %v2158, -inf
    %2187 = vmax.xlane.f32.xlu0 %v2186
    %v2188 = vpop.xlane.xlu0 %2187
    %v2189 = vsel %vm600, %v2161, -inf
    %2190 = vmax.xlane.f32.xlu0 %v2189
    %v2191 = vpop.xlane.xlu0 %2190
    %v2192 = vsel %vm600, %v2166, -inf
    %2193 = vmax.xlane.f32.xlu0 %v2192
    %v2194 = vpop.xlane.xlu0 %2193
    %v2195 = vsel %vm600, %v2169, -inf
    %2196 = vmax.xlane.f32.xlu0 %v2195
    %v2197 = vpop.xlane.xlu0 %2196
    %v2198 = vsel %vm600, %v2174, -inf
    %2199 = vmax.xlane.f32.xlu0 %v2198
    %v2200 = vpop.xlane.xlu0 %2199
    %v2201 = vsel %vm600, %v2177, -inf
    %2202 = vmax.xlane.f32.xlu0 %v2201
    %v2203 = vpop.xlane.xlu0 %2202
    %v2204 = vsub.f32 %v2150, %v2182
    %v2205 = vsub.f32 %v2153, %v2185
    %v2206 = vsub.f32 %v2158, %v2188
    %v2207 = vsub.f32 %v2161, %v2191
    %v2208 = vsub.f32 %v2166, %v2194
    %v2209 = vsub.f32 %v2169, %v2197
    %v2210 = vsub.f32 %v2174, %v2200
    %v2211 = vsub.f32 %v2177, %v2203
    %v2212 = vmul.f32 %v2204, 1.442695
    %v2213 = vpow.pop %v2212
    %v2214 = vmul.f32 %v2205, 1.442695
    %v2215 = vpow.pop %v2214
    %v2216 = vmul.f32 %v2206, 1.442695
    %v2217 = vpow.pop %v2216
    %v2218 = vmul.f32 %v2207, 1.442695
    %v2219 = vpow.pop %v2218
    %v2220 = vmul.f32 %v2208, 1.442695
    %v2221 = vpow.pop %v2220
    %v2222 = vmul.f32 %v2209, 1.442695
    %v2223 = vpow.pop %v2222
    %v2224 = vmul.f32 %v2210, 1.442695
    %v2225 = vpow.pop %v2224
    %v2226 = vmul.f32 %v2211, 1.442695
    %v2227 = vpow.pop %v2226
    %v2228 = vsel %vm600, %v2213, 0.0
    %2229 = vadd.xlane.f32.xlu0 %v2228
    %v2230 = vpop.xlane.xlu0 %2229
    %v2231 = vsel %vm600, %v2215, 0.0
    %2232 = vadd.xlane.f32.xlu0 %v2231
    %v2233 = vpop.xlane.xlu0 %2232
    %v2234 = vsel %vm600, %v2217, 0.0
    %2235 = vadd.xlane.f32.xlu0 %v2234
    %v2236 = vpop.xlane.xlu0 %2235
    %v2237 = vsel %vm600, %v2219, 0.0
    %2238 = vadd.xlane.f32.xlu0 %v2237
    %v2239 = vpop.xlane.xlu0 %2238
    %v2240 = vsel %vm600, %v2221, 0.0
    %2241 = vadd.xlane.f32.xlu0 %v2240
    %v2242 = vpop.xlane.xlu0 %2241
    %v2243 = vsel %vm600, %v2223, 0.0
    %2244 = vadd.xlane.f32.xlu0 %v2243
    %v2245 = vpop.xlane.xlu0 %2244
    %v2246 = vsel %vm600, %v2225, 0.0
    %2247 = vadd.xlane.f32.xlu0 %v2246
    %v2248 = vpop.xlane.xlu0 %2247
    %v2249 = vsel %vm600, %v2227, 0.0
    %2250 = vadd.xlane.f32.xlu0 %v2249
    %v2251 = vpop.xlane.xlu0 %2250
    %v2252 = vrcp.pop %v2230
    %v2253 = vrcp.pop %v2233
    %v2254 = vrcp.pop %v2236
    %v2255 = vrcp.pop %v2239
    %v2256 = vrcp.pop %v2242
    %v2257 = vrcp.pop %v2245
    %v2258 = vrcp.pop %v2248
    %v2259 = vrcp.pop %v2251
    %v2260 = vmul.f32 %v2213, %v2252
    %v2261 = vmul.f32 %v2215, %v2253
    %v2262 = vmul.f32 %v2217, %v2254
    %v2263 = vmul.f32 %v2219, %v2255
    %v2264 = vmul.f32 %v2221, %v2256
    %v2265 = vmul.f32 %v2223, %v2257
    %v2266 = vmul.f32 %v2225, %v2258
    %v2267 = vmul.f32 %v2227, %v2259
    %v2268 = vpack.c.bf16 %v2261, %v2260
    %v2269 = vpack.c.bf16 %v2263, %v2262
    %v2270 = vpack.c.bf16 %v2265, %v2264
    %v2271 = vpack.c.bf16 %v2267, %v2266
    %2272 = vrot.lane.b32.xlu0 %v1789, 56
    %v2273 = vpop.permute.xlu0 %2272
    %2274 = vrot.lane.b32.xlu0 %v1790, 56
    %v2275 = vpop.permute.xlu0 %2274
    %2276 = vrot.lane.b32.xlu0 %v1791, 56
    %v2277 = vpop.permute.xlu0 %2276
    %2278 = vrot.lane.b32.xlu0 %v1792, 56
    %v2279 = vpop.permute.xlu0 %2278
    %v2285 = vsel %vm600, %v2268, 0
    %v2288 = vsel %vm600, %v2269, 0
    %v2291 = vsel %vm600, %v2270, 0
    %v2294 = vsel %vm600, %v2271, 0
    %2296 = vmatprep.subr.bf16.mxu0 0
    %2297 = vmatpush1.bf16.msra.mxu0 %v2273
    %2298 = vmatprep.subr.bf16.mxu0 0
    %2299 = vmatpush1.bf16.msra.mxu0 %v2275
    %2300 = vmatprep.subr.bf16.mxu0 0
    %2301 = vmatpush1.bf16.msra.mxu0 %v2277
    %2302 = vmatprep.subr.bf16.mxu0 0
    %2303 = vmatpush1.bf16.msra.mxu0 %v2279
    %2304 = vmatprep.subr.bf16.mxu0 0
    %2305 = vmatpush1.bf16.msra.mxu0 0
    %2306 = vmatprep.subr.bf16.mxu0 0
    %2307 = vmatpush1.bf16.msra.mxu0 0
    %2308 = vmatprep.subr.bf16.mxu0 0
    %2309 = vmatpush1.bf16.msra.mxu0 0
    %2310 = vmatprep.subr.bf16.mxu0 0
    %2311 = vmatpush1.bf16.msra.mxu0 0
    %2312 = vmatprep.subr.bf16.mxu0 0
    %2313 = vmatpush1.bf16.msra.mxu0 0
    %2314 = vmatprep.subr.bf16.mxu0 0
    %2315 = vmatpush1.bf16.msra.mxu0 0
    %2316 = vmatprep.subr.bf16.mxu0 0
    %2317 = vmatpush1.bf16.msra.mxu0 0
    %2318 = vmatprep.subr.bf16.mxu0 0
    %2319 = vmatpush1.bf16.msra.mxu0 0
    %2320 = vmatprep.subr.bf16.mxu0 0
    %2321 = vmatpush1.bf16.msra.mxu0 0
    %2322 = vmatprep.subr.bf16.mxu0 0
    %2323 = vmatpush1.bf16.msra.mxu0 0
    %2324 = vmatprep.subr.bf16.mxu0 0
    %2325 = vmatpush1.bf16.msra.mxu0 0
    %2326 = vmatprep.subr.bf16.mxu0 0
    %2327 = vmatpush1.bf16.msra.mxu0 0
    %2328 = vmatprep.mubr.bf16.mxu0 0
    %2329 = vmatmul.mubr.bf16.gmra.mrb[0].mxu0 %v2285
    %v2330 = vpop.f32.mrb[0].mxu0
    %v2331 = vadd.f32 0.0, %v2330
    %v2332 = vpop.f32.mrb[0].mxu0
    %v2333 = vpop.f32.mrb[0].mxu0
    %v2334 = vadd.f32 0.0, %v2333
    %v2335 = vpop.f32.mrb[0].mxu0
    %2336 = vmatprep.mubr.bf16.mxu0 0
    %2337 = vmatmul.mubr.bf16.gmra.mrb[0].mxu0 %v2288
    %v2338 = vpop.f32.mrb[0].mxu0
    %v2339 = vadd.f32 0.0, %v2338
    %v2340 = vpop.f32.mrb[0].mxu0
    %v2341 = vpop.f32.mrb[0].mxu0
    %v2342 = vadd.f32 0.0, %v2341
    %v2343 = vpop.f32.mrb[0].mxu0
    %2344 = vmatprep.mubr.bf16.mxu0 0
    %2345 = vmatmul.mubr.bf16.gmra.mrb[0].mxu0 %v2291
    %v2346 = vpop.f32.mrb[0].mxu0
    %v2347 = vadd.f32 0.0, %v2346
    %v2348 = vpop.f32.mrb[0].mxu0
    %v2349 = vpop.f32.mrb[0].mxu0
    %v2350 = vadd.f32 0.0, %v2349
    %v2351 = vpop.f32.mrb[0].mxu0
    %2352 = vmatprep.mubr.bf16.mxu0 0
    %2353 = vmatmul.mubr.bf16.gmra.mrb[0].mxu0 %v2294
    %v2354 = vpop.f32.mrb[0].mxu0
    %v2355 = vadd.f32 0.0, %v2354
    %v2356 = vpop.f32.mrb[0].mxu0
    %v2357 = vpop.f32.mrb[0].mxu0
    %v2358 = vadd.f32 0.0, %v2357
    %v2359 = vpop.f32.mrb[0].mxu0
    %2360 = vdwg.mxu0
    %2361 = vrot.lane.b32.xlu0 %v1789, 112
    %v2362 = vpop.permute.xlu0 %2361
    %2363 = vrot.lane.b32.xlu0 %v1790, 112
    %v2364 = vpop.permute.xlu0 %2363
    %2365 = vrot.lane.b32.xlu0 %v1791, 112
    %v2366 = vpop.permute.xlu0 %2365
    %2367 = vrot.lane.b32.xlu0 %v1792, 112
    %v2368 = vpop.permute.xlu0 %2367
    %2369 = vrot.lane.b32.xlu0 %v1789, 80
    %v2370 = vpop.permute.xlu0 %2369
    %2371 = vrot.lane.b32.xlu0 %v1790, 80
    %v2372 = vpop.permute.xlu0 %2371
    %2373 = vrot.lane.b32.xlu0 %v1791, 80
    %v2374 = vpop.permute.xlu0 %2373
    %2375 = vrot.lane.b32.xlu0 %v1792, 80
    %v2376 = vpop.permute.xlu0 %2375
    %v2378 = vsel %vm510, %v2362, 0
    %v2381 = vsel %vm510, %v2364, 0
    %v2384 = vsel %vm510, %v2366, 0
    %v2387 = vsel %vm510, %v2368, 0
    %v2390 = vsel %vm510, %v2370, 0
    %v2393 = vsel %vm510, %v2372, 0
    %v2396 = vsel %vm510, %v2374, 0
    %v2399 = vsel %vm510, %v2376, 0
    %2401 = vmatprep.subr.bf16.mxu0 0
    %2402 = vmatpush1.bf16.xpose.msra.mxu0 %v2390
    %2403 = vmatprep.subr.bf16.mxu0 0
    %2404 = vmatpush1.bf16.xpose.msra.mxu0 %v2393
    %2405 = vmatprep.subr.bf16.mxu0 0
    %2406 = vmatpush1.bf16.xpose.msra.mxu0 %v2396
    %2407 = vmatprep.subr.bf16.mxu0 0
    %2408 = vmatpush1.bf16.xpose.msra.mxu0 %v2399
    %2409 = vmatprep.subr.bf16.mxu0 0
    %2410 = vmatpush1.bf16.xpose.msra.mxu0 0
    %2411 = vmatprep.subr.bf16.mxu0 0
    %2412 = vmatpush1.bf16.xpose.msra.mxu0 0
    %2413 = vmatprep.subr.bf16.mxu0 0
    %2414 = vmatpush1.bf16.xpose.msra.mxu0 0
    %2415 = vmatprep.subr.bf16.mxu0 0
    %2416 = vmatpush1.bf16.xpose.msra.mxu0 0
    %2417 = vmatprep.subr.bf16.mxu0 0
    %2418 = vmatpush1.bf16.xpose.msra.mxu0 0
    %2419 = vmatprep.subr.bf16.mxu0 0
    %2420 = vmatpush1.bf16.xpose.msra.mxu0 0
    %2421 = vmatprep.subr.bf16.mxu0 0
    %2422 = vmatpush1.bf16.xpose.msra.mxu0 0
    %2423 = vmatprep.subr.bf16.mxu0 0
    %2424 = vmatpush1.bf16.xpose.msra.mxu0 0
    %2425 = vmatprep.subr.bf16.mxu0 0
    %2426 = vmatpush1.bf16.xpose.msra.mxu0 0
    %2427 = vmatprep.subr.bf16.mxu0 0
    %2428 = vmatpush1.bf16.xpose.msra.mxu0 0
    %2429 = vmatprep.subr.bf16.mxu0 0
    %2430 = vmatpush1.bf16.xpose.msra.mxu0 0
    %2431 = vmatprep.subr.bf16.mxu0 0
    %2432 = vmatpush1.bf16.xpose.msra.mxu0 0
    %2433 = vmatprep.mubr.bf16.mxu0 0
    %2434 = vmatmul.mubr.bf16.gmra.mrb[0].mxu0 %v2378
    %v2435 = vpop.f32.mrb[0].mxu0
    %v2436 = vadd.f32 %v1078, %v2435
    %v2437 = vpop.f32.mrb[0].mxu0
    %v2438 = vpop.f32.mrb[0].mxu0
    %v2439 = vadd.f32 %v1079, %v2438
    %v2440 = vpop.f32.mrb[0].mxu0
    %2441 = vmatprep.mubr.bf16.mxu0 0
    %2442 = vmatmul.mubr.bf16.gmra.mrb[0].mxu0 %v2381
    %v2443 = vpop.f32.mrb[0].mxu0
    %v2444 = vadd.f32 %v1080, %v2443
    %v2445 = vpop.f32.mrb[0].mxu0
    %v2446 = vpop.f32.mrb[0].mxu0
    %v2447 = vadd.f32 %v1081, %v2446
    %v2448 = vpop.f32.mrb[0].mxu0
    %2449 = vmatprep.mubr.bf16.mxu0 0
    %2450 = vmatmul.mubr.bf16.gmra.mrb[0].mxu0 %v2384
    %v2451 = vpop.f32.mrb[0].mxu0
    %v2452 = vadd.f32 %v1082, %v2451
    %v2453 = vpop.f32.mrb[0].mxu0
    %v2454 = vpop.f32.mrb[0].mxu0
    %v2455 = vadd.f32 %v1083, %v2454
    %v2456 = vpop.f32.mrb[0].mxu0
    %2457 = vmatprep.mubr.bf16.mxu0 0
    %2458 = vmatmul.mubr.bf16.gmra.mrb[0].mxu0 %v2387
    %v2459 = vpop.f32.mrb[0].mxu0
    %v2460 = vadd.f32 %v1084, %v2459
    %v2461 = vpop.f32.mrb[0].mxu0
    %v2462 = vpop.f32.mrb[0].mxu0
    %v2463 = vadd.f32 %v1085, %v2462
    %v2464 = vpop.f32.mrb[0].mxu0
    %2465 = vdwg.mxu0
    %v2466 = vsel %vm600, %v2436, -inf
    %2467 = vmax.xlane.f32.xlu0 %v2466
    %v2468 = vpop.xlane.xlu0 %2467
    %v2469 = vsel %vm600, %v2439, -inf
    %2470 = vmax.xlane.f32.xlu0 %v2469
    %v2471 = vpop.xlane.xlu0 %2470
    %v2472 = vsel %vm600, %v2444, -inf
    %2473 = vmax.xlane.f32.xlu0 %v2472
    %v2474 = vpop.xlane.xlu0 %2473
    %v2475 = vsel %vm600, %v2447, -inf
    %2476 = vmax.xlane.f32.xlu0 %v2475
    %v2477 = vpop.xlane.xlu0 %2476
    %v2478 = vsel %vm600, %v2452, -inf
    %2479 = vmax.xlane.f32.xlu0 %v2478
    %v2480 = vpop.xlane.xlu0 %2479
    %v2481 = vsel %vm600, %v2455, -inf
    %2482 = vmax.xlane.f32.xlu0 %v2481
    %v2483 = vpop.xlane.xlu0 %2482
    %v2484 = vsel %vm600, %v2460, -inf
    %2485 = vmax.xlane.f32.xlu0 %v2484
    %v2486 = vpop.xlane.xlu0 %2485
    %v2487 = vsel %vm600, %v2463, -inf
    %2488 = vmax.xlane.f32.xlu0 %v2487
    %v2489 = vpop.xlane.xlu0 %2488
    %v2490 = vsub.f32 %v2436, %v2468
    %v2491 = vsub.f32 %v2439, %v2471
    %v2492 = vsub.f32 %v2444, %v2474
    %v2493 = vsub.f32 %v2447, %v2477
    %v2494 = vsub.f32 %v2452, %v2480
    %v2495 = vsub.f32 %v2455, %v2483
    %v2496 = vsub.f32 %v2460, %v2486
    %v2497 = vsub.f32 %v2463, %v2489
    %v2498 = vmul.f32 %v2490, 1.442695
    %v2499 = vpow.pop %v2498
    %v2500 = vmul.f32 %v2491, 1.442695
    %v2501 = vpow.pop %v2500
    %v2502 = vmul.f32 %v2492, 1.442695
    %v2503 = vpow.pop %v2502
    %v2504 = vmul.f32 %v2493, 1.442695
    %v2505 = vpow.pop %v2504
    %v2506 = vmul.f32 %v2494, 1.442695
    %v2507 = vpow.pop %v2506
    %v2508 = vmul.f32 %v2495, 1.442695
    %v2509 = vpow.pop %v2508
    %v2510 = vmul.f32 %v2496, 1.442695
    %v2511 = vpow.pop %v2510
    %v2512 = vmul.f32 %v2497, 1.442695
    %v2513 = vpow.pop %v2512
    %v2514 = vsel %vm600, %v2499, 0.0
    %2515 = vadd.xlane.f32.xlu0 %v2514
    %v2516 = vpop.xlane.xlu0 %2515
    %v2517 = vsel %vm600, %v2501, 0.0
    %2518 = vadd.xlane.f32.xlu0 %v2517
    %v2519 = vpop.xlane.xlu0 %2518
    %v2520 = vsel %vm600, %v2503, 0.0
    %2521 = vadd.xlane.f32.xlu0 %v2520
    %v2522 = vpop.xlane.xlu0 %2521
    %v2523 = vsel %vm600, %v2505, 0.0
    %2524 = vadd.xlane.f32.xlu0 %v2523
    %v2525 = vpop.xlane.xlu0 %2524
    %v2526 = vsel %vm600, %v2507, 0.0
    %2527 = vadd.xlane.f32.xlu0 %v2526
    %v2528 = vpop.xlane.xlu0 %2527
    %v2529 = vsel %vm600, %v2509, 0.0
    %2530 = vadd.xlane.f32.xlu0 %v2529
    %v2531 = vpop.xlane.xlu0 %2530
    %v2532 = vsel %vm600, %v2511, 0.0
    %2533 = vadd.xlane.f32.xlu0 %v2532
    %v2534 = vpop.xlane.xlu0 %2533
    %v2535 = vsel %vm600, %v2513, 0.0
    %2536 = vadd.xlane.f32.xlu0 %v2535
    %v2537 = vpop.xlane.xlu0 %2536
    %v2538 = vrcp.pop %v2516
    %v2539 = vrcp.pop %v2519
    %v2540 = vrcp.pop %v2522
    %v2541 = vrcp.pop %v2525
    %v2542 = vrcp.pop %v2528
    %v2543 = vrcp.pop %v2531
    %v2544 = vrcp.pop %v2534
    %v2545 = vrcp.pop %v2537
    %v2546 = vmul.f32 %v2499, %v2538
    %v2547 = vmul.f32 %v2501, %v2539
    %v2548 = vmul.f32 %v2503, %v2540
    %v2549 = vmul.f32 %v2505, %v2541
    %v2550 = vmul.f32 %v2507, %v2542
    %v2551 = vmul.f32 %v2509, %v2543
    %v2552 = vmul.f32 %v2511, %v2544
    %v2553 = vmul.f32 %v2513, %v2545
    %v2554 = vpack.c.bf16 %v2547, %v2546
    %v2555 = vpack.c.bf16 %v2549, %v2548
    %v2556 = vpack.c.bf16 %v2551, %v2550
    %v2557 = vpack.c.bf16 %v2553, %v2552
    %2558 = vrot.lane.b32.xlu0 %v1789, 48
    %v2559 = vpop.permute.xlu0 %2558
    %2560 = vrot.lane.b32.xlu0 %v1790, 48
    %v2561 = vpop.permute.xlu0 %2560
    %2562 = vrot.lane.b32.xlu0 %v1791, 48
    %v2563 = vpop.permute.xlu0 %2562
    %2564 = vrot.lane.b32.xlu0 %v1792, 48
    %v2565 = vpop.permute.xlu0 %2564
    %v2571 = vsel %vm600, %v2554, 0
    %v2574 = vsel %vm600, %v2555, 0
    %v2577 = vsel %vm600, %v2556, 0
    %v2580 = vsel %vm600, %v2557, 0
    %2582 = vmatprep.subr.bf16.mxu0 0
    %2583 = vmatpush1.bf16.msra.mxu0 %v2559
    %2584 = vmatprep.subr.bf16.mxu0 0
    %2585 = vmatpush1.bf16.msra.mxu0 %v2561
    %2586 = vmatprep.subr.bf16.mxu0 0
    %2587 = vmatpush1.bf16.msra.mxu0 %v2563
    %2588 = vmatprep.subr.bf16.mxu0 0
    %2589 = vmatpush1.bf16.msra.mxu0 %v2565
    %2590 = vmatprep.subr.bf16.mxu0 0
    %2591 = vmatpush1.bf16.msra.mxu0 0
    %2592 = vmatprep.subr.bf16.mxu0 0
    %2593 = vmatpush1.bf16.msra.mxu0 0
    %2594 = vmatprep.subr.bf16.mxu0 0
    %2595 = vmatpush1.bf16.msra.mxu0 0
    %2596 = vmatprep.subr.bf16.mxu0 0
    %2597 = vmatpush1.bf16.msra.mxu0 0
    %2598 = vmatprep.subr.bf16.mxu0 0
    %2599 = vmatpush1.bf16.msra.mxu0 0
    %2600 = vmatprep.subr.bf16.mxu0 0
    %2601 = vmatpush1.bf16.msra.mxu0 0
    %2602 = vmatprep.subr.bf16.mxu0 0
    %2603 = vmatpush1.bf16.msra.mxu0 0
    %2604 = vmatprep.subr.bf16.mxu0 0
    %2605 = vmatpush1.bf16.msra.mxu0 0
    %2606 = vmatprep.subr.bf16.mxu0 0
    %2607 = vmatpush1.bf16.msra.mxu0 0
    %2608 = vmatprep.subr.bf16.mxu0 0
    %2609 = vmatpush1.bf16.msra.mxu0 0
    %2610 = vmatprep.subr.bf16.mxu0 0
    %2611 = vmatpush1.bf16.msra.mxu0 0
    %2612 = vmatprep.subr.bf16.mxu0 0
    %2613 = vmatpush1.bf16.msra.mxu0 0
    %2614 = vmatprep.mubr.bf16.mxu0 0
    %2615 = vmatmul.mubr.bf16.gmra.mrb[0].mxu0 %v2571
    %v2616 = vpop.f32.mrb[0].mxu0
    %v2617 = vadd.f32 0.0, %v2616
    %v2618 = vpop.f32.mrb[0].mxu0
    %v2619 = vpop.f32.mrb[0].mxu0
    %v2620 = vadd.f32 0.0, %v2619
    %v2621 = vpop.f32.mrb[0].mxu0
    %2622 = vmatprep.mubr.bf16.mxu0 0
    %2623 = vmatmul.mubr.bf16.gmra.mrb[0].mxu0 %v2574
    %v2624 = vpop.f32.mrb[0].mxu0
    %v2625 = vadd.f32 0.0, %v2624
    %v2626 = vpop.f32.mrb[0].mxu0
    %v2627 = vpop.f32.mrb[0].mxu0
    %v2628 = vadd.f32 0.0, %v2627
    %v2629 = vpop.f32.mrb[0].mxu0
    %2630 = vmatprep.mubr.bf16.mxu0 0
    %2631 = vmatmul.mubr.bf16.gmra.mrb[0].mxu0 %v2577
    %v2632 = vpop.f32.mrb[0].mxu0
    %v2633 = vadd.f32 0.0, %v2632
    %v2634 = vpop.f32.mrb[0].mxu0
    %v2635 = vpop.f32.mrb[0].mxu0
    %v2636 = vadd.f32 0.0, %v2635
    %v2637 = vpop.f32.mrb[0].mxu0
    %2638 = vmatprep.mubr.bf16.mxu0 0
    %2639 = vmatmul.mubr.bf16.gmra.mrb[0].mxu0 %v2580
    %v2640 = vpop.f32.mrb[0].mxu0
    %v2641 = vadd.f32 0.0, %v2640
    %v2642 = vpop.f32.mrb[0].mxu0
    %v2643 = vpop.f32.mrb[0].mxu0
    %v2644 = vadd.f32 0.0, %v2643
    %v2645 = vpop.f32.mrb[0].mxu0
    %2646 = vdwg.mxu0
    %2647 = vrot.lane.b32.xlu0 %v1789, 104
    %v2648 = vpop.permute.xlu0 %2647
    %2649 = vrot.lane.b32.xlu0 %v1790, 104
    %v2650 = vpop.permute.xlu0 %2649
    %2651 = vrot.lane.b32.xlu0 %v1791, 104
    %v2652 = vpop.permute.xlu0 %2651
    %2653 = vrot.lane.b32.xlu0 %v1792, 104
    %v2654 = vpop.permute.xlu0 %2653
    %2655 = vrot.lane.b32.xlu0 %v1789, 72
    %v2656 = vpop.permute.xlu0 %2655
    %2657 = vrot.lane.b32.xlu0 %v1790, 72
    %v2658 = vpop.permute.xlu0 %2657
    %2659 = vrot.lane.b32.xlu0 %v1791, 72
    %v2660 = vpop.permute.xlu0 %2659
    %2661 = vrot.lane.b32.xlu0 %v1792, 72
    %v2662 = vpop.permute.xlu0 %2661
    %v2664 = vsel %vm510, %v2648, 0
    %v2667 = vsel %vm510, %v2650, 0
    %v2670 = vsel %vm510, %v2652, 0
    %v2673 = vsel %vm510, %v2654, 0
    %v2676 = vsel %vm510, %v2656, 0
    %v2679 = vsel %vm510, %v2658, 0
    %v2682 = vsel %vm510, %v2660, 0
    %v2685 = vsel %vm510, %v2662, 0
    %2687 = vmatprep.subr.bf16.mxu0 0
    %2688 = vmatpush1.bf16.xpose.msra.mxu0 %v2676
    %2689 = vmatprep.subr.bf16.mxu0 0
    %2690 = vmatpush1.bf16.xpose.msra.mxu0 %v2679
    %2691 = vmatprep.subr.bf16.mxu0 0
    %2692 = vmatpush1.bf16.xpose.msra.mxu0 %v2682
    %2693 = vmatprep.subr.bf16.mxu0 0
    %2694 = vmatpush1.bf16.xpose.msra.mxu0 %v2685
    %2695 = vmatprep.subr.bf16.mxu0 0
    %2696 = vmatpush1.bf16.xpose.msra.mxu0 0
    %2697 = vmatprep.subr.bf16.mxu0 0
    %2698 = vmatpush1.bf16.xpose.msra.mxu0 0
    %2699 = vmatprep.subr.bf16.mxu0 0
    %2700 = vmatpush1.bf16.xpose.msra.mxu0 0
    %2701 = vmatprep.subr.bf16.mxu0 0
    %2702 = vmatpush1.bf16.xpose.msra.mxu0 0
    %2703 = vmatprep.subr.bf16.mxu0 0
    %2704 = vmatpush1.bf16.xpose.msra.mxu0 0
    %2705 = vmatprep.subr.bf16.mxu0 0
    %2706 = vmatpush1.bf16.xpose.msra.mxu0 0
    %2707 = vmatprep.subr.bf16.mxu0 0
    %2708 = vmatpush1.bf16.xpose.msra.mxu0 0
    %2709 = vmatprep.subr.bf16.mxu0 0
    %2710 = vmatpush1.bf16.xpose.msra.mxu0 0
    %2711 = vmatprep.subr.bf16.mxu0 0
    %2712 = vmatpush1.bf16.xpose.msra.mxu0 0
    %2713 = vmatprep.subr.bf16.mxu0 0
    %2714 = vmatpush1.bf16.xpose.msra.mxu0 0
    %2715 = vmatprep.subr.bf16.mxu0 0
    %2716 = vmatpush1.bf16.xpose.msra.mxu0 0
    %2717 = vmatprep.subr.bf16.mxu0 0
    %2718 = vmatpush1.bf16.xpose.msra.mxu0 0
    %2719 = vmatprep.mubr.bf16.mxu0 0
    %2720 = vmatmul.mubr.bf16.gmra.mrb[0].mxu0 %v2664
    %v2721 = vpop.f32.mrb[0].mxu0
    %v2722 = vadd.f32 %v1373, %v2721
    %v2723 = vpop.f32.mrb[0].mxu0
    %v2724 = vpop.f32.mrb[0].mxu0
    %v2725 = vadd.f32 %v1374, %v2724
    %v2726 = vpop.f32.mrb[0].mxu0
    %2727 = vmatprep.mubr.bf16.mxu0 0
    %2728 = vmatmul.mubr.bf16.gmra.mrb[0].mxu0 %v2667
    %v2729 = vpop.f32.mrb[0].mxu0
    %v2730 = vadd.f32 %v1375, %v2729
    %v2731 = vpop.f32.mrb[0].mxu0
    %v2732 = vpop.f32.mrb[0].mxu0
    %v2733 = vadd.f32 %v1376, %v2732
    %v2734 = vpop.f32.mrb[0].mxu0
    %2735 = vmatprep.mubr.bf16.mxu0 0
    %2736 = vmatmul.mubr.bf16.gmra.mrb[0].mxu0 %v2670
    %v2737 = vpop.f32.mrb[0].mxu0
    %v2738 = vadd.f32 %v1377, %v2737
    %v2739 = vpop.f32.mrb[0].mxu0
    %v2740 = vpop.f32.mrb[0].mxu0
    %v2741 = vadd.f32 %v1378, %v2740
    %v2742 = vpop.f32.mrb[0].mxu0
    %2743 = vmatprep.mubr.bf16.mxu0 0
    %2744 = vmatmul.mubr.bf16.gmra.mrb[0].mxu0 %v2673
    %v2745 = vpop.f32.mrb[0].mxu0
    %v2746 = vadd.f32 %v1379, %v2745
    %v2747 = vpop.f32.mrb[0].mxu0
    %v2748 = vpop.f32.mrb[0].mxu0
    %v2749 = vadd.f32 %v1380, %v2748
    %v2750 = vpop.f32.mrb[0].mxu0
    %2751 = vdwg.mxu0
    %v2752 = vsel %vm600, %v2722, -inf
    %2753 = vmax.xlane.f32.xlu0 %v2752
    %v2754 = vpop.xlane.xlu0 %2753
    %v2755 = vsel %vm600, %v2725, -inf
    %2756 = vmax.xlane.f32.xlu0 %v2755
    %v2757 = vpop.xlane.xlu0 %2756
    %v2758 = vsel %vm600, %v2730, -inf
    %2759 = vmax.xlane.f32.xlu0 %v2758
    %v2760 = vpop.xlane.xlu0 %2759
    %v2761 = vsel %vm600, %v2733, -inf
    %2762 = vmax.xlane.f32.xlu0 %v2761
    %v2763 = vpop.xlane.xlu0 %2762
    %v2764 = vsel %vm600, %v2738, -inf
    %2765 = vmax.xlane.f32.xlu0 %v2764
    %v2766 = vpop.xlane.xlu0 %2765
    %v2767 = vsel %vm600, %v2741, -inf
    %2768 = vmax.xlane.f32.xlu0 %v2767
    %v2769 = vpop.xlane.xlu0 %2768
    %v2770 = vsel %vm600, %v2746, -inf
    %2771 = vmax.xlane.f32.xlu0 %v2770
    %v2772 = vpop.xlane.xlu0 %2771
    %v2773 = vsel %vm600, %v2749, -inf
    %2774 = vmax.xlane.f32.xlu0 %v2773
    %v2775 = vpop.xlane.xlu0 %2774
    %v2776 = vsub.f32 %v2722, %v2754
    %v2777 = vsub.f32 %v2725, %v2757
    %v2778 = vsub.f32 %v2730, %v2760
    %v2779 = vsub.f32 %v2733, %v2763
    %v2780 = vsub.f32 %v2738, %v2766
    %v2781 = vsub.f32 %v2741, %v2769
    %v2782 = vsub.f32 %v2746, %v2772
    %v2783 = vsub.f32 %v2749, %v2775
    %v2784 = vmul.f32 %v2776, 1.442695
    %v2785 = vpow.pop %v2784
    %v2786 = vmul.f32 %v2777, 1.442695
    %v2787 = vpow.pop %v2786
    %v2788 = vmul.f32 %v2778, 1.442695
    %v2789 = vpow.pop %v2788
    %v2790 = vmul.f32 %v2779, 1.442695
    %v2791 = vpow.pop %v2790
    %v2792 = vmul.f32 %v2780, 1.442695
    %v2793 = vpow.pop %v2792
    %v2794 = vmul.f32 %v2781, 1.442695
    %v2795 = vpow.pop %v2794
    %v2796 = vmul.f32 %v2782, 1.442695
    %v2797 = vpow.pop %v2796
    %v2798 = vmul.f32 %v2783, 1.442695
    %v2799 = vpow.pop %v2798
    %v2800 = vsel %vm600, %v2785, 0.0
    %2801 = vadd.xlane.f32.xlu0 %v2800
    %v2802 = vpop.xlane.xlu0 %2801
    %v2803 = vsel %vm600, %v2787, 0.0
    %2804 = vadd.xlane.f32.xlu0 %v2803
    %v2805 = vpop.xlane.xlu0 %2804
    %v2806 = vsel %vm600, %v2789, 0.0
    %2807 = vadd.xlane.f32.xlu0 %v2806
    %v2808 = vpop.xlane.xlu0 %2807
    %v2809 = vsel %vm600, %v2791, 0.0
    %2810 = vadd.xlane.f32.xlu0 %v2809
    %v2811 = vpop.xlane.xlu0 %2810
    %v2812 = vsel %vm600, %v2793, 0.0
    %2813 = vadd.xlane.f32.xlu0 %v2812
    %v2814 = vpop.xlane.xlu0 %2813
    %v2815 = vsel %vm600, %v2795, 0.0
    %2816 = vadd.xlane.f32.xlu0 %v2815
    %v2817 = vpop.xlane.xlu0 %2816
    %v2818 = vsel %vm600, %v2797, 0.0
    %2819 = vadd.xlane.f32.xlu0 %v2818
    %v2820 = vpop.xlane.xlu0 %2819
    %v2821 = vsel %vm600, %v2799, 0.0
    %2822 = vadd.xlane.f32.xlu0 %v2821
    %v2823 = vpop.xlane.xlu0 %2822
    %v2824 = vrcp.pop %v2802
    %v2825 = vrcp.pop %v2805
    %v2826 = vrcp.pop %v2808
    %v2827 = vrcp.pop %v2811
    %v2828 = vrcp.pop %v2814
    %v2829 = vrcp.pop %v2817
    %v2830 = vrcp.pop %v2820
    %v2831 = vrcp.pop %v2823
    %v2832 = vmul.f32 %v2785, %v2824
    %v2833 = vmul.f32 %v2787, %v2825
    %v2834 = vmul.f32 %v2789, %v2826
    %v2835 = vmul.f32 %v2791, %v2827
    %v2836 = vmul.f32 %v2793, %v2828
    %v2837 = vmul.f32 %v2795, %v2829
    %v2838 = vmul.f32 %v2797, %v2830
    %v2839 = vmul.f32 %v2799, %v2831
    %v2840 = vpack.c.bf16 %v2833, %v2832
    %v2841 = vpack.c.bf16 %v2835, %v2834
    %v2842 = vpack.c.bf16 %v2837, %v2836
    %v2843 = vpack.c.bf16 %v2839, %v2838
    %2844 = vrot.lane.b32.xlu0 %v1789, 40
    %v2845 = vpop.permute.xlu0 %2844
    %2846 = vrot.lane.b32.xlu0 %v1790, 40
    %v2847 = vpop.permute.xlu0 %2846
    %2848 = vrot.lane.b32.xlu0 %v1791, 40
    %v2849 = vpop.permute.xlu0 %2848
    %2850 = vrot.lane.b32.xlu0 %v1792, 40
    %v2851 = vpop.permute.xlu0 %2850
    %v2857 = vsel %vm600, %v2840, 0
    %v2860 = vsel %vm600, %v2841, 0
    %v2863 = vsel %vm600, %v2842, 0
    %v2866 = vsel %vm600, %v2843, 0
    %2868 = vmatprep.subr.bf16.mxu0 0
    %2869 = vmatpush1.bf16.msra.mxu0 %v2845
    %2870 = vmatprep.subr.bf16.mxu0 0
    %2871 = vmatpush1.bf16.msra.mxu0 %v2847
    %2872 = vmatprep.subr.bf16.mxu0 0
    %2873 = vmatpush1.bf16.msra.mxu0 %v2849
    %2874 = vmatprep.subr.bf16.mxu0 0
    %2875 = vmatpush1.bf16.msra.mxu0 %v2851
    %2876 = vmatprep.subr.bf16.mxu0 0
    %2877 = vmatpush1.bf16.msra.mxu0 0
    %2878 = vmatprep.subr.bf16.mxu0 0
    %2879 = vmatpush1.bf16.msra.mxu0 0
    %2880 = vmatprep.subr.bf16.mxu0 0
    %2881 = vmatpush1.bf16.msra.mxu0 0
    %2882 = vmatprep.subr.bf16.mxu0 0
    %2883 = vmatpush1.bf16.msra.mxu0 0
    %2884 = vmatprep.subr.bf16.mxu0 0
    %2885 = vmatpush1.bf16.msra.mxu0 0
    %2886 = vmatprep.subr.bf16.mxu0 0
    %2887 = vmatpush1.bf16.msra.mxu0 0
    %2888 = vmatprep.subr.bf16.mxu0 0
    %2889 = vmatpush1.bf16.msra.mxu0 0
    %2890 = vmatprep.subr.bf16.mxu0 0
    %2891 = vmatpush1.bf16.msra.mxu0 0
    %2892 = vmatprep.subr.bf16.mxu0 0
    %2893 = vmatpush1.bf16.msra.mxu0 0
    %2894 = vmatprep.subr.bf16.mxu0 0
    %2895 = vmatpush1.bf16.msra.mxu0 0
    %2896 = vmatprep.subr.bf16.mxu0 0
    %2897 = vmatpush1.bf16.msra.mxu0 0
    %2898 = vmatprep.subr.bf16.mxu0 0
    %2899 = vmatpush1.bf16.msra.mxu0 0
    %2900 = vmatprep.mubr.bf16.mxu0 0
    %2901 = vmatmul.mubr.bf16.gmra.mrb[0].mxu0 %v2857
    %v2902 = vpop.f32.mrb[0].mxu0
    %v2903 = vadd.f32 0.0, %v2902
    %v2904 = vpop.f32.mrb[0].mxu0
    %v2905 = vpop.f32.mrb[0].mxu0
    %v2906 = vadd.f32 0.0, %v2905
    %v2907 = vpop.f32.mrb[0].mxu0
    %2908 = vmatprep.mubr.bf16.mxu0 0
    %2909 = vmatmul.mubr.bf16.gmra.mrb[0].mxu0 %v2860
    %v2910 = vpop.f32.mrb[0].mxu0
    %v2911 = vadd.f32 0.0, %v2910
    %v2912 = vpop.f32.mrb[0].mxu0
    %v2913 = vpop.f32.mrb[0].mxu0
    %v2914 = vadd.f32 0.0, %v2913
    %v2915 = vpop.f32.mrb[0].mxu0
    %2916 = vmatprep.mubr.bf16.mxu0 0
    %2917 = vmatmul.mubr.bf16.gmra.mrb[0].mxu0 %v2863
    %v2918 = vpop.f32.mrb[0].mxu0
    %v2919 = vadd.f32 0.0, %v2918
    %v2920 = vpop.f32.mrb[0].mxu0
    %v2921 = vpop.f32.mrb[0].mxu0
    %v2922 = vadd.f32 0.0, %v2921
    %v2923 = vpop.f32.mrb[0].mxu0
    %2924 = vmatprep.mubr.bf16.mxu0 0
    %2925 = vmatmul.mubr.bf16.gmra.mrb[0].mxu0 %v2866
    %v2926 = vpop.f32.mrb[0].mxu0
    %v2927 = vadd.f32 0.0, %v2926
    %v2928 = vpop.f32.mrb[0].mxu0
    %v2929 = vpop.f32.mrb[0].mxu0
    %v2930 = vadd.f32 0.0, %v2929
    %v2931 = vpop.f32.mrb[0].mxu0
    %2932 = vdwg.mxu0
    %2941 = vrot.lane.b32.xlu0 %v2331, 8
    %v2942 = vpop.permute.xlu0 %2941
    %2943 = vrot.lane.b32.xlu0 %v2334, 8
    %v2944 = vpop.permute.xlu0 %2943
    %2945 = vrot.lane.b32.xlu0 %v2339, 8
    %v2946 = vpop.permute.xlu0 %2945
    %2947 = vrot.lane.b32.xlu0 %v2342, 8
    %v2948 = vpop.permute.xlu0 %2947
    %2949 = vrot.lane.b32.xlu0 %v2347, 8
    %v2950 = vpop.permute.xlu0 %2949
    %2951 = vrot.lane.b32.xlu0 %v2350, 8
    %v2952 = vpop.permute.xlu0 %2951
    %2953 = vrot.lane.b32.xlu0 %v2355, 8
    %v2954 = vpop.permute.xlu0 %2953
    %2955 = vrot.lane.b32.xlu0 %v2358, 8
    %v2956 = vpop.permute.xlu0 %2955
    %2973 = vrot.lane.b32.xlu0 %v2617, 16
    %v2974 = vpop.permute.xlu0 %2973
    %2975 = vrot.lane.b32.xlu0 %v2620, 16
    %v2976 = vpop.permute.xlu0 %2975
    %2977 = vrot.lane.b32.xlu0 %v2625, 16
    %v2978 = vpop.permute.xlu0 %2977
    %2979 = vrot.lane.b32.xlu0 %v2628, 16
    %v2980 = vpop.permute.xlu0 %2979
    %2981 = vrot.lane.b32.xlu0 %v2633, 16
    %v2982 = vpop.permute.xlu0 %2981
    %2983 = vrot.lane.b32.xlu0 %v2636, 16
    %v2984 = vpop.permute.xlu0 %2983
    %2985 = vrot.lane.b32.xlu0 %v2641, 16
    %v2986 = vpop.permute.xlu0 %2985
    %2987 = vrot.lane.b32.xlu0 %v2644, 16
    %v2988 = vpop.permute.xlu0 %2987
    %3005 = vrot.lane.b32.xlu0 %v2903, 24
    %v3006 = vpop.permute.xlu0 %3005
    %3007 = vrot.lane.b32.xlu0 %v2906, 24
    %v3008 = vpop.permute.xlu0 %3007
    %3009 = vrot.lane.b32.xlu0 %v2911, 24
    %v3010 = vpop.permute.xlu0 %3009
    %3011 = vrot.lane.b32.xlu0 %v2914, 24
    %v3012 = vpop.permute.xlu0 %3011
    %3013 = vrot.lane.b32.xlu0 %v2919, 24
    %v3014 = vpop.permute.xlu0 %3013
    %3015 = vrot.lane.b32.xlu0 %v2922, 24
    %v3016 = vpop.permute.xlu0 %3015
    %3017 = vrot.lane.b32.xlu0 %v2927, 24
    %v3018 = vpop.permute.xlu0 %3017
    %3019 = vrot.lane.b32.xlu0 %v2930, 24
    %v3020 = vpop.permute.xlu0 %3019
    %v3029 = vsel %vm510, %v2045, %v2942
    %v3030 = vsel %vm510, %v2048, %v2944
    %v3031 = vsel %vm510, %v2053, %v2946
    %v3032 = vsel %vm510, %v2056, %v2948
    %v3033 = vsel %vm510, %v2061, %v2950
    %v3034 = vsel %vm510, %v2064, %v2952
    %v3035 = vsel %vm510, %v2069, %v2954
    %v3036 = vsel %vm510, %v2072, %v2956
    %v3037 = vsel %vm1771, %v3029, %v2974
    %v3038 = vsel %vm1771, %v3030, %v2976
    %v3039 = vsel %vm1771, %v3031, %v2978
    %v3040 = vsel %vm1771, %v3032, %v2980
    %v3041 = vsel %vm1771, %v3033, %v2982
    %v3042 = vsel %vm1771, %v3034, %v2984
    %v3043 = vsel %vm1771, %v3035, %v2986
    %v3044 = vsel %vm1771, %v3036, %v2988
    %v3045 = vsel %vm1780, %v3037, %v3006
    %v3046 = vsel %vm1780, %v3038, %v3008
    %v3047 = vsel %vm1780, %v3039, %v3010
    %v3048 = vsel %vm1780, %v3040, %v3012
    %v3049 = vsel %vm1780, %v3041, %v3014
    %v3050 = vsel %vm1780, %v3042, %v3016
    %v3051 = vsel %vm1780, %v3043, %v3018
    %v3052 = vsel %vm1780, %v3044, %v3020
    %v3053 = vpack.c.bf16 %v1782, %v1781
    %v3054 = vpack.c.bf16 %v1784, %v1783
    %v3055 = vpack.c.bf16 %v1786, %v1785
    %v3056 = vpack.c.bf16 %v1788, %v1787
    %v3057 = vpack.c.bf16 %v3046, %v3045
    %v3058 = vpack.c.bf16 %v3048, %v3047
    %v3059 = vpack.c.bf16 %v3050, %v3049
    %v3060 = vpack.c.bf16 %v3052, %v3051
    %v3061 = vld [vmem:[%s6] sm:$0xf]
    %v3062 = vld [vmem:[%s6 + $0x4] sm:$0xf]
    %v3063 = vld [vmem:[%s6 + $0x8] sm:$0xf]
    %v3064 = vld [vmem:[%s6 + $0xc] sm:$0xf]
    %v3065 = vld [vmem:[%s7] sm:$0x1]
    %v3067 = vlaneseq
    %v3068 = vshrl.u32 %v3067, 7
    %v3069 = vsub.s32 0, %v3068
    %v3070 = vrot.slane %v3065, %v3069
    %v3076 = vunpack.c.l.b16 %v3061
    %v3077 = vunpack.c.l.b16 %v3062
    %v3078 = vunpack.c.l.b16 %v3063
    %v3079 = vunpack.c.l.b16 %v3064
    %v3080 = vpack.c.b16 %v3077, %v3076
    %v3081 = vpack.c.b16 %v3079, %v3078
    %v3085 = vsel %vm80, %v3053, 0
    %v3088 = vsel %vm80, %v3054, 0
    %v3091 = vsel %vm80, %v3055, 0
    %v3094 = vsel %vm80, %v3056, 0
    %v3097 = vsel %vm80, %v3057, 0
    %v3100 = vsel %vm80, %v3058, 0
    %v3103 = vsel %vm80, %v3059, 0
    %v3106 = vsel %vm80, %v3060, 0
    %3108 = vmatprep.subr.bf16.mxu0 0
    %3109 = vmatpush1.bf16.msra.mxu0 %v3080
    %3110 = vmatprep.subr.bf16.mxu0 0
    %3111 = vmatpush1.bf16.msra.mxu0 %v3081
    %3112 = vmatprep.subr.bf16.mxu0 0
    %3113 = vmatpush1.bf16.msra.mxu0 0
    %3114 = vmatprep.subr.bf16.mxu0 0
    %3115 = vmatpush1.bf16.msra.mxu0 0
    %3116 = vmatprep.subr.bf16.mxu0 0
    %3117 = vmatpush1.bf16.msra.mxu0 0
    %3118 = vmatprep.subr.bf16.mxu0 0
    %3119 = vmatpush1.bf16.msra.mxu0 0
    %3120 = vmatprep.subr.bf16.mxu0 0
    %3121 = vmatpush1.bf16.msra.mxu0 0
    %3122 = vmatprep.subr.bf16.mxu0 0
    %3123 = vmatpush1.bf16.msra.mxu0 0
    %3124 = vmatprep.subr.bf16.mxu0 0
    %3125 = vmatpush1.bf16.msra.mxu0 0
    %3126 = vmatprep.subr.bf16.mxu0 0
    %3127 = vmatpush1.bf16.msra.mxu0 0
    %3128 = vmatprep.subr.bf16.mxu0 0
    %3129 = vmatpush1.bf16.msra.mxu0 0
    %3130 = vmatprep.subr.bf16.mxu0 0
    %3131 = vmatpush1.bf16.msra.mxu0 0
    %3132 = vmatprep.subr.bf16.mxu0 0
    %3133 = vmatpush1.bf16.msra.mxu0 0
    %3134 = vmatprep.subr.bf16.mxu0 0
    %3135 = vmatpush1.bf16.msra.mxu0 0
    %3136 = vmatprep.subr.bf16.mxu0 0
    %3137 = vmatpush1.bf16.msra.mxu0 0
    %3138 = vmatprep.subr.bf16.mxu0 0
    %3139 = vmatpush1.bf16.msra.mxu0 0
    %3140 = vmatprep.mubr.bf16.mxu0 0
    %3141 = vmatmul.mubr.bf16.gmra.mrb[0].mxu0 %v3085
    %v3142 = vpop.f32.mrb[0].mxu0
    %v3143 = vadd.f32 %v3070, %v3142
    %v3144 = vpop.f32.mrb[0].mxu0
    %v3145 = vpop.f32.mrb[0].mxu0
    %v3146 = vadd.f32 %v3070, %v3145
    %v3147 = vpop.f32.mrb[0].mxu0
    %3148 = vmatprep.mubr.bf16.mxu0 0
    %3149 = vmatmul.mubr.bf16.gmra.mrb[0].mxu0 %v3088
    %v3150 = vpop.f32.mrb[0].mxu0
    %v3151 = vadd.f32 %v3070, %v3150
    %v3152 = vpop.f32.mrb[0].mxu0
    %v3153 = vpop.f32.mrb[0].mxu0
    %v3154 = vadd.f32 %v3070, %v3153
    %v3155 = vpop.f32.mrb[0].mxu0
    %3156 = vmatprep.mubr.bf16.mxu0 0
    %3157 = vmatmul.mubr.bf16.gmra.mrb[0].mxu0 %v3091
    %v3158 = vpop.f32.mrb[0].mxu0
    %v3159 = vadd.f32 %v3070, %v3158
    %v3160 = vpop.f32.mrb[0].mxu0
    %v3161 = vpop.f32.mrb[0].mxu0
    %v3162 = vadd.f32 %v3070, %v3161
    %v3163 = vpop.f32.mrb[0].mxu0
    %3164 = vmatprep.mubr.bf16.mxu0 0
    %3165 = vmatmul.mubr.bf16.gmra.mrb[0].mxu0 %v3094
    %v3166 = vpop.f32.mrb[0].mxu0
    %v3167 = vadd.f32 %v3070, %v3166
    %v3168 = vpop.f32.mrb[0].mxu0
    %v3169 = vpop.f32.mrb[0].mxu0
    %v3170 = vadd.f32 %v3070, %v3169
    %v3171 = vpop.f32.mrb[0].mxu0
    %3172 = vmatprep.mubr.bf16.mxu0 0
    %3173 = vmatmul.mubr.bf16.gmra.mrb[0].mxu0 %v3097
    %v3174 = vpop.f32.mrb[0].mxu0
    %v3175 = vadd.f32 %v3070, %v3174
    %v3176 = vpop.f32.mrb[0].mxu0
    %v3177 = vpop.f32.mrb[0].mxu0
    %v3178 = vadd.f32 %v3070, %v3177
    %v3179 = vpop.f32.mrb[0].mxu0
    %3180 = vmatprep.mubr.bf16.mxu0 0
    %3181 = vmatmul.mubr.bf16.gmra.mrb[0].mxu0 %v3100
    %v3182 = vpop.f32.mrb[0].mxu0
    %v3183 = vadd.f32 %v3070, %v3182
    %v3184 = vpop.f32.mrb[0].mxu0
    %v3185 = vpop.f32.mrb[0].mxu0
    %v3186 = vadd.f32 %v3070, %v3185
    %v3187 = vpop.f32.mrb[0].mxu0
    %3188 = vmatprep.mubr.bf16.mxu0 0
    %3189 = vmatmul.mubr.bf16.gmra.mrb[0].mxu0 %v3103
    %v3190 = vpop.f32.mrb[0].mxu0
    %v3191 = vadd.f32 %v3070, %v3190
    %v3192 = vpop.f32.mrb[0].mxu0
    %v3193 = vpop.f32.mrb[0].mxu0
    %v3194 = vadd.f32 %v3070, %v3193
    %v3195 = vpop.f32.mrb[0].mxu0
    %3196 = vmatprep.mubr.bf16.mxu0 0
    %3197 = vmatmul.mubr.bf16.gmra.mrb[0].mxu0 %v3106
    %v3198 = vpop.f32.mrb[0].mxu0
    %v3199 = vadd.f32 %v3070, %v3198
    %v3200 = vpop.f32.mrb[0].mxu0
    %v3201 = vpop.f32.mrb[0].mxu0
    %v3202 = vadd.f32 %v3070, %v3201
    %v3203 = vpop.f32.mrb[0].mxu0
    %3204 = vdwg.mxu0
    %v3205 = vadd.f32 %v62, %v3143
    %v3206 = vadd.f32 %v63, %v3146
    %v3207 = vadd.f32 %v64, %v3151
    %v3208 = vadd.f32 %v65, %v3154
    %v3209 = vadd.f32 %v66, %v3159
    %v3210 = vadd.f32 %v67, %v3162
    %v3211 = vadd.f32 %v68, %v3167
    %v3212 = vadd.f32 %v69, %v3170
    %v3213 = vadd.f32 %v70, %v3175
    %v3214 = vadd.f32 %v71, %v3178
    %v3215 = vadd.f32 %v72, %v3183
    %v3216 = vadd.f32 %v73, %v3186
    %v3217 = vadd.f32 %v74, %v3191
    %v3218 = vadd.f32 %v75, %v3194
    %v3219 = vadd.f32 %v76, %v3199
    %v3220 = vadd.f32 %v77, %v3202
    %v3221 = vld [vmem:[%s8] sm:$0x1]
    %v3222 = vld [vmem:[%s9] sm:$0x1]
    %v3223 = vsel %vm80, %v3205, 0.0
    %3224 = vadd.xlane.f32.xlu0 %v3223
    %v3225 = vpop.xlane.xlu0 %3224
    %v3226 = vsel %vm80, %v3206, 0.0
    %3227 = vadd.xlane.f32.xlu0 %v3226
    %v3228 = vpop.xlane.xlu0 %3227
    %v3229 = vsel %vm80, %v3207, 0.0
    %3230 = vadd.xlane.f32.xlu0 %v3229
    %v3231 = vpop.xlane.xlu0 %3230
    %v3232 = vsel %vm80, %v3208, 0.0
    %3233 = vadd.xlane.f32.xlu0 %v3232
    %v3234 = vpop.xlane.xlu0 %3233
    %v3235 = vsel %vm80, %v3209, 0.0
    %3236 = vadd.xlane.f32.xlu0 %v3235
    %v3237 = vpop.xlane.xlu0 %3236
    %v3238 = vsel %vm80, %v3210, 0.0
    %3239 = vadd.xlane.f32.xlu0 %v3238
    %v3240 = vpop.xlane.xlu0 %3239
    %v3241 = vsel %vm80, %v3211, 0.0
    %3242 = vadd.xlane.f32.xlu0 %v3241
    %v3243 = vpop.xlane.xlu0 %3242
    %v3244 = vsel %vm80, %v3212, 0.0
    %3245 = vadd.xlane.f32.xlu0 %v3244
    %v3246 = vpop.xlane.xlu0 %3245
    %v3247 = vsel %vm80, %v3213, 0.0
    %3248 = vadd.xlane.f32.xlu0 %v3247
    %v3249 = vpop.xlane.xlu0 %3248
    %v3250 = vsel %vm80, %v3214, 0.0
    %3251 = vadd.xlane.f32.xlu0 %v3250
    %v3252 = vpop.xlane.xlu0 %3251
    %v3253 = vsel %vm80, %v3215, 0.0
    %3254 = vadd.xlane.f32.xlu0 %v3253
    %v3255 = vpop.xlane.xlu0 %3254
    %v3256 = vsel %vm80, %v3216, 0.0
    %3257 = vadd.xlane.f32.xlu0 %v3256
    %v3258 = vpop.xlane.xlu0 %3257
    %v3259 = vsel %vm80, %v3217, 0.0
    %3260 = vadd.xlane.f32.xlu0 %v3259
    %v3261 = vpop.xlane.xlu0 %3260
    %v3262 = vsel %vm80, %v3218, 0.0
    %3263 = vadd.xlane.f32.xlu0 %v3262
    %v3264 = vpop.xlane.xlu0 %3263
    %v3265 = vsel %vm80, %v3219, 0.0
    %3266 = vadd.xlane.f32.xlu0 %v3265
    %v3267 = vpop.xlane.xlu0 %3266
    %v3268 = vsel %vm80, %v3220, 0.0
    %3269 = vadd.xlane.f32.xlu0 %v3268
    %v3270 = vpop.xlane.xlu0 %3269
    %v3271 = vmul.f32 %v3225, %v129
    %v3272 = vmul.f32 %v3228, %v129
    %v3273 = vmul.f32 %v3231, %v129
    %v3274 = vmul.f32 %v3234, %v129
    %v3275 = vmul.f32 %v3237, %v129
    %v3276 = vmul.f32 %v3240, %v129
    %v3277 = vmul.f32 %v3243, %v129
    %v3278 = vmul.f32 %v3246, %v129
    %v3279 = vmul.f32 %v3249, %v129
    %v3280 = vmul.f32 %v3252, %v129
    %v3281 = vmul.f32 %v3255, %v129
    %v3282 = vmul.f32 %v3258, %v129
    %v3283 = vmul.f32 %v3261, %v129
    %v3284 = vmul.f32 %v3264, %v129
    %v3285 = vmul.f32 %v3267, %v129
    %v3286 = vmul.f32 %v3270, %v129
    %v3287 = vsub.f32 %v3205, %v3271
    %v3288 = vsub.f32 %v3206, %v3272
    %v3289 = vsub.f32 %v3207, %v3273
    %v3290 = vsub.f32 %v3208, %v3274
    %v3291 = vsub.f32 %v3209, %v3275
    %v3292 = vsub.f32 %v3210, %v3276
    %v3293 = vsub.f32 %v3211, %v3277
    %v3294 = vsub.f32 %v3212, %v3278
    %v3295 = vsub.f32 %v3213, %v3279
    %v3296 = vsub.f32 %v3214, %v3280
    %v3297 = vsub.f32 %v3215, %v3281
    %v3298 = vsub.f32 %v3216, %v3282
    %v3299 = vsub.f32 %v3217, %v3283
    %v3300 = vsub.f32 %v3218, %v3284
    %v3301 = vsub.f32 %v3219, %v3285
    %v3302 = vsub.f32 %v3220, %v3286
    %v3303 = vmul.f32 %v3287, %v3287
    %v3304 = vmul.f32 %v3288, %v3288
    %v3305 = vmul.f32 %v3289, %v3289
    %v3306 = vmul.f32 %v3290, %v3290
    %v3307 = vmul.f32 %v3291, %v3291
    %v3308 = vmul.f32 %v3292, %v3292
    %v3309 = vmul.f32 %v3293, %v3293
    %v3310 = vmul.f32 %v3294, %v3294
    %v3311 = vmul.f32 %v3295, %v3295
    %v3312 = vmul.f32 %v3296, %v3296
    %v3313 = vmul.f32 %v3297, %v3297
    %v3314 = vmul.f32 %v3298, %v3298
    %v3315 = vmul.f32 %v3299, %v3299
    %v3316 = vmul.f32 %v3300, %v3300
    %v3317 = vmul.f32 %v3301, %v3301
    %v3318 = vmul.f32 %v3302, %v3302
    %v3319 = vsel %vm80, %v3303, 0.0
    %3320 = vadd.xlane.f32.xlu0 %v3319
    %v3321 = vpop.xlane.xlu0 %3320
    %v3322 = vsel %vm80, %v3304, 0.0
    %3323 = vadd.xlane.f32.xlu0 %v3322
    %v3324 = vpop.xlane.xlu0 %3323
    %v3325 = vsel %vm80, %v3305, 0.0
    %3326 = vadd.xlane.f32.xlu0 %v3325
    %v3327 = vpop.xlane.xlu0 %3326
    %v3328 = vsel %vm80, %v3306, 0.0
    %3329 = vadd.xlane.f32.xlu0 %v3328
    %v3330 = vpop.xlane.xlu0 %3329
    %v3331 = vsel %vm80, %v3307, 0.0
    %3332 = vadd.xlane.f32.xlu0 %v3331
    %v3333 = vpop.xlane.xlu0 %3332
    %v3334 = vsel %vm80, %v3308, 0.0
    %3335 = vadd.xlane.f32.xlu0 %v3334
    %v3336 = vpop.xlane.xlu0 %3335
    %v3337 = vsel %vm80, %v3309, 0.0
    %3338 = vadd.xlane.f32.xlu0 %v3337
    %v3339 = vpop.xlane.xlu0 %3338
    %v3340 = vsel %vm80, %v3310, 0.0
    %3341 = vadd.xlane.f32.xlu0 %v3340
    %v3342 = vpop.xlane.xlu0 %3341
    %v3343 = vsel %vm80, %v3311, 0.0
    %3344 = vadd.xlane.f32.xlu0 %v3343
    %v3345 = vpop.xlane.xlu0 %3344
    %v3346 = vsel %vm80, %v3312, 0.0
    %3347 = vadd.xlane.f32.xlu0 %v3346
    %v3348 = vpop.xlane.xlu0 %3347
    %v3349 = vsel %vm80, %v3313, 0.0
    %3350 = vadd.xlane.f32.xlu0 %v3349
    %v3351 = vpop.xlane.xlu0 %3350
    %v3352 = vsel %vm80, %v3314, 0.0
    %3353 = vadd.xlane.f32.xlu0 %v3352
    %v3354 = vpop.xlane.xlu0 %3353
    %v3355 = vsel %vm80, %v3315, 0.0
    %3356 = vadd.xlane.f32.xlu0 %v3355
    %v3357 = vpop.xlane.xlu0 %3356
    %v3358 = vsel %vm80, %v3316, 0.0
    %3359 = vadd.xlane.f32.xlu0 %v3358
    %v3360 = vpop.xlane.xlu0 %3359
    %v3361 = vsel %vm80, %v3317, 0.0
    %3362 = vadd.xlane.f32.xlu0 %v3361
    %v3363 = vpop.xlane.xlu0 %3362
    %v3364 = vsel %vm80, %v3318, 0.0
    %3365 = vadd.xlane.f32.xlu0 %v3364
    %v3366 = vpop.xlane.xlu0 %3365
    %v3367 = vmul.f32 %v3321, %v129
    %v3368 = vmul.f32 %v3324, %v129
    %v3369 = vmul.f32 %v3327, %v129
    %v3370 = vmul.f32 %v3330, %v129
    %v3371 = vmul.f32 %v3333, %v129
    %v3372 = vmul.f32 %v3336, %v129
    %v3373 = vmul.f32 %v3339, %v129
    %v3374 = vmul.f32 %v3342, %v129
    %v3375 = vmul.f32 %v3345, %v129
    %v3376 = vmul.f32 %v3348, %v129
    %v3377 = vmul.f32 %v3351, %v129
    %v3378 = vmul.f32 %v3354, %v129
    %v3379 = vmul.f32 %v3357, %v129
    %v3380 = vmul.f32 %v3360, %v129
    %v3381 = vmul.f32 %v3363, %v129
    %v3382 = vmul.f32 %v3366, %v129
    %v3383 = vadd.f32 %v3367, 1e-05
    %v3384 = vadd.f32 %v3368, 1e-05
    %v3385 = vadd.f32 %v3369, 1e-05
    %v3386 = vadd.f32 %v3370, 1e-05
    %v3387 = vadd.f32 %v3371, 1e-05
    %v3388 = vadd.f32 %v3372, 1e-05
    %v3389 = vadd.f32 %v3373, 1e-05
    %v3390 = vadd.f32 %v3374, 1e-05
    %v3391 = vadd.f32 %v3375, 1e-05
    %v3392 = vadd.f32 %v3376, 1e-05
    %v3393 = vadd.f32 %v3377, 1e-05
    %v3394 = vadd.f32 %v3378, 1e-05
    %v3395 = vadd.f32 %v3379, 1e-05
    %v3396 = vadd.f32 %v3380, 1e-05
    %v3397 = vadd.f32 %v3381, 1e-05
    %v3398 = vadd.f32 %v3382, 1e-05
    %v3399 = vrsqrt.pop %v3383
    %v3400 = vrsqrt.pop %v3384
    %v3401 = vrsqrt.pop %v3385
    %v3402 = vrsqrt.pop %v3386
    %v3403 = vrsqrt.pop %v3387
    %v3404 = vrsqrt.pop %v3388
    %v3405 = vrsqrt.pop %v3389
    %v3406 = vrsqrt.pop %v3390
    %v3407 = vrsqrt.pop %v3391
    %v3408 = vrsqrt.pop %v3392
    %v3409 = vrsqrt.pop %v3393
    %v3410 = vrsqrt.pop %v3394
    %v3411 = vrsqrt.pop %v3395
    %v3412 = vrsqrt.pop %v3396
    %v3413 = vrsqrt.pop %v3397
    %v3414 = vrsqrt.pop %v3398
    %v3415 = vmul.f32 %v3287, %v3399
    %v3416 = vmul.f32 %v3288, %v3400
    %v3417 = vmul.f32 %v3289, %v3401
    %v3418 = vmul.f32 %v3290, %v3402
    %v3419 = vmul.f32 %v3291, %v3403
    %v3420 = vmul.f32 %v3292, %v3404
    %v3421 = vmul.f32 %v3293, %v3405
    %v3422 = vmul.f32 %v3294, %v3406
    %v3423 = vmul.f32 %v3295, %v3407
    %v3424 = vmul.f32 %v3296, %v3408
    %v3425 = vmul.f32 %v3297, %v3409
    %v3426 = vmul.f32 %v3298, %v3410
    %v3427 = vmul.f32 %v3299, %v3411
    %v3428 = vmul.f32 %v3300, %v3412
    %v3429 = vmul.f32 %v3301, %v3413
    %v3430 = vmul.f32 %v3302, %v3414
    %v3432 = vlaneseq
    %v3433 = vshrl.u32 %v3432, 7
    %v3434 = vsub.s32 0, %v3433
    %v3435 = vrot.slane %v3221, %v3434
    %v3437 = vmul.f32 %v3415, %v3435
    %v3438 = vmul.f32 %v3416, %v3435
    %v3439 = vmul.f32 %v3417, %v3435
    %v3440 = vmul.f32 %v3418, %v3435
    %v3441 = vmul.f32 %v3419, %v3435
    %v3442 = vmul.f32 %v3420, %v3435
    %v3443 = vmul.f32 %v3421, %v3435
    %v3444 = vmul.f32 %v3422, %v3435
    %v3445 = vmul.f32 %v3423, %v3435
    %v3446 = vmul.f32 %v3424, %v3435
    %v3447 = vmul.f32 %v3425, %v3435
    %v3448 = vmul.f32 %v3426, %v3435
    %v3449 = vmul.f32 %v3427, %v3435
    %v3450 = vmul.f32 %v3428, %v3435
    %v3451 = vmul.f32 %v3429, %v3435
    %v3452 = vmul.f32 %v3430, %v3435
    %v3454 = vlaneseq
    %v3455 = vshrl.u32 %v3454, 7
    %v3456 = vsub.s32 0, %v3455
    %v3457 = vrot.slane %v3222, %v3456
    %v3459 = vadd.f32 %v3437, %v3457
    %v3460 = vadd.f32 %v3438, %v3457
    %v3461 = vadd.f32 %v3439, %v3457
    %v3462 = vadd.f32 %v3440, %v3457
    %v3463 = vadd.f32 %v3441, %v3457
    %v3464 = vadd.f32 %v3442, %v3457
    %v3465 = vadd.f32 %v3443, %v3457
    %v3466 = vadd.f32 %v3444, %v3457
    %v3467 = vadd.f32 %v3445, %v3457
    %v3468 = vadd.f32 %v3446, %v3457
    %v3469 = vadd.f32 %v3447, %v3457
    %v3470 = vadd.f32 %v3448, %v3457
    %v3471 = vadd.f32 %v3449, %v3457
    %v3472 = vadd.f32 %v3450, %v3457
    %v3473 = vadd.f32 %v3451, %v3457
    %v3474 = vadd.f32 %v3452, %v3457
    %v3475 = vpack.c.bf16 %v3460, %v3459
    %v3476 = vpack.c.bf16 %v3462, %v3461
    %v3477 = vpack.c.bf16 %v3464, %v3463
    %v3478 = vpack.c.bf16 %v3466, %v3465
    %v3479 = vpack.c.bf16 %v3468, %v3467
    %v3480 = vpack.c.bf16 %v3470, %v3469
    %v3481 = vpack.c.bf16 %v3472, %v3471
    %v3482 = vpack.c.bf16 %v3474, %v3473
    %v3483 = vld [vmem:[%s10] sm:$0xf]
    %v3484 = vld [vmem:[%s10 + $0x4] sm:$0xf]
    %v3485 = vld [vmem:[%s10 + $0x8] sm:$0xf]
    %v3486 = vld [vmem:[%s10 + $0xc] sm:$0xf]
    %v3487 = vld [vmem:[%s11] sm:$0x1]
    %v3489 = vlaneseq
    %v3490 = vshrl.u32 %v3489, 7
    %v3491 = vsub.s32 0, %v3490
    %v3492 = vrot.slane %v3487, %v3491
    %v3498 = vunpack.c.l.b16 %v3483
    %v3499 = vunpack.c.l.b16 %v3484
    %v3500 = vunpack.c.l.b16 %v3485
    %v3501 = vunpack.c.l.b16 %v3486
    %v3502 = vpack.c.b16 %v3499, %v3498
    %v3503 = vpack.c.b16 %v3501, %v3500
    %v3507 = vsel %vm80, %v3475, 0
    %v3510 = vsel %vm80, %v3476, 0
    %v3513 = vsel %vm80, %v3477, 0
    %v3516 = vsel %vm80, %v3478, 0
    %v3519 = vsel %vm80, %v3479, 0
    %v3522 = vsel %vm80, %v3480, 0
    %v3525 = vsel %vm80, %v3481, 0
    %v3528 = vsel %vm80, %v3482, 0
    %3530 = vmatprep.subr.bf16.mxu0 0
    %3531 = vmatpush1.bf16.msra.mxu0 %v3502
    %3532 = vmatprep.subr.bf16.mxu0 0
    %3533 = vmatpush1.bf16.msra.mxu0 %v3503
    %3534 = vmatprep.subr.bf16.mxu0 0
    %3535 = vmatpush1.bf16.msra.mxu0 0
    %3536 = vmatprep.subr.bf16.mxu0 0
    %3537 = vmatpush1.bf16.msra.mxu0 0
    %3538 = vmatprep.subr.bf16.mxu0 0
    %3539 = vmatpush1.bf16.msra.mxu0 0
    %3540 = vmatprep.subr.bf16.mxu0 0
    %3541 = vmatpush1.bf16.msra.mxu0 0
    %3542 = vmatprep.subr.bf16.mxu0 0
    %3543 = vmatpush1.bf16.msra.mxu0 0
    %3544 = vmatprep.subr.bf16.mxu0 0
    %3545 = vmatpush1.bf16.msra.mxu0 0
    %3546 = vmatprep.subr.bf16.mxu0 0
    %3547 = vmatpush1.bf16.msra.mxu0 0
    %3548 = vmatprep.subr.bf16.mxu0 0
    %3549 = vmatpush1.bf16.msra.mxu0 0
    %3550 = vmatprep.subr.bf16.mxu0 0
    %3551 = vmatpush1.bf16.msra.mxu0 0
    %3552 = vmatprep.subr.bf16.mxu0 0
    %3553 = vmatpush1.bf16.msra.mxu0 0
    %3554 = vmatprep.subr.bf16.mxu0 0
    %3555 = vmatpush1.bf16.msra.mxu0 0
    %3556 = vmatprep.subr.bf16.mxu0 0
    %3557 = vmatpush1.bf16.msra.mxu0 0
    %3558 = vmatprep.subr.bf16.mxu0 0
    %3559 = vmatpush1.bf16.msra.mxu0 0
    %3560 = vmatprep.subr.bf16.mxu0 0
    %3561 = vmatpush1.bf16.msra.mxu0 0
    %3562 = vmatprep.mubr.bf16.mxu0 0
    %3563 = vmatmul.mubr.bf16.gmra.mrb[0].mxu0 %v3507
    %v3564 = vpop.f32.mrb[0].mxu0
    %v3565 = vadd.f32 %v3492, %v3564
    %v3566 = vpop.f32.mrb[0].mxu0
    %v3567 = vpop.f32.mrb[0].mxu0
    %v3568 = vadd.f32 %v3492, %v3567
    %v3569 = vpop.f32.mrb[0].mxu0
    %3570 = vmatprep.mubr.bf16.mxu0 0
    %3571 = vmatmul.mubr.bf16.gmra.mrb[0].mxu0 %v3510
    %v3572 = vpop.f32.mrb[0].mxu0
    %v3573 = vadd.f32 %v3492, %v3572
    %v3574 = vpop.f32.mrb[0].mxu0
    %v3575 = vpop.f32.mrb[0].mxu0
    %v3576 = vadd.f32 %v3492, %v3575
    %v3577 = vpop.f32.mrb[0].mxu0
    %3578 = vmatprep.mubr.bf16.mxu0 0
    %3579 = vmatmul.mubr.bf16.gmra.mrb[0].mxu0 %v3513
    %v3580 = vpop.f32.mrb[0].mxu0
    %v3581 = vadd.f32 %v3492, %v3580
    %v3582 = vpop.f32.mrb[0].mxu0
    %v3583 = vpop.f32.mrb[0].mxu0
    %v3584 = vadd.f32 %v3492, %v3583
    %v3585 = vpop.f32.mrb[0].mxu0
    %3586 = vmatprep.mubr.bf16.mxu0 0
    %3587 = vmatmul.mubr.bf16.gmra.mrb[0].mxu0 %v3516
    %v3588 = vpop.f32.mrb[0].mxu0
    %v3589 = vadd.f32 %v3492, %v3588
    %v3590 = vpop.f32.mrb[0].mxu0
    %v3591 = vpop.f32.mrb[0].mxu0
    %v3592 = vadd.f32 %v3492, %v3591
    %v3593 = vpop.f32.mrb[0].mxu0
    %3594 = vmatprep.mubr.bf16.mxu0 0
    %3595 = vmatmul.mubr.bf16.gmra.mrb[0].mxu0 %v3519
    %v3596 = vpop.f32.mrb[0].mxu0
    %v3597 = vadd.f32 %v3492, %v3596
    %v3598 = vpop.f32.mrb[0].mxu0
    %v3599 = vpop.f32.mrb[0].mxu0
    %v3600 = vadd.f32 %v3492, %v3599
    %v3601 = vpop.f32.mrb[0].mxu0
    %3602 = vmatprep.mubr.bf16.mxu0 0
    %3603 = vmatmul.mubr.bf16.gmra.mrb[0].mxu0 %v3522
    %v3604 = vpop.f32.mrb[0].mxu0
    %v3605 = vadd.f32 %v3492, %v3604
    %v3606 = vpop.f32.mrb[0].mxu0
    %v3607 = vpop.f32.mrb[0].mxu0
    %v3608 = vadd.f32 %v3492, %v3607
    %v3609 = vpop.f32.mrb[0].mxu0
    %3610 = vmatprep.mubr.bf16.mxu0 0
    %3611 = vmatmul.mubr.bf16.gmra.mrb[0].mxu0 %v3525
    %v3612 = vpop.f32.mrb[0].mxu0
    %v3613 = vadd.f32 %v3492, %v3612
    %v3614 = vpop.f32.mrb[0].mxu0
    %v3615 = vpop.f32.mrb[0].mxu0
    %v3616 = vadd.f32 %v3492, %v3615
    %v3617 = vpop.f32.mrb[0].mxu0
    %3618 = vmatprep.mubr.bf16.mxu0 0
    %3619 = vmatmul.mubr.bf16.gmra.mrb[0].mxu0 %v3528
    %v3620 = vpop.f32.mrb[0].mxu0
    %v3621 = vadd.f32 %v3492, %v3620
    %v3622 = vpop.f32.mrb[0].mxu0
    %v3623 = vpop.f32.mrb[0].mxu0
    %v3624 = vadd.f32 %v3492, %v3623
    %v3625 = vpop.f32.mrb[0].mxu0
    %3626 = vdwg.mxu0
    %v3627 = vmul.f32 %v3565, 0.5
    %v3628 = vmul.f32 %v3568, 0.5
    %v3629 = vmul.f32 %v3573, 0.5
    %v3630 = vmul.f32 %v3576, 0.5
    %v3631 = vmul.f32 %v3581, 0.5
    %v3632 = vmul.f32 %v3584, 0.5
    %v3633 = vmul.f32 %v3589, 0.5
    %v3634 = vmul.f32 %v3592, 0.5
    %v3635 = vmul.f32 %v3597, 0.5
    %v3636 = vmul.f32 %v3600, 0.5
    %v3637 = vmul.f32 %v3605, 0.5
    %v3638 = vmul.f32 %v3608, 0.5
    %v3639 = vmul.f32 %v3613, 0.5
    %v3640 = vmul.f32 %v3616, 0.5
    %v3641 = vmul.f32 %v3621, 0.5
    %v3642 = vmul.f32 %v3624, 0.5
    %v3643 = vmul.f32 %v3565, 0.044715
    %v3644 = vmul.f32 %v3568, 0.044715
    %v3645 = vmul.f32 %v3573, 0.044715
    %v3646 = vmul.f32 %v3576, 0.044715
    %v3647 = vmul.f32 %v3581, 0.044715
    %v3648 = vmul.f32 %v3584, 0.044715
    %v3649 = vmul.f32 %v3589, 0.044715
    %v3650 = vmul.f32 %v3592, 0.044715
    %v3651 = vmul.f32 %v3597, 0.044715
    %v3652 = vmul.f32 %v3600, 0.044715
    %v3653 = vmul.f32 %v3605, 0.044715
    %v3654 = vmul.f32 %v3608, 0.044715
    %v3655 = vmul.f32 %v3613, 0.044715
    %v3656 = vmul.f32 %v3616, 0.044715
    %v3657 = vmul.f32 %v3621, 0.044715
    %v3658 = vmul.f32 %v3624, 0.044715
    %v3659 = vmul.f32 %v3643, %v3565
    %v3660 = vmul.f32 %v3644, %v3568
    %v3661 = vmul.f32 %v3645, %v3573
    %v3662 = vmul.f32 %v3646, %v3576
    %v3663 = vmul.f32 %v3647, %v3581
    %v3664 = vmul.f32 %v3648, %v3584
    %v3665 = vmul.f32 %v3649, %v3589
    %v3666 = vmul.f32 %v3650, %v3592
    %v3667 = vmul.f32 %v3651, %v3597
    %v3668 = vmul.f32 %v3652, %v3600
    %v3669 = vmul.f32 %v3653, %v3605
    %v3670 = vmul.f32 %v3654, %v3608
    %v3671 = vmul.f32 %v3655, %v3613
    %v3672 = vmul.f32 %v3656, %v3616
    %v3673 = vmul.f32 %v3657, %v3621
    %v3674 = vmul.f32 %v3658, %v3624
    %v3675 = vmul.f32 %v3659, %v3565
    %v3676 = vmul.f32 %v3660, %v3568
    %v3677 = vmul.f32 %v3661, %v3573
    %v3678 = vmul.f32 %v3662, %v3576
    %v3679 = vmul.f32 %v3663, %v3581
    %v3680 = vmul.f32 %v3664, %v3584
    %v3681 = vmul.f32 %v3665, %v3589
    %v3682 = vmul.f32 %v3666, %v3592
    %v3683 = vmul.f32 %v3667, %v3597
    %v3684 = vmul.f32 %v3668, %v3600
    %v3685 = vmul.f32 %v3669, %v3605
    %v3686 = vmul.f32 %v3670, %v3608
    %v3687 = vmul.f32 %v3671, %v3613
    %v3688 = vmul.f32 %v3672, %v3616
    %v3689 = vmul.f32 %v3673, %v3621
    %v3690 = vmul.f32 %v3674, %v3624
    %v3691 = vadd.f32 %v3565, %v3675
    %v3692 = vadd.f32 %v3568, %v3676
    %v3693 = vadd.f32 %v3573, %v3677
    %v3694 = vadd.f32 %v3576, %v3678
    %v3695 = vadd.f32 %v3581, %v3679
    %v3696 = vadd.f32 %v3584, %v3680
    %v3697 = vadd.f32 %v3589, %v3681
    %v3698 = vadd.f32 %v3592, %v3682
    %v3699 = vadd.f32 %v3597, %v3683
    %v3700 = vadd.f32 %v3600, %v3684
    %v3701 = vadd.f32 %v3605, %v3685
    %v3702 = vadd.f32 %v3608, %v3686
    %v3703 = vadd.f32 %v3613, %v3687
    %v3704 = vadd.f32 %v3616, %v3688
    %v3705 = vadd.f32 %v3621, %v3689
    %v3706 = vadd.f32 %v3624, %v3690
    %v3707 = vmul.f32 %v3691, 0.7978846
    %v3708 = vmul.f32 %v3692, 0.7978846
    %v3709 = vmul.f32 %v3693, 0.7978846
    %v3710 = vmul.f32 %v3694, 0.7978846
    %v3711 = vmul.f32 %v3695, 0.7978846
    %v3712 = vmul.f32 %v3696, 0.7978846
    %v3713 = vmul.f32 %v3697, 0.7978846
    %v3714 = vmul.f32 %v3698, 0.7978846
    %v3715 = vmul.f32 %v3699, 0.7978846
    %v3716 = vmul.f32 %v3700, 0.7978846
    %v3717 = vmul.f32 %v3701, 0.7978846
    %v3718 = vmul.f32 %v3702, 0.7978846
    %v3719 = vmul.f32 %v3703, 0.7978846
    %v3720 = vmul.f32 %v3704, 0.7978846
    %v3721 = vmul.f32 %v3705, 0.7978846
    %v3722 = vmul.f32 %v3706, 0.7978846
    %v3723 = vtanh.pop %v3707
    %v3724 = vtanh.pop %v3708
    %v3725 = vtanh.pop %v3709
    %v3726 = vtanh.pop %v3710
    %v3727 = vtanh.pop %v3711
    %v3728 = vtanh.pop %v3712
    %v3729 = vtanh.pop %v3713
    %v3730 = vtanh.pop %v3714
    %v3731 = vtanh.pop %v3715
    %v3732 = vtanh.pop %v3716
    %v3733 = vtanh.pop %v3717
    %v3734 = vtanh.pop %v3718
    %v3735 = vtanh.pop %v3719
    %v3736 = vtanh.pop %v3720
    %v3737 = vtanh.pop %v3721
    %v3738 = vtanh.pop %v3722
    %v3739 = vadd.f32 %v3723, 1.0
    %v3740 = vadd.f32 %v3724, 1.0
    %v3741 = vadd.f32 %v3725, 1.0
    %v3742 = vadd.f32 %v3726, 1.0
    %v3743 = vadd.f32 %v3727, 1.0
    %v3744 = vadd.f32 %v3728, 1.0
    %v3745 = vadd.f32 %v3729, 1.0
    %v3746 = vadd.f32 %v3730, 1.0
    %v3747 = vadd.f32 %v3731, 1.0
    %v3748 = vadd.f32 %v3732, 1.0
    %v3749 = vadd.f32 %v3733, 1.0
    %v3750 = vadd.f32 %v3734, 1.0
    %v3751 = vadd.f32 %v3735, 1.0
    %v3752 = vadd.f32 %v3736, 1.0
    %v3753 = vadd.f32 %v3737, 1.0
    %v3754 = vadd.f32 %v3738, 1.0
    %v3755 = vmul.f32 %v3627, %v3739
    %v3756 = vmul.f32 %v3628, %v3740
    %v3757 = vmul.f32 %v3629, %v3741
    %v3758 = vmul.f32 %v3630, %v3742
    %v3759 = vmul.f32 %v3631, %v3743
    %v3760 = vmul.f32 %v3632, %v3744
    %v3761 = vmul.f32 %v3633, %v3745
    %v3762 = vmul.f32 %v3634, %v3746
    %v3763 = vmul.f32 %v3635, %v3747
    %v3764 = vmul.f32 %v3636, %v3748
    %v3765 = vmul.f32 %v3637, %v3749
    %v3766 = vmul.f32 %v3638, %v3750
    %v3767 = vmul.f32 %v3639, %v3751
    %v3768 = vmul.f32 %v3640, %v3752
    %v3769 = vmul.f32 %v3641, %v3753
    %v3770 = vmul.f32 %v3642, %v3754
    %v3771 = vpack.c.bf16 %v3756, %v3755
    %v3772 = vpack.c.bf16 %v3758, %v3757
    %v3773 = vpack.c.bf16 %v3760, %v3759
    %v3774 = vpack.c.bf16 %v3762, %v3761
    %v3775 = vpack.c.bf16 %v3764, %v3763
    %v3776 = vpack.c.bf16 %v3766, %v3765
    %v3777 = vpack.c.bf16 %v3768, %v3767
    %v3778 = vpack.c.bf16 %v3770, %v3769
    %v3779 = vld [vmem:[%s12] sm:$0xf]
    %v3780 = vld [vmem:[%s12 + $0x4] sm:$0xf]
    %v3781 = vld [vmem:[%s12 + $0x8] sm:$0xf]
    %v3782 = vld [vmem:[%s12 + $0xc] sm:$0xf]
    %v3783 = vld [vmem:[%s12 + $0x10] sm:$0xf]
    %v3784 = vld [vmem:[%s12 + $0x14] sm:$0xf]
    %v3785 = vld [vmem:[%s12 + $0x18] sm:$0xf]
    %v3786 = vld [vmem:[%s12 + $0x1c] sm:$0xf]
    %v3787 = vld [vmem:[%s12 + $0x20] sm:$0xf]
    %v3788 = vld [vmem:[%s12 + $0x24] sm:$0xf]
    %v3789 = vld [vmem:[%s12 + $0x28] sm:$0xf]
    %v3790 = vld [vmem:[%s12 + $0x2c] sm:$0xf]
    %v3791 = vld [vmem:[%s12 + $0x30] sm:$0xf]
    %v3792 = vld [vmem:[%s12 + $0x34] sm:$0xf]
    %v3793 = vld [vmem:[%s12 + $0x38] sm:$0xf]
    %v3794 = vld [vmem:[%s12 + $0x3c] sm:$0xf]
    %v3795 = vld [vmem:[%s13] sm:$0x1]
    %v3797 = vlaneseq
    %v3798 = vshrl.u32 %v3797, 7
    %v3799 = vsub.s32 0, %v3798
    %v3800 = vrot.slane %v3795, %v3799
    %v3818 = vunpack.c.l.b16 %v3779
    %v3819 = vunpack.c.l.b16 %v3780
    %v3820 = vunpack.c.l.b16 %v3781
    %v3821 = vunpack.c.l.b16 %v3782
    %v3822 = vunpack.c.l.b16 %v3783
    %v3823 = vunpack.c.l.b16 %v3784
    %v3824 = vunpack.c.l.b16 %v3785
    %v3825 = vunpack.c.l.b16 %v3786
    %v3826 = vunpack.c.l.b16 %v3787
    %v3827 = vunpack.c.l.b16 %v3788
    %v3828 = vunpack.c.l.b16 %v3789
    %v3829 = vunpack.c.l.b16 %v3790
    %v3830 = vunpack.c.l.b16 %v3791
    %v3831 = vunpack.c.l.b16 %v3792
    %v3832 = vunpack.c.l.b16 %v3793
    %v3833 = vunpack.c.l.b16 %v3794
    %v3834 = vpack.c.b16 %v3819, %v3818
    %v3835 = vpack.c.b16 %v3821, %v3820
    %v3836 = vpack.c.b16 %v3823, %v3822
    %v3837 = vpack.c.b16 %v3825, %v3824
    %v3838 = vpack.c.b16 %v3827, %v3826
    %v3839 = vpack.c.b16 %v3829, %v3828
    %v3840 = vpack.c.b16 %v3831, %v3830
    %v3841 = vpack.c.b16 %v3833, %v3832
    %3850 = vmatprep.subr.bf16.mxu0 0
    %3851 = vmatpush1.bf16.msra.mxu0 %v3834
    %3852 = vmatprep.subr.bf16.mxu0 0
    %3853 = vmatpush1.bf16.msra.mxu0 %v3835
    %3854 = vmatprep.subr.bf16.mxu0 0
    %3855 = vmatpush1.bf16.msra.mxu0 %v3836
    %3856 = vmatprep.subr.bf16.mxu0 0
    %3857 = vmatpush1.bf16.msra.mxu0 %v3837
    %3858 = vmatprep.subr.bf16.mxu0 0
    %3859 = vmatpush1.bf16.msra.mxu0 %v3838
    %3860 = vmatprep.subr.bf16.mxu0 0
    %3861 = vmatpush1.bf16.msra.mxu0 %v3839
    %3862 = vmatprep.subr.bf16.mxu0 0
    %3863 = vmatpush1.bf16.msra.mxu0 %v3840
    %3864 = vmatprep.subr.bf16.mxu0 0
    %3865 = vmatpush1.bf16.msra.mxu0 %v3841
    %3866 = vmatprep.subr.bf16.mxu0 0
    %3867 = vmatpush1.bf16.msra.mxu0 0
    %3868 = vmatprep.subr.bf16.mxu0 0
    %3869 = vmatpush1.bf16.msra.mxu0 0
    %3870 = vmatprep.subr.bf16.mxu0 0
    %3871 = vmatpush1.bf16.msra.mxu0 0
    %3872 = vmatprep.subr.bf16.mxu0 0
    %3873 = vmatpush1.bf16.msra.mxu0 0
    %3874 = vmatprep.subr.bf16.mxu0 0
    %3875 = vmatpush1.bf16.msra.mxu0 0
    %3876 = vmatprep.subr.bf16.mxu0 0
    %3877 = vmatpush1.bf16.msra.mxu0 0
    %3878 = vmatprep.subr.bf16.mxu0 0
    %3879 = vmatpush1.bf16.msra.mxu0 0
    %3880 = vmatprep.subr.bf16.mxu0 0
    %3881 = vmatpush1.bf16.msra.mxu0 0
    %3882 = vmatprep.mubr.bf16.mxu0 0
    %3883 = vmatmul.mubr.bf16.gmra.mrb[0].mxu0 %v3771
    %v3884 = vpop.f32.mrb[0].mxu0
    %v3885 = vadd.f32 %v3800, %v3884
    %v3886 = vpop.f32.mrb[0].mxu0
    %v3887 = vpop.f32.mrb[0].mxu0
    %v3888 = vadd.f32 %v3800, %v3887
    %v3889 = vpop.f32.mrb[0].mxu0
    %3890 = vmatprep.mubr.bf16.mxu0 0
    %3891 = vmatmul.mubr.bf16.gmra.mrb[0].mxu0 %v3772
    %v3892 = vpop.f32.mrb[0].mxu0
    %v3893 = vadd.f32 %v3800, %v3892
    %v3894 = vpop.f32.mrb[0].mxu0
    %v3895 = vpop.f32.mrb[0].mxu0
    %v3896 = vadd.f32 %v3800, %v3895
    %v3897 = vpop.f32.mrb[0].mxu0
    %3898 = vmatprep.mubr.bf16.mxu0 0
    %3899 = vmatmul.mubr.bf16.gmra.mrb[0].mxu0 %v3773
    %v3900 = vpop.f32.mrb[0].mxu0
    %v3901 = vadd.f32 %v3800, %v3900
    %v3902 = vpop.f32.mrb[0].mxu0
    %v3903 = vpop.f32.mrb[0].mxu0
    %v3904 = vadd.f32 %v3800, %v3903
    %v3905 = vpop.f32.mrb[0].mxu0
    %3906 = vmatprep.mubr.bf16.mxu0 0
    %3907 = vmatmul.mubr.bf16.gmra.mrb[0].mxu0 %v3774
    %v3908 = vpop.f32.mrb[0].mxu0
    %v3909 = vadd.f32 %v3800, %v3908
    %v3910 = vpop.f32.mrb[0].mxu0
    %v3911 = vpop.f32.mrb[0].mxu0
    %v3912 = vadd.f32 %v3800, %v3911
    %v3913 = vpop.f32.mrb[0].mxu0
    %3914 = vmatprep.mubr.bf16.mxu0 0
    %3915 = vmatmul.mubr.bf16.gmra.mrb[0].mxu0 %v3775
    %v3916 = vpop.f32.mrb[0].mxu0
    %v3917 = vadd.f32 %v3800, %v3916
    %v3918 = vpop.f32.mrb[0].mxu0
    %v3919 = vpop.f32.mrb[0].mxu0
    %v3920 = vadd.f32 %v3800, %v3919
    %v3921 = vpop.f32.mrb[0].mxu0
    %3922 = vmatprep.mubr.bf16.mxu0 0
    %3923 = vmatmul.mubr.bf16.gmra.mrb[0].mxu0 %v3776
    %v3924 = vpop.f32.mrb[0].mxu0
    %v3925 = vadd.f32 %v3800, %v3924
    %v3926 = vpop.f32.mrb[0].mxu0
    %v3927 = vpop.f32.mrb[0].mxu0
    %v3928 = vadd.f32 %v3800, %v3927
    %v3929 = vpop.f32.mrb[0].mxu0
    %3930 = vmatprep.mubr.bf16.mxu0 0
    %3931 = vmatmul.mubr.bf16.gmra.mrb[0].mxu0 %v3777
    %v3932 = vpop.f32.mrb[0].mxu0
    %v3933 = vadd.f32 %v3800, %v3932
    %v3934 = vpop.f32.mrb[0].mxu0
    %v3935 = vpop.f32.mrb[0].mxu0
    %v3936 = vadd.f32 %v3800, %v3935
    %v3937 = vpop.f32.mrb[0].mxu0
    %3938 = vmatprep.mubr.bf16.mxu0 0
    %3939 = vmatmul.mubr.bf16.gmra.mrb[0].mxu0 %v3778
    %v3940 = vpop.f32.mrb[0].mxu0
    %v3941 = vadd.f32 %v3800, %v3940
    %v3942 = vpop.f32.mrb[0].mxu0
    %v3943 = vpop.f32.mrb[0].mxu0
    %v3944 = vadd.f32 %v3800, %v3943
    %v3945 = vpop.f32.mrb[0].mxu0
    %3946 = vdwg.mxu0
    %v3947 = vadd.f32 %v3205, %v3885
    %v3948 = vadd.f32 %v3206, %v3888
    %v3949 = vadd.f32 %v3207, %v3893
    %v3950 = vadd.f32 %v3208, %v3896
    %v3951 = vadd.f32 %v3209, %v3901
    %v3952 = vadd.f32 %v3210, %v3904
    %v3953 = vadd.f32 %v3211, %v3909
    %v3954 = vadd.f32 %v3212, %v3912
    %v3955 = vadd.f32 %v3213, %v3917
    %v3956 = vadd.f32 %v3214, %v3920
    %v3957 = vadd.f32 %v3215, %v3925
    %v3958 = vadd.f32 %v3216, %v3928
    %v3959 = vadd.f32 %v3217, %v3933
    %v3960 = vadd.f32 %v3218, %v3936
    %v3961 = vadd.f32 %v3219, %v3941
    %v3962 = vadd.f32 %v3220, %v3944
    %s3963 = scalar_lea.vmem %s2, 1
    %v3964 = vld [vmem:[%s3963] sm:$0x1]
    %s3965 = scalar_lea.vmem %s3, 1
    %v3966 = vld [vmem:[%s3965] sm:$0x1]
    %v3967 = vsel %vm80, %v3947, 0.0
    %3968 = vadd.xlane.f32.xlu0 %v3967
    %v3969 = vpop.xlane.xlu0 %3968
    %v3970 = vsel %vm80, %v3948, 0.0
    %3971 = vadd.xlane.f32.xlu0 %v3970
    %v3972 = vpop.xlane.xlu0 %3971
    %v3973 = vsel %vm80, %v3949, 0.0
    %3974 = vadd.xlane.f32.xlu0 %v3973
    %v3975 = vpop.xlane.xlu0 %3974
    %v3976 = vsel %vm80, %v3950, 0.0
    %3977 = vadd.xlane.f32.xlu0 %v3976
    %v3978 = vpop.xlane.xlu0 %3977
    %v3979 = vsel %vm80, %v3951, 0.0
    %3980 = vadd.xlane.f32.xlu0 %v3979
    %v3981 = vpop.xlane.xlu0 %3980
    %v3982 = vsel %vm80, %v3952, 0.0
    %3983 = vadd.xlane.f32.xlu0 %v3982
    %v3984 = vpop.xlane.xlu0 %3983
    %v3985 = vsel %vm80, %v3953, 0.0
    %3986 = vadd.xlane.f32.xlu0 %v3985
    %v3987 = vpop.xlane.xlu0 %3986
    %v3988 = vsel %vm80, %v3954, 0.0
    %3989 = vadd.xlane.f32.xlu0 %v3988
    %v3990 = vpop.xlane.xlu0 %3989
    %v3991 = vsel %vm80, %v3955, 0.0
    %3992 = vadd.xlane.f32.xlu0 %v3991
    %v3993 = vpop.xlane.xlu0 %3992
    %v3994 = vsel %vm80, %v3956, 0.0
    %3995 = vadd.xlane.f32.xlu0 %v3994
    %v3996 = vpop.xlane.xlu0 %3995
    %v3997 = vsel %vm80, %v3957, 0.0
    %3998 = vadd.xlane.f32.xlu0 %v3997
    %v3999 = vpop.xlane.xlu0 %3998
    %v4000 = vsel %vm80, %v3958, 0.0
    %4001 = vadd.xlane.f32.xlu0 %v4000
    %v4002 = vpop.xlane.xlu0 %4001
    %v4003 = vsel %vm80, %v3959, 0.0
    %4004 = vadd.xlane.f32.xlu0 %v4003
    %v4005 = vpop.xlane.xlu0 %4004
    %v4006 = vsel %vm80, %v3960, 0.0
    %4007 = vadd.xlane.f32.xlu0 %v4006
    %v4008 = vpop.xlane.xlu0 %4007
    %v4009 = vsel %vm80, %v3961, 0.0
    %4010 = vadd.xlane.f32.xlu0 %v4009
    %v4011 = vpop.xlane.xlu0 %4010
    %v4012 = vsel %vm80, %v3962, 0.0
    %4013 = vadd.xlane.f32.xlu0 %v4012
    %v4014 = vpop.xlane.xlu0 %4013
    %v4015 = vmul.f32 %v3969, %v129
    %v4016 = vmul.f32 %v3972, %v129
    %v4017 = vmul.f32 %v3975, %v129
    %v4018 = vmul.f32 %v3978, %v129
    %v4019 = vmul.f32 %v3981, %v129
    %v4020 = vmul.f32 %v3984, %v129
    %v4021 = vmul.f32 %v3987, %v129
    %v4022 = vmul.f32 %v3990, %v129
    %v4023 = vmul.f32 %v3993, %v129
    %v4024 = vmul.f32 %v3996, %v129
    %v4025 = vmul.f32 %v3999, %v129
    %v4026 = vmul.f32 %v4002, %v129
    %v4027 = vmul.f32 %v4005, %v129
    %v4028 = vmul.f32 %v4008, %v129
    %v4029 = vmul.f32 %v4011, %v129
    %v4030 = vmul.f32 %v4014, %v129
    %v4031 = vsub.f32 %v3947, %v4015
    %v4032 = vsub.f32 %v3948, %v4016
    %v4033 = vsub.f32 %v3949, %v4017
    %v4034 = vsub.f32 %v3950, %v4018
    %v4035 = vsub.f32 %v3951, %v4019
    %v4036 = vsub.f32 %v3952, %v4020
    %v4037 = vsub.f32 %v3953, %v4021
    %v4038 = vsub.f32 %v3954, %v4022
    %v4039 = vsub.f32 %v3955, %v4023
    %v4040 = vsub.f32 %v3956, %v4024
    %v4041 = vsub.f32 %v3957, %v4025
    %v4042 = vsub.f32 %v3958, %v4026
    %v4043 = vsub.f32 %v3959, %v4027
    %v4044 = vsub.f32 %v3960, %v4028
    %v4045 = vsub.f32 %v3961, %v4029
    %v4046 = vsub.f32 %v3962, %v4030
    %v4047 = vmul.f32 %v4031, %v4031
    %v4048 = vmul.f32 %v4032, %v4032
    %v4049 = vmul.f32 %v4033, %v4033
    %v4050 = vmul.f32 %v4034, %v4034
    %v4051 = vmul.f32 %v4035, %v4035
    %v4052 = vmul.f32 %v4036, %v4036
    %v4053 = vmul.f32 %v4037, %v4037
    %v4054 = vmul.f32 %v4038, %v4038
    %v4055 = vmul.f32 %v4039, %v4039
    %v4056 = vmul.f32 %v4040, %v4040
    %v4057 = vmul.f32 %v4041, %v4041
    %v4058 = vmul.f32 %v4042, %v4042
    %v4059 = vmul.f32 %v4043, %v4043
    %v4060 = vmul.f32 %v4044, %v4044
    %v4061 = vmul.f32 %v4045, %v4045
    %v4062 = vmul.f32 %v4046, %v4046
    %v4063 = vsel %vm80, %v4047, 0.0
    %4064 = vadd.xlane.f32.xlu0 %v4063
    %v4065 = vpop.xlane.xlu0 %4064
    %v4066 = vsel %vm80, %v4048, 0.0
    %4067 = vadd.xlane.f32.xlu0 %v4066
    %v4068 = vpop.xlane.xlu0 %4067
    %v4069 = vsel %vm80, %v4049, 0.0
    %4070 = vadd.xlane.f32.xlu0 %v4069
    %v4071 = vpop.xlane.xlu0 %4070
    %v4072 = vsel %vm80, %v4050, 0.0
    %4073 = vadd.xlane.f32.xlu0 %v4072
    %v4074 = vpop.xlane.xlu0 %4073
    %v4075 = vsel %vm80, %v4051, 0.0
    %4076 = vadd.xlane.f32.xlu0 %v4075
    %v4077 = vpop.xlane.xlu0 %4076
    %v4078 = vsel %vm80, %v4052, 0.0
    %4079 = vadd.xlane.f32.xlu0 %v4078
    %v4080 = vpop.xlane.xlu0 %4079
    %v4081 = vsel %vm80, %v4053, 0.0
    %4082 = vadd.xlane.f32.xlu0 %v4081
    %v4083 = vpop.xlane.xlu0 %4082
    %v4084 = vsel %vm80, %v4054, 0.0
    %4085 = vadd.xlane.f32.xlu0 %v4084
    %v4086 = vpop.xlane.xlu0 %4085
    %v4087 = vsel %vm80, %v4055, 0.0
    %4088 = vadd.xlane.f32.xlu0 %v4087
    %v4089 = vpop.xlane.xlu0 %4088
    %v4090 = vsel %vm80, %v4056, 0.0
    %4091 = vadd.xlane.f32.xlu0 %v4090
    %v4092 = vpop.xlane.xlu0 %4091
    %v4093 = vsel %vm80, %v4057, 0.0
    %4094 = vadd.xlane.f32.xlu0 %v4093
    %v4095 = vpop.xlane.xlu0 %4094
    %v4096 = vsel %vm80, %v4058, 0.0
    %4097 = vadd.xlane.f32.xlu0 %v4096
    %v4098 = vpop.xlane.xlu0 %4097
    %v4099 = vsel %vm80, %v4059, 0.0
    %4100 = vadd.xlane.f32.xlu0 %v4099
    %v4101 = vpop.xlane.xlu0 %4100
    %v4102 = vsel %vm80, %v4060, 0.0
    %4103 = vadd.xlane.f32.xlu0 %v4102
    %v4104 = vpop.xlane.xlu0 %4103
    %v4105 = vsel %vm80, %v4061, 0.0
    %4106 = vadd.xlane.f32.xlu0 %v4105
    %v4107 = vpop.xlane.xlu0 %4106
    %v4108 = vsel %vm80, %v4062, 0.0
    %4109 = vadd.xlane.f32.xlu0 %v4108
    %v4110 = vpop.xlane.xlu0 %4109
    %v4111 = vmul.f32 %v4065, %v129
    %v4112 = vmul.f32 %v4068, %v129
    %v4113 = vmul.f32 %v4071, %v129
    %v4114 = vmul.f32 %v4074, %v129
    %v4115 = vmul.f32 %v4077, %v129
    %v4116 = vmul.f32 %v4080, %v129
    %v4117 = vmul.f32 %v4083, %v129
    %v4118 = vmul.f32 %v4086, %v129
    %v4119 = vmul.f32 %v4089, %v129
    %v4120 = vmul.f32 %v4092, %v129
    %v4121 = vmul.f32 %v4095, %v129
    %v4122 = vmul.f32 %v4098, %v129
    %v4123 = vmul.f32 %v4101, %v129
    %v4124 = vmul.f32 %v4104, %v129
    %v4125 = vmul.f32 %v4107, %v129
    %v4126 = vmul.f32 %v4110, %v129
    %v4127 = vadd.f32 %v4111, 1e-05
    %v4128 = vadd.f32 %v4112, 1e-05
    %v4129 = vadd.f32 %v4113, 1e-05
    %v4130 = vadd.f32 %v4114, 1e-05
    %v4131 = vadd.f32 %v4115, 1e-05
    %v4132 = vadd.f32 %v4116, 1e-05
    %v4133 = vadd.f32 %v4117, 1e-05
    %v4134 = vadd.f32 %v4118, 1e-05
    %v4135 = vadd.f32 %v4119, 1e-05
    %v4136 = vadd.f32 %v4120, 1e-05
    %v4137 = vadd.f32 %v4121, 1e-05
    %v4138 = vadd.f32 %v4122, 1e-05
    %v4139 = vadd.f32 %v4123, 1e-05
    %v4140 = vadd.f32 %v4124, 1e-05
    %v4141 = vadd.f32 %v4125, 1e-05
    %v4142 = vadd.f32 %v4126, 1e-05
    %v4143 = vrsqrt.pop %v4127
    %v4144 = vrsqrt.pop %v4128
    %v4145 = vrsqrt.pop %v4129
    %v4146 = vrsqrt.pop %v4130
    %v4147 = vrsqrt.pop %v4131
    %v4148 = vrsqrt.pop %v4132
    %v4149 = vrsqrt.pop %v4133
    %v4150 = vrsqrt.pop %v4134
    %v4151 = vrsqrt.pop %v4135
    %v4152 = vrsqrt.pop %v4136
    %v4153 = vrsqrt.pop %v4137
    %v4154 = vrsqrt.pop %v4138
    %v4155 = vrsqrt.pop %v4139
    %v4156 = vrsqrt.pop %v4140
    %v4157 = vrsqrt.pop %v4141
    %v4158 = vrsqrt.pop %v4142
    %v4159 = vmul.f32 %v4031, %v4143
    %v4160 = vmul.f32 %v4032, %v4144
    %v4161 = vmul.f32 %v4033, %v4145
    %v4162 = vmul.f32 %v4034, %v4146
    %v4163 = vmul.f32 %v4035, %v4147
    %v4164 = vmul.f32 %v4036, %v4148
    %v4165 = vmul.f32 %v4037, %v4149
    %v4166 = vmul.f32 %v4038, %v4150
    %v4167 = vmul.f32 %v4039, %v4151
    %v4168 = vmul.f32 %v4040, %v4152
    %v4169 = vmul.f32 %v4041, %v4153
    %v4170 = vmul.f32 %v4042, %v4154
    %v4171 = vmul.f32 %v4043, %v4155
    %v4172 = vmul.f32 %v4044, %v4156
    %v4173 = vmul.f32 %v4045, %v4157
    %v4174 = vmul.f32 %v4046, %v4158
    %v4176 = vlaneseq
    %v4177 = vshrl.u32 %v4176, 7
    %v4178 = vsub.s32 0, %v4177
    %v4179 = vrot.slane %v3964, %v4178
    %v4181 = vmul.f32 %v4159, %v4179
    %v4182 = vmul.f32 %v4160, %v4179
    %v4183 = vmul.f32 %v4161, %v4179
    %v4184 = vmul.f32 %v4162, %v4179
    %v4185 = vmul.f32 %v4163, %v4179
    %v4186 = vmul.f32 %v4164, %v4179
    %v4187 = vmul.f32 %v4165, %v4179
    %v4188 = vmul.f32 %v4166, %v4179
    %v4189 = vmul.f32 %v4167, %v4179
    %v4190 = vmul.f32 %v4168, %v4179
    %v4191 = vmul.f32 %v4169, %v4179
    %v4192 = vmul.f32 %v4170, %v4179
    %v4193 = vmul.f32 %v4171, %v4179
    %v4194 = vmul.f32 %v4172, %v4179
    %v4195 = vmul.f32 %v4173, %v4179
    %v4196 = vmul.f32 %v4174, %v4179
    %v4198 = vlaneseq
    %v4199 = vshrl.u32 %v4198, 7
    %v4200 = vsub.s32 0, %v4199
    %v4201 = vrot.slane %v3966, %v4200
    %v4203 = vadd.f32 %v4181, %v4201
    %v4204 = vadd.f32 %v4182, %v4201
    %v4205 = vadd.f32 %v4183, %v4201
    %v4206 = vadd.f32 %v4184, %v4201
    %v4207 = vadd.f32 %v4185, %v4201
    %v4208 = vadd.f32 %v4186, %v4201
    %v4209 = vadd.f32 %v4187, %v4201
    %v4210 = vadd.f32 %v4188, %v4201
    %v4211 = vadd.f32 %v4189, %v4201
    %v4212 = vadd.f32 %v4190, %v4201
    %v4213 = vadd.f32 %v4191, %v4201
    %v4214 = vadd.f32 %v4192, %v4201
    %v4215 = vadd.f32 %v4193, %v4201
    %v4216 = vadd.f32 %v4194, %v4201
    %v4217 = vadd.f32 %v4195, %v4201
    %v4218 = vadd.f32 %v4196, %v4201
    %v4219 = vpack.c.bf16 %v4204, %v4203
    %v4220 = vpack.c.bf16 %v4206, %v4205
    %v4221 = vpack.c.bf16 %v4208, %v4207
    %v4222 = vpack.c.bf16 %v4210, %v4209
    %v4223 = vpack.c.bf16 %v4212, %v4211
    %v4224 = vpack.c.bf16 %v4214, %v4213
    %v4225 = vpack.c.bf16 %v4216, %v4215
    %v4226 = vpack.c.bf16 %v4218, %v4217
    %s4227 = scalar_lea.vmem %s4, 16
    %v4228 = vld [vmem:[%s4227] sm:$0xf]
    %v4229 = vld [vmem:[%s4227 + $0x4] sm:$0xf]
    %v4230 = vld [vmem:[%s4227 + $0x8] sm:$0xf]
    %v4231 = vld [vmem:[%s4227 + $0xc] sm:$0xf]
    %s4232 = scalar_lea.vmem %s5, 1
    %v4233 = vld [vmem:[%s4232] sm:$0x1]
    %v4235 = vlaneseq
    %v4236 = vshrl.u32 %v4235, 7
    %v4237 = vsub.s32 0, %v4236
    %v4238 = vrot.slane %v4233, %v4237
    %v4244 = vunpack.c.l.b16 %v4228
    %v4245 = vunpack.c.l.b16 %v4229
    %v4246 = vunpack.c.l.b16 %v4230
    %v4247 = vunpack.c.l.b16 %v4231
    %v4248 = vpack.c.b16 %v4245, %v4244
    %v4249 = vpack.c.b16 %v4247, %v4246
    %v4253 = vsel %vm80, %v4219, 0
    %v4256 = vsel %vm80, %v4220, 0
    %v4259 = vsel %vm80, %v4221, 0
    %v4262 = vsel %vm80, %v4222, 0
    %v4265 = vsel %vm80, %v4223, 0
    %v4268 = vsel %vm80, %v4224, 0
    %v4271 = vsel %vm80, %v4225, 0
    %v4274 = vsel %vm80, %v4226, 0
    %4276 = vmatprep.subr.bf16.mxu0 0
    %4277 = vmatpush1.bf16.msra.mxu0 %v4248
    %4278 = vmatprep.subr.bf16.mxu0 0
    %4279 = vmatpush1.bf16.msra.mxu0 %v4249
    %4280 = vmatprep.subr.bf16.mxu0 0
    %4281 = vmatpush1.bf16.msra.mxu0 0
    %4282 = vmatprep.subr.bf16.mxu0 0
    %4283 = vmatpush1.bf16.msra.mxu0 0
    %4284 = vmatprep.subr.bf16.mxu0 0
    %4285 = vmatpush1.bf16.msra.mxu0 0
    %4286 = vmatprep.subr.bf16.mxu0 0
    %4287 = vmatpush1.bf16.msra.mxu0 0
    %4288 = vmatprep.subr.bf16.mxu0 0
    %4289 = vmatpush1.bf16.msra.mxu0 0
    %4290 = vmatprep.subr.bf16.mxu0 0
    %4291 = vmatpush1.bf16.msra.mxu0 0
    %4292 = vmatprep.subr.bf16.mxu0 0
    %4293 = vmatpush1.bf16.msra.mxu0 0
    %4294 = vmatprep.subr.bf16.mxu0 0
    %4295 = vmatpush1.bf16.msra.mxu0 0
    %4296 = vmatprep.subr.bf16.mxu0 0
    %4297 = vmatpush1.bf16.msra.mxu0 0
    %4298 = vmatprep.subr.bf16.mxu0 0
    %4299 = vmatpush1.bf16.msra.mxu0 0
    %4300 = vmatprep.subr.bf16.mxu0 0
    %4301 = vmatpush1.bf16.msra.mxu0 0
    %4302 = vmatprep.subr.bf16.mxu0 0
    %4303 = vmatpush1.bf16.msra.mxu0 0
    %4304 = vmatprep.subr.bf16.mxu0 0
    %4305 = vmatpush1.bf16.msra.mxu0 0
    %4306 = vmatprep.subr.bf16.mxu0 0
    %4307 = vmatpush1.bf16.msra.mxu0 0
    %4308 = vmatprep.mubr.bf16.mxu0 0
    %4309 = vmatmul.mubr.bf16.gmra.mrb[0].mxu0 %v4253
    %v4310 = vpop.f32.mrb[0].mxu0
    %v4311 = vadd.f32 %v4238, %v4310
    %v4312 = vpop.f32.mrb[0].mxu0
    %v4313 = vpop.f32.mrb[0].mxu0
    %v4314 = vadd.f32 %v4238, %v4313
    %v4315 = vpop.f32.mrb[0].mxu0
    %4316 = vmatprep.mubr.bf16.mxu0 0
    %4317 = vmatmul.mubr.bf16.gmra.mrb[0].mxu0 %v4256
    %v4318 = vpop.f32.mrb[0].mxu0
    %v4319 = vadd.f32 %v4238, %v4318
    %v4320 = vpop.f32.mrb[0].mxu0
    %v4321 = vpop.f32.mrb[0].mxu0
    %v4322 = vadd.f32 %v4238, %v4321
    %v4323 = vpop.f32.mrb[0].mxu0
    %4324 = vmatprep.mubr.bf16.mxu0 0
    %4325 = vmatmul.mubr.bf16.gmra.mrb[0].mxu0 %v4259
    %v4326 = vpop.f32.mrb[0].mxu0
    %v4327 = vadd.f32 %v4238, %v4326
    %v4328 = vpop.f32.mrb[0].mxu0
    %v4329 = vpop.f32.mrb[0].mxu0
    %v4330 = vadd.f32 %v4238, %v4329
    %v4331 = vpop.f32.mrb[0].mxu0
    %4332 = vmatprep.mubr.bf16.mxu0 0
    %4333 = vmatmul.mubr.bf16.gmra.mrb[0].mxu0 %v4262
    %v4334 = vpop.f32.mrb[0].mxu0
    %v4335 = vadd.f32 %v4238, %v4334
    %v4336 = vpop.f32.mrb[0].mxu0
    %v4337 = vpop.f32.mrb[0].mxu0
    %v4338 = vadd.f32 %v4238, %v4337
    %v4339 = vpop.f32.mrb[0].mxu0
    %4340 = vmatprep.mubr.bf16.mxu0 0
    %4341 = vmatmul.mubr.bf16.gmra.mrb[0].mxu0 %v4265
    %v4342 = vpop.f32.mrb[0].mxu0
    %v4343 = vadd.f32 %v4238, %v4342
    %v4344 = vpop.f32.mrb[0].mxu0
    %v4345 = vpop.f32.mrb[0].mxu0
    %v4346 = vadd.f32 %v4238, %v4345
    %v4347 = vpop.f32.mrb[0].mxu0
    %4348 = vmatprep.mubr.bf16.mxu0 0
    %4349 = vmatmul.mubr.bf16.gmra.mrb[0].mxu0 %v4268
    %v4350 = vpop.f32.mrb[0].mxu0
    %v4351 = vadd.f32 %v4238, %v4350
    %v4352 = vpop.f32.mrb[0].mxu0
    %v4353 = vpop.f32.mrb[0].mxu0
    %v4354 = vadd.f32 %v4238, %v4353
    %v4355 = vpop.f32.mrb[0].mxu0
    %4356 = vmatprep.mubr.bf16.mxu0 0
    %4357 = vmatmul.mubr.bf16.gmra.mrb[0].mxu0 %v4271
    %v4358 = vpop.f32.mrb[0].mxu0
    %v4359 = vadd.f32 %v4238, %v4358
    %v4360 = vpop.f32.mrb[0].mxu0
    %v4361 = vpop.f32.mrb[0].mxu0
    %v4362 = vadd.f32 %v4238, %v4361
    %v4363 = vpop.f32.mrb[0].mxu0
    %4364 = vmatprep.mubr.bf16.mxu0 0
    %4365 = vmatmul.mubr.bf16.gmra.mrb[0].mxu0 %v4274
    %v4366 = vpop.f32.mrb[0].mxu0
    %v4367 = vadd.f32 %v4238, %v4366
    %v4368 = vpop.f32.mrb[0].mxu0
    %v4369 = vpop.f32.mrb[0].mxu0
    %v4370 = vadd.f32 %v4238, %v4369
    %v4371 = vpop.f32.mrb[0].mxu0
    %4372 = vdwg.mxu0
    %v4373 = vpack.c.bf16 %v4314, %v4311
    %v4374 = vpack.c.bf16 %v4322, %v4319
    %v4375 = vpack.c.bf16 %v4330, %v4327
    %v4376 = vpack.c.bf16 %v4338, %v4335
    %s4377 = scalar_lea.vmem [#allocation2], 256
    %v4378 = vld [vmem:[%s4377] sm:$0xff]
    %v4379 = vld [vmem:[%s4377 + $0x8] sm:$0xff]
    %v4380 = vld [vmem:[%s4377 + $0x10] sm:$0xff]
    %v4381 = vld [vmem:[%s4377 + $0x18] sm:$0xff]
    %v4382 = vld [vmem:[%s4377 + $0x20] sm:$0xff]
    %v4383 = vld [vmem:[%s4377 + $0x28] sm:$0xff]
    %v4384 = vld [vmem:[%s4377 + $0x30] sm:$0xff]
    %v4385 = vld [vmem:[%s4377 + $0x38] sm:$0xff]
    %4390 = vrot.lane.b32.xlu0 %v4373, 96
    %v4391 = vpop.permute.xlu0 %4390
    %4392 = vrot.lane.b32.xlu0 %v4374, 96
    %v4393 = vpop.permute.xlu0 %4392
    %4394 = vrot.lane.b32.xlu0 %v4375, 96
    %v4395 = vpop.permute.xlu0 %4394
    %4396 = vrot.lane.b32.xlu0 %v4376, 96
    %v4397 = vpop.permute.xlu0 %4396
    %v4399 = vsel %vm510, %v4373, 0
    %v4402 = vsel %vm510, %v4374, 0
    %v4405 = vsel %vm510, %v4375, 0
    %v4408 = vsel %vm510, %v4376, 0
    %v4411 = vsel %vm510, %v4391, 0
    %v4414 = vsel %vm510, %v4393, 0
    %v4417 = vsel %vm510, %v4395, 0
    %v4420 = vsel %vm510, %v4397, 0
    %4422 = vmatprep.subr.bf16.mxu0 0
    %4423 = vmatpush1.bf16.xpose.msra.mxu0 %v4411
    %4424 = vmatprep.subr.bf16.mxu0 0
    %4425 = vmatpush1.bf16.xpose.msra.mxu0 %v4414
    %4426 = vmatprep.subr.bf16.mxu0 0
    %4427 = vmatpush1.bf16.xpose.msra.mxu0 %v4417
    %4428 = vmatprep.subr.bf16.mxu0 0
    %4429 = vmatpush1.bf16.xpose.msra.mxu0 %v4420
    %4430 = vmatprep.subr.bf16.mxu0 0
    %4431 = vmatpush1.bf16.xpose.msra.mxu0 0
    %4432 = vmatprep.subr.bf16.mxu0 0
    %4433 = vmatpush1.bf16.xpose.msra.mxu0 0
    %4434 = vmatprep.subr.bf16.mxu0 0
    %4435 = vmatpush1.bf16.xpose.msra.mxu0 0
    %4436 = vmatprep.subr.bf16.mxu0 0
    %4437 = vmatpush1.bf16.xpose.msra.mxu0 0
    %4438 = vmatprep.subr.bf16.mxu0 0
    %4439 = vmatpush1.bf16.xpose.msra.mxu0 0
    %4440 = vmatprep.subr.bf16.mxu0 0
    %4441 = vmatpush1.bf16.xpose.msra.mxu0 0
    %4442 = vmatprep.subr.bf16.mxu0 0
    %4443 = vmatpush1.bf16.xpose.msra.mxu0 0
    %4444 = vmatprep.subr.bf16.mxu0 0
    %4445 = vmatpush1.bf16.xpose.msra.mxu0 0
    %4446 = vmatprep.subr.bf16.mxu0 0
    %4447 = vmatpush1.bf16.xpose.msra.mxu0 0
    %4448 = vmatprep.subr.bf16.mxu0 0
    %4449 = vmatpush1.bf16.xpose.msra.mxu0 0
    %4450 = vmatprep.subr.bf16.mxu0 0
    %4451 = vmatpush1.bf16.xpose.msra.mxu0 0
    %4452 = vmatprep.subr.bf16.mxu0 0
    %4453 = vmatpush1.bf16.xpose.msra.mxu0 0
    %4454 = vmatprep.mubr.bf16.mxu0 0
    %4455 = vmatmul.mubr.bf16.gmra.mrb[0].mxu0 %v4399
    %v4456 = vpop.f32.mrb[0].mxu0
    %v4457 = vadd.f32 %v4378, %v4456
    %v4458 = vpop.f32.mrb[0].mxu0
    %v4459 = vpop.f32.mrb[0].mxu0
    %v4460 = vadd.f32 %v4379, %v4459
    %v4461 = vpop.f32.mrb[0].mxu0
    %4462 = vmatprep.mubr.bf16.mxu0 0
    %4463 = vmatmul.mubr.bf16.gmra.mrb[0].mxu0 %v4402
    %v4464 = vpop.f32.mrb[0].mxu0
    %v4465 = vadd.f32 %v4380, %v4464
    %v4466 = vpop.f32.mrb[0].mxu0
    %v4467 = vpop.f32.mrb[0].mxu0
    %v4468 = vadd.f32 %v4381, %v4467
    %v4469 = vpop.f32.mrb[0].mxu0
    %4470 = vmatprep.mubr.bf16.mxu0 0
    %4471 = vmatmul.mubr.bf16.gmra.mrb[0].mxu0 %v4405
    %v4472 = vpop.f32.mrb[0].mxu0
    %v4473 = vadd.f32 %v4382, %v4472
    %v4474 = vpop.f32.mrb[0].mxu0
    %v4475 = vpop.f32.mrb[0].mxu0
    %v4476 = vadd.f32 %v4383, %v4475
    %v4477 = vpop.f32.mrb[0].mxu0
    %4478 = vmatprep.mubr.bf16.mxu0 0
    %4479 = vmatmul.mubr.bf16.gmra.mrb[0].mxu0 %v4408
    %v4480 = vpop.f32.mrb[0].mxu0
    %v4481 = vadd.f32 %v4384, %v4480
    %v4482 = vpop.f32.mrb[0].mxu0
    %v4483 = vpop.f32.mrb[0].mxu0
    %v4484 = vadd.f32 %v4385, %v4483
    %v4485 = vpop.f32.mrb[0].mxu0
    %4486 = vdwg.mxu0
    %v4487 = vsel %vm600, %v4457, -inf
    %4488 = vmax.xlane.f32.xlu0 %v4487
    %v4489 = vpop.xlane.xlu0 %4488
    %v4490 = vsel %vm600, %v4460, -inf
    %4491 = vmax.xlane.f32.xlu0 %v4490
    %v4492 = vpop.xlane.xlu0 %4491
    %v4493 = vsel %vm600, %v4465, -inf
    %4494 = vmax.xlane.f32.xlu0 %v4493
    %v4495 = vpop.xlane.xlu0 %4494
    %v4496 = vsel %vm600, %v4468, -inf
    %4497 = vmax.xlane.f32.xlu0 %v4496
    %v4498 = vpop.xlane.xlu0 %4497
    %v4499 = vsel %vm600, %v4473, -inf
    %4500 = vmax.xlane.f32.xlu0 %v4499
    %v4501 = vpop.xlane.xlu0 %4500
    %v4502 = vsel %vm600, %v4476, -inf
    %4503 = vmax.xlane.f32.xlu0 %v4502
    %v4504 = vpop.xlane.xlu0 %4503
    %v4505 = vsel %vm600, %v4481, -inf
    %4506 = vmax.xlane.f32.xlu0 %v4505
    %v4507 = vpop.xlane.xlu0 %4506
    %v4508 = vsel %vm600, %v4484, -inf
    %4509 = vmax.xlane.f32.xlu0 %v4508
    %v4510 = vpop.xlane.xlu0 %4509
    %v4511 = vsub.f32 %v4457, %v4489
    %v4512 = vsub.f32 %v4460, %v4492
    %v4513 = vsub.f32 %v4465, %v4495
    %v4514 = vsub.f32 %v4468, %v4498
    %v4515 = vsub.f32 %v4473, %v4501
    %v4516 = vsub.f32 %v4476, %v4504
    %v4517 = vsub.f32 %v4481, %v4507
    %v4518 = vsub.f32 %v4484, %v4510
    %v4519 = vmul.f32 %v4511, 1.442695
    %v4520 = vpow.pop %v4519
    %v4521 = vmul.f32 %v4512, 1.442695
    %v4522 = vpow.pop %v4521
    %v4523 = vmul.f32 %v4513, 1.442695
    %v4524 = vpow.pop %v4523
    %v4525 = vmul.f32 %v4514, 1.442695
    %v4526 = vpow.pop %v4525
    %v4527 = vmul.f32 %v4515, 1.442695
    %v4528 = vpow.pop %v4527
    %v4529 = vmul.f32 %v4516, 1.442695
    %v4530 = vpow.pop %v4529
    %v4531 = vmul.f32 %v4517, 1.442695
    %v4532 = vpow.pop %v4531
    %v4533 = vmul.f32 %v4518, 1.442695
    %v4534 = vpow.pop %v4533
    %v4535 = vsel %vm600, %v4520, 0.0
    %4536 = vadd.xlane.f32.xlu0 %v4535
    %v4537 = vpop.xlane.xlu0 %4536
    %v4538 = vsel %vm600, %v4522, 0.0
    %4539 = vadd.xlane.f32.xlu0 %v4538
    %v4540 = vpop.xlane.xlu0 %4539
    %v4541 = vsel %vm600, %v4524, 0.0
    %4542 = vadd.xlane.f32.xlu0 %v4541
    %v4543 = vpop.xlane.xlu0 %4542
    %v4544 = vsel %vm600, %v4526, 0.0
    %4545 = vadd.xlane.f32.xlu0 %v4544
    %v4546 = vpop.xlane.xlu0 %4545
    %v4547 = vsel %vm600, %v4528, 0.0
    %4548 = vadd.xlane.f32.xlu0 %v4547
    %v4549 = vpop.xlane.xlu0 %4548
    %v4550 = vsel %vm600, %v4530, 0.0
    %4551 = vadd.xlane.f32.xlu0 %v4550
    %v4552 = vpop.xlane.xlu0 %4551
    %v4553 = vsel %vm600, %v4532, 0.0
    %4554 = vadd.xlane.f32.xlu0 %v4553
    %v4555 = vpop.xlane.xlu0 %4554
    %v4556 = vsel %vm600, %v4534, 0.0
    %4557 = vadd.xlane.f32.xlu0 %v4556
    %v4558 = vpop.xlane.xlu0 %4557
    %v4559 = vrcp.pop %v4537
    %v4560 = vrcp.pop %v4540
    %v4561 = vrcp.pop %v4543
    %v4562 = vrcp.pop %v4546
    %v4563 = vrcp.pop %v4549
    %v4564 = vrcp.pop %v4552
    %v4565 = vrcp.pop %v4555
    %v4566 = vrcp.pop %v4558
    %v4567 = vmul.f32 %v4520, %v4559
    %v4568 = vmul.f32 %v4522, %v4560
    %v4569 = vmul.f32 %v4524, %v4561
    %v4570 = vmul.f32 %v4526, %v4562
    %v4571 = vmul.f32 %v4528, %v4563
    %v4572 = vmul.f32 %v4530, %v4564
    %v4573 = vmul.f32 %v4532, %v4565
    %v4574 = vmul.f32 %v4534, %v4566
    %v4575 = vpack.c.bf16 %v4568, %v4567
    %v4576 = vpack.c.bf16 %v4570, %v4569
    %v4577 = vpack.c.bf16 %v4572, %v4571
    %v4578 = vpack.c.bf16 %v4574, %v4573
    %4579 = vrot.lane.b32.xlu0 %v4373, 64
    %v4580 = vpop.permute.xlu0 %4579
    %4581 = vrot.lane.b32.xlu0 %v4374, 64
    %v4582 = vpop.permute.xlu0 %4581
    %4583 = vrot.lane.b32.xlu0 %v4375, 64
    %v4584 = vpop.permute.xlu0 %4583
    %4585 = vrot.lane.b32.xlu0 %v4376, 64
    %v4586 = vpop.permute.xlu0 %4585
    %v4592 = vsel %vm600, %v4575, 0
    %v4595 = vsel %vm600, %v4576, 0
    %v4598 = vsel %vm600, %v4577, 0
    %v4601 = vsel %vm600, %v4578, 0
    %4603 = vmatprep.subr.bf16.mxu0 0
    %4604 = vmatpush1.bf16.msra.mxu0 %v4580
    %4605 = vmatprep.subr.bf16.mxu0 0
    %4606 = vmatpush1.bf16.msra.mxu0 %v4582
    %4607 = vmatprep.subr.bf16.mxu0 0
    %4608 = vmatpush1.bf16.msra.mxu0 %v4584
    %4609 = vmatprep.subr.bf16.mxu0 0
    %4610 = vmatpush1.bf16.msra.mxu0 %v4586
    %4611 = vmatprep.subr.bf16.mxu0 0
    %4612 = vmatpush1.bf16.msra.mxu0 0
    %4613 = vmatprep.subr.bf16.mxu0 0
    %4614 = vmatpush1.bf16.msra.mxu0 0
    %4615 = vmatprep.subr.bf16.mxu0 0
    %4616 = vmatpush1.bf16.msra.mxu0 0
    %4617 = vmatprep.subr.bf16.mxu0 0
    %4618 = vmatpush1.bf16.msra.mxu0 0
    %4619 = vmatprep.subr.bf16.mxu0 0
    %4620 = vmatpush1.bf16.msra.mxu0 0
    %4621 = vmatprep.subr.bf16.mxu0 0
    %4622 = vmatpush1.bf16.msra.mxu0 0
    %4623 = vmatprep.subr.bf16.mxu0 0
    %4624 = vmatpush1.bf16.msra.mxu0 0
    %4625 = vmatprep.subr.bf16.mxu0 0
    %4626 = vmatpush1.bf16.msra.mxu0 0
    %4627 = vmatprep.subr.bf16.mxu0 0
    %4628 = vmatpush1.bf16.msra.mxu0 0
    %4629 = vmatprep.subr.bf16.mxu0 0
    %4630 = vmatpush1.bf16.msra.mxu0 0
    %4631 = vmatprep.subr.bf16.mxu0 0
    %4632 = vmatpush1.bf16.msra.mxu0 0
    %4633 = vmatprep.subr.bf16.mxu0 0
    %4634 = vmatpush1.bf16.msra.mxu0 0
    %4635 = vmatprep.mubr.bf16.mxu0 0
    %4636 = vmatmul.mubr.bf16.gmra.mrb[0].mxu0 %v4592
    %v4637 = vpop.f32.mrb[0].mxu0
    %v4638 = vadd.f32 0.0, %v4637
    %v4639 = vpop.f32.mrb[0].mxu0
    %v4640 = vpop.f32.mrb[0].mxu0
    %v4641 = vadd.f32 0.0, %v4640
    %v4642 = vpop.f32.mrb[0].mxu0
    %4643 = vmatprep.mubr.bf16.mxu0 0
    %4644 = vmatmul.mubr.bf16.gmra.mrb[0].mxu0 %v4595
    %v4645 = vpop.f32.mrb[0].mxu0
    %v4646 = vadd.f32 0.0, %v4645
    %v4647 = vpop.f32.mrb[0].mxu0
    %v4648 = vpop.f32.mrb[0].mxu0
    %v4649 = vadd.f32 0.0, %v4648
    %v4650 = vpop.f32.mrb[0].mxu0
    %4651 = vmatprep.mubr.bf16.mxu0 0
    %4652 = vmatmul.mubr.bf16.gmra.mrb[0].mxu0 %v4598
    %v4653 = vpop.f32.mrb[0].mxu0
    %v4654 = vadd.f32 0.0, %v4653
    %v4655 = vpop.f32.mrb[0].mxu0
    %v4656 = vpop.f32.mrb[0].mxu0
    %v4657 = vadd.f32 0.0, %v4656
    %v4658 = vpop.f32.mrb[0].mxu0
    %4659 = vmatprep.mubr.bf16.mxu0 0
    %4660 = vmatmul.mubr.bf16.gmra.mrb[0].mxu0 %v4601
    %v4661 = vpop.f32.mrb[0].mxu0
    %v4662 = vadd.f32 0.0, %v4661
    %v4663 = vpop.f32.mrb[0].mxu0
    %v4664 = vpop.f32.mrb[0].mxu0
    %v4665 = vadd.f32 0.0, %v4664
    %v4666 = vpop.f32.mrb[0].mxu0
    %4667 = vdwg.mxu0
    %s4668 = scalar_lea.vmem [#allocation2], 320
    %v4669 = vld [vmem:[%s4668] sm:$0xff]
    %v4670 = vld [vmem:[%s4668 + $0x8] sm:$0xff]
    %v4671 = vld [vmem:[%s4668 + $0x10] sm:$0xff]
    %v4672 = vld [vmem:[%s4668 + $0x18] sm:$0xff]
    %v4673 = vld [vmem:[%s4668 + $0x20] sm:$0xff]
    %v4674 = vld [vmem:[%s4668 + $0x28] sm:$0xff]
    %v4675 = vld [vmem:[%s4668 + $0x30] sm:$0xff]
    %v4676 = vld [vmem:[%s4668 + $0x38] sm:$0xff]
    %4677 = vrot.lane.b32.xlu0 %v4373, 120
    %v4678 = vpop.permute.xlu0 %4677
    %4679 = vrot.lane.b32.xlu0 %v4374, 120
    %v4680 = vpop.permute.xlu0 %4679
    %4681 = vrot.lane.b32.xlu0 %v4375, 120
    %v4682 = vpop.permute.xlu0 %4681
    %4683 = vrot.lane.b32.xlu0 %v4376, 120
    %v4684 = vpop.permute.xlu0 %4683
    %4685 = vrot.lane.b32.xlu0 %v4373, 88
    %v4686 = vpop.permute.xlu0 %4685
    %4687 = vrot.lane.b32.xlu0 %v4374, 88
    %v4688 = vpop.permute.xlu0 %4687
    %4689 = vrot.lane.b32.xlu0 %v4375, 88
    %v4690 = vpop.permute.xlu0 %4689
    %4691 = vrot.lane.b32.xlu0 %v4376, 88
    %v4692 = vpop.permute.xlu0 %4691
    %v4694 = vsel %vm510, %v4678, 0
    %v4697 = vsel %vm510, %v4680, 0
    %v4700 = vsel %vm510, %v4682, 0
    %v4703 = vsel %vm510, %v4684, 0
    %v4706 = vsel %vm510, %v4686, 0
    %v4709 = vsel %vm510, %v4688, 0
    %v4712 = vsel %vm510, %v4690, 0
    %v4715 = vsel %vm510, %v4692, 0
    %4717 = vmatprep.subr.bf16.mxu0 0
    %4718 = vmatpush1.bf16.xpose.msra.mxu0 %v4706
    %4719 = vmatprep.subr.bf16.mxu0 0
    %4720 = vmatpush1.bf16.xpose.msra.mxu0 %v4709
    %4721 = vmatprep.subr.bf16.mxu0 0
    %4722 = vmatpush1.bf16.xpose.msra.mxu0 %v4712
    %4723 = vmatprep.subr.bf16.mxu0 0
    %4724 = vmatpush1.bf16.xpose.msra.mxu0 %v4715
    %4725 = vmatprep.subr.bf16.mxu0 0
    %4726 = vmatpush1.bf16.xpose.msra.mxu0 0
    %4727 = vmatprep.subr.bf16.mxu0 0
    %4728 = vmatpush1.bf16.xpose.msra.mxu0 0
    %4729 = vmatprep.subr.bf16.mxu0 0
    %4730 = vmatpush1.bf16.xpose.msra.mxu0 0
    %4731 = vmatprep.subr.bf16.mxu0 0
    %4732 = vmatpush1.bf16.xpose.msra.mxu0 0
    %4733 = vmatprep.subr.bf16.mxu0 0
    %4734 = vmatpush1.bf16.xpose.msra.mxu0 0
    %4735 = vmatprep.subr.bf16.mxu0 0
    %4736 = vmatpush1.bf16.xpose.msra.mxu0 0
    %4737 = vmatprep.subr.bf16.mxu0 0
    %4738 = vmatpush1.bf16.xpose.msra.mxu0 0
    %4739 = vmatprep.subr.bf16.mxu0 0
    %4740 = vmatpush1.bf16.xpose.msra.mxu0 0
    %4741 = vmatprep.subr.bf16.mxu0 0
    %4742 = vmatpush1.bf16.xpose.msra.mxu0 0
    %4743 = vmatprep.subr.bf16.mxu0 0
    %4744 = vmatpush1.bf16.xpose.msra.mxu0 0
    %4745 = vmatprep.subr.bf16.mxu0 0
    %4746 = vmatpush1.bf16.xpose.msra.mxu0 0
    %4747 = vmatprep.subr.bf16.mxu0 0
    %4748 = vmatpush1.bf16.xpose.msra.mxu0 0
    %4749 = vmatprep.mubr.bf16.mxu0 0
    %4750 = vmatmul.mubr.bf16.gmra.mrb[0].mxu0 %v4694
    %v4751 = vpop.f32.mrb[0].mxu0
    %v4752 = vadd.f32 %v4669, %v4751
    %v4753 = vpop.f32.mrb[0].mxu0
    %v4754 = vpop.f32.mrb[0].mxu0
    %v4755 = vadd.f32 %v4670, %v4754
    %v4756 = vpop.f32.mrb[0].mxu0
    %4757 = vmatprep.mubr.bf16.mxu0 0
    %4758 = vmatmul.mubr.bf16.gmra.mrb[0].mxu0 %v4697
    %v4759 = vpop.f32.mrb[0].mxu0
    %v4760 = vadd.f32 %v4671, %v4759
    %v4761 = vpop.f32.mrb[0].mxu0
    %v4762 = vpop.f32.mrb[0].mxu0
    %v4763 = vadd.f32 %v4672, %v4762
    %v4764 = vpop.f32.mrb[0].mxu0
    %4765 = vmatprep.mubr.bf16.mxu0 0
    %4766 = vmatmul.mubr.bf16.gmra.mrb[0].mxu0 %v4700
    %v4767 = vpop.f32.mrb[0].mxu0
    %v4768 = vadd.f32 %v4673, %v4767
    %v4769 = vpop.f32.mrb[0].mxu0
    %v4770 = vpop.f32.mrb[0].mxu0
    %v4771 = vadd.f32 %v4674, %v4770
    %v4772 = vpop.f32.mrb[0].mxu0
    %4773 = vmatprep.mubr.bf16.mxu0 0
    %4774 = vmatmul.mubr.bf16.gmra.mrb[0].mxu0 %v4703
    %v4775 = vpop.f32.mrb[0].mxu0
    %v4776 = vadd.f32 %v4675, %v4775
    %v4777 = vpop.f32.mrb[0].mxu0
    %v4778 = vpop.f32.mrb[0].mxu0
    %v4779 = vadd.f32 %v4676, %v4778
    %v4780 = vpop.f32.mrb[0].mxu0
    %4781 = vdwg.mxu0
    %v4782 = vsel %vm600, %v4752, -inf
    %4783 = vmax.xlane.f32.xlu0 %v4782
    %v4784 = vpop.xlane.xlu0 %4783
    %v4785 = vsel %vm600, %v4755, -inf
    %4786 = vmax.xlane.f32.xlu0 %v4785
    %v4787 = vpop.xlane.xlu0 %4786
    %v4788 = vsel %vm600, %v4760, -inf
    %4789 = vmax.xlane.f32.xlu0 %v4788
    %v4790 = vpop.xlane.xlu0 %4789
    %v4791 = vsel %vm600, %v4763, -inf
    %4792 = vmax.xlane.f32.xlu0 %v4791
    %v4793 = vpop.xlane.xlu0 %4792
    %v4794 = vsel %vm600, %v4768, -inf
    %4795 = vmax.xlane.f32.xlu0 %v4794
    %v4796 = vpop.xlane.xlu0 %4795
    %v4797 = vsel %vm600, %v4771, -inf
    %4798 = vmax.xlane.f32.xlu0 %v4797
    %v4799 = vpop.xlane.xlu0 %4798
    %v4800 = vsel %vm600, %v4776, -inf
    %4801 = vmax.xlane.f32.xlu0 %v4800
    %v4802 = vpop.xlane.xlu0 %4801
    %v4803 = vsel %vm600, %v4779, -inf
    %4804 = vmax.xlane.f32.xlu0 %v4803
    %v4805 = vpop.xlane.xlu0 %4804
    %v4806 = vsub.f32 %v4752, %v4784
    %v4807 = vsub.f32 %v4755, %v4787
    %v4808 = vsub.f32 %v4760, %v4790
    %v4809 = vsub.f32 %v4763, %v4793
    %v4810 = vsub.f32 %v4768, %v4796
    %v4811 = vsub.f32 %v4771, %v4799
    %v4812 = vsub.f32 %v4776, %v4802
    %v4813 = vsub.f32 %v4779, %v4805
    %v4814 = vmul.f32 %v4806, 1.442695
    %v4815 = vpow.pop %v4814
    %v4816 = vmul.f32 %v4807, 1.442695
    %v4817 = vpow.pop %v4816
    %v4818 = vmul.f32 %v4808, 1.442695
    %v4819 = vpow.pop %v4818
    %v4820 = vmul.f32 %v4809, 1.442695
    %v4821 = vpow.pop %v4820
    %v4822 = vmul.f32 %v4810, 1.442695
    %v4823 = vpow.pop %v4822
    %v4824 = vmul.f32 %v4811, 1.442695
    %v4825 = vpow.pop %v4824
    %v4826 = vmul.f32 %v4812, 1.442695
    %v4827 = vpow.pop %v4826
    %v4828 = vmul.f32 %v4813, 1.442695
    %v4829 = vpow.pop %v4828
    %v4830 = vsel %vm600, %v4815, 0.0
    %4831 = vadd.xlane.f32.xlu0 %v4830
    %v4832 = vpop.xlane.xlu0 %4831
    %v4833 = vsel %vm600, %v4817, 0.0
    %4834 = vadd.xlane.f32.xlu0 %v4833
    %v4835 = vpop.xlane.xlu0 %4834
    %v4836 = vsel %vm600, %v4819, 0.0
    %4837 = vadd.xlane.f32.xlu0 %v4836
    %v4838 = vpop.xlane.xlu0 %4837
    %v4839 = vsel %vm600, %v4821, 0.0
    %4840 = vadd.xlane.f32.xlu0 %v4839
    %v4841 = vpop.xlane.xlu0 %4840
    %v4842 = vsel %vm600, %v4823, 0.0
    %4843 = vadd.xlane.f32.xlu0 %v4842
    %v4844 = vpop.xlane.xlu0 %4843
    %v4845 = vsel %vm600, %v4825, 0.0
    %4846 = vadd.xlane.f32.xlu0 %v4845
    %v4847 = vpop.xlane.xlu0 %4846
    %v4848 = vsel %vm600, %v4827, 0.0
    %4849 = vadd.xlane.f32.xlu0 %v4848
    %v4850 = vpop.xlane.xlu0 %4849
    %v4851 = vsel %vm600, %v4829, 0.0
    %4852 = vadd.xlane.f32.xlu0 %v4851
    %v4853 = vpop.xlane.xlu0 %4852
    %v4854 = vrcp.pop %v4832
    %v4855 = vrcp.pop %v4835
    %v4856 = vrcp.pop %v4838
    %v4857 = vrcp.pop %v4841
    %v4858 = vrcp.pop %v4844
    %v4859 = vrcp.pop %v4847
    %v4860 = vrcp.pop %v4850
    %v4861 = vrcp.pop %v4853
    %v4862 = vmul.f32 %v4815, %v4854
    %v4863 = vmul.f32 %v4817, %v4855
    %v4864 = vmul.f32 %v4819, %v4856
    %v4865 = vmul.f32 %v4821, %v4857
    %v4866 = vmul.f32 %v4823, %v4858
    %v4867 = vmul.f32 %v4825, %v4859
    %v4868 = vmul.f32 %v4827, %v4860
    %v4869 = vmul.f32 %v4829, %v4861
    %v4870 = vpack.c.bf16 %v4863, %v4862
    %v4871 = vpack.c.bf16 %v4865, %v4864
    %v4872 = vpack.c.bf16 %v4867, %v4866
    %v4873 = vpack.c.bf16 %v4869, %v4868
    %4874 = vrot.lane.b32.xlu0 %v4373, 56
    %v4875 = vpop.permute.xlu0 %4874
    %4876 = vrot.lane.b32.xlu0 %v4374, 56
    %v4877 = vpop.permute.xlu0 %4876
    %4878 = vrot.lane.b32.xlu0 %v4375, 56
    %v4879 = vpop.permute.xlu0 %4878
    %4880 = vrot.lane.b32.xlu0 %v4376, 56
    %v4881 = vpop.permute.xlu0 %4880
    %v4887 = vsel %vm600, %v4870, 0
    %v4890 = vsel %vm600, %v4871, 0
    %v4893 = vsel %vm600, %v4872, 0
    %v4896 = vsel %vm600, %v4873, 0
    %4898 = vmatprep.subr.bf16.mxu0 0
    %4899 = vmatpush1.bf16.msra.mxu0 %v4875
    %4900 = vmatprep.subr.bf16.mxu0 0
    %4901 = vmatpush1.bf16.msra.mxu0 %v4877
    %4902 = vmatprep.subr.bf16.mxu0 0
    %4903 = vmatpush1.bf16.msra.mxu0 %v4879
    %4904 = vmatprep.subr.bf16.mxu0 0
    %4905 = vmatpush1.bf16.msra.mxu0 %v4881
    %4906 = vmatprep.subr.bf16.mxu0 0
    %4907 = vmatpush1.bf16.msra.mxu0 0
    %4908 = vmatprep.subr.bf16.mxu0 0
    %4909 = vmatpush1.bf16.msra.mxu0 0
    %4910 = vmatprep.subr.bf16.mxu0 0
    %4911 = vmatpush1.bf16.msra.mxu0 0
    %4912 = vmatprep.subr.bf16.mxu0 0
    %4913 = vmatpush1.bf16.msra.mxu0 0
    %4914 = vmatprep.subr.bf16.mxu0 0
    %4915 = vmatpush1.bf16.msra.mxu0 0
    %4916 = vmatprep.subr.bf16.mxu0 0
    %4917 = vmatpush1.bf16.msra.mxu0 0
    %4918 = vmatprep.subr.bf16.mxu0 0
    %4919 = vmatpush1.bf16.msra.mxu0 0
    %4920 = vmatprep.subr.bf16.mxu0 0
    %4921 = vmatpush1.bf16.msra.mxu0 0
    %4922 = vmatprep.subr.bf16.mxu0 0
    %4923 = vmatpush1.bf16.msra.mxu0 0
    %4924 = vmatprep.subr.bf16.mxu0 0
    %4925 = vmatpush1.bf16.msra.mxu0 0
    %4926 = vmatprep.subr.bf16.mxu0 0
    %4927 = vmatpush1.bf16.msra.mxu0 0
    %4928 = vmatprep.subr.bf16.mxu0 0
    %4929 = vmatpush1.bf16.msra.mxu0 0
    %4930 = vmatprep.mubr.bf16.mxu0 0
    %4931 = vmatmul.mubr.bf16.gmra.mrb[0].mxu0 %v4887
    %v4932 = vpop.f32.mrb[0].mxu0
    %v4933 = vadd.f32 0.0, %v4932
    %v4934 = vpop.f32.mrb[0].mxu0
    %v4935 = vpop.f32.mrb[0].mxu0
    %v4936 = vadd.f32 0.0, %v4935
    %v4937 = vpop.f32.mrb[0].mxu0
    %4938 = vmatprep.mubr.bf16.mxu0 0
    %4939 = vmatmul.mubr.bf16.gmra.mrb[0].mxu0 %v4890
    %v4940 = vpop.f32.mrb[0].mxu0
    %v4941 = vadd.f32 0.0, %v4940
    %v4942 = vpop.f32.mrb[0].mxu0
    %v4943 = vpop.f32.mrb[0].mxu0
    %v4944 = vadd.f32 0.0, %v4943
    %v4945 = vpop.f32.mrb[0].mxu0
    %4946 = vmatprep.mubr.bf16.mxu0 0
    %4947 = vmatmul.mubr.bf16.gmra.mrb[0].mxu0 %v4893
    %v4948 = vpop.f32.mrb[0].mxu0
    %v4949 = vadd.f32 0.0, %v4948
    %v4950 = vpop.f32.mrb[0].mxu0
    %v4951 = vpop.f32.mrb[0].mxu0
    %v4952 = vadd.f32 0.0, %v4951
    %v4953 = vpop.f32.mrb[0].mxu0
    %4954 = vmatprep.mubr.bf16.mxu0 0
    %4955 = vmatmul.mubr.bf16.gmra.mrb[0].mxu0 %v4896
    %v4956 = vpop.f32.mrb[0].mxu0
    %v4957 = vadd.f32 0.0, %v4956
    %v4958 = vpop.f32.mrb[0].mxu0
    %v4959 = vpop.f32.mrb[0].mxu0
    %v4960 = vadd.f32 0.0, %v4959
    %v4961 = vpop.f32.mrb[0].mxu0
    %4962 = vdwg.mxu0
    %s4963 = scalar_lea.vmem [#allocation2], 384
    %v4964 = vld [vmem:[%s4963] sm:$0xff]
    %v4965 = vld [vmem:[%s4963 + $0x8] sm:$0xff]
    %v4966 = vld [vmem:[%s4963 + $0x10] sm:$0xff]
    %v4967 = vld [vmem:[%s4963 + $0x18] sm:$0xff]
    %v4968 = vld [vmem:[%s4963 + $0x20] sm:$0xff]
    %v4969 = vld [vmem:[%s4963 + $0x28] sm:$0xff]
    %v4970 = vld [vmem:[%s4963 + $0x30] sm:$0xff]
    %v4971 = vld [vmem:[%s4963 + $0x38] sm:$0xff]
    %4972 = vrot.lane.b32.xlu0 %v4373, 112
    %v4973 = vpop.permute.xlu0 %4972
    %4974 = vrot.lane.b32.xlu0 %v4374, 112
    %v4975 = vpop.permute.xlu0 %4974
    %4976 = vrot.lane.b32.xlu0 %v4375, 112
    %v4977 = vpop.permute.xlu0 %4976
    %4978 = vrot.lane.b32.xlu0 %v4376, 112
    %v4979 = vpop.permute.xlu0 %4978
    %4980 = vrot.lane.b32.xlu0 %v4373, 80
    %v4981 = vpop.permute.xlu0 %4980
    %4982 = vrot.lane.b32.xlu0 %v4374, 80
    %v4983 = vpop.permute.xlu0 %4982
    %4984 = vrot.lane.b32.xlu0 %v4375, 80
    %v4985 = vpop.permute.xlu0 %4984
    %4986 = vrot.lane.b32.xlu0 %v4376, 80
    %v4987 = vpop.permute.xlu0 %4986
    %v4989 = vsel %vm510, %v4973, 0
    %v4992 = vsel %vm510, %v4975, 0
    %v4995 = vsel %vm510, %v4977, 0
    %v4998 = vsel %vm510, %v4979, 0
    %v5001 = vsel %vm510, %v4981, 0
    %v5004 = vsel %vm510, %v4983, 0
    %v5007 = vsel %vm510, %v4985, 0
    %v5010 = vsel %vm510, %v4987, 0
    %5012 = vmatprep.subr.bf16.mxu0 0
    %5013 = vmatpush1.bf16.xpose.msra.mxu0 %v5001
    %5014 = vmatprep.subr.bf16.mxu0 0
    %5015 = vmatpush1.bf16.xpose.msra.mxu0 %v5004
    %5016 = vmatprep.subr.bf16.mxu0 0
    %5017 = vmatpush1.bf16.xpose.msra.mxu0 %v5007
    %5018 = vmatprep.subr.bf16.mxu0 0
    %5019 = vmatpush1.bf16.xpose.msra.mxu0 %v5010
    %5020 = vmatprep.subr.bf16.mxu0 0
    %5021 = vmatpush1.bf16.xpose.msra.mxu0 0
    %5022 = vmatprep.subr.bf16.mxu0 0
    %5023 = vmatpush1.bf16.xpose.msra.mxu0 0
    %5024 = vmatprep.subr.bf16.mxu0 0
    %5025 = vmatpush1.bf16.xpose.msra.mxu0 0
    %5026 = vmatprep.subr.bf16.mxu0 0
    %5027 = vmatpush1.bf16.xpose.msra.mxu0 0
    %5028 = vmatprep.subr.bf16.mxu0 0
    %5029 = vmatpush1.bf16.xpose.msra.mxu0 0
    %5030 = vmatprep.subr.bf16.mxu0 0
    %5031 = vmatpush1.bf16.xpose.msra.mxu0 0
    %5032 = vmatprep.subr.bf16.mxu0 0
    %5033 = vmatpush1.bf16.xpose.msra.mxu0 0
    %5034 = vmatprep.subr.bf16.mxu0 0
    %5035 = vmatpush1.bf16.xpose.msra.mxu0 0
    %5036 = vmatprep.subr.bf16.mxu0 0
    %5037 = vmatpush1.bf16.xpose.msra.mxu0 0
    %5038 = vmatprep.subr.bf16.mxu0 0
    %5039 = vmatpush1.bf16.xpose.msra.mxu0 0
    %5040 = vmatprep.subr.bf16.mxu0 0
    %5041 = vmatpush1.bf16.xpose.msra.mxu0 0
    %5042 = vmatprep.subr.bf16.mxu0 0
    %5043 = vmatpush1.bf16.xpose.msra.mxu0 0
    %5044 = vmatprep.mubr.bf16.mxu0 0
    %5045 = vmatmul.mubr.bf16.gmra.mrb[0].mxu0 %v4989
    %v5046 = vpop.f32.mrb[0].mxu0
    %v5047 = vadd.f32 %v4964, %v5046
    %v5048 = vpop.f32.mrb[0].mxu0
    %v5049 = vpop.f32.mrb[0].mxu0
    %v5050 = vadd.f32 %v4965, %v5049
    %v5051 = vpop.f32.mrb[0].mxu0
    %5052 = vmatprep.mubr.bf16.mxu0 0
    %5053 = vmatmul.mubr.bf16.gmra.mrb[0].mxu0 %v4992
    %v5054 = vpop.f32.mrb[0].mxu0
    %v5055 = vadd.f32 %v4966, %v5054
    %v5056 = vpop.f32.mrb[0].mxu0
    %v5057 = vpop.f32.mrb[0].mxu0
    %v5058 = vadd.f32 %v4967, %v5057
    %v5059 = vpop.f32.mrb[0].mxu0
    %5060 = vmatprep.mubr.bf16.mxu0 0
    %5061 = vmatmul.mubr.bf16.gmra.mrb[0].mxu0 %v4995
    %v5062 = vpop.f32.mrb[0].mxu0
    %v5063 = vadd.f32 %v4968, %v5062
    %v5064 = vpop.f32.mrb[0].mxu0
    %v5065 = vpop.f32.mrb[0].mxu0
    %v5066 = vadd.f32 %v4969, %v5065
    %v5067 = vpop.f32.mrb[0].mxu0
    %5068 = vmatprep.mubr.bf16.mxu0 0
    %5069 = vmatmul.mubr.bf16.gmra.mrb[0].mxu0 %v4998
    %v5070 = vpop.f32.mrb[0].mxu0
    %v5071 = vadd.f32 %v4970, %v5070
    %v5072 = vpop.f32.mrb[0].mxu0
    %v5073 = vpop.f32.mrb[0].mxu0
    %v5074 = vadd.f32 %v4971, %v5073
    %v5075 = vpop.f32.mrb[0].mxu0
    %5076 = vdwg.mxu0
    %v5077 = vsel %vm600, %v5047, -inf
    %5078 = vmax.xlane.f32.xlu0 %v5077
    %v5079 = vpop.xlane.xlu0 %5078
    %v5080 = vsel %vm600, %v5050, -inf
    %5081 = vmax.xlane.f32.xlu0 %v5080
    %v5082 = vpop.xlane.xlu0 %5081
    %v5083 = vsel %vm600, %v5055, -inf
    %5084 = vmax.xlane.f32.xlu0 %v5083
    %v5085 = vpop.xlane.xlu0 %5084
    %v5086 = vsel %vm600, %v5058, -inf
    %5087 = vmax.xlane.f32.xlu0 %v5086
    %v5088 = vpop.xlane.xlu0 %5087
    %v5089 = vsel %vm600, %v5063, -inf
    %5090 = vmax.xlane.f32.xlu0 %v5089
    %v5091 = vpop.xlane.xlu0 %5090
    %v5092 = vsel %vm600, %v5066, -inf
    %5093 = vmax.xlane.f32.xlu0 %v5092
    %v5094 = vpop.xlane.xlu0 %5093
    %v5095 = vsel %vm600, %v5071, -inf
    %5096 = vmax.xlane.f32.xlu0 %v5095
    %v5097 = vpop.xlane.xlu0 %5096
    %v5098 = vsel %vm600, %v5074, -inf
    %5099 = vmax.xlane.f32.xlu0 %v5098
    %v5100 = vpop.xlane.xlu0 %5099
    %v5101 = vsub.f32 %v5047, %v5079
    %v5102 = vsub.f32 %v5050, %v5082
    %v5103 = vsub.f32 %v5055, %v5085
    %v5104 = vsub.f32 %v5058, %v5088
    %v5105 = vsub.f32 %v5063, %v5091
    %v5106 = vsub.f32 %v5066, %v5094
    %v5107 = vsub.f32 %v5071, %v5097
    %v5108 = vsub.f32 %v5074, %v5100
    %v5109 = vmul.f32 %v5101, 1.442695
    %v5110 = vpow.pop %v5109
    %v5111 = vmul.f32 %v5102, 1.442695
    %v5112 = vpow.pop %v5111
    %v5113 = vmul.f32 %v5103, 1.442695
    %v5114 = vpow.pop %v5113
    %v5115 = vmul.f32 %v5104, 1.442695
    %v5116 = vpow.pop %v5115
    %v5117 = vmul.f32 %v5105, 1.442695
    %v5118 = vpow.pop %v5117
    %v5119 = vmul.f32 %v5106, 1.442695
    %v5120 = vpow.pop %v5119
    %v5121 = vmul.f32 %v5107, 1.442695
    %v5122 = vpow.pop %v5121
    %v5123 = vmul.f32 %v5108, 1.442695
    %v5124 = vpow.pop %v5123
    %v5125 = vsel %vm600, %v5110, 0.0
    %5126 = vadd.xlane.f32.xlu0 %v5125
    %v5127 = vpop.xlane.xlu0 %5126
    %v5128 = vsel %vm600, %v5112, 0.0
    %5129 = vadd.xlane.f32.xlu0 %v5128
    %v5130 = vpop.xlane.xlu0 %5129
    %v5131 = vsel %vm600, %v5114, 0.0
    %5132 = vadd.xlane.f32.xlu0 %v5131
    %v5133 = vpop.xlane.xlu0 %5132
    %v5134 = vsel %vm600, %v5116, 0.0
    %5135 = vadd.xlane.f32.xlu0 %v5134
    %v5136 = vpop.xlane.xlu0 %5135
    %v5137 = vsel %vm600, %v5118, 0.0
    %5138 = vadd.xlane.f32.xlu0 %v5137
    %v5139 = vpop.xlane.xlu0 %5138
    %v5140 = vsel %vm600, %v5120, 0.0
    %5141 = vadd.xlane.f32.xlu0 %v5140
    %v5142 = vpop.xlane.xlu0 %5141
    %v5143 = vsel %vm600, %v5122, 0.0
    %5144 = vadd.xlane.f32.xlu0 %v5143
    %v5145 = vpop.xlane.xlu0 %5144
    %v5146 = vsel %vm600, %v5124, 0.0
    %5147 = vadd.xlane.f32.xlu0 %v5146
    %v5148 = vpop.xlane.xlu0 %5147
    %v5149 = vrcp.pop %v5127
    %v5150 = vrcp.pop %v5130
    %v5151 = vrcp.pop %v5133
    %v5152 = vrcp.pop %v5136
    %v5153 = vrcp.pop %v5139
    %v5154 = vrcp.pop %v5142
    %v5155 = vrcp.pop %v5145
    %v5156 = vrcp.pop %v5148
    %v5157 = vmul.f32 %v5110, %v5149
    %v5158 = vmul.f32 %v5112, %v5150
    %v5159 = vmul.f32 %v5114, %v5151
    %v5160 = vmul.f32 %v5116, %v5152
    %v5161 = vmul.f32 %v5118, %v5153
    %v5162 = vmul.f32 %v5120, %v5154
    %v5163 = vmul.f32 %v5122, %v5155
    %v5164 = vmul.f32 %v5124, %v5156
    %v5165 = vpack.c.bf16 %v5158, %v5157
    %v5166 = vpack.c.bf16 %v5160, %v5159
    %v5167 = vpack.c.bf16 %v5162, %v5161
    %v5168 = vpack.c.bf16 %v5164, %v5163
    %5169 = vrot.lane.b32.xlu0 %v4373, 48
    %v5170 = vpop.permute.xlu0 %5169
    %5171 = vrot.lane.b32.xlu0 %v4374, 48
    %v5172 = vpop.permute.xlu0 %5171
    %5173 = vrot.lane.b32.xlu0 %v4375, 48
    %v5174 = vpop.permute.xlu0 %5173
    %5175 = vrot.lane.b32.xlu0 %v4376, 48
    %v5176 = vpop.permute.xlu0 %5175
    %v5182 = vsel %vm600, %v5165, 0
    %v5185 = vsel %vm600, %v5166, 0
    %v5188 = vsel %vm600, %v5167, 0
    %v5191 = vsel %vm600, %v5168, 0
    %5193 = vmatprep.subr.bf16.mxu0 0
    %5194 = vmatpush1.bf16.msra.mxu0 %v5170
    %5195 = vmatprep.subr.bf16.mxu0 0
    %5196 = vmatpush1.bf16.msra.mxu0 %v5172
    %5197 = vmatprep.subr.bf16.mxu0 0
    %5198 = vmatpush1.bf16.msra.mxu0 %v5174
    %5199 = vmatprep.subr.bf16.mxu0 0
    %5200 = vmatpush1.bf16.msra.mxu0 %v5176
    %5201 = vmatprep.subr.bf16.mxu0 0
    %5202 = vmatpush1.bf16.msra.mxu0 0
    %5203 = vmatprep.subr.bf16.mxu0 0
    %5204 = vmatpush1.bf16.msra.mxu0 0
    %5205 = vmatprep.subr.bf16.mxu0 0
    %5206 = vmatpush1.bf16.msra.mxu0 0
    %5207 = vmatprep.subr.bf16.mxu0 0
    %5208 = vmatpush1.bf16.msra.mxu0 0
    %5209 = vmatprep.subr.bf16.mxu0 0
    %5210 = vmatpush1.bf16.msra.mxu0 0
    %5211 = vmatprep.subr.bf16.mxu0 0
    %5212 = vmatpush1.bf16.msra.mxu0 0
    %5213 = vmatprep.subr.bf16.mxu0 0
    %5214 = vmatpush1.bf16.msra.mxu0 0
    %5215 = vmatprep.subr.bf16.mxu0 0
    %5216 = vmatpush1.bf16.msra.mxu0 0
    %5217 = vmatprep.subr.bf16.mxu0 0
    %5218 = vmatpush1.bf16.msra.mxu0 0
    %5219 = vmatprep.subr.bf16.mxu0 0
    %5220 = vmatpush1.bf16.msra.mxu0 0
    %5221 = vmatprep.subr.bf16.mxu0 0
    %5222 = vmatpush1.bf16.msra.mxu0 0
    %5223 = vmatprep.subr.bf16.mxu0 0
    %5224 = vmatpush1.bf16.msra.mxu0 0
    %5225 = vmatprep.mubr.bf16.mxu0 0
    %5226 = vmatmul.mubr.bf16.gmra.mrb[0].mxu0 %v5182
    %v5227 = vpop.f32.mrb[0].mxu0
    %v5228 = vadd.f32 0.0, %v5227
    %v5229 = vpop.f32.mrb[0].mxu0
    %v5230 = vpop.f32.mrb[0].mxu0
    %v5231 = vadd.f32 0.0, %v5230
    %v5232 = vpop.f32.mrb[0].mxu0
    %5233 = vmatprep.mubr.bf16.mxu0 0
    %5234 = vmatmul.mubr.bf16.gmra.mrb[0].mxu0 %v5185
    %v5235 = vpop.f32.mrb[0].mxu0
    %v5236 = vadd.f32 0.0, %v5235
    %v5237 = vpop.f32.mrb[0].mxu0
    %v5238 = vpop.f32.mrb[0].mxu0
    %v5239 = vadd.f32 0.0, %v5238
    %v5240 = vpop.f32.mrb[0].mxu0
    %5241 = vmatprep.mubr.bf16.mxu0 0
    %5242 = vmatmul.mubr.bf16.gmra.mrb[0].mxu0 %v5188
    %v5243 = vpop.f32.mrb[0].mxu0
    %v5244 = vadd.f32 0.0, %v5243
    %v5245 = vpop.f32.mrb[0].mxu0
    %v5246 = vpop.f32.mrb[0].mxu0
    %v5247 = vadd.f32 0.0, %v5246
    %v5248 = vpop.f32.mrb[0].mxu0
    %5249 = vmatprep.mubr.bf16.mxu0 0
    %5250 = vmatmul.mubr.bf16.gmra.mrb[0].mxu0 %v5191
    %v5251 = vpop.f32.mrb[0].mxu0
    %v5252 = vadd.f32 0.0, %v5251
    %v5253 = vpop.f32.mrb[0].mxu0
    %v5254 = vpop.f32.mrb[0].mxu0
    %v5255 = vadd.f32 0.0, %v5254
    %v5256 = vpop.f32.mrb[0].mxu0
    %5257 = vdwg.mxu0
    %s5258 = scalar_lea.vmem [#allocation2], 448
    %v5259 = vld [vmem:[%s5258] sm:$0xff]
    %v5260 = vld [vmem:[%s5258 + $0x8] sm:$0xff]
    %v5261 = vld [vmem:[%s5258 + $0x10] sm:$0xff]
    %v5262 = vld [vmem:[%s5258 + $0x18] sm:$0xff]
    %v5263 = vld [vmem:[%s5258 + $0x20] sm:$0xff]
    %v5264 = vld [vmem:[%s5258 + $0x28] sm:$0xff]
    %v5265 = vld [vmem:[%s5258 + $0x30] sm:$0xff]
    %v5266 = vld [vmem:[%s5258 + $0x38] sm:$0xff]
    %5267 = vrot.lane.b32.xlu0 %v4373, 104
    %v5268 = vpop.permute.xlu0 %5267
    %5269 = vrot.lane.b32.xlu0 %v4374, 104
    %v5270 = vpop.permute.xlu0 %5269
    %5271 = vrot.lane.b32.xlu0 %v4375, 104
    %v5272 = vpop.permute.xlu0 %5271
    %5273 = vrot.lane.b32.xlu0 %v4376, 104
    %v5274 = vpop.permute.xlu0 %5273
    %5275 = vrot.lane.b32.xlu0 %v4373, 72
    %v5276 = vpop.permute.xlu0 %5275
    %5277 = vrot.lane.b32.xlu0 %v4374, 72
    %v5278 = vpop.permute.xlu0 %5277
    %5279 = vrot.lane.b32.xlu0 %v4375, 72
    %v5280 = vpop.permute.xlu0 %5279
    %5281 = vrot.lane.b32.xlu0 %v4376, 72
    %v5282 = vpop.permute.xlu0 %5281
    %v5284 = vsel %vm510, %v5268, 0
    %v5287 = vsel %vm510, %v5270, 0
    %v5290 = vsel %vm510, %v5272, 0
    %v5293 = vsel %vm510, %v5274, 0
    %v5296 = vsel %vm510, %v5276, 0
    %v5299 = vsel %vm510, %v5278, 0
    %v5302 = vsel %vm510, %v5280, 0
    %v5305 = vsel %vm510, %v5282, 0
    %5307 = vmatprep.subr.bf16.mxu0 0
    %5308 = vmatpush1.bf16.xpose.msra.mxu0 %v5296
    %5309 = vmatprep.subr.bf16.mxu0 0
    %5310 = vmatpush1.bf16.xpose.msra.mxu0 %v5299
    %5311 = vmatprep.subr.bf16.mxu0 0
    %5312 = vmatpush1.bf16.xpose.msra.mxu0 %v5302
    %5313 = vmatprep.subr.bf16.mxu0 0
    %5314 = vmatpush1.bf16.xpose.msra.mxu0 %v5305
    %5315 = vmatprep.subr.bf16.mxu0 0
    %5316 = vmatpush1.bf16.xpose.msra.mxu0 0
    %5317 = vmatprep.subr.bf16.mxu0 0
    %5318 = vmatpush1.bf16.xpose.msra.mxu0 0
    %5319 = vmatprep.subr.bf16.mxu0 0
    %5320 = vmatpush1.bf16.xpose.msra.mxu0 0
    %5321 = vmatprep.subr.bf16.mxu0 0
    %5322 = vmatpush1.bf16.xpose.msra.mxu0 0
    %5323 = vmatprep.subr.bf16.mxu0 0
    %5324 = vmatpush1.bf16.xpose.msra.mxu0 0
    %5325 = vmatprep.subr.bf16.mxu0 0
    %5326 = vmatpush1.bf16.xpose.msra.mxu0 0
    %5327 = vmatprep.subr.bf16.mxu0 0
    %5328 = vmatpush1.bf16.xpose.msra.mxu0 0
    %5329 = vmatprep.subr.bf16.mxu0 0
    %5330 = vmatpush1.bf16.xpose.msra.mxu0 0
    %5331 = vmatprep.subr.bf16.mxu0 0
    %5332 = vmatpush1.bf16.xpose.msra.mxu0 0
    %5333 = vmatprep.subr.bf16.mxu0 0
    %5334 = vmatpush1.bf16.xpose.msra.mxu0 0
    %5335 = vmatprep.subr.bf16.mxu0 0
    %5336 = vmatpush1.bf16.xpose.msra.mxu0 0
    %5337 = vmatprep.subr.bf16.mxu0 0
    %5338 = vmatpush1.bf16.xpose.msra.mxu0 0
    %5339 = vmatprep.mubr.bf16.mxu0 0
    %5340 = vmatmul.mubr.bf16.gmra.mrb[0].mxu0 %v5284
    %v5341 = vpop.f32.mrb[0].mxu0
    %v5342 = vadd.f32 %v5259, %v5341
    %v5343 = vpop.f32.mrb[0].mxu0
    %v5344 = vpop.f32.mrb[0].mxu0
    %v5345 = vadd.f32 %v5260, %v5344
    %v5346 = vpop.f32.mrb[0].mxu0
    %5347 = vmatprep.mubr.bf16.mxu0 0
    %5348 = vmatmul.mubr.bf16.gmra.mrb[0].mxu0 %v5287
    %v5349 = vpop.f32.mrb[0].mxu0
    %v5350 = vadd.f32 %v5261, %v5349
    %v5351 = vpop.f32.mrb[0].mxu0
    %v5352 = vpop.f32.mrb[0].mxu0
    %v5353 = vadd.f32 %v5262, %v5352
    %v5354 = vpop.f32.mrb[0].mxu0
    %5355 = vmatprep.mubr.bf16.mxu0 0
    %5356 = vmatmul.mubr.bf16.gmra.mrb[0].mxu0 %v5290
    %v5357 = vpop.f32.mrb[0].mxu0
    %v5358 = vadd.f32 %v5263, %v5357
    %v5359 = vpop.f32.mrb[0].mxu0
    %v5360 = vpop.f32.mrb[0].mxu0
    %v5361 = vadd.f32 %v5264, %v5360
    %v5362 = vpop.f32.mrb[0].mxu0
    %5363 = vmatprep.mubr.bf16.mxu0 0
    %5364 = vmatmul.mubr.bf16.gmra.mrb[0].mxu0 %v5293
    %v5365 = vpop.f32.mrb[0].mxu0
    %v5366 = vadd.f32 %v5265, %v5365
    %v5367 = vpop.f32.mrb[0].mxu0
    %v5368 = vpop.f32.mrb[0].mxu0
    %v5369 = vadd.f32 %v5266, %v5368
    %v5370 = vpop.f32.mrb[0].mxu0
    %5371 = vdwg.mxu0
    %v5372 = vsel %vm600, %v5342, -inf
    %5373 = vmax.xlane.f32.xlu0 %v5372
    %v5374 = vpop.xlane.xlu0 %5373
    %v5375 = vsel %vm600, %v5345, -inf
    %5376 = vmax.xlane.f32.xlu0 %v5375
    %v5377 = vpop.xlane.xlu0 %5376
    %v5378 = vsel %vm600, %v5350, -inf
    %5379 = vmax.xlane.f32.xlu0 %v5378
    %v5380 = vpop.xlane.xlu0 %5379
    %v5381 = vsel %vm600, %v5353, -inf
    %5382 = vmax.xlane.f32.xlu0 %v5381
    %v5383 = vpop.xlane.xlu0 %5382
    %v5384 = vsel %vm600, %v5358, -inf
    %5385 = vmax.xlane.f32.xlu0 %v5384
    %v5386 = vpop.xlane.xlu0 %5385
    %v5387 = vsel %vm600, %v5361, -inf
    %5388 = vmax.xlane.f32.xlu0 %v5387
    %v5389 = vpop.xlane.xlu0 %5388
    %v5390 = vsel %vm600, %v5366, -inf
    %5391 = vmax.xlane.f32.xlu0 %v5390
    %v5392 = vpop.xlane.xlu0 %5391
    %v5393 = vsel %vm600, %v5369, -inf
    %5394 = vmax.xlane.f32.xlu0 %v5393
    %v5395 = vpop.xlane.xlu0 %5394
    %v5396 = vsub.f32 %v5342, %v5374
    %v5397 = vsub.f32 %v5345, %v5377
    %v5398 = vsub.f32 %v5350, %v5380
    %v5399 = vsub.f32 %v5353, %v5383
    %v5400 = vsub.f32 %v5358, %v5386
    %v5401 = vsub.f32 %v5361, %v5389
    %v5402 = vsub.f32 %v5366, %v5392
    %v5403 = vsub.f32 %v5369, %v5395
    %v5404 = vmul.f32 %v5396, 1.442695
    %v5405 = vpow.pop %v5404
    %v5406 = vmul.f32 %v5397, 1.442695
    %v5407 = vpow.pop %v5406
    %v5408 = vmul.f32 %v5398, 1.442695
    %v5409 = vpow.pop %v5408
    %v5410 = vmul.f32 %v5399, 1.442695
    %v5411 = vpow.pop %v5410
    %v5412 = vmul.f32 %v5400, 1.442695
    %v5413 = vpow.pop %v5412
    %v5414 = vmul.f32 %v5401, 1.442695
    %v5415 = vpow.pop %v5414
    %v5416 = vmul.f32 %v5402, 1.442695
    %v5417 = vpow.pop %v5416
    %v5418 = vmul.f32 %v5403, 1.442695
    %v5419 = vpow.pop %v5418
    %v5420 = vsel %vm600, %v5405, 0.0
    %5421 = vadd.xlane.f32.xlu0 %v5420
    %v5422 = vpop.xlane.xlu0 %5421
    %v5423 = vsel %vm600, %v5407, 0.0
    %5424 = vadd.xlane.f32.xlu0 %v5423
    %v5425 = vpop.xlane.xlu0 %5424
    %v5426 = vsel %vm600, %v5409, 0.0
    %5427 = vadd.xlane.f32.xlu0 %v5426
    %v5428 = vpop.xlane.xlu0 %5427
    %v5429 = vsel %vm600, %v5411, 0.0
    %5430 = vadd.xlane.f32.xlu0 %v5429
    %v5431 = vpop.xlane.xlu0 %5430
    %v5432 = vsel %vm600, %v5413, 0.0
    %5433 = vadd.xlane.f32.xlu0 %v5432
    %v5434 = vpop.xlane.xlu0 %5433
    %v5435 = vsel %vm600, %v5415, 0.0
    %5436 = vadd.xlane.f32.xlu0 %v5435
    %v5437 = vpop.xlane.xlu0 %5436
    %v5438 = vsel %vm600, %v5417, 0.0
    %5439 = vadd.xlane.f32.xlu0 %v5438
    %v5440 = vpop.xlane.xlu0 %5439
    %v5441 = vsel %vm600, %v5419, 0.0
    %5442 = vadd.xlane.f32.xlu0 %v5441
    %v5443 = vpop.xlane.xlu0 %5442
    %v5444 = vrcp.pop %v5422
    %v5445 = vrcp.pop %v5425
    %v5446 = vrcp.pop %v5428
    %v5447 = vrcp.pop %v5431
    %v5448 = vrcp.pop %v5434
    %v5449 = vrcp.pop %v5437
    %v5450 = vrcp.pop %v5440
    %v5451 = vrcp.pop %v5443
    %v5452 = vmul.f32 %v5405, %v5444
    %v5453 = vmul.f32 %v5407, %v5445
    %v5454 = vmul.f32 %v5409, %v5446
    %v5455 = vmul.f32 %v5411, %v5447
    %v5456 = vmul.f32 %v5413, %v5448
    %v5457 = vmul.f32 %v5415, %v5449
    %v5458 = vmul.f32 %v5417, %v5450
    %v5459 = vmul.f32 %v5419, %v5451
    %v5460 = vpack.c.bf16 %v5453, %v5452
    %v5461 = vpack.c.bf16 %v5455, %v5454
    %v5462 = vpack.c.bf16 %v5457, %v5456
    %v5463 = vpack.c.bf16 %v5459, %v5458
    %5464 = vrot.lane.b32.xlu0 %v4373, 40
    %v5465 = vpop.permute.xlu0 %5464
    %5466 = vrot.lane.b32.xlu0 %v4374, 40
    %v5467 = vpop.permute.xlu0 %5466
    %5468 = vrot.lane.b32.xlu0 %v4375, 40
    %v5469 = vpop.permute.xlu0 %5468
    %5470 = vrot.lane.b32.xlu0 %v4376, 40
    %v5471 = vpop.permute.xlu0 %5470
    %v5477 = vsel %vm600, %v5460, 0
    %v5480 = vsel %vm600, %v5461, 0
    %v5483 = vsel %vm600, %v5462, 0
    %v5486 = vsel %vm600, %v5463, 0
    %5488 = vmatprep.subr.bf16.mxu0 0
    %5489 = vmatpush1.bf16.msra.mxu0 %v5465
    %5490 = vmatprep.subr.bf16.mxu0 0
    %5491 = vmatpush1.bf16.msra.mxu0 %v5467
    %5492 = vmatprep.subr.bf16.mxu0 0
    %5493 = vmatpush1.bf16.msra.mxu0 %v5469
    %5494 = vmatprep.subr.bf16.mxu0 0
    %5495 = vmatpush1.bf16.msra.mxu0 %v5471
    %5496 = vmatprep.subr.bf16.mxu0 0
    %5497 = vmatpush1.bf16.msra.mxu0 0
    %5498 = vmatprep.subr.bf16.mxu0 0
    %5499 = vmatpush1.bf16.msra.mxu0 0
    %5500 = vmatprep.subr.bf16.mxu0 0
    %5501 = vmatpush1.bf16.msra.mxu0 0
    %5502 = vmatprep.subr.bf16.mxu0 0
    %5503 = vmatpush1.bf16.msra.mxu0 0
    %5504 = vmatprep.subr.bf16.mxu0 0
    %5505 = vmatpush1.bf16.msra.mxu0 0
    %5506 = vmatprep.subr.bf16.mxu0 0
    %5507 = vmatpush1.bf16.msra.mxu0 0
    %5508 = vmatprep.subr.bf16.mxu0 0
    %5509 = vmatpush1.bf16.msra.mxu0 0
    %5510 = vmatprep.subr.bf16.mxu0 0
    %5511 = vmatpush1.bf16.msra.mxu0 0
    %5512 = vmatprep.subr.bf16.mxu0 0
    %5513 = vmatpush1.bf16.msra.mxu0 0
    %5514 = vmatprep.subr.bf16.mxu0 0
    %5515 = vmatpush1.bf16.msra.mxu0 0
    %5516 = vmatprep.subr.bf16.mxu0 0
    %5517 = vmatpush1.bf16.msra.mxu0 0
    %5518 = vmatprep.subr.bf16.mxu0 0
    %5519 = vmatpush1.bf16.msra.mxu0 0
    %5520 = vmatprep.mubr.bf16.mxu0 0
    %5521 = vmatmul.mubr.bf16.gmra.mrb[0].mxu0 %v5477
    %v5522 = vpop.f32.mrb[0].mxu0
    %v5523 = vadd.f32 0.0, %v5522
    %v5524 = vpop.f32.mrb[0].mxu0
    %v5525 = vpop.f32.mrb[0].mxu0
    %v5526 = vadd.f32 0.0, %v5525
    %v5527 = vpop.f32.mrb[0].mxu0
    %5528 = vmatprep.mubr.bf16.mxu0 0
    %5529 = vmatmul.mubr.bf16.gmra.mrb[0].mxu0 %v5480
    %v5530 = vpop.f32.mrb[0].mxu0
    %v5531 = vadd.f32 0.0, %v5530
    %v5532 = vpop.f32.mrb[0].mxu0
    %v5533 = vpop.f32.mrb[0].mxu0
    %v5534 = vadd.f32 0.0, %v5533
    %v5535 = vpop.f32.mrb[0].mxu0
    %5536 = vmatprep.mubr.bf16.mxu0 0
    %5537 = vmatmul.mubr.bf16.gmra.mrb[0].mxu0 %v5483
    %v5538 = vpop.f32.mrb[0].mxu0
    %v5539 = vadd.f32 0.0, %v5538
    %v5540 = vpop.f32.mrb[0].mxu0
    %v5541 = vpop.f32.mrb[0].mxu0
    %v5542 = vadd.f32 0.0, %v5541
    %v5543 = vpop.f32.mrb[0].mxu0
    %5544 = vmatprep.mubr.bf16.mxu0 0
    %5545 = vmatmul.mubr.bf16.gmra.mrb[0].mxu0 %v5486
    %v5546 = vpop.f32.mrb[0].mxu0
    %v5547 = vadd.f32 0.0, %v5546
    %v5548 = vpop.f32.mrb[0].mxu0
    %v5549 = vpop.f32.mrb[0].mxu0
    %v5550 = vadd.f32 0.0, %v5549
    %v5551 = vpop.f32.mrb[0].mxu0
    %5552 = vdwg.mxu0
    %5561 = vrot.lane.b32.xlu0 %v4933, 8
    %v5562 = vpop.permute.xlu0 %5561
    %5563 = vrot.lane.b32.xlu0 %v4936, 8
    %v5564 = vpop.permute.xlu0 %5563
    %5565 = vrot.lane.b32.xlu0 %v4941, 8
    %v5566 = vpop.permute.xlu0 %5565
    %5567 = vrot.lane.b32.xlu0 %v4944, 8
    %v5568 = vpop.permute.xlu0 %5567
    %5569 = vrot.lane.b32.xlu0 %v4949, 8
    %v5570 = vpop.permute.xlu0 %5569
    %5571 = vrot.lane.b32.xlu0 %v4952, 8
    %v5572 = vpop.permute.xlu0 %5571
    %5573 = vrot.lane.b32.xlu0 %v4957, 8
    %v5574 = vpop.permute.xlu0 %5573
    %5575 = vrot.lane.b32.xlu0 %v4960, 8
    %v5576 = vpop.permute.xlu0 %5575
    %5593 = vrot.lane.b32.xlu0 %v5228, 16
    %v5594 = vpop.permute.xlu0 %5593
    %5595 = vrot.lane.b32.xlu0 %v5231, 16
    %v5596 = vpop.permute.xlu0 %5595
    %5597 = vrot.lane.b32.xlu0 %v5236, 16
    %v5598 = vpop.permute.xlu0 %5597
    %5599 = vrot.lane.b32.xlu0 %v5239, 16
    %v5600 = vpop.permute.xlu0 %5599
    %5601 = vrot.lane.b32.xlu0 %v5244, 16
    %v5602 = vpop.permute.xlu0 %5601
    %5603 = vrot.lane.b32.xlu0 %v5247, 16
    %v5604 = vpop.permute.xlu0 %5603
    %5605 = vrot.lane.b32.xlu0 %v5252, 16
    %v5606 = vpop.permute.xlu0 %5605
    %5607 = vrot.lane.b32.xlu0 %v5255, 16
    %v5608 = vpop.permute.xlu0 %5607
    %5625 = vrot.lane.b32.xlu0 %v5523, 24
    %v5626 = vpop.permute.xlu0 %5625
    %5627 = vrot.lane.b32.xlu0 %v5526, 24
    %v5628 = vpop.permute.xlu0 %5627
    %5629 = vrot.lane.b32.xlu0 %v5531, 24
    %v5630 = vpop.permute.xlu0 %5629
    %5631 = vrot.lane.b32.xlu0 %v5534, 24
    %v5632 = vpop.permute.xlu0 %5631
    %5633 = vrot.lane.b32.xlu0 %v5539, 24
    %v5634 = vpop.permute.xlu0 %5633
    %5635 = vrot.lane.b32.xlu0 %v5542, 24
    %v5636 = vpop.permute.xlu0 %5635
    %5637 = vrot.lane.b32.xlu0 %v5547, 24
    %v5638 = vpop.permute.xlu0 %5637
    %5639 = vrot.lane.b32.xlu0 %v5550, 24
    %v5640 = vpop.permute.xlu0 %5639
    %v5649 = vsel %vm510, %v4638, %v5562
    %v5650 = vsel %vm510, %v4641, %v5564
    %v5651 = vsel %vm510, %v4646, %v5566
    %v5652 = vsel %vm510, %v4649, %v5568
    %v5653 = vsel %vm510, %v4654, %v5570
    %v5654 = vsel %vm510, %v4657, %v5572
    %v5655 = vsel %vm510, %v4662, %v5574
    %v5656 = vsel %vm510, %v4665, %v5576
    %v5657 = vsel %vm1771, %v5649, %v5594
    %v5658 = vsel %vm1771, %v5650, %v5596
    %v5659 = vsel %vm1771, %v5651, %v5598
    %v5660 = vsel %vm1771, %v5652, %v5600
    %v5661 = vsel %vm1771, %v5653, %v5602
    %v5662 = vsel %vm1771, %v5654, %v5604
    %v5663 = vsel %vm1771, %v5655, %v5606
    %v5664 = vsel %vm1771, %v5656, %v5608
    %v5665 = vsel %vm1780, %v5657, %v5626
    %v5666 = vsel %vm1780, %v5658, %v5628
    %v5667 = vsel %vm1780, %v5659, %v5630
    %v5668 = vsel %vm1780, %v5660, %v5632
    %v5669 = vsel %vm1780, %v5661, %v5634
    %v5670 = vsel %vm1780, %v5662, %v5636
    %v5671 = vsel %vm1780, %v5663, %v5638
    %v5672 = vsel %vm1780, %v5664, %v5640
    %v5673 = vpack.c.bf16 %v4346, %v4343
    %v5674 = vpack.c.bf16 %v4354, %v4351
    %v5675 = vpack.c.bf16 %v4362, %v4359
    %v5676 = vpack.c.bf16 %v4370, %v4367
    %5681 = vrot.lane.b32.xlu0 %v5673, 96
    %v5682 = vpop.permute.xlu0 %5681
    %5683 = vrot.lane.b32.xlu0 %v5674, 96
    %v5684 = vpop.permute.xlu0 %5683
    %5685 = vrot.lane.b32.xlu0 %v5675, 96
    %v5686 = vpop.permute.xlu0 %5685
    %5687 = vrot.lane.b32.xlu0 %v5676, 96
    %v5688 = vpop.permute.xlu0 %5687
    %v5690 = vsel %vm510, %v5673, 0
    %v5693 = vsel %vm510, %v5674, 0
    %v5696 = vsel %vm510, %v5675, 0
    %v5699 = vsel %vm510, %v5676, 0
    %v5702 = vsel %vm510, %v5682, 0
    %v5705 = vsel %vm510, %v5684, 0
    %v5708 = vsel %vm510, %v5686, 0
    %v5711 = vsel %vm510, %v5688, 0
    %5713 = vmatprep.subr.bf16.mxu0 0
    %5714 = vmatpush1.bf16.xpose.msra.mxu0 %v5702
    %5715 = vmatprep.subr.bf16.mxu0 0
    %5716 = vmatpush1.bf16.xpose.msra.mxu0 %v5705
    %5717 = vmatprep.subr.bf16.mxu0 0
    %5718 = vmatpush1.bf16.xpose.msra.mxu0 %v5708
    %5719 = vmatprep.subr.bf16.mxu0 0
    %5720 = vmatpush1.bf16.xpose.msra.mxu0 %v5711
    %5721 = vmatprep.subr.bf16.mxu0 0
    %5722 = vmatpush1.bf16.xpose.msra.mxu0 0
    %5723 = vmatprep.subr.bf16.mxu0 0
    %5724 = vmatpush1.bf16.xpose.msra.mxu0 0
    %5725 = vmatprep.subr.bf16.mxu0 0
    %5726 = vmatpush1.bf16.xpose.msra.mxu0 0
    %5727 = vmatprep.subr.bf16.mxu0 0
    %5728 = vmatpush1.bf16.xpose.msra.mxu0 0
    %5729 = vmatprep.subr.bf16.mxu0 0
    %5730 = vmatpush1.bf16.xpose.msra.mxu0 0
    %5731 = vmatprep.subr.bf16.mxu0 0
    %5732 = vmatpush1.bf16.xpose.msra.mxu0 0
    %5733 = vmatprep.subr.bf16.mxu0 0
    %5734 = vmatpush1.bf16.xpose.msra.mxu0 0
    %5735 = vmatprep.subr.bf16.mxu0 0
    %5736 = vmatpush1.bf16.xpose.msra.mxu0 0
    %5737 = vmatprep.subr.bf16.mxu0 0
    %5738 = vmatpush1.bf16.xpose.msra.mxu0 0
    %5739 = vmatprep.subr.bf16.mxu0 0
    %5740 = vmatpush1.bf16.xpose.msra.mxu0 0
    %5741 = vmatprep.subr.bf16.mxu0 0
    %5742 = vmatpush1.bf16.xpose.msra.mxu0 0
    %5743 = vmatprep.subr.bf16.mxu0 0
    %5744 = vmatpush1.bf16.xpose.msra.mxu0 0
    %5745 = vmatprep.mubr.bf16.mxu0 0
    %5746 = vmatmul.mubr.bf16.gmra.mrb[0].mxu0 %v5690
    %v5747 = vpop.f32.mrb[0].mxu0
    %v5748 = vadd.f32 %v4378, %v5747
    %v5749 = vpop.f32.mrb[0].mxu0
    %v5750 = vpop.f32.mrb[0].mxu0
    %v5751 = vadd.f32 %v4379, %v5750
    %v5752 = vpop.f32.mrb[0].mxu0
    %5753 = vmatprep.mubr.bf16.mxu0 0
    %5754 = vmatmul.mubr.bf16.gmra.mrb[0].mxu0 %v5693
    %v5755 = vpop.f32.mrb[0].mxu0
    %v5756 = vadd.f32 %v4380, %v5755
    %v5757 = vpop.f32.mrb[0].mxu0
    %v5758 = vpop.f32.mrb[0].mxu0
    %v5759 = vadd.f32 %v4381, %v5758
    %v5760 = vpop.f32.mrb[0].mxu0
    %5761 = vmatprep.mubr.bf16.mxu0 0
    %5762 = vmatmul.mubr.bf16.gmra.mrb[0].mxu0 %v5696
    %v5763 = vpop.f32.mrb[0].mxu0
    %v5764 = vadd.f32 %v4382, %v5763
    %v5765 = vpop.f32.mrb[0].mxu0
    %v5766 = vpop.f32.mrb[0].mxu0
    %v5767 = vadd.f32 %v4383, %v5766
    %v5768 = vpop.f32.mrb[0].mxu0
    %5769 = vmatprep.mubr.bf16.mxu0 0
    %5770 = vmatmul.mubr.bf16.gmra.mrb[0].mxu0 %v5699
    %v5771 = vpop.f32.mrb[0].mxu0
    %v5772 = vadd.f32 %v4384, %v5771
    %v5773 = vpop.f32.mrb[0].mxu0
    %v5774 = vpop.f32.mrb[0].mxu0
    %v5775 = vadd.f32 %v4385, %v5774
    %v5776 = vpop.f32.mrb[0].mxu0
    %5777 = vdwg.mxu0
    %v5778 = vsel %vm600, %v5748, -inf
    %5779 = vmax.xlane.f32.xlu0 %v5778
    %v5780 = vpop.xlane.xlu0 %5779
    %v5781 = vsel %vm600, %v5751, -inf
    %5782 = vmax.xlane.f32.xlu0 %v5781
    %v5783 = vpop.xlane.xlu0 %5782
    %v5784 = vsel %vm600, %v5756, -inf
    %5785 = vmax.xlane.f32.xlu0 %v5784
    %v5786 = vpop.xlane.xlu0 %5785
    %v5787 = vsel %vm600, %v5759, -inf
    %5788 = vmax.xlane.f32.xlu0 %v5787
    %v5789 = vpop.xlane.xlu0 %5788
    %v5790 = vsel %vm600, %v5764, -inf
    %5791 = vmax.xlane.f32.xlu0 %v5790
    %v5792 = vpop.xlane.xlu0 %5791
    %v5793 = vsel %vm600, %v5767, -inf
    %5794 = vmax.xlane.f32.xlu0 %v5793
    %v5795 = vpop.xlane.xlu0 %5794
    %v5796 = vsel %vm600, %v5772, -inf
    %5797 = vmax.xlane.f32.xlu0 %v5796
    %v5798 = vpop.xlane.xlu0 %5797
    %v5799 = vsel %vm600, %v5775, -inf
    %5800 = vmax.xlane.f32.xlu0 %v5799
    %v5801 = vpop.xlane.xlu0 %5800
    %v5802 = vsub.f32 %v5748, %v5780
    %v5803 = vsub.f32 %v5751, %v5783
    %v5804 = vsub.f32 %v5756, %v5786
    %v5805 = vsub.f32 %v5759, %v5789
    %v5806 = vsub.f32 %v5764, %v5792
    %v5807 = vsub.f32 %v5767, %v5795
    %v5808 = vsub.f32 %v5772, %v5798
    %v5809 = vsub.f32 %v5775, %v5801
    %v5810 = vmul.f32 %v5802, 1.442695
    %v5811 = vpow.pop %v5810
    %v5812 = vmul.f32 %v5803, 1.442695
    %v5813 = vpow.pop %v5812
    %v5814 = vmul.f32 %v5804, 1.442695
    %v5815 = vpow.pop %v5814
    %v5816 = vmul.f32 %v5805, 1.442695
    %v5817 = vpow.pop %v5816
    %v5818 = vmul.f32 %v5806, 1.442695
    %v5819 = vpow.pop %v5818
    %v5820 = vmul.f32 %v5807, 1.442695
    %v5821 = vpow.pop %v5820
    %v5822 = vmul.f32 %v5808, 1.442695
    %v5823 = vpow.pop %v5822
    %v5824 = vmul.f32 %v5809, 1.442695
    %v5825 = vpow.pop %v5824
    %v5826 = vsel %vm600, %v5811, 0.0
    %5827 = vadd.xlane.f32.xlu0 %v5826
    %v5828 = vpop.xlane.xlu0 %5827
    %v5829 = vsel %vm600, %v5813, 0.0
    %5830 = vadd.xlane.f32.xlu0 %v5829
    %v5831 = vpop.xlane.xlu0 %5830
    %v5832 = vsel %vm600, %v5815, 0.0
    %5833 = vadd.xlane.f32.xlu0 %v5832
    %v5834 = vpop.xlane.xlu0 %5833
    %v5835 = vsel %vm600, %v5817, 0.0
    %5836 = vadd.xlane.f32.xlu0 %v5835
    %v5837 = vpop.xlane.xlu0 %5836
    %v5838 = vsel %vm600, %v5819, 0.0
    %5839 = vadd.xlane.f32.xlu0 %v5838
    %v5840 = vpop.xlane.xlu0 %5839
    %v5841 = vsel %vm600, %v5821, 0.0
    %5842 = vadd.xlane.f32.xlu0 %v5841
    %v5843 = vpop.xlane.xlu0 %5842
    %v5844 = vsel %vm600, %v5823, 0.0
    %5845 = vadd.xlane.f32.xlu0 %v5844
    %v5846 = vpop.xlane.xlu0 %5845
    %v5847 = vsel %vm600, %v5825, 0.0
    %5848 = vadd.xlane.f32.xlu0 %v5847
    %v5849 = vpop.xlane.xlu0 %5848
    %v5850 = vrcp.pop %v5828
    %v5851 = vrcp.pop %v5831
    %v5852 = vrcp.pop %v5834
    %v5853 = vrcp.pop %v5837
    %v5854 = vrcp.pop %v5840
    %v5855 = vrcp.pop %v5843
    %v5856 = vrcp.pop %v5846
    %v5857 = vrcp.pop %v5849
    %v5858 = vmul.f32 %v5811, %v5850
    %v5859 = vmul.f32 %v5813, %v5851
    %v5860 = vmul.f32 %v5815, %v5852
    %v5861 = vmul.f32 %v5817, %v5853
    %v5862 = vmul.f32 %v5819, %v5854
    %v5863 = vmul.f32 %v5821, %v5855
    %v5864 = vmul.f32 %v5823, %v5856
    %v5865 = vmul.f32 %v5825, %v5857
    %v5866 = vpack.c.bf16 %v5859, %v5858
    %v5867 = vpack.c.bf16 %v5861, %v5860
    %v5868 = vpack.c.bf16 %v5863, %v5862
    %v5869 = vpack.c.bf16 %v5865, %v5864
    %5870 = vrot.lane.b32.xlu0 %v5673, 64
    %v5871 = vpop.permute.xlu0 %5870
    %5872 = vrot.lane.b32.xlu0 %v5674, 64
    %v5873 = vpop.permute.xlu0 %5872
    %5874 = vrot.lane.b32.xlu0 %v5675, 64
    %v5875 = vpop.permute.xlu0 %5874
    %5876 = vrot.lane.b32.xlu0 %v5676, 64
    %v5877 = vpop.permute.xlu0 %5876
    %v5883 = vsel %vm600, %v5866, 0
    %v5886 = vsel %vm600, %v5867, 0
    %v5889 = vsel %vm600, %v5868, 0
    %v5892 = vsel %vm600, %v5869, 0
    %5894 = vmatprep.subr.bf16.mxu0 0
    %5895 = vmatpush1.bf16.msra.mxu0 %v5871
    %5896 = vmatprep.subr.bf16.mxu0 0
    %5897 = vmatpush1.bf16.msra.mxu0 %v5873
    %5898 = vmatprep.subr.bf16.mxu0 0
    %5899 = vmatpush1.bf16.msra.mxu0 %v5875
    %5900 = vmatprep.subr.bf16.mxu0 0
    %5901 = vmatpush1.bf16.msra.mxu0 %v5877
    %5902 = vmatprep.subr.bf16.mxu0 0
    %5903 = vmatpush1.bf16.msra.mxu0 0
    %5904 = vmatprep.subr.bf16.mxu0 0
    %5905 = vmatpush1.bf16.msra.mxu0 0
    %5906 = vmatprep.subr.bf16.mxu0 0
    %5907 = vmatpush1.bf16.msra.mxu0 0
    %5908 = vmatprep.subr.bf16.mxu0 0
    %5909 = vmatpush1.bf16.msra.mxu0 0
    %5910 = vmatprep.subr.bf16.mxu0 0
    %5911 = vmatpush1.bf16.msra.mxu0 0
    %5912 = vmatprep.subr.bf16.mxu0 0
    %5913 = vmatpush1.bf16.msra.mxu0 0
    %5914 = vmatprep.subr.bf16.mxu0 0
    %5915 = vmatpush1.bf16.msra.mxu0 0
    %5916 = vmatprep.subr.bf16.mxu0 0
    %5917 = vmatpush1.bf16.msra.mxu0 0
    %5918 = vmatprep.subr.bf16.mxu0 0
    %5919 = vmatpush1.bf16.msra.mxu0 0
    %5920 = vmatprep.subr.bf16.mxu0 0
    %5921 = vmatpush1.bf16.msra.mxu0 0
    %5922 = vmatprep.subr.bf16.mxu0 0
    %5923 = vmatpush1.bf16.msra.mxu0 0
    %5924 = vmatprep.subr.bf16.mxu0 0
    %5925 = vmatpush1.bf16.msra.mxu0 0
    %5926 = vmatprep.mubr.bf16.mxu0 0
    %5927 = vmatmul.mubr.bf16.gmra.mrb[0].mxu0 %v5883
    %v5928 = vpop.f32.mrb[0].mxu0
    %v5929 = vadd.f32 0.0, %v5928
    %v5930 = vpop.f32.mrb[0].mxu0
    %v5931 = vpop.f32.mrb[0].mxu0
    %v5932 = vadd.f32 0.0, %v5931
    %v5933 = vpop.f32.mrb[0].mxu0
    %5934 = vmatprep.mubr.bf16.mxu0 0
    %5935 = vmatmul.mubr.bf16.gmra.mrb[0].mxu0 %v5886
    %v5936 = vpop.f32.mrb[0].mxu0
    %v5937 = vadd.f32 0.0, %v5936
    %v5938 = vpop.f32.mrb[0].mxu0
    %v5939 = vpop.f32.mrb[0].mxu0
    %v5940 = vadd.f32 0.0, %v5939
    %v5941 = vpop.f32.mrb[0].mxu0
    %5942 = vmatprep.mubr.bf16.mxu0 0
    %5943 = vmatmul.mubr.bf16.gmra.mrb[0].mxu0 %v5889
    %v5944 = vpop.f32.mrb[0].mxu0
    %v5945 = vadd.f32 0.0, %v5944
    %v5946 = vpop.f32.mrb[0].mxu0
    %v5947 = vpop.f32.mrb[0].mxu0
    %v5948 = vadd.f32 0.0, %v5947
    %v5949 = vpop.f32.mrb[0].mxu0
    %5950 = vmatprep.mubr.bf16.mxu0 0
    %5951 = vmatmul.mubr.bf16.gmra.mrb[0].mxu0 %v5892
    %v5952 = vpop.f32.mrb[0].mxu0
    %v5953 = vadd.f32 0.0, %v5952
    %v5954 = vpop.f32.mrb[0].mxu0
    %v5955 = vpop.f32.mrb[0].mxu0
    %v5956 = vadd.f32 0.0, %v5955
    %v5957 = vpop.f32.mrb[0].mxu0
    %5958 = vdwg.mxu0
    %5959 = vrot.lane.b32.xlu0 %v5673, 120
    %v5960 = vpop.permute.xlu0 %5959
    %5961 = vrot.lane.b32.xlu0 %v5674, 120
    %v5962 = vpop.permute.xlu0 %5961
    %5963 = vrot.lane.b32.xlu0 %v5675, 120
    %v5964 = vpop.permute.xlu0 %5963
    %5965 = vrot.lane.b32.xlu0 %v5676, 120
    %v5966 = vpop.permute.xlu0 %5965
    %5967 = vrot.lane.b32.xlu0 %v5673, 88
    %v5968 = vpop.permute.xlu0 %5967
    %5969 = vrot.lane.b32.xlu0 %v5674, 88
    %v5970 = vpop.permute.xlu0 %5969
    %5971 = vrot.lane.b32.xlu0 %v5675, 88
    %v5972 = vpop.permute.xlu0 %5971
    %5973 = vrot.lane.b32.xlu0 %v5676, 88
    %v5974 = vpop.permute.xlu0 %5973
    %v5976 = vsel %vm510, %v5960, 0
    %v5979 = vsel %vm510, %v5962, 0
    %v5982 = vsel %vm510, %v5964, 0
    %v5985 = vsel %vm510, %v5966, 0
    %v5988 = vsel %vm510, %v5968, 0
    %v5991 = vsel %vm510, %v5970, 0
    %v5994 = vsel %vm510, %v5972, 0
    %v5997 = vsel %vm510, %v5974, 0
    %5999 = vmatprep.subr.bf16.mxu0 0
    %6000 = vmatpush1.bf16.xpose.msra.mxu0 %v5988
    %6001 = vmatprep.subr.bf16.mxu0 0
    %6002 = vmatpush1.bf16.xpose.msra.mxu0 %v5991
    %6003 = vmatprep.subr.bf16.mxu0 0
    %6004 = vmatpush1.bf16.xpose.msra.mxu0 %v5994
    %6005 = vmatprep.subr.bf16.mxu0 0
    %6006 = vmatpush1.bf16.xpose.msra.mxu0 %v5997
    %6007 = vmatprep.subr.bf16.mxu0 0
    %6008 = vmatpush1.bf16.xpose.msra.mxu0 0
    %6009 = vmatprep.subr.bf16.mxu0 0
    %6010 = vmatpush1.bf16.xpose.msra.mxu0 0
    %6011 = vmatprep.subr.bf16.mxu0 0
    %6012 = vmatpush1.bf16.xpose.msra.mxu0 0
    %6013 = vmatprep.subr.bf16.mxu0 0
    %6014 = vmatpush1.bf16.xpose.msra.mxu0 0
    %6015 = vmatprep.subr.bf16.mxu0 0
    %6016 = vmatpush1.bf16.xpose.msra.mxu0 0
    %6017 = vmatprep.subr.bf16.mxu0 0
    %6018 = vmatpush1.bf16.xpose.msra.mxu0 0
    %6019 = vmatprep.subr.bf16.mxu0 0
    %6020 = vmatpush1.bf16.xpose.msra.mxu0 0
    %6021 = vmatprep.subr.bf16.mxu0 0
    %6022 = vmatpush1.bf16.xpose.msra.mxu0 0
    %6023 = vmatprep.subr.bf16.mxu0 0
    %6024 = vmatpush1.bf16.xpose.msra.mxu0 0
    %6025 = vmatprep.subr.bf16.mxu0 0
    %6026 = vmatpush1.bf16.xpose.msra.mxu0 0
    %6027 = vmatprep.subr.bf16.mxu0 0
    %6028 = vmatpush1.bf16.xpose.msra.mxu0 0
    %6029 = vmatprep.subr.bf16.mxu0 0
    %6030 = vmatpush1.bf16.xpose.msra.mxu0 0
    %6031 = vmatprep.mubr.bf16.mxu0 0
    %6032 = vmatmul.mubr.bf16.gmra.mrb[0].mxu0 %v5976
    %v6033 = vpop.f32.mrb[0].mxu0
    %v6034 = vadd.f32 %v4669, %v6033
    %v6035 = vpop.f32.mrb[0].mxu0
    %v6036 = vpop.f32.mrb[0].mxu0
    %v6037 = vadd.f32 %v4670, %v6036
    %v6038 = vpop.f32.mrb[0].mxu0
    %6039 = vmatprep.mubr.bf16.mxu0 0
    %6040 = vmatmul.mubr.bf16.gmra.mrb[0].mxu0 %v5979
    %v6041 = vpop.f32.mrb[0].mxu0
    %v6042 = vadd.f32 %v4671, %v6041
    %v6043 = vpop.f32.mrb[0].mxu0
    %v6044 = vpop.f32.mrb[0].mxu0
    %v6045 = vadd.f32 %v4672, %v6044
    %v6046 = vpop.f32.mrb[0].mxu0
    %6047 = vmatprep.mubr.bf16.mxu0 0
    %6048 = vmatmul.mubr.bf16.gmra.mrb[0].mxu0 %v5982
    %v6049 = vpop.f32.mrb[0].mxu0
    %v6050 = vadd.f32 %v4673, %v6049
    %v6051 = vpop.f32.mrb[0].mxu0
    %v6052 = vpop.f32.mrb[0].mxu0
    %v6053 = vadd.f32 %v4674, %v6052
    %v6054 = vpop.f32.mrb[0].mxu0
    %6055 = vmatprep.mubr.bf16.mxu0 0
    %6056 = vmatmul.mubr.bf16.gmra.mrb[0].mxu0 %v5985
    %v6057 = vpop.f32.mrb[0].mxu0
    %v6058 = vadd.f32 %v4675, %v6057
    %v6059 = vpop.f32.mrb[0].mxu0
    %v6060 = vpop.f32.mrb[0].mxu0
    %v6061 = vadd.f32 %v4676, %v6060
    %v6062 = vpop.f32.mrb[0].mxu0
    %6063 = vdwg.mxu0
    %v6064 = vsel %vm600, %v6034, -inf
    %6065 = vmax.xlane.f32.xlu0 %v6064
    %v6066 = vpop.xlane.xlu0 %6065
    %v6067 = vsel %vm600, %v6037, -inf
    %6068 = vmax.xlane.f32.xlu0 %v6067
    %v6069 = vpop.xlane.xlu0 %6068
    %v6070 = vsel %vm600, %v6042, -inf
    %6071 = vmax.xlane.f32.xlu0 %v6070
    %v6072 = vpop.xlane.xlu0 %6071
    %v6073 = vsel %vm600, %v6045, -inf
    %6074 = vmax.xlane.f32.xlu0 %v6073
    %v6075 = vpop.xlane.xlu0 %6074
    %v6076 = vsel %vm600, %v6050, -inf
    %6077 = vmax.xlane.f32.xlu0 %v6076
    %v6078 = vpop.xlane.xlu0 %6077
    %v6079 = vsel %vm600, %v6053, -inf
    %6080 = vmax.xlane.f32.xlu0 %v6079
    %v6081 = vpop.xlane.xlu0 %6080
    %v6082 = vsel %vm600, %v6058, -inf
    %6083 = vmax.xlane.f32.xlu0 %v6082
    %v6084 = vpop.xlane.xlu0 %6083
    %v6085 = vsel %vm600, %v6061, -inf
    %6086 = vmax.xlane.f32.xlu0 %v6085
    %v6087 = vpop.xlane.xlu0 %6086
    %v6088 = vsub.f32 %v6034, %v6066
    %v6089 = vsub.f32 %v6037, %v6069
    %v6090 = vsub.f32 %v6042, %v6072
    %v6091 = vsub.f32 %v6045, %v6075
    %v6092 = vsub.f32 %v6050, %v6078
    %v6093 = vsub.f32 %v6053, %v6081
    %v6094 = vsub.f32 %v6058, %v6084
    %v6095 = vsub.f32 %v6061, %v6087
    %v6096 = vmul.f32 %v6088, 1.442695
    %v6097 = vpow.pop %v6096
    %v6098 = vmul.f32 %v6089, 1.442695
    %v6099 = vpow.pop %v6098
    %v6100 = vmul.f32 %v6090, 1.442695
    %v6101 = vpow.pop %v6100
    %v6102 = vmul.f32 %v6091, 1.442695
    %v6103 = vpow.pop %v6102
    %v6104 = vmul.f32 %v6092, 1.442695
    %v6105 = vpow.pop %v6104
    %v6106 = vmul.f32 %v6093, 1.442695
    %v6107 = vpow.pop %v6106
    %v6108 = vmul.f32 %v6094, 1.442695
    %v6109 = vpow.pop %v6108
    %v6110 = vmul.f32 %v6095, 1.442695
    %v6111 = vpow.pop %v6110
    %v6112 = vsel %vm600, %v6097, 0.0
    %6113 = vadd.xlane.f32.xlu0 %v6112
    %v6114 = vpop.xlane.xlu0 %6113
    %v6115 = vsel %vm600, %v6099, 0.0
    %6116 = vadd.xlane.f32.xlu0 %v6115
    %v6117 = vpop.xlane.xlu0 %6116
    %v6118 = vsel %vm600, %v6101, 0.0
    %6119 = vadd.xlane.f32.xlu0 %v6118
    %v6120 = vpop.xlane.xlu0 %6119
    %v6121 = vsel %vm600, %v6103, 0.0
    %6122 = vadd.xlane.f32.xlu0 %v6121
    %v6123 = vpop.xlane.xlu0 %6122
    %v6124 = vsel %vm600, %v6105, 0.0
    %6125 = vadd.xlane.f32.xlu0 %v6124
    %v6126 = vpop.xlane.xlu0 %6125
    %v6127 = vsel %vm600, %v6107, 0.0
    %6128 = vadd.xlane.f32.xlu0 %v6127
    %v6129 = vpop.xlane.xlu0 %6128
    %v6130 = vsel %vm600, %v6109, 0.0
    %6131 = vadd.xlane.f32.xlu0 %v6130
    %v6132 = vpop.xlane.xlu0 %6131
    %v6133 = vsel %vm600, %v6111, 0.0
    %6134 = vadd.xlane.f32.xlu0 %v6133
    %v6135 = vpop.xlane.xlu0 %6134
    %v6136 = vrcp.pop %v6114
    %v6137 = vrcp.pop %v6117
    %v6138 = vrcp.pop %v6120
    %v6139 = vrcp.pop %v6123
    %v6140 = vrcp.pop %v6126
    %v6141 = vrcp.pop %v6129
    %v6142 = vrcp.pop %v6132
    %v6143 = vrcp.pop %v6135
    %v6144 = vmul.f32 %v6097, %v6136
    %v6145 = vmul.f32 %v6099, %v6137
    %v6146 = vmul.f32 %v6101, %v6138
    %v6147 = vmul.f32 %v6103, %v6139
    %v6148 = vmul.f32 %v6105, %v6140
    %v6149 = vmul.f32 %v6107, %v6141
    %v6150 = vmul.f32 %v6109, %v6142
    %v6151 = vmul.f32 %v6111, %v6143
    %v6152 = vpack.c.bf16 %v6145, %v6144
    %v6153 = vpack.c.bf16 %v6147, %v6146
    %v6154 = vpack.c.bf16 %v6149, %v6148
    %v6155 = vpack.c.bf16 %v6151, %v6150
    %6156 = vrot.lane.b32.xlu0 %v5673, 56
    %v6157 = vpop.permute.xlu0 %6156
    %6158 = vrot.lane.b32.xlu0 %v5674, 56
    %v6159 = vpop.permute.xlu0 %6158
    %6160 = vrot.lane.b32.xlu0 %v5675, 56
    %v6161 = vpop.permute.xlu0 %6160
    %6162 = vrot.lane.b32.xlu0 %v5676, 56
    %v6163 = vpop.permute.xlu0 %6162
    %v6169 = vsel %vm600, %v6152, 0
    %v6172 = vsel %vm600, %v6153, 0
    %v6175 = vsel %vm600, %v6154, 0
    %v6178 = vsel %vm600, %v6155, 0
    %6180 = vmatprep.subr.bf16.mxu0 0
    %6181 = vmatpush1.bf16.msra.mxu0 %v6157
    %6182 = vmatprep.subr.bf16.mxu0 0
    %6183 = vmatpush1.bf16.msra.mxu0 %v6159
    %6184 = vmatprep.subr.bf16.mxu0 0
    %6185 = vmatpush1.bf16.msra.mxu0 %v6161
    %6186 = vmatprep.subr.bf16.mxu0 0
    %6187 = vmatpush1.bf16.msra.mxu0 %v6163
    %6188 = vmatprep.subr.bf16.mxu0 0
    %6189 = vmatpush1.bf16.msra.mxu0 0
    %6190 = vmatprep.subr.bf16.mxu0 0
    %6191 = vmatpush1.bf16.msra.mxu0 0
    %6192 = vmatprep.subr.bf16.mxu0 0
    %6193 = vmatpush1.bf16.msra.mxu0 0
    %6194 = vmatprep.subr.bf16.mxu0 0
    %6195 = vmatpush1.bf16.msra.mxu0 0
    %6196 = vmatprep.subr.bf16.mxu0 0
    %6197 = vmatpush1.bf16.msra.mxu0 0
    %6198 = vmatprep.subr.bf16.mxu0 0
    %6199 = vmatpush1.bf16.msra.mxu0 0
    %6200 = vmatprep.subr.bf16.mxu0 0
    %6201 = vmatpush1.bf16.msra.mxu0 0
    %6202 = vmatprep.subr.bf16.mxu0 0
    %6203 = vmatpush1.bf16.msra.mxu0 0
    %6204 = vmatprep.subr.bf16.mxu0 0
    %6205 = vmatpush1.bf16.msra.mxu0 0
    %6206 = vmatprep.subr.bf16.mxu0 0
    %6207 = vmatpush1.bf16.msra.mxu0 0
    %6208 = vmatprep.subr.bf16.mxu0 0
    %6209 = vmatpush1.bf16.msra.mxu0 0
    %6210 = vmatprep.subr.bf16.mxu0 0
    %6211 = vmatpush1.bf16.msra.mxu0 0
    %6212 = vmatprep.mubr.bf16.mxu0 0
    %6213 = vmatmul.mubr.bf16.gmra.mrb[0].mxu0 %v6169
    %v6214 = vpop.f32.mrb[0].mxu0
    %v6215 = vadd.f32 0.0, %v6214
    %v6216 = vpop.f32.mrb[0].mxu0
    %v6217 = vpop.f32.mrb[0].mxu0
    %v6218 = vadd.f32 0.0, %v6217
    %v6219 = vpop.f32.mrb[0].mxu0
    %6220 = vmatprep.mubr.bf16.mxu0 0
    %6221 = vmatmul.mubr.bf16.gmra.mrb[0].mxu0 %v6172
    %v6222 = vpop.f32.mrb[0].mxu0
    %v6223 = vadd.f32 0.0, %v6222
    %v6224 = vpop.f32.mrb[0].mxu0
    %v6225 = vpop.f32.mrb[0].mxu0
    %v6226 = vadd.f32 0.0, %v6225
    %v6227 = vpop.f32.mrb[0].mxu0
    %6228 = vmatprep.mubr.bf16.mxu0 0
    %6229 = vmatmul.mubr.bf16.gmra.mrb[0].mxu0 %v6175
    %v6230 = vpop.f32.mrb[0].mxu0
    %v6231 = vadd.f32 0.0, %v6230
    %v6232 = vpop.f32.mrb[0].mxu0
    %v6233 = vpop.f32.mrb[0].mxu0
    %v6234 = vadd.f32 0.0, %v6233
    %v6235 = vpop.f32.mrb[0].mxu0
    %6236 = vmatprep.mubr.bf16.mxu0 0
    %6237 = vmatmul.mubr.bf16.gmra.mrb[0].mxu0 %v6178
    %v6238 = vpop.f32.mrb[0].mxu0
    %v6239 = vadd.f32 0.0, %v6238
    %v6240 = vpop.f32.mrb[0].mxu0
    %v6241 = vpop.f32.mrb[0].mxu0
    %v6242 = vadd.f32 0.0, %v6241
    %v6243 = vpop.f32.mrb[0].mxu0
    %6244 = vdwg.mxu0
    %6245 = vrot.lane.b32.xlu0 %v5673, 112
    %v6246 = vpop.permute.xlu0 %6245
    %6247 = vrot.lane.b32.xlu0 %v5674, 112
    %v6248 = vpop.permute.xlu0 %6247
    %6249 = vrot.lane.b32.xlu0 %v5675, 112
    %v6250 = vpop.permute.xlu0 %6249
    %6251 = vrot.lane.b32.xlu0 %v5676, 112
    %v6252 = vpop.permute.xlu0 %6251
    %6253 = vrot.lane.b32.xlu0 %v5673, 80
    %v6254 = vpop.permute.xlu0 %6253
    %6255 = vrot.lane.b32.xlu0 %v5674, 80
    %v6256 = vpop.permute.xlu0 %6255
    %6257 = vrot.lane.b32.xlu0 %v5675, 80
    %v6258 = vpop.permute.xlu0 %6257
    %6259 = vrot.lane.b32.xlu0 %v5676, 80
    %v6260 = vpop.permute.xlu0 %6259
    %v6262 = vsel %vm510, %v6246, 0
    %v6265 = vsel %vm510, %v6248, 0
    %v6268 = vsel %vm510, %v6250, 0
    %v6271 = vsel %vm510, %v6252, 0
    %v6274 = vsel %vm510, %v6254, 0
    %v6277 = vsel %vm510, %v6256, 0
    %v6280 = vsel %vm510, %v6258, 0
    %v6283 = vsel %vm510, %v6260, 0
    %6285 = vmatprep.subr.bf16.mxu0 0
    %6286 = vmatpush1.bf16.xpose.msra.mxu0 %v6274
    %6287 = vmatprep.subr.bf16.mxu0 0
    %6288 = vmatpush1.bf16.xpose.msra.mxu0 %v6277
    %6289 = vmatprep.subr.bf16.mxu0 0
    %6290 = vmatpush1.bf16.xpose.msra.mxu0 %v6280
    %6291 = vmatprep.subr.bf16.mxu0 0
    %6292 = vmatpush1.bf16.xpose.msra.mxu0 %v6283
    %6293 = vmatprep.subr.bf16.mxu0 0
    %6294 = vmatpush1.bf16.xpose.msra.mxu0 0
    %6295 = vmatprep.subr.bf16.mxu0 0
    %6296 = vmatpush1.bf16.xpose.msra.mxu0 0
    %6297 = vmatprep.subr.bf16.mxu0 0
    %6298 = vmatpush1.bf16.xpose.msra.mxu0 0
    %6299 = vmatprep.subr.bf16.mxu0 0
    %6300 = vmatpush1.bf16.xpose.msra.mxu0 0
    %6301 = vmatprep.subr.bf16.mxu0 0
    %6302 = vmatpush1.bf16.xpose.msra.mxu0 0
    %6303 = vmatprep.subr.bf16.mxu0 0
    %6304 = vmatpush1.bf16.xpose.msra.mxu0 0
    %6305 = vmatprep.subr.bf16.mxu0 0
    %6306 = vmatpush1.bf16.xpose.msra.mxu0 0
    %6307 = vmatprep.subr.bf16.mxu0 0
    %6308 = vmatpush1.bf16.xpose.msra.mxu0 0
    %6309 = vmatprep.subr.bf16.mxu0 0
    %6310 = vmatpush1.bf16.xpose.msra.mxu0 0
    %6311 = vmatprep.subr.bf16.mxu0 0
    %6312 = vmatpush1.bf16.xpose.msra.mxu0 0
    %6313 = vmatprep.subr.bf16.mxu0 0
    %6314 = vmatpush1.bf16.xpose.msra.mxu0 0
    %6315 = vmatprep.subr.bf16.mxu0 0
    %6316 = vmatpush1.bf16.xpose.msra.mxu0 0
    %6317 = vmatprep.mubr.bf16.mxu0 0
    %6318 = vmatmul.mubr.bf16.gmra.mrb[0].mxu0 %v6262
    %v6319 = vpop.f32.mrb[0].mxu0
    %v6320 = vadd.f32 %v4964, %v6319
    %v6321 = vpop.f32.mrb[0].mxu0
    %v6322 = vpop.f32.mrb[0].mxu0
    %v6323 = vadd.f32 %v4965, %v6322
    %v6324 = vpop.f32.mrb[0].mxu0
    %6325 = vmatprep.mubr.bf16.mxu0 0
    %6326 = vmatmul.mubr.bf16.gmra.mrb[0].mxu0 %v6265
    %v6327 = vpop.f32.mrb[0].mxu0
    %v6328 = vadd.f32 %v4966, %v6327
    %v6329 = vpop.f32.mrb[0].mxu0
    %v6330 = vpop.f32.mrb[0].mxu0
    %v6331 = vadd.f32 %v4967, %v6330
    %v6332 = vpop.f32.mrb[0].mxu0
    %6333 = vmatprep.mubr.bf16.mxu0 0
    %6334 = vmatmul.mubr.bf16.gmra.mrb[0].mxu0 %v6268
    %v6335 = vpop.f32.mrb[0].mxu0
    %v6336 = vadd.f32 %v4968, %v6335
    %v6337 = vpop.f32.mrb[0].mxu0
    %v6338 = vpop.f32.mrb[0].mxu0
    %v6339 = vadd.f32 %v4969, %v6338
    %v6340 = vpop.f32.mrb[0].mxu0
    %6341 = vmatprep.mubr.bf16.mxu0 0
    %6342 = vmatmul.mubr.bf16.gmra.mrb[0].mxu0 %v6271
    %v6343 = vpop.f32.mrb[0].mxu0
    %v6344 = vadd.f32 %v4970, %v6343
    %v6345 = vpop.f32.mrb[0].mxu0
    %v6346 = vpop.f32.mrb[0].mxu0
    %v6347 = vadd.f32 %v4971, %v6346
    %v6348 = vpop.f32.mrb[0].mxu0
    %6349 = vdwg.mxu0
    %v6350 = vsel %vm600, %v6320, -inf
    %6351 = vmax.xlane.f32.xlu0 %v6350
    %v6352 = vpop.xlane.xlu0 %6351
    %v6353 = vsel %vm600, %v6323, -inf
    %6354 = vmax.xlane.f32.xlu0 %v6353
    %v6355 = vpop.xlane.xlu0 %6354
    %v6356 = vsel %vm600, %v6328, -inf
    %6357 = vmax.xlane.f32.xlu0 %v6356
    %v6358 = vpop.xlane.xlu0 %6357
    %v6359 = vsel %vm600, %v6331, -inf
    %6360 = vmax.xlane.f32.xlu0 %v6359
    %v6361 = vpop.xlane.xlu0 %6360
    %v6362 = vsel %vm600, %v6336, -inf
    %6363 = vmax.xlane.f32.xlu0 %v6362
    %v6364 = vpop.xlane.xlu0 %6363
    %v6365 = vsel %vm600, %v6339, -inf
    %6366 = vmax.xlane.f32.xlu0 %v6365
    %v6367 = vpop.xlane.xlu0 %6366
    %v6368 = vsel %vm600, %v6344, -inf
    %6369 = vmax.xlane.f32.xlu0 %v6368
    %v6370 = vpop.xlane.xlu0 %6369
    %v6371 = vsel %vm600, %v6347, -inf
    %6372 = vmax.xlane.f32.xlu0 %v6371
    %v6373 = vpop.xlane.xlu0 %6372
    %v6374 = vsub.f32 %v6320, %v6352
    %v6375 = vsub.f32 %v6323, %v6355
    %v6376 = vsub.f32 %v6328, %v6358
    %v6377 = vsub.f32 %v6331, %v6361
    %v6378 = vsub.f32 %v6336, %v6364
    %v6379 = vsub.f32 %v6339, %v6367
    %v6380 = vsub.f32 %v6344, %v6370
    %v6381 = vsub.f32 %v6347, %v6373
    %v6382 = vmul.f32 %v6374, 1.442695
    %v6383 = vpow.pop %v6382
    %v6384 = vmul.f32 %v6375, 1.442695
    %v6385 = vpow.pop %v6384
    %v6386 = vmul.f32 %v6376, 1.442695
    %v6387 = vpow.pop %v6386
    %v6388 = vmul.f32 %v6377, 1.442695
    %v6389 = vpow.pop %v6388
    %v6390 = vmul.f32 %v6378, 1.442695
    %v6391 = vpow.pop %v6390
    %v6392 = vmul.f32 %v6379, 1.442695
    %v6393 = vpow.pop %v6392
    %v6394 = vmul.f32 %v6380, 1.442695
    %v6395 = vpow.pop %v6394
    %v6396 = vmul.f32 %v6381, 1.442695
    %v6397 = vpow.pop %v6396
    %v6398 = vsel %vm600, %v6383, 0.0
    %6399 = vadd.xlane.f32.xlu0 %v6398
    %v6400 = vpop.xlane.xlu0 %6399
    %v6401 = vsel %vm600, %v6385, 0.0
    %6402 = vadd.xlane.f32.xlu0 %v6401
    %v6403 = vpop.xlane.xlu0 %6402
    %v6404 = vsel %vm600, %v6387, 0.0
    %6405 = vadd.xlane.f32.xlu0 %v6404
    %v6406 = vpop.xlane.xlu0 %6405
    %v6407 = vsel %vm600, %v6389, 0.0
    %6408 = vadd.xlane.f32.xlu0 %v6407
    %v6409 = vpop.xlane.xlu0 %6408
    %v6410 = vsel %vm600, %v6391, 0.0
    %6411 = vadd.xlane.f32.xlu0 %v6410
    %v6412 = vpop.xlane.xlu0 %6411
    %v6413 = vsel %vm600, %v6393, 0.0
    %6414 = vadd.xlane.f32.xlu0 %v6413
    %v6415 = vpop.xlane.xlu0 %6414
    %v6416 = vsel %vm600, %v6395, 0.0
    %6417 = vadd.xlane.f32.xlu0 %v6416
    %v6418 = vpop.xlane.xlu0 %6417
    %v6419 = vsel %vm600, %v6397, 0.0
    %6420 = vadd.xlane.f32.xlu0 %v6419
    %v6421 = vpop.xlane.xlu0 %6420
    %v6422 = vrcp.pop %v6400
    %v6423 = vrcp.pop %v6403
    %v6424 = vrcp.pop %v6406
    %v6425 = vrcp.pop %v6409
    %v6426 = vrcp.pop %v6412
    %v6427 = vrcp.pop %v6415
    %v6428 = vrcp.pop %v6418
    %v6429 = vrcp.pop %v6421
    %v6430 = vmul.f32 %v6383, %v6422
    %v6431 = vmul.f32 %v6385, %v6423
    %v6432 = vmul.f32 %v6387, %v6424
    %v6433 = vmul.f32 %v6389, %v6425
    %v6434 = vmul.f32 %v6391, %v6426
    %v6435 = vmul.f32 %v6393, %v6427
    %v6436 = vmul.f32 %v6395, %v6428
    %v6437 = vmul.f32 %v6397, %v6429
    %v6438 = vpack.c.bf16 %v6431, %v6430
    %v6439 = vpack.c.bf16 %v6433, %v6432
    %v6440 = vpack.c.bf16 %v6435, %v6434
    %v6441 = vpack.c.bf16 %v6437, %v6436
    %6442 = vrot.lane.b32.xlu0 %v5673, 48
    %v6443 = vpop.permute.xlu0 %6442
    %6444 = vrot.lane.b32.xlu0 %v5674, 48
    %v6445 = vpop.permute.xlu0 %6444
    %6446 = vrot.lane.b32.xlu0 %v5675, 48
    %v6447 = vpop.permute.xlu0 %6446
    %6448 = vrot.lane.b32.xlu0 %v5676, 48
    %v6449 = vpop.permute.xlu0 %6448
    %v6455 = vsel %vm600, %v6438, 0
    %v6458 = vsel %vm600, %v6439, 0
    %v6461 = vsel %vm600, %v6440, 0
    %v6464 = vsel %vm600, %v6441, 0
    %6466 = vmatprep.subr.bf16.mxu0 0
    %6467 = vmatpush1.bf16.msra.mxu0 %v6443
    %6468 = vmatprep.subr.bf16.mxu0 0
    %6469 = vmatpush1.bf16.msra.mxu0 %v6445
    %6470 = vmatprep.subr.bf16.mxu0 0
    %6471 = vmatpush1.bf16.msra.mxu0 %v6447
    %6472 = vmatprep.subr.bf16.mxu0 0
    %6473 = vmatpush1.bf16.msra.mxu0 %v6449
    %6474 = vmatprep.subr.bf16.mxu0 0
    %6475 = vmatpush1.bf16.msra.mxu0 0
    %6476 = vmatprep.subr.bf16.mxu0 0
    %6477 = vmatpush1.bf16.msra.mxu0 0
    %6478 = vmatprep.subr.bf16.mxu0 0
    %6479 = vmatpush1.bf16.msra.mxu0 0
    %6480 = vmatprep.subr.bf16.mxu0 0
    %6481 = vmatpush1.bf16.msra.mxu0 0
    %6482 = vmatprep.subr.bf16.mxu0 0
    %6483 = vmatpush1.bf16.msra.mxu0 0
    %6484 = vmatprep.subr.bf16.mxu0 0
    %6485 = vmatpush1.bf16.msra.mxu0 0
    %6486 = vmatprep.subr.bf16.mxu0 0
    %6487 = vmatpush1.bf16.msra.mxu0 0
    %6488 = vmatprep.subr.bf16.mxu0 0
    %6489 = vmatpush1.bf16.msra.mxu0 0
    %6490 = vmatprep.subr.bf16.mxu0 0
    %6491 = vmatpush1.bf16.msra.mxu0 0
    %6492 = vmatprep.subr.bf16.mxu0 0
    %6493 = vmatpush1.bf16.msra.mxu0 0
    %6494 = vmatprep.subr.bf16.mxu0 0
    %6495 = vmatpush1.bf16.msra.mxu0 0
    %6496 = vmatprep.subr.bf16.mxu0 0
    %6497 = vmatpush1.bf16.msra.mxu0 0
    %6498 = vmatprep.mubr.bf16.mxu0 0
    %6499 = vmatmul.mubr.bf16.gmra.mrb[0].mxu0 %v6455
    %v6500 = vpop.f32.mrb[0].mxu0
    %v6501 = vadd.f32 0.0, %v6500
    %v6502 = vpop.f32.mrb[0].mxu0
    %v6503 = vpop.f32.mrb[0].mxu0
    %v6504 = vadd.f32 0.0, %v6503
    %v6505 = vpop.f32.mrb[0].mxu0
    %6506 = vmatprep.mubr.bf16.mxu0 0
    %6507 = vmatmul.mubr.bf16.gmra.mrb[0].mxu0 %v6458
    %v6508 = vpop.f32.mrb[0].mxu0
    %v6509 = vadd.f32 0.0, %v6508
    %v6510 = vpop.f32.mrb[0].mxu0
    %v6511 = vpop.f32.mrb[0].mxu0
    %v6512 = vadd.f32 0.0, %v6511
    %v6513 = vpop.f32.mrb[0].mxu0
    %6514 = vmatprep.mubr.bf16.mxu0 0
    %6515 = vmatmul.mubr.bf16.gmra.mrb[0].mxu0 %v6461
    %v6516 = vpop.f32.mrb[0].mxu0
    %v6517 = vadd.f32 0.0, %v6516
    %v6518 = vpop.f32.mrb[0].mxu0
    %v6519 = vpop.f32.mrb[0].mxu0
    %v6520 = vadd.f32 0.0, %v6519
    %v6521 = vpop.f32.mrb[0].mxu0
    %6522 = vmatprep.mubr.bf16.mxu0 0
    %6523 = vmatmul.mubr.bf16.gmra.mrb[0].mxu0 %v6464
    %v6524 = vpop.f32.mrb[0].mxu0
    %v6525 = vadd.f32 0.0, %v6524
    %v6526 = vpop.f32.mrb[0].mxu0
    %v6527 = vpop.f32.mrb[0].mxu0
    %v6528 = vadd.f32 0.0, %v6527
    %v6529 = vpop.f32.mrb[0].mxu0
    %6530 = vdwg.mxu0
    %6531 = vrot.lane.b32.xlu0 %v5673, 104
    %v6532 = vpop.permute.xlu0 %6531
    %6533 = vrot.lane.b32.xlu0 %v5674, 104
    %v6534 = vpop.permute.xlu0 %6533
    %6535 = vrot.lane.b32.xlu0 %v5675, 104
    %v6536 = vpop.permute.xlu0 %6535
    %6537 = vrot.lane.b32.xlu0 %v5676, 104
    %v6538 = vpop.permute.xlu0 %6537
    %6539 = vrot.lane.b32.xlu0 %v5673, 72
    %v6540 = vpop.permute.xlu0 %6539
    %6541 = vrot.lane.b32.xlu0 %v5674, 72
    %v6542 = vpop.permute.xlu0 %6541
    %6543 = vrot.lane.b32.xlu0 %v5675, 72
    %v6544 = vpop.permute.xlu0 %6543
    %6545 = vrot.lane.b32.xlu0 %v5676, 72
    %v6546 = vpop.permute.xlu0 %6545
    %v6548 = vsel %vm510, %v6532, 0
    %v6551 = vsel %vm510, %v6534, 0
    %v6554 = vsel %vm510, %v6536, 0
    %v6557 = vsel %vm510, %v6538, 0
    %v6560 = vsel %vm510, %v6540, 0
    %v6563 = vsel %vm510, %v6542, 0
    %v6566 = vsel %vm510, %v6544, 0
    %v6569 = vsel %vm510, %v6546, 0
    %6571 = vmatprep.subr.bf16.mxu0 0
    %6572 = vmatpush1.bf16.xpose.msra.mxu0 %v6560
    %6573 = vmatprep.subr.bf16.mxu0 0
    %6574 = vmatpush1.bf16.xpose.msra.mxu0 %v6563
    %6575 = vmatprep.subr.bf16.mxu0 0
    %6576 = vmatpush1.bf16.xpose.msra.mxu0 %v6566
    %6577 = vmatprep.subr.bf16.mxu0 0
    %6578 = vmatpush1.bf16.xpose.msra.mxu0 %v6569
    %6579 = vmatprep.subr.bf16.mxu0 0
    %6580 = vmatpush1.bf16.xpose.msra.mxu0 0
    %6581 = vmatprep.subr.bf16.mxu0 0
    %6582 = vmatpush1.bf16.xpose.msra.mxu0 0
    %6583 = vmatprep.subr.bf16.mxu0 0
    %6584 = vmatpush1.bf16.xpose.msra.mxu0 0
    %6585 = vmatprep.subr.bf16.mxu0 0
    %6586 = vmatpush1.bf16.xpose.msra.mxu0 0
    %6587 = vmatprep.subr.bf16.mxu0 0
    %6588 = vmatpush1.bf16.xpose.msra.mxu0 0
    %6589 = vmatprep.subr.bf16.mxu0 0
    %6590 = vmatpush1.bf16.xpose.msra.mxu0 0
    %6591 = vmatprep.subr.bf16.mxu0 0
    %6592 = vmatpush1.bf16.xpose.msra.mxu0 0
    %6593 = vmatprep.subr.bf16.mxu0 0
    %6594 = vmatpush1.bf16.xpose.msra.mxu0 0
    %6595 = vmatprep.subr.bf16.mxu0 0
    %6596 = vmatpush1.bf16.xpose.msra.mxu0 0
    %6597 = vmatprep.subr.bf16.mxu0 0
    %6598 = vmatpush1.bf16.xpose.msra.mxu0 0
    %6599 = vmatprep.subr.bf16.mxu0 0
    %6600 = vmatpush1.bf16.xpose.msra.mxu0 0
    %6601 = vmatprep.subr.bf16.mxu0 0
    %6602 = vmatpush1.bf16.xpose.msra.mxu0 0
    %6603 = vmatprep.mubr.bf16.mxu0 0
    %6604 = vmatmul.mubr.bf16.gmra.mrb[0].mxu0 %v6548
    %v6605 = vpop.f32.mrb[0].mxu0
    %v6606 = vadd.f32 %v5259, %v6605
    %v6607 = vpop.f32.mrb[0].mxu0
    %v6608 = vpop.f32.mrb[0].mxu0
    %v6609 = vadd.f32 %v5260, %v6608
    %v6610 = vpop.f32.mrb[0].mxu0
    %6611 = vmatprep.mubr.bf16.mxu0 0
    %6612 = vmatmul.mubr.bf16.gmra.mrb[0].mxu0 %v6551
    %v6613 = vpop.f32.mrb[0].mxu0
    %v6614 = vadd.f32 %v5261, %v6613
    %v6615 = vpop.f32.mrb[0].mxu0
    %v6616 = vpop.f32.mrb[0].mxu0
    %v6617 = vadd.f32 %v5262, %v6616
    %v6618 = vpop.f32.mrb[0].mxu0
    %6619 = vmatprep.mubr.bf16.mxu0 0
    %6620 = vmatmul.mubr.bf16.gmra.mrb[0].mxu0 %v6554
    %v6621 = vpop.f32.mrb[0].mxu0
    %v6622 = vadd.f32 %v5263, %v6621
    %v6623 = vpop.f32.mrb[0].mxu0
    %v6624 = vpop.f32.mrb[0].mxu0
    %v6625 = vadd.f32 %v5264, %v6624
    %v6626 = vpop.f32.mrb[0].mxu0
    %6627 = vmatprep.mubr.bf16.mxu0 0
    %6628 = vmatmul.mubr.bf16.gmra.mrb[0].mxu0 %v6557
    %v6629 = vpop.f32.mrb[0].mxu0
    %v6630 = vadd.f32 %v5265, %v6629
    %v6631 = vpop.f32.mrb[0].mxu0
    %v6632 = vpop.f32.mrb[0].mxu0
    %v6633 = vadd.f32 %v5266, %v6632
    %v6634 = vpop.f32.mrb[0].mxu0
    %6635 = vdwg.mxu0
    %v6636 = vsel %vm600, %v6606, -inf
    %6637 = vmax.xlane.f32.xlu0 %v6636
    %v6638 = vpop.xlane.xlu0 %6637
    %v6639 = vsel %vm600, %v6609, -inf
    %6640 = vmax.xlane.f32.xlu0 %v6639
    %v6641 = vpop.xlane.xlu0 %6640
    %v6642 = vsel %vm600, %v6614, -inf
    %6643 = vmax.xlane.f32.xlu0 %v6642
    %v6644 = vpop.xlane.xlu0 %6643
    %v6645 = vsel %vm600, %v6617, -inf
    %6646 = vmax.xlane.f32.xlu0 %v6645
    %v6647 = vpop.xlane.xlu0 %6646
    %v6648 = vsel %vm600, %v6622, -inf
    %6649 = vmax.xlane.f32.xlu0 %v6648
    %v6650 = vpop.xlane.xlu0 %6649
    %v6651 = vsel %vm600, %v6625, -inf
    %6652 = vmax.xlane.f32.xlu0 %v6651
    %v6653 = vpop.xlane.xlu0 %6652
    %v6654 = vsel %vm600, %v6630, -inf
    %6655 = vmax.xlane.f32.xlu0 %v6654
    %v6656 = vpop.xlane.xlu0 %6655
    %v6657 = vsel %vm600, %v6633, -inf
    %6658 = vmax.xlane.f32.xlu0 %v6657
    %v6659 = vpop.xlane.xlu0 %6658
    %v6660 = vsub.f32 %v6606, %v6638
    %v6661 = vsub.f32 %v6609, %v6641
    %v6662 = vsub.f32 %v6614, %v6644
    %v6663 = vsub.f32 %v6617, %v6647
    %v6664 = vsub.f32 %v6622, %v6650
    %v6665 = vsub.f32 %v6625, %v6653
    %v6666 = vsub.f32 %v6630, %v6656
    %v6667 = vsub.f32 %v6633, %v6659
    %v6668 = vmul.f32 %v6660, 1.442695
    %v6669 = vpow.pop %v6668
    %v6670 = vmul.f32 %v6661, 1.442695
    %v6671 = vpow.pop %v6670
    %v6672 = vmul.f32 %v6662, 1.442695
    %v6673 = vpow.pop %v6672
    %v6674 = vmul.f32 %v6663, 1.442695
    %v6675 = vpow.pop %v6674
    %v6676 = vmul.f32 %v6664, 1.442695
    %v6677 = vpow.pop %v6676
    %v6678 = vmul.f32 %v6665, 1.442695
    %v6679 = vpow.pop %v6678
    %v6680 = vmul.f32 %v6666, 1.442695
    %v6681 = vpow.pop %v6680
    %v6682 = vmul.f32 %v6667, 1.442695
    %v6683 = vpow.pop %v6682
    %v6684 = vsel %vm600, %v6669, 0.0
    %6685 = vadd.xlane.f32.xlu0 %v6684
    %v6686 = vpop.xlane.xlu0 %6685
    %v6687 = vsel %vm600, %v6671, 0.0
    %6688 = vadd.xlane.f32.xlu0 %v6687
    %v6689 = vpop.xlane.xlu0 %6688
    %v6690 = vsel %vm600, %v6673, 0.0
    %6691 = vadd.xlane.f32.xlu0 %v6690
    %v6692 = vpop.xlane.xlu0 %6691
    %v6693 = vsel %vm600, %v6675, 0.0
    %6694 = vadd.xlane.f32.xlu0 %v6693
    %v6695 = vpop.xlane.xlu0 %6694
    %v6696 = vsel %vm600, %v6677, 0.0
    %6697 = vadd.xlane.f32.xlu0 %v6696
    %v6698 = vpop.xlane.xlu0 %6697
    %v6699 = vsel %vm600, %v6679, 0.0
    %6700 = vadd.xlane.f32.xlu0 %v6699
    %v6701 = vpop.xlane.xlu0 %6700
    %v6702 = vsel %vm600, %v6681, 0.0
    %6703 = vadd.xlane.f32.xlu0 %v6702
    %v6704 = vpop.xlane.xlu0 %6703
    %v6705 = vsel %vm600, %v6683, 0.0
    %6706 = vadd.xlane.f32.xlu0 %v6705
    %v6707 = vpop.xlane.xlu0 %6706
    %v6708 = vrcp.pop %v6686
    %v6709 = vrcp.pop %v6689
    %v6710 = vrcp.pop %v6692
    %v6711 = vrcp.pop %v6695
    %v6712 = vrcp.pop %v6698
    %v6713 = vrcp.pop %v6701
    %v6714 = vrcp.pop %v6704
    %v6715 = vrcp.pop %v6707
    %v6716 = vmul.f32 %v6669, %v6708
    %v6717 = vmul.f32 %v6671, %v6709
    %v6718 = vmul.f32 %v6673, %v6710
    %v6719 = vmul.f32 %v6675, %v6711
    %v6720 = vmul.f32 %v6677, %v6712
    %v6721 = vmul.f32 %v6679, %v6713
    %v6722 = vmul.f32 %v6681, %v6714
    %v6723 = vmul.f32 %v6683, %v6715
    %v6724 = vpack.c.bf16 %v6717, %v6716
    %v6725 = vpack.c.bf16 %v6719, %v6718
    %v6726 = vpack.c.bf16 %v6721, %v6720
    %v6727 = vpack.c.bf16 %v6723, %v6722
    %6728 = vrot.lane.b32.xlu0 %v5673, 40
    %v6729 = vpop.permute.xlu0 %6728
    %6730 = vrot.lane.b32.xlu0 %v5674, 40
    %v6731 = vpop.permute.xlu0 %6730
    %6732 = vrot.lane.b32.xlu0 %v5675, 40
    %v6733 = vpop.permute.xlu0 %6732
    %6734 = vrot.lane.b32.xlu0 %v5676, 40
    %v6735 = vpop.permute.xlu0 %6734
    %v6741 = vsel %vm600, %v6724, 0
    %v6744 = vsel %vm600, %v6725, 0
    %v6747 = vsel %vm600, %v6726, 0
    %v6750 = vsel %vm600, %v6727, 0
    %6752 = vmatprep.subr.bf16.mxu0 0
    %6753 = vmatpush1.bf16.msra.mxu0 %v6729
    %6754 = vmatprep.subr.bf16.mxu0 0
    %6755 = vmatpush1.bf16.msra.mxu0 %v6731
    %6756 = vmatprep.subr.bf16.mxu0 0
    %6757 = vmatpush1.bf16.msra.mxu0 %v6733
    %6758 = vmatprep.subr.bf16.mxu0 0
    %6759 = vmatpush1.bf16.msra.mxu0 %v6735
    %6760 = vmatprep.subr.bf16.mxu0 0
    %6761 = vmatpush1.bf16.msra.mxu0 0
    %6762 = vmatprep.subr.bf16.mxu0 0
    %6763 = vmatpush1.bf16.msra.mxu0 0
    %6764 = vmatprep.subr.bf16.mxu0 0
    %6765 = vmatpush1.bf16.msra.mxu0 0
    %6766 = vmatprep.subr.bf16.mxu0 0
    %6767 = vmatpush1.bf16.msra.mxu0 0
    %6768 = vmatprep.subr.bf16.mxu0 0
    %6769 = vmatpush1.bf16.msra.mxu0 0
    %6770 = vmatprep.subr.bf16.mxu0 0
    %6771 = vmatpush1.bf16.msra.mxu0 0
    %6772 = vmatprep.subr.bf16.mxu0 0
    %6773 = vmatpush1.bf16.msra.mxu0 0
    %6774 = vmatprep.subr.bf16.mxu0 0
    %6775 = vmatpush1.bf16.msra.mxu0 0
    %6776 = vmatprep.subr.bf16.mxu0 0
    %6777 = vmatpush1.bf16.msra.mxu0 0
    %6778 = vmatprep.subr.bf16.mxu0 0
    %6779 = vmatpush1.bf16.msra.mxu0 0
    %6780 = vmatprep.subr.bf16.mxu0 0
    %6781 = vmatpush1.bf16.msra.mxu0 0
    %6782 = vmatprep.subr.bf16.mxu0 0
    %6783 = vmatpush1.bf16.msra.mxu0 0
    %6784 = vmatprep.mubr.bf16.mxu0 0
    %6785 = vmatmul.mubr.bf16.gmra.mrb[0].mxu0 %v6741
    %v6786 = vpop.f32.mrb[0].mxu0
    %v6787 = vadd.f32 0.0, %v6786
    %v6788 = vpop.f32.mrb[0].mxu0
    %v6789 = vpop.f32.mrb[0].mxu0
    %v6790 = vadd.f32 0.0, %v6789
    %v6791 = vpop.f32.mrb[0].mxu0
    %6792 = vmatprep.mubr.bf16.mxu0 0
    %6793 = vmatmul.mubr.bf16.gmra.mrb[0].mxu0 %v6744
    %v6794 = vpop.f32.mrb[0].mxu0
    %v6795 = vadd.f32 0.0, %v6794
    %v6796 = vpop.f32.mrb[0].mxu0
    %v6797 = vpop.f32.mrb[0].mxu0
    %v6798 = vadd.f32 0.0, %v6797
    %v6799 = vpop.f32.mrb[0].mxu0
    %6800 = vmatprep.mubr.bf16.mxu0 0
    %6801 = vmatmul.mubr.bf16.gmra.mrb[0].mxu0 %v6747
    %v6802 = vpop.f32.mrb[0].mxu0
    %v6803 = vadd.f32 0.0, %v6802
    %v6804 = vpop.f32.mrb[0].mxu0
    %v6805 = vpop.f32.mrb[0].mxu0
    %v6806 = vadd.f32 0.0, %v6805
    %v6807 = vpop.f32.mrb[0].mxu0
    %6808 = vmatprep.mubr.bf16.mxu0 0
    %6809 = vmatmul.mubr.bf16.gmra.mrb[0].mxu0 %v6750
    %v6810 = vpop.f32.mrb[0].mxu0
    %v6811 = vadd.f32 0.0, %v6810
    %v6812 = vpop.f32.mrb[0].mxu0
    %v6813 = vpop.f32.mrb[0].mxu0
    %v6814 = vadd.f32 0.0, %v6813
    %v6815 = vpop.f32.mrb[0].mxu0
    %6816 = vdwg.mxu0
    %6825 = vrot.lane.b32.xlu0 %v6215, 8
    %v6826 = vpop.permute.xlu0 %6825
    %6827 = vrot.lane.b32.xlu0 %v6218, 8
    %v6828 = vpop.permute.xlu0 %6827
    %6829 = vrot.lane.b32.xlu0 %v6223, 8
    %v6830 = vpop.permute.xlu0 %6829
    %6831 = vrot.lane.b32.xlu0 %v6226, 8
    %v6832 = vpop.permute.xlu0 %6831
    %6833 = vrot.lane.b32.xlu0 %v6231, 8
    %v6834 = vpop.permute.xlu0 %6833
    %6835 = vrot.lane.b32.xlu0 %v6234, 8
    %v6836 = vpop.permute.xlu0 %6835
    %6837 = vrot.lane.b32.xlu0 %v6239, 8
    %v6838 = vpop.permute.xlu0 %6837
    %6839 = vrot.lane.b32.xlu0 %v6242, 8
    %v6840 = vpop.permute.xlu0 %6839
    %6857 = vrot.lane.b32.xlu0 %v6501, 16
    %v6858 = vpop.permute.xlu0 %6857
    %6859 = vrot.lane.b32.xlu0 %v6504, 16
    %v6860 = vpop.permute.xlu0 %6859
    %6861 = vrot.lane.b32.xlu0 %v6509, 16
    %v6862 = vpop.permute.xlu0 %6861
    %6863 = vrot.lane.b32.xlu0 %v6512, 16
    %v6864 = vpop.permute.xlu0 %6863
    %6865 = vrot.lane.b32.xlu0 %v6517, 16
    %v6866 = vpop.permute.xlu0 %6865
    %6867 = vrot.lane.b32.xlu0 %v6520, 16
    %v6868 = vpop.permute.xlu0 %6867
    %6869 = vrot.lane.b32.xlu0 %v6525, 16
    %v6870 = vpop.permute.xlu0 %6869
    %6871 = vrot.lane.b32.xlu0 %v6528, 16
    %v6872 = vpop.permute.xlu0 %6871
    %6889 = vrot.lane.b32.xlu0 %v6787, 24
    %v6890 = vpop.permute.xlu0 %6889
    %6891 = vrot.lane.b32.xlu0 %v6790, 24
    %v6892 = vpop.permute.xlu0 %6891
    %6893 = vrot.lane.b32.xlu0 %v6795, 24
    %v6894 = vpop.permute.xlu0 %6893
    %6895 = vrot.lane.b32.xlu0 %v6798, 24
    %v6896 = vpop.permute.xlu0 %6895
    %6897 = vrot.lane.b32.xlu0 %v6803, 24
    %v6898 = vpop.permute.xlu0 %6897
    %6899 = vrot.lane.b32.xlu0 %v6806, 24
    %v6900 = vpop.permute.xlu0 %6899
    %6901 = vrot.lane.b32.xlu0 %v6811, 24
    %v6902 = vpop.permute.xlu0 %6901
    %6903 = vrot.lane.b32.xlu0 %v6814, 24
    %v6904 = vpop.permute.xlu0 %6903
    %v6913 = vsel %vm510, %v5929, %v6826
    %v6914 = vsel %vm510, %v5932, %v6828
    %v6915 = vsel %vm510, %v5937, %v6830
    %v6916 = vsel %vm510, %v5940, %v6832
    %v6917 = vsel %vm510, %v5945, %v6834
    %v6918 = vsel %vm510, %v5948, %v6836
    %v6919 = vsel %vm510, %v5953, %v6838
    %v6920 = vsel %vm510, %v5956, %v6840
    %v6921 = vsel %vm1771, %v6913, %v6858
    %v6922 = vsel %vm1771, %v6914, %v6860
    %v6923 = vsel %vm1771, %v6915, %v6862
    %v6924 = vsel %vm1771, %v6916, %v6864
    %v6925 = vsel %vm1771, %v6917, %v6866
    %v6926 = vsel %vm1771, %v6918, %v6868
    %v6927 = vsel %vm1771, %v6919, %v6870
    %v6928 = vsel %vm1771, %v6920, %v6872
    %v6929 = vsel %vm1780, %v6921, %v6890
    %v6930 = vsel %vm1780, %v6922, %v6892
    %v6931 = vsel %vm1780, %v6923, %v6894
    %v6932 = vsel %vm1780, %v6924, %v6896
    %v6933 = vsel %vm1780, %v6925, %v6898
    %v6934 = vsel %vm1780, %v6926, %v6900
    %v6935 = vsel %vm1780, %v6927, %v6902
    %v6936 = vsel %vm1780, %v6928, %v6904
    %v6937 = vpack.c.bf16 %v5666, %v5665
    %v6938 = vpack.c.bf16 %v5668, %v5667
    %v6939 = vpack.c.bf16 %v5670, %v5669
    %v6940 = vpack.c.bf16 %v5672, %v5671
    %v6941 = vpack.c.bf16 %v6930, %v6929
    %v6942 = vpack.c.bf16 %v6932, %v6931
    %v6943 = vpack.c.bf16 %v6934, %v6933
    %v6944 = vpack.c.bf16 %v6936, %v6935
    %s6945 = scalar_lea.vmem %s6, 16
    %v6946 = vld [vmem:[%s6945] sm:$0xf]
    %v6947 = vld [vmem:[%s6945 + $0x4] sm:$0xf]
    %v6948 = vld [vmem:[%s6945 + $0x8] sm:$0xf]
    %v6949 = vld [vmem:[%s6945 + $0xc] sm:$0xf]
    %s6950 = scalar_lea.vmem %s7, 1
    %v6951 = vld [vmem:[%s6950] sm:$0x1]
    %v6953 = vlaneseq
    %v6954 = vshrl.u32 %v6953, 7
    %v6955 = vsub.s32 0, %v6954
    %v6956 = vrot.slane %v6951, %v6955
    %v6962 = vunpack.c.l.b16 %v6946
    %v6963 = vunpack.c.l.b16 %v6947
    %v6964 = vunpack.c.l.b16 %v6948
    %v6965 = vunpack.c.l.b16 %v6949
    %v6966 = vpack.c.b16 %v6963, %v6962
    %v6967 = vpack.c.b16 %v6965, %v6964
    %v6971 = vsel %vm80, %v6937, 0
    %v6974 = vsel %vm80, %v6938, 0
    %v6977 = vsel %vm80, %v6939, 0
    %v6980 = vsel %vm80, %v6940, 0
    %v6983 = vsel %vm80, %v6941, 0
    %v6986 = vsel %vm80, %v6942, 0
    %v6989 = vsel %vm80, %v6943, 0
    %v6992 = vsel %vm80, %v6944, 0
    %6994 = vmatprep.subr.bf16.mxu0 0
    %6995 = vmatpush1.bf16.msra.mxu0 %v6966
    %6996 = vmatprep.subr.bf16.mxu0 0
    %6997 = vmatpush1.bf16.msra.mxu0 %v6967
    %6998 = vmatprep.subr.bf16.mxu0 0
    %6999 = vmatpush1.bf16.msra.mxu0 0
    %7000 = vmatprep.subr.bf16.mxu0 0
    %7001 = vmatpush1.bf16.msra.mxu0 0
    %7002 = vmatprep.subr.bf16.mxu0 0
    %7003 = vmatpush1.bf16.msra.mxu0 0
    %7004 = vmatprep.subr.bf16.mxu0 0
    %7005 = vmatpush1.bf16.msra.mxu0 0
    %7006 = vmatprep.subr.bf16.mxu0 0
    %7007 = vmatpush1.bf16.msra.mxu0 0
    %7008 = vmatprep.subr.bf16.mxu0 0
    %7009 = vmatpush1.bf16.msra.mxu0 0
    %7010 = vmatprep.subr.bf16.mxu0 0
    %7011 = vmatpush1.bf16.msra.mxu0 0
    %7012 = vmatprep.subr.bf16.mxu0 0
    %7013 = vmatpush1.bf16.msra.mxu0 0
    %7014 = vmatprep.subr.bf16.mxu0 0
    %7015 = vmatpush1.bf16.msra.mxu0 0
    %7016 = vmatprep.subr.bf16.mxu0 0
    %7017 = vmatpush1.bf16.msra.mxu0 0
    %7018 = vmatprep.subr.bf16.mxu0 0
    %7019 = vmatpush1.bf16.msra.mxu0 0
    %7020 = vmatprep.subr.bf16.mxu0 0
    %7021 = vmatpush1.bf16.msra.mxu0 0
    %7022 = vmatprep.subr.bf16.mxu0 0
    %7023 = vmatpush1.bf16.msra.mxu0 0
    %7024 = vmatprep.subr.bf16.mxu0 0
    %7025 = vmatpush1.bf16.msra.mxu0 0
    %7026 = vmatprep.mubr.bf16.mxu0 0
    %7027 = vmatmul.mubr.bf16.gmra.mrb[0].mxu0 %v6971
    %v7028 = vpop.f32.mrb[0].mxu0
    %v7029 = vadd.f32 %v6956, %v7028
    %v7030 = vpop.f32.mrb[0].mxu0
    %v7031 = vpop.f32.mrb[0].mxu0
    %v7032 = vadd.f32 %v6956, %v7031
    %v7033 = vpop.f32.mrb[0].mxu0
    %7034 = vmatprep.mubr.bf16.mxu0 0
    %7035 = vmatmul.mubr.bf16.gmra.mrb[0].mxu0 %v6974
    %v7036 = vpop.f32.mrb[0].mxu0
    %v7037 = vadd.f32 %v6956, %v7036
    %v7038 = vpop.f32.mrb[0].mxu0
    %v7039 = vpop.f32.mrb[0].mxu0
    %v7040 = vadd.f32 %v6956, %v7039
    %v7041 = vpop.f32.mrb[0].mxu0
    %7042 = vmatprep.mubr.bf16.mxu0 0
    %7043 = vmatmul.mubr.bf16.gmra.mrb[0].mxu0 %v6977
    %v7044 = vpop.f32.mrb[0].mxu0
    %v7045 = vadd.f32 %v6956, %v7044
    %v7046 = vpop.f32.mrb[0].mxu0
    %v7047 = vpop.f32.mrb[0].mxu0
    %v7048 = vadd.f32 %v6956, %v7047
    %v7049 = vpop.f32.mrb[0].mxu0
    %7050 = vmatprep.mubr.bf16.mxu0 0
    %7051 = vmatmul.mubr.bf16.gmra.mrb[0].mxu0 %v6980
    %v7052 = vpop.f32.mrb[0].mxu0
    %v7053 = vadd.f32 %v6956, %v7052
    %v7054 = vpop.f32.mrb[0].mxu0
    %v7055 = vpop.f32.mrb[0].mxu0
    %v7056 = vadd.f32 %v6956, %v7055
    %v7057 = vpop.f32.mrb[0].mxu0
    %7058 = vmatprep.mubr.bf16.mxu0 0
    %7059 = vmatmul.mubr.bf16.gmra.mrb[0].mxu0 %v6983
    %v7060 = vpop.f32.mrb[0].mxu0
    %v7061 = vadd.f32 %v6956, %v7060
    %v7062 = vpop.f32.mrb[0].mxu0
    %v7063 = vpop.f32.mrb[0].mxu0
    %v7064 = vadd.f32 %v6956, %v7063
    %v7065 = vpop.f32.mrb[0].mxu0
    %7066 = vmatprep.mubr.bf16.mxu0 0
    %7067 = vmatmul.mubr.bf16.gmra.mrb[0].mxu0 %v6986
    %v7068 = vpop.f32.mrb[0].mxu0
    %v7069 = vadd.f32 %v6956, %v7068
    %v7070 = vpop.f32.mrb[0].mxu0
    %v7071 = vpop.f32.mrb[0].mxu0
    %v7072 = vadd.f32 %v6956, %v7071
    %v7073 = vpop.f32.mrb[0].mxu0
    %7074 = vmatprep.mubr.bf16.mxu0 0
    %7075 = vmatmul.mubr.bf16.gmra.mrb[0].mxu0 %v6989
    %v7076 = vpop.f32.mrb[0].mxu0
    %v7077 = vadd.f32 %v6956, %v7076
    %v7078 = vpop.f32.mrb[0].mxu0
    %v7079 = vpop.f32.mrb[0].mxu0
    %v7080 = vadd.f32 %v6956, %v7079
    %v7081 = vpop.f32.mrb[0].mxu0
    %7082 = vmatprep.mubr.bf16.mxu0 0
    %7083 = vmatmul.mubr.bf16.gmra.mrb[0].mxu0 %v6992
    %v7084 = vpop.f32.mrb[0].mxu0
    %v7085 = vadd.f32 %v6956, %v7084
    %v7086 = vpop.f32.mrb[0].mxu0
    %v7087 = vpop.f32.mrb[0].mxu0
    %v7088 = vadd.f32 %v6956, %v7087
    %v7089 = vpop.f32.mrb[0].mxu0
    %7090 = vdwg.mxu0
    %v7091 = vadd.f32 %v3947, %v7029
    %v7092 = vadd.f32 %v3948, %v7032
    %v7093 = vadd.f32 %v3949, %v7037
    %v7094 = vadd.f32 %v3950, %v7040
    %v7095 = vadd.f32 %v3951, %v7045
    %v7096 = vadd.f32 %v3952, %v7048
    %v7097 = vadd.f32 %v3953, %v7053
    %v7098 = vadd.f32 %v3954, %v7056
    %v7099 = vadd.f32 %v3955, %v7061
    %v7100 = vadd.f32 %v3956, %v7064
    %v7101 = vadd.f32 %v3957, %v7069
    %v7102 = vadd.f32 %v3958, %v7072
    %v7103 = vadd.f32 %v3959, %v7077
    %v7104 = vadd.f32 %v3960, %v7080
    %v7105 = vadd.f32 %v3961, %v7085
    %v7106 = vadd.f32 %v3962, %v7088
    %s7107 = scalar_lea.vmem %s8, 1
    %v7108 = vld [vmem:[%s7107] sm:$0x1]
    %s7109 = scalar_lea.vmem %s9, 1
    %v7110 = vld [vmem:[%s7109] sm:$0x1]
    %v7111 = vsel %vm80, %v7091, 0.0
    %7112 = vadd.xlane.f32.xlu0 %v7111
    %v7113 = vpop.xlane.xlu0 %7112
    %v7114 = vsel %vm80, %v7092, 0.0
    %7115 = vadd.xlane.f32.xlu0 %v7114
    %v7116 = vpop.xlane.xlu0 %7115
    %v7117 = vsel %vm80, %v7093, 0.0
    %7118 = vadd.xlane.f32.xlu0 %v7117
    %v7119 = vpop.xlane.xlu0 %7118
    %v7120 = vsel %vm80, %v7094, 0.0
    %7121 = vadd.xlane.f32.xlu0 %v7120
    %v7122 = vpop.xlane.xlu0 %7121
    %v7123 = vsel %vm80, %v7095, 0.0
    %7124 = vadd.xlane.f32.xlu0 %v7123
    %v7125 = vpop.xlane.xlu0 %7124
    %v7126 = vsel %vm80, %v7096, 0.0
    %7127 = vadd.xlane.f32.xlu0 %v7126
    %v7128 = vpop.xlane.xlu0 %7127
    %v7129 = vsel %vm80, %v7097, 0.0
    %7130 = vadd.xlane.f32.xlu0 %v7129
    %v7131 = vpop.xlane.xlu0 %7130
    %v7132 = vsel %vm80, %v7098, 0.0
    %7133 = vadd.xlane.f32.xlu0 %v7132
    %v7134 = vpop.xlane.xlu0 %7133
    %v7135 = vsel %vm80, %v7099, 0.0
    %7136 = vadd.xlane.f32.xlu0 %v7135
    %v7137 = vpop.xlane.xlu0 %7136
    %v7138 = vsel %vm80, %v7100, 0.0
    %7139 = vadd.xlane.f32.xlu0 %v7138
    %v7140 = vpop.xlane.xlu0 %7139
    %v7141 = vsel %vm80, %v7101, 0.0
    %7142 = vadd.xlane.f32.xlu0 %v7141
    %v7143 = vpop.xlane.xlu0 %7142
    %v7144 = vsel %vm80, %v7102, 0.0
    %7145 = vadd.xlane.f32.xlu0 %v7144
    %v7146 = vpop.xlane.xlu0 %7145
    %v7147 = vsel %vm80, %v7103, 0.0
    %7148 = vadd.xlane.f32.xlu0 %v7147
    %v7149 = vpop.xlane.xlu0 %7148
    %v7150 = vsel %vm80, %v7104, 0.0
    %7151 = vadd.xlane.f32.xlu0 %v7150
    %v7152 = vpop.xlane.xlu0 %7151
    %v7153 = vsel %vm80, %v7105, 0.0
    %7154 = vadd.xlane.f32.xlu0 %v7153
    %v7155 = vpop.xlane.xlu0 %7154
    %v7156 = vsel %vm80, %v7106, 0.0
    %7157 = vadd.xlane.f32.xlu0 %v7156
    %v7158 = vpop.xlane.xlu0 %7157
    %v7159 = vmul.f32 %v7113, %v129
    %v7160 = vmul.f32 %v7116, %v129
    %v7161 = vmul.f32 %v7119, %v129
    %v7162 = vmul.f32 %v7122, %v129
    %v7163 = vmul.f32 %v7125, %v129
    %v7164 = vmul.f32 %v7128, %v129
    %v7165 = vmul.f32 %v7131, %v129
    %v7166 = vmul.f32 %v7134, %v129
    %v7167 = vmul.f32 %v7137, %v129
    %v7168 = vmul.f32 %v7140, %v129
    %v7169 = vmul.f32 %v7143, %v129
    %v7170 = vmul.f32 %v7146, %v129
    %v7171 = vmul.f32 %v7149, %v129
    %v7172 = vmul.f32 %v7152, %v129
    %v7173 = vmul.f32 %v7155, %v129
    %v7174 = vmul.f32 %v7158, %v129
    %v7175 = vsub.f32 %v7091, %v7159
    %v7176 = vsub.f32 %v7092, %v7160
    %v7177 = vsub.f32 %v7093, %v7161
    %v7178 = vsub.f32 %v7094, %v7162
    %v7179 = vsub.f32 %v7095, %v7163
    %v7180 = vsub.f32 %v7096, %v7164
    %v7181 = vsub.f32 %v7097, %v7165
    %v7182 = vsub.f32 %v7098, %v7166
    %v7183 = vsub.f32 %v7099, %v7167
    %v7184 = vsub.f32 %v7100, %v7168
    %v7185 = vsub.f32 %v7101, %v7169
    %v7186 = vsub.f32 %v7102, %v7170
    %v7187 = vsub.f32 %v7103, %v7171
    %v7188 = vsub.f32 %v7104, %v7172
    %v7189 = vsub.f32 %v7105, %v7173
    %v7190 = vsub.f32 %v7106, %v7174
    %v7191 = vmul.f32 %v7175, %v7175
    %v7192 = vmul.f32 %v7176, %v7176
    %v7193 = vmul.f32 %v7177, %v7177
    %v7194 = vmul.f32 %v7178, %v7178
    %v7195 = vmul.f32 %v7179, %v7179
    %v7196 = vmul.f32 %v7180, %v7180
    %v7197 = vmul.f32 %v7181, %v7181
    %v7198 = vmul.f32 %v7182, %v7182
    %v7199 = vmul.f32 %v7183, %v7183
    %v7200 = vmul.f32 %v7184, %v7184
    %v7201 = vmul.f32 %v7185, %v7185
    %v7202 = vmul.f32 %v7186, %v7186
    %v7203 = vmul.f32 %v7187, %v7187
    %v7204 = vmul.f32 %v7188, %v7188
    %v7205 = vmul.f32 %v7189, %v7189
    %v7206 = vmul.f32 %v7190, %v7190
    %v7207 = vsel %vm80, %v7191, 0.0
    %7208 = vadd.xlane.f32.xlu0 %v7207
    %v7209 = vpop.xlane.xlu0 %7208
    %v7210 = vsel %vm80, %v7192, 0.0
    %7211 = vadd.xlane.f32.xlu0 %v7210
    %v7212 = vpop.xlane.xlu0 %7211
    %v7213 = vsel %vm80, %v7193, 0.0
    %7214 = vadd.xlane.f32.xlu0 %v7213
    %v7215 = vpop.xlane.xlu0 %7214
    %v7216 = vsel %vm80, %v7194, 0.0
    %7217 = vadd.xlane.f32.xlu0 %v7216
    %v7218 = vpop.xlane.xlu0 %7217
    %v7219 = vsel %vm80, %v7195, 0.0
    %7220 = vadd.xlane.f32.xlu0 %v7219
    %v7221 = vpop.xlane.xlu0 %7220
    %v7222 = vsel %vm80, %v7196, 0.0
    %7223 = vadd.xlane.f32.xlu0 %v7222
    %v7224 = vpop.xlane.xlu0 %7223
    %v7225 = vsel %vm80, %v7197, 0.0
    %7226 = vadd.xlane.f32.xlu0 %v7225
    %v7227 = vpop.xlane.xlu0 %7226
    %v7228 = vsel %vm80, %v7198, 0.0
    %7229 = vadd.xlane.f32.xlu0 %v7228
    %v7230 = vpop.xlane.xlu0 %7229
    %v7231 = vsel %vm80, %v7199, 0.0
    %7232 = vadd.xlane.f32.xlu0 %v7231
    %v7233 = vpop.xlane.xlu0 %7232
    %v7234 = vsel %vm80, %v7200, 0.0
    %7235 = vadd.xlane.f32.xlu0 %v7234
    %v7236 = vpop.xlane.xlu0 %7235
    %v7237 = vsel %vm80, %v7201, 0.0
    %7238 = vadd.xlane.f32.xlu0 %v7237
    %v7239 = vpop.xlane.xlu0 %7238
    %v7240 = vsel %vm80, %v7202, 0.0
    %7241 = vadd.xlane.f32.xlu0 %v7240
    %v7242 = vpop.xlane.xlu0 %7241
    %v7243 = vsel %vm80, %v7203, 0.0
    %7244 = vadd.xlane.f32.xlu0 %v7243
    %v7245 = vpop.xlane.xlu0 %7244
    %v7246 = vsel %vm80, %v7204, 0.0
    %7247 = vadd.xlane.f32.xlu0 %v7246
    %v7248 = vpop.xlane.xlu0 %7247
    %v7249 = vsel %vm80, %v7205, 0.0
    %7250 = vadd.xlane.f32.xlu0 %v7249
    %v7251 = vpop.xlane.xlu0 %7250
    %v7252 = vsel %vm80, %v7206, 0.0
    %7253 = vadd.xlane.f32.xlu0 %v7252
    %v7254 = vpop.xlane.xlu0 %7253
    %v7255 = vmul.f32 %v7209, %v129
    %v7256 = vmul.f32 %v7212, %v129
    %v7257 = vmul.f32 %v7215, %v129
    %v7258 = vmul.f32 %v7218, %v129
    %v7259 = vmul.f32 %v7221, %v129
    %v7260 = vmul.f32 %v7224, %v129
    %v7261 = vmul.f32 %v7227, %v129
    %v7262 = vmul.f32 %v7230, %v129
    %v7263 = vmul.f32 %v7233, %v129
    %v7264 = vmul.f32 %v7236, %v129
    %v7265 = vmul.f32 %v7239, %v129
    %v7266 = vmul.f32 %v7242, %v129
    %v7267 = vmul.f32 %v7245, %v129
    %v7268 = vmul.f32 %v7248, %v129
    %v7269 = vmul.f32 %v7251, %v129
    %v7270 = vmul.f32 %v7254, %v129
    %v7271 = vadd.f32 %v7255, 1e-05
    %v7272 = vadd.f32 %v7256, 1e-05
    %v7273 = vadd.f32 %v7257, 1e-05
    %v7274 = vadd.f32 %v7258, 1e-05
    %v7275 = vadd.f32 %v7259, 1e-05
    %v7276 = vadd.f32 %v7260, 1e-05
    %v7277 = vadd.f32 %v7261, 1e-05
    %v7278 = vadd.f32 %v7262, 1e-05
    %v7279 = vadd.f32 %v7263, 1e-05
    %v7280 = vadd.f32 %v7264, 1e-05
    %v7281 = vadd.f32 %v7265, 1e-05
    %v7282 = vadd.f32 %v7266, 1e-05
    %v7283 = vadd.f32 %v7267, 1e-05
    %v7284 = vadd.f32 %v7268, 1e-05
    %v7285 = vadd.f32 %v7269, 1e-05
    %v7286 = vadd.f32 %v7270, 1e-05
    %v7287 = vrsqrt.pop %v7271
    %v7288 = vrsqrt.pop %v7272
    %v7289 = vrsqrt.pop %v7273
    %v7290 = vrsqrt.pop %v7274
    %v7291 = vrsqrt.pop %v7275
    %v7292 = vrsqrt.pop %v7276
    %v7293 = vrsqrt.pop %v7277
    %v7294 = vrsqrt.pop %v7278
    %v7295 = vrsqrt.pop %v7279
    %v7296 = vrsqrt.pop %v7280
    %v7297 = vrsqrt.pop %v7281
    %v7298 = vrsqrt.pop %v7282
    %v7299 = vrsqrt.pop %v7283
    %v7300 = vrsqrt.pop %v7284
    %v7301 = vrsqrt.pop %v7285
    %v7302 = vrsqrt.pop %v7286
    %v7303 = vmul.f32 %v7175, %v7287
    %v7304 = vmul.f32 %v7176, %v7288
    %v7305 = vmul.f32 %v7177, %v7289
    %v7306 = vmul.f32 %v7178, %v7290
    %v7307 = vmul.f32 %v7179, %v7291
    %v7308 = vmul.f32 %v7180, %v7292
    %v7309 = vmul.f32 %v7181, %v7293
    %v7310 = vmul.f32 %v7182, %v7294
    %v7311 = vmul.f32 %v7183, %v7295
    %v7312 = vmul.f32 %v7184, %v7296
    %v7313 = vmul.f32 %v7185, %v7297
    %v7314 = vmul.f32 %v7186, %v7298
    %v7315 = vmul.f32 %v7187, %v7299
    %v7316 = vmul.f32 %v7188, %v7300
    %v7317 = vmul.f32 %v7189, %v7301
    %v7318 = vmul.f32 %v7190, %v7302
    %v7320 = vlaneseq
    %v7321 = vshrl.u32 %v7320, 7
    %v7322 = vsub.s32 0, %v7321
    %v7323 = vrot.slane %v7108, %v7322
    %v7325 = vmul.f32 %v7303, %v7323
    %v7326 = vmul.f32 %v7304, %v7323
    %v7327 = vmul.f32 %v7305, %v7323
    %v7328 = vmul.f32 %v7306, %v7323
    %v7329 = vmul.f32 %v7307, %v7323
    %v7330 = vmul.f32 %v7308, %v7323
    %v7331 = vmul.f32 %v7309, %v7323
    %v7332 = vmul.f32 %v7310, %v7323
    %v7333 = vmul.f32 %v7311, %v7323
    %v7334 = vmul.f32 %v7312, %v7323
    %v7335 = vmul.f32 %v7313, %v7323
    %v7336 = vmul.f32 %v7314, %v7323
    %v7337 = vmul.f32 %v7315, %v7323
    %v7338 = vmul.f32 %v7316, %v7323
    %v7339 = vmul.f32 %v7317, %v7323
    %v7340 = vmul.f32 %v7318, %v7323
    %v7342 = vlaneseq
    %v7343 = vshrl.u32 %v7342, 7
    %v7344 = vsub.s32 0, %v7343
    %v7345 = vrot.slane %v7110, %v7344
    %v7347 = vadd.f32 %v7325, %v7345
    %v7348 = vadd.f32 %v7326, %v7345
    %v7349 = vadd.f32 %v7327, %v7345
    %v7350 = vadd.f32 %v7328, %v7345
    %v7351 = vadd.f32 %v7329, %v7345
    %v7352 = vadd.f32 %v7330, %v7345
    %v7353 = vadd.f32 %v7331, %v7345
    %v7354 = vadd.f32 %v7332, %v7345
    %v7355 = vadd.f32 %v7333, %v7345
    %v7356 = vadd.f32 %v7334, %v7345
    %v7357 = vadd.f32 %v7335, %v7345
    %v7358 = vadd.f32 %v7336, %v7345
    %v7359 = vadd.f32 %v7337, %v7345
    %v7360 = vadd.f32 %v7338, %v7345
    %v7361 = vadd.f32 %v7339, %v7345
    %v7362 = vadd.f32 %v7340, %v7345
    %v7363 = vpack.c.bf16 %v7348, %v7347
    %v7364 = vpack.c.bf16 %v7350, %v7349
    %v7365 = vpack.c.bf16 %v7352, %v7351
    %v7366 = vpack.c.bf16 %v7354, %v7353
    %v7367 = vpack.c.bf16 %v7356, %v7355
    %v7368 = vpack.c.bf16 %v7358, %v7357
    %v7369 = vpack.c.bf16 %v7360, %v7359
    %v7370 = vpack.c.bf16 %v7362, %v7361
    %s7371 = scalar_lea.vmem %s10, 16
    %v7372 = vld [vmem:[%s7371] sm:$0xf]
    %v7373 = vld [vmem:[%s7371 + $0x4] sm:$0xf]
    %v7374 = vld [vmem:[%s7371 + $0x8] sm:$0xf]
    %v7375 = vld [vmem:[%s7371 + $0xc] sm:$0xf]
    %s7376 = scalar_lea.vmem %s11, 1
    %v7377 = vld [vmem:[%s7376] sm:$0x1]
    %v7379 = vlaneseq
    %v7380 = vshrl.u32 %v7379, 7
    %v7381 = vsub.s32 0, %v7380
    %v7382 = vrot.slane %v7377, %v7381
    %v7388 = vunpack.c.l.b16 %v7372
    %v7389 = vunpack.c.l.b16 %v7373
    %v7390 = vunpack.c.l.b16 %v7374
    %v7391 = vunpack.c.l.b16 %v7375
    %v7392 = vpack.c.b16 %v7389, %v7388
    %v7393 = vpack.c.b16 %v7391, %v7390
    %v7397 = vsel %vm80, %v7363, 0
    %v7400 = vsel %vm80, %v7364, 0
    %v7403 = vsel %vm80, %v7365, 0
    %v7406 = vsel %vm80, %v7366, 0
    %v7409 = vsel %vm80, %v7367, 0
    %v7412 = vsel %vm80, %v7368, 0
    %v7415 = vsel %vm80, %v7369, 0
    %v7418 = vsel %vm80, %v7370, 0
    %7420 = vmatprep.subr.bf16.mxu0 0
    %7421 = vmatpush1.bf16.msra.mxu0 %v7392
    %7422 = vmatprep.subr.bf16.mxu0 0
    %7423 = vmatpush1.bf16.msra.mxu0 %v7393
    %7424 = vmatprep.subr.bf16.mxu0 0
    %7425 = vmatpush1.bf16.msra.mxu0 0
    %7426 = vmatprep.subr.bf16.mxu0 0
    %7427 = vmatpush1.bf16.msra.mxu0 0
    %7428 = vmatprep.subr.bf16.mxu0 0
    %7429 = vmatpush1.bf16.msra.mxu0 0
    %7430 = vmatprep.subr.bf16.mxu0 0
    %7431 = vmatpush1.bf16.msra.mxu0 0
    %7432 = vmatprep.subr.bf16.mxu0 0
    %7433 = vmatpush1.bf16.msra.mxu0 0
    %7434 = vmatprep.subr.bf16.mxu0 0
    %7435 = vmatpush1.bf16.msra.mxu0 0
    %7436 = vmatprep.subr.bf16.mxu0 0
    %7437 = vmatpush1.bf16.msra.mxu0 0
    %7438 = vmatprep.subr.bf16.mxu0 0
    %7439 = vmatpush1.bf16.msra.mxu0 0
    %7440 = vmatprep.subr.bf16.mxu0 0
    %7441 = vmatpush1.bf16.msra.mxu0 0
    %7442 = vmatprep.subr.bf16.mxu0 0
    %7443 = vmatpush1.bf16.msra.mxu0 0
    %7444 = vmatprep.subr.bf16.mxu0 0
    %7445 = vmatpush1.bf16.msra.mxu0 0
    %7446 = vmatprep.subr.bf16.mxu0 0
    %7447 = vmatpush1.bf16.msra.mxu0 0
    %7448 = vmatprep.subr.bf16.mxu0 0
    %7449 = vmatpush1.bf16.msra.mxu0 0
    %7450 = vmatprep.subr.bf16.mxu0 0
    %7451 = vmatpush1.bf16.msra.mxu0 0
    %7452 = vmatprep.mubr.bf16.mxu0 0
    %7453 = vmatmul.mubr.bf16.gmra.mrb[0].mxu0 %v7397
    %v7454 = vpop.f32.mrb[0].mxu0
    %v7455 = vadd.f32 %v7382, %v7454
    %v7456 = vpop.f32.mrb[0].mxu0
    %v7457 = vpop.f32.mrb[0].mxu0
    %v7458 = vadd.f32 %v7382, %v7457
    %v7459 = vpop.f32.mrb[0].mxu0
    %7460 = vmatprep.mubr.bf16.mxu0 0
    %7461 = vmatmul.mubr.bf16.gmra.mrb[0].mxu0 %v7400
    %v7462 = vpop.f32.mrb[0].mxu0
    %v7463 = vadd.f32 %v7382, %v7462
    %v7464 = vpop.f32.mrb[0].mxu0
    %v7465 = vpop.f32.mrb[0].mxu0
    %v7466 = vadd.f32 %v7382, %v7465
    %v7467 = vpop.f32.mrb[0].mxu0
    %7468 = vmatprep.mubr.bf16.mxu0 0
    %7469 = vmatmul.mubr.bf16.gmra.mrb[0].mxu0 %v7403
    %v7470 = vpop.f32.mrb[0].mxu0
    %v7471 = vadd.f32 %v7382, %v7470
    %v7472 = vpop.f32.mrb[0].mxu0
    %v7473 = vpop.f32.mrb[0].mxu0
    %v7474 = vadd.f32 %v7382, %v7473
    %v7475 = vpop.f32.mrb[0].mxu0
    %7476 = vmatprep.mubr.bf16.mxu0 0
    %7477 = vmatmul.mubr.bf16.gmra.mrb[0].mxu0 %v7406
    %v7478 = vpop.f32.mrb[0].mxu0
    %v7479 = vadd.f32 %v7382, %v7478
    %v7480 = vpop.f32.mrb[0].mxu0
    %v7481 = vpop.f32.mrb[0].mxu0
    %v7482 = vadd.f32 %v7382, %v7481
    %v7483 = vpop.f32.mrb[0].mxu0
    %7484 = vmatprep.mubr.bf16.mxu0 0
    %7485 = vmatmul.mubr.bf16.gmra.mrb[0].mxu0 %v7409
    %v7486 = vpop.f32.mrb[0].mxu0
    %v7487 = vadd.f32 %v7382, %v7486
    %v7488 = vpop.f32.mrb[0].mxu0
    %v7489 = vpop.f32.mrb[0].mxu0
    %v7490 = vadd.f32 %v7382, %v7489
    %v7491 = vpop.f32.mrb[0].mxu0
    %7492 = vmatprep.mubr.bf16.mxu0 0
    %7493 = vmatmul.mubr.bf16.gmra.mrb[0].mxu0 %v7412
    %v7494 = vpop.f32.mrb[0].mxu0
    %v7495 = vadd.f32 %v7382, %v7494
    %v7496 = vpop.f32.mrb[0].mxu0
    %v7497 = vpop.f32.mrb[0].mxu0
    %v7498 = vadd.f32 %v7382, %v7497
    %v7499 = vpop.f32.mrb[0].mxu0
    %7500 = vmatprep.mubr.bf16.mxu0 0
    %7501 = vmatmul.mubr.bf16.gmra.mrb[0].mxu0 %v7415
    %v7502 = vpop.f32.mrb[0].mxu0
    %v7503 = vadd.f32 %v7382, %v7502
    %v7504 = vpop.f32.mrb[0].mxu0
    %v7505 = vpop.f32.mrb[0].mxu0
    %v7506 = vadd.f32 %v7382, %v7505
    %v7507 = vpop.f32.mrb[0].mxu0
    %7508 = vmatprep.mubr.bf16.mxu0 0
    %7509 = vmatmul.mubr.bf16.gmra.mrb[0].mxu0 %v7418
    %v7510 = vpop.f32.mrb[0].mxu0
    %v7511 = vadd.f32 %v7382, %v7510
    %v7512 = vpop.f32.mrb[0].mxu0
    %v7513 = vpop.f32.mrb[0].mxu0
    %v7514 = vadd.f32 %v7382, %v7513
    %v7515 = vpop.f32.mrb[0].mxu0
    %7516 = vdwg.mxu0
    %v7517 = vmul.f32 %v7455, 0.5
    %v7518 = vmul.f32 %v7458, 0.5
    %v7519 = vmul.f32 %v7463, 0.5
    %v7520 = vmul.f32 %v7466, 0.5
    %v7521 = vmul.f32 %v7471, 0.5
    %v7522 = vmul.f32 %v7474, 0.5
    %v7523 = vmul.f32 %v7479, 0.5
    %v7524 = vmul.f32 %v7482, 0.5
    %v7525 = vmul.f32 %v7487, 0.5
    %v7526 = vmul.f32 %v7490, 0.5
    %v7527 = vmul.f32 %v7495, 0.5
    %v7528 = vmul.f32 %v7498, 0.5
    %v7529 = vmul.f32 %v7503, 0.5
    %v7530 = vmul.f32 %v7506, 0.5
    %v7531 = vmul.f32 %v7511, 0.5
    %v7532 = vmul.f32 %v7514, 0.5
    %v7533 = vmul.f32 %v7455, 0.044715
    %v7534 = vmul.f32 %v7458, 0.044715
    %v7535 = vmul.f32 %v7463, 0.044715
    %v7536 = vmul.f32 %v7466, 0.044715
    %v7537 = vmul.f32 %v7471, 0.044715
    %v7538 = vmul.f32 %v7474, 0.044715
    %v7539 = vmul.f32 %v7479, 0.044715
    %v7540 = vmul.f32 %v7482, 0.044715
    %v7541 = vmul.f32 %v7487, 0.044715
    %v7542 = vmul.f32 %v7490, 0.044715
    %v7543 = vmul.f32 %v7495, 0.044715
    %v7544 = vmul.f32 %v7498, 0.044715
    %v7545 = vmul.f32 %v7503, 0.044715
    %v7546 = vmul.f32 %v7506, 0.044715
    %v7547 = vmul.f32 %v7511, 0.044715
    %v7548 = vmul.f32 %v7514, 0.044715
    %v7549 = vmul.f32 %v7533, %v7455
    %v7550 = vmul.f32 %v7534, %v7458
    %v7551 = vmul.f32 %v7535, %v7463
    %v7552 = vmul.f32 %v7536, %v7466
    %v7553 = vmul.f32 %v7537, %v7471
    %v7554 = vmul.f32 %v7538, %v7474
    %v7555 = vmul.f32 %v7539, %v7479
    %v7556 = vmul.f32 %v7540, %v7482
    %v7557 = vmul.f32 %v7541, %v7487
    %v7558 = vmul.f32 %v7542, %v7490
    %v7559 = vmul.f32 %v7543, %v7495
    %v7560 = vmul.f32 %v7544, %v7498
    %v7561 = vmul.f32 %v7545, %v7503
    %v7562 = vmul.f32 %v7546, %v7506
    %v7563 = vmul.f32 %v7547, %v7511
    %v7564 = vmul.f32 %v7548, %v7514
    %v7565 = vmul.f32 %v7549, %v7455
    %v7566 = vmul.f32 %v7550, %v7458
    %v7567 = vmul.f32 %v7551, %v7463
    %v7568 = vmul.f32 %v7552, %v7466
    %v7569 = vmul.f32 %v7553, %v7471
    %v7570 = vmul.f32 %v7554, %v7474
    %v7571 = vmul.f32 %v7555, %v7479
    %v7572 = vmul.f32 %v7556, %v7482
    %v7573 = vmul.f32 %v7557, %v7487
    %v7574 = vmul.f32 %v7558, %v7490
    %v7575 = vmul.f32 %v7559, %v7495
    %v7576 = vmul.f32 %v7560, %v7498
    %v7577 = vmul.f32 %v7561, %v7503
    %v7578 = vmul.f32 %v7562, %v7506
    %v7579 = vmul.f32 %v7563, %v7511
    %v7580 = vmul.f32 %v7564, %v7514
    %v7581 = vadd.f32 %v7455, %v7565
    %v7582 = vadd.f32 %v7458, %v7566
    %v7583 = vadd.f32 %v7463, %v7567
    %v7584 = vadd.f32 %v7466, %v7568
    %v7585 = vadd.f32 %v7471, %v7569
    %v7586 = vadd.f32 %v7474, %v7570
    %v7587 = vadd.f32 %v7479, %v7571
    %v7588 = vadd.f32 %v7482, %v7572
    %v7589 = vadd.f32 %v7487, %v7573
    %v7590 = vadd.f32 %v7490, %v7574
    %v7591 = vadd.f32 %v7495, %v7575
    %v7592 = vadd.f32 %v7498, %v7576
    %v7593 = vadd.f32 %v7503, %v7577
    %v7594 = vadd.f32 %v7506, %v7578
    %v7595 = vadd.f32 %v7511, %v7579
    %v7596 = vadd.f32 %v7514, %v7580
    %v7597 = vmul.f32 %v7581, 0.7978846
    %v7598 = vmul.f32 %v7582, 0.7978846
    %v7599 = vmul.f32 %v7583, 0.7978846
    %v7600 = vmul.f32 %v7584, 0.7978846
    %v7601 = vmul.f32 %v7585, 0.7978846
    %v7602 = vmul.f32 %v7586, 0.7978846
    %v7603 = vmul.f32 %v7587, 0.7978846
    %v7604 = vmul.f32 %v7588, 0.7978846
    %v7605 = vmul.f32 %v7589, 0.7978846
    %v7606 = vmul.f32 %v7590, 0.7978846
    %v7607 = vmul.f32 %v7591, 0.7978846
    %v7608 = vmul.f32 %v7592, 0.7978846
    %v7609 = vmul.f32 %v7593, 0.7978846
    %v7610 = vmul.f32 %v7594, 0.7978846
    %v7611 = vmul.f32 %v7595, 0.7978846
    %v7612 = vmul.f32 %v7596, 0.7978846
    %v7613 = vtanh.pop %v7597
    %v7614 = vtanh.pop %v7598
    %v7615 = vtanh.pop %v7599
    %v7616 = vtanh.pop %v7600
    %v7617 = vtanh.pop %v7601
    %v7618 = vtanh.pop %v7602
    %v7619 = vtanh.pop %v7603
    %v7620 = vtanh.pop %v7604
    %v7621 = vtanh.pop %v7605
    %v7622 = vtanh.pop %v7606
    %v7623 = vtanh.pop %v7607
    %v7624 = vtanh.pop %v7608
    %v7625 = vtanh.pop %v7609
    %v7626 = vtanh.pop %v7610
    %v7627 = vtanh.pop %v7611
    %v7628 = vtanh.pop %v7612
    %v7629 = vadd.f32 %v7613, 1.0
    %v7630 = vadd.f32 %v7614, 1.0
    %v7631 = vadd.f32 %v7615, 1.0
    %v7632 = vadd.f32 %v7616, 1.0
    %v7633 = vadd.f32 %v7617, 1.0
    %v7634 = vadd.f32 %v7618, 1.0
    %v7635 = vadd.f32 %v7619, 1.0
    %v7636 = vadd.f32 %v7620, 1.0
    %v7637 = vadd.f32 %v7621, 1.0
    %v7638 = vadd.f32 %v7622, 1.0
    %v7639 = vadd.f32 %v7623, 1.0
    %v7640 = vadd.f32 %v7624, 1.0
    %v7641 = vadd.f32 %v7625, 1.0
    %v7642 = vadd.f32 %v7626, 1.0
    %v7643 = vadd.f32 %v7627, 1.0
    %v7644 = vadd.f32 %v7628, 1.0
    %v7645 = vmul.f32 %v7517, %v7629
    %v7646 = vmul.f32 %v7518, %v7630
    %v7647 = vmul.f32 %v7519, %v7631
    %v7648 = vmul.f32 %v7520, %v7632
    %v7649 = vmul.f32 %v7521, %v7633
    %v7650 = vmul.f32 %v7522, %v7634
    %v7651 = vmul.f32 %v7523, %v7635
    %v7652 = vmul.f32 %v7524, %v7636
    %v7653 = vmul.f32 %v7525, %v7637
    %v7654 = vmul.f32 %v7526, %v7638
    %v7655 = vmul.f32 %v7527, %v7639
    %v7656 = vmul.f32 %v7528, %v7640
    %v7657 = vmul.f32 %v7529, %v7641
    %v7658 = vmul.f32 %v7530, %v7642
    %v7659 = vmul.f32 %v7531, %v7643
    %v7660 = vmul.f32 %v7532, %v7644
    %v7661 = vpack.c.bf16 %v7646, %v7645
    %v7662 = vpack.c.bf16 %v7648, %v7647
    %v7663 = vpack.c.bf16 %v7650, %v7649
    %v7664 = vpack.c.bf16 %v7652, %v7651
    %v7665 = vpack.c.bf16 %v7654, %v7653
    %v7666 = vpack.c.bf16 %v7656, %v7655
    %v7667 = vpack.c.bf16 %v7658, %v7657
    %v7668 = vpack.c.bf16 %v7660, %v7659
    %s7669 = scalar_lea.vmem %s12, 64
    %v7670 = vld [vmem:[%s7669] sm:$0xf]
    %v7671 = vld [vmem:[%s7669 + $0x4] sm:$0xf]
    %v7672 = vld [vmem:[%s7669 + $0x8] sm:$0xf]
    %v7673 = vld [vmem:[%s7669 + $0xc] sm:$0xf]
    %v7674 = vld [vmem:[%s7669 + $0x10] sm:$0xf]
    %v7675 = vld [vmem:[%s7669 + $0x14] sm:$0xf]
    %v7676 = vld [vmem:[%s7669 + $0x18] sm:$0xf]
    %v7677 = vld [vmem:[%s7669 + $0x1c] sm:$0xf]
    %v7678 = vld [vmem:[%s7669 + $0x20] sm:$0xf]
    %v7679 = vld [vmem:[%s7669 + $0x24] sm:$0xf]
    %v7680 = vld [vmem:[%s7669 + $0x28] sm:$0xf]
    %v7681 = vld [vmem:[%s7669 + $0x2c] sm:$0xf]
    %v7682 = vld [vmem:[%s7669 + $0x30] sm:$0xf]
    %v7683 = vld [vmem:[%s7669 + $0x34] sm:$0xf]
    %v7684 = vld [vmem:[%s7669 + $0x38] sm:$0xf]
    %v7685 = vld [vmem:[%s7669 + $0x3c] sm:$0xf]
    %s7686 = scalar_lea.vmem %s13, 1
    %v7687 = vld [vmem:[%s7686] sm:$0x1]
    %v7689 = vlaneseq
    %v7690 = vshrl.u32 %v7689, 7
    %v7691 = vsub.s32 0, %v7690
    %v7692 = vrot.slane %v7687, %v7691
    %v7710 = vunpack.c.l.b16 %v7670
    %v7711 = vunpack.c.l.b16 %v7671
    %v7712 = vunpack.c.l.b16 %v7672
    %v7713 = vunpack.c.l.b16 %v7673
    %v7714 = vunpack.c.l.b16 %v7674
    %v7715 = vunpack.c.l.b16 %v7675
    %v7716 = vunpack.c.l.b16 %v7676
    %v7717 = vunpack.c.l.b16 %v7677
    %v7718 = vunpack.c.l.b16 %v7678
    %v7719 = vunpack.c.l.b16 %v7679
    %v7720 = vunpack.c.l.b16 %v7680
    %v7721 = vunpack.c.l.b16 %v7681
    %v7722 = vunpack.c.l.b16 %v7682
    %v7723 = vunpack.c.l.b16 %v7683
    %v7724 = vunpack.c.l.b16 %v7684
    %v7725 = vunpack.c.l.b16 %v7685
    %v7726 = vpack.c.b16 %v7711, %v7710
    %v7727 = vpack.c.b16 %v7713, %v7712
    %v7728 = vpack.c.b16 %v7715, %v7714
    %v7729 = vpack.c.b16 %v7717, %v7716
    %v7730 = vpack.c.b16 %v7719, %v7718
    %v7731 = vpack.c.b16 %v7721, %v7720
    %v7732 = vpack.c.b16 %v7723, %v7722
    %v7733 = vpack.c.b16 %v7725, %v7724
    %7742 = vmatprep.subr.bf16.mxu0 0
    %7743 = vmatpush1.bf16.msra.mxu0 %v7726
    %7744 = vmatprep.subr.bf16.mxu0 0
    %7745 = vmatpush1.bf16.msra.mxu0 %v7727
    %7746 = vmatprep.subr.bf16.mxu0 0
    %7747 = vmatpush1.bf16.msra.mxu0 %v7728
    %7748 = vmatprep.subr.bf16.mxu0 0
    %7749 = vmatpush1.bf16.msra.mxu0 %v7729
    %7750 = vmatprep.subr.bf16.mxu0 0
    %7751 = vmatpush1.bf16.msra.mxu0 %v7730
    %7752 = vmatprep.subr.bf16.mxu0 0
    %7753 = vmatpush1.bf16.msra.mxu0 %v7731
    %7754 = vmatprep.subr.bf16.mxu0 0
    %7755 = vmatpush1.bf16.msra.mxu0 %v7732
    %7756 = vmatprep.subr.bf16.mxu0 0
    %7757 = vmatpush1.bf16.msra.mxu0 %v7733
    %7758 = vmatprep.subr.bf16.mxu0 0
    %7759 = vmatpush1.bf16.msra.mxu0 0
    %7760 = vmatprep.subr.bf16.mxu0 0
    %7761 = vmatpush1.bf16.msra.mxu0 0
    %7762 = vmatprep.subr.bf16.mxu0 0
    %7763 = vmatpush1.bf16.msra.mxu0 0
    %7764 = vmatprep.subr.bf16.mxu0 0
    %7765 = vmatpush1.bf16.msra.mxu0 0
    %7766 = vmatprep.subr.bf16.mxu0 0
    %7767 = vmatpush1.bf16.msra.mxu0 0
    %7768 = vmatprep.subr.bf16.mxu0 0
    %7769 = vmatpush1.bf16.msra.mxu0 0
    %7770 = vmatprep.subr.bf16.mxu0 0
    %7771 = vmatpush1.bf16.msra.mxu0 0
    %7772 = vmatprep.subr.bf16.mxu0 0
    %7773 = vmatpush1.bf16.msra.mxu0 0
    %7774 = vmatprep.mubr.bf16.mxu0 0
    %7775 = vmatmul.mubr.bf16.gmra.mrb[0].mxu0 %v7661
    %v7776 = vpop.f32.mrb[0].mxu0
    %v7777 = vadd.f32 %v7692, %v7776
    %v7778 = vpop.f32.mrb[0].mxu0
    %v7779 = vpop.f32.mrb[0].mxu0
    %v7780 = vadd.f32 %v7692, %v7779
    %v7781 = vpop.f32.mrb[0].mxu0
    %7782 = vmatprep.mubr.bf16.mxu0 0
    %7783 = vmatmul.mubr.bf16.gmra.mrb[0].mxu0 %v7662
    %v7784 = vpop.f32.mrb[0].mxu0
    %v7785 = vadd.f32 %v7692, %v7784
    %v7786 = vpop.f32.mrb[0].mxu0
    %v7787 = vpop.f32.mrb[0].mxu0
    %v7788 = vadd.f32 %v7692, %v7787
    %v7789 = vpop.f32.mrb[0].mxu0
    %7790 = vmatprep.mubr.bf16.mxu0 0
    %7791 = vmatmul.mubr.bf16.gmra.mrb[0].mxu0 %v7663
    %v7792 = vpop.f32.mrb[0].mxu0
    %v7793 = vadd.f32 %v7692, %v7792
    %v7794 = vpop.f32.mrb[0].mxu0
    %v7795 = vpop.f32.mrb[0].mxu0
    %v7796 = vadd.f32 %v7692, %v7795
    %v7797 = vpop.f32.mrb[0].mxu0
    %7798 = vmatprep.mubr.bf16.mxu0 0
    %7799 = vmatmul.mubr.bf16.gmra.mrb[0].mxu0 %v7664
    %v7800 = vpop.f32.mrb[0].mxu0
    %v7801 = vadd.f32 %v7692, %v7800
    %v7802 = vpop.f32.mrb[0].mxu0
    %v7803 = vpop.f32.mrb[0].mxu0
    %v7804 = vadd.f32 %v7692, %v7803
    %v7805 = vpop.f32.mrb[0].mxu0
    %7806 = vmatprep.mubr.bf16.mxu0 0
    %7807 = vmatmul.mubr.bf16.gmra.mrb[0].mxu0 %v7665
    %v7808 = vpop.f32.mrb[0].mxu0
    %v7809 = vadd.f32 %v7692, %v7808
    %v7810 = vpop.f32.mrb[0].mxu0
    %v7811 = vpop.f32.mrb[0].mxu0
    %v7812 = vadd.f32 %v7692, %v7811
    %v7813 = vpop.f32.mrb[0].mxu0
    %7814 = vmatprep.mubr.bf16.mxu0 0
    %7815 = vmatmul.mubr.bf16.gmra.mrb[0].mxu0 %v7666
    %v7816 = vpop.f32.mrb[0].mxu0
    %v7817 = vadd.f32 %v7692, %v7816
    %v7818 = vpop.f32.mrb[0].mxu0
    %v7819 = vpop.f32.mrb[0].mxu0
    %v7820 = vadd.f32 %v7692, %v7819
    %v7821 = vpop.f32.mrb[0].mxu0
    %7822 = vmatprep.mubr.bf16.mxu0 0
    %7823 = vmatmul.mubr.bf16.gmra.mrb[0].mxu0 %v7667
    %v7824 = vpop.f32.mrb[0].mxu0
    %v7825 = vadd.f32 %v7692, %v7824
    %v7826 = vpop.f32.mrb[0].mxu0
    %v7827 = vpop.f32.mrb[0].mxu0
    %v7828 = vadd.f32 %v7692, %v7827
    %v7829 = vpop.f32.mrb[0].mxu0
    %7830 = vmatprep.mubr.bf16.mxu0 0
    %7831 = vmatmul.mubr.bf16.gmra.mrb[0].mxu0 %v7668
    %v7832 = vpop.f32.mrb[0].mxu0
    %v7833 = vadd.f32 %v7692, %v7832
    %v7834 = vpop.f32.mrb[0].mxu0
    %v7835 = vpop.f32.mrb[0].mxu0
    %v7836 = vadd.f32 %v7692, %v7835
    %v7837 = vpop.f32.mrb[0].mxu0
    %7838 = vdwg.mxu0
    %v7839 = vadd.f32 %v7091, %v7777
    %v7840 = vadd.f32 %v7092, %v7780
    %v7841 = vadd.f32 %v7093, %v7785
    %v7842 = vadd.f32 %v7094, %v7788
    %v7843 = vadd.f32 %v7095, %v7793
    %v7844 = vadd.f32 %v7096, %v7796
    %v7845 = vadd.f32 %v7097, %v7801
    %v7846 = vadd.f32 %v7098, %v7804
    %v7847 = vadd.f32 %v7099, %v7809
    %v7848 = vadd.f32 %v7100, %v7812
    %v7849 = vadd.f32 %v7101, %v7817
    %v7850 = vadd.f32 %v7102, %v7820
    %v7851 = vadd.f32 %v7103, %v7825
    %v7852 = vadd.f32 %v7104, %v7828
    %v7853 = vadd.f32 %v7105, %v7833
    %v7854 = vadd.f32 %v7106, %v7836
    %7855 = vst.msk [vmem:[%s14] sm:$0xff] %vm80, %v7839
    %7856 = vst.msk [vmem:[%s14 + $0x8] sm:$0xff] %vm80, %v7840
    %7857 = vst.msk [vmem:[%s14 + $0x10] sm:$0xff] %vm80, %v7841
    %7858 = vst.msk [vmem:[%s14 + $0x18] sm:$0xff] %vm80, %v7842
    %7859 = vst.msk [vmem:[%s14 + $0x20] sm:$0xff] %vm80, %v7843
    %7860 = vst.msk [vmem:[%s14 + $0x28] sm:$0xff] %vm80, %v7844
    %7861 = vst.msk [vmem:[%s14 + $0x30] sm:$0xff] %vm80, %v7845
    %7862 = vst.msk [vmem:[%s14 + $0x38] sm:$0xff] %vm80, %v7846
    %7863 = vst.msk [vmem:[%s14 + $0x40] sm:$0xff] %vm80, %v7847
    %7864 = vst.msk [vmem:[%s14 + $0x48] sm:$0xff] %vm80, %v7848
    %7865 = vst.msk [vmem:[%s14 + $0x50] sm:$0xff] %vm80, %v7849
    %7866 = vst.msk [vmem:[%s14 + $0x58] sm:$0xff] %vm80, %v7850
    %7867 = vst.msk [vmem:[%s14 + $0x60] sm:$0xff] %vm80, %v7851
    %7868 = vst.msk [vmem:[%s14 + $0x68] sm:$0xff] %vm80, %v7852
    %7869 = vst.msk [vmem:[%s14 + $0x70] sm:$0xff] %vm80, %v7853
    %7870 = vst.msk [vmem:[%s14 + $0x78] sm:$0xff] %vm80, %v7854
    // Predicated region
    $region62: #{tpu_custom_call.1} parent=1 // pred_check
      _
    $region63: #{tpu_custom_call.1} parent=1 // pred_check_branch
      %7872 = sbr.rel (0) target = $region65
    $region64: #{tpu_custom_call.1} parent=1 // pred_region
      _
    $region65: #{tpu_custom_call.1} parent=1 // pred_fallthru
      _
    // Predicated region
    $region66: #{tpu_custom_call.1} parent=1 // pred_check
      _
    $region67: #{tpu_custom_call.1} parent=1 // pred_check_branch
      %7874 = sbr.rel (0) target = $region69
    $region68: #{tpu_custom_call.1} parent=1 // pred_region
      _
    $region69: #{tpu_custom_call.1} parent=1 // pred_fallthru
      _
    %7875 = vsyncpa [#allocation3], 1

</llo_original>
